<compile_context>
chip_gen: v7x
topology: tpu7x:2x2x1
jax: 0.10.0
libtpu: 0.0.40
codegen_flags: <defaults>
</compile_context>

<pallas_src>
import numpy as np
import jax
import jax.numpy as jnp
from jax.experimental import pallas as pl
from jax.experimental.pallas import tpu as pltpu


def _whole_spec(shape):
    nd = len(shape)
    return pl.BlockSpec(shape, lambda i, _nd=nd: (0,) * _nd)


# --------------------------- fused forward kernel ---------------------------
def listener_kernel(x_ref, w1c_ref, b1c_ref, w2c_ref, b2c_ref,
                    gamma_ref, beta_ref, pm_ref,
                    w1f_ref, b1f_ref, w2f_ref, b2f_ref, g_ref,
                    o_ref,
                    xp1_ref, xp2_ref, p2_ref, y2s_ref, pf_ref, feat_ref):
    B, H, W, _ = x_ref.shape
    C1 = w1c_ref.shape[-1]
    C2 = w2c_ref.shape[-1]
    Hp, Wp = H // 2, W // 2
    P = B * H * W

    # ---- Conv2d(1, C1, 3, pad=1) + ReLU: in-kernel zero pad + 9 rank-1 taps ----
    xp1_ref[...] = jnp.zeros_like(xp1_ref)
    xp1_ref[:, 1:H + 1, 1:W + 1, :] = x_ref[...]
    xp1 = xp1_ref[...]
    acc1 = jnp.zeros((P, C1), jnp.float32)
    for k in range(9):                       # unrolled 3x3 taps (Cin == 1)
        dy, dx = k // 3, k % 3
        patch = xp1[:, dy:dy + H, dx:dx + W, :].reshape(P, 1)
        acc1 = acc1 + patch * w1c_ref[k]     # (P,1) * (1,C1) rank-1 update
    y1 = jnp.maximum(acc1 + b1c_ref[...], 0.0)              # (P, C1)

    # ---- Conv2d(C1, C2, 3, pad=1) + ReLU: im2col + ONE K=9*C1 MXU matmul ----
    xp2_ref[...] = jnp.zeros_like(xp2_ref)
    xp2_ref[:, 1:H + 1, 1:W + 1, :] = y1.reshape(B, H, W, C1)
    xp2 = xp2_ref[...]
    for k in range(9):                       # build (P, 9*C1) patch matrix
        dy, dx = k // 3, k % 3
        p2_ref[:, k * C1:(k + 1) * C1] = xp2[:, dy:dy + H, dx:dx + W, :].reshape(P, C1)
    y2s_ref[...] = jnp.maximum(
        jnp.dot(p2_ref[...], w2c_ref[...], preferred_element_type=jnp.float32)
        + b2c_ref[...], 0.0)                 # (P, C2), row = b*H*W + h*W + w

    # ---- MaxPool2d(2,2), fully in VMEM ----
    # W-pairs: adjacent rows -> strided sublane loads.
    ev = y2s_ref[pl.ds(0, P // 2, 2), :]
    od = y2s_ref[pl.ds(1, P // 2, 2), :]
    wmax = jnp.maximum(ev, od)               # (B*H*Wp, C2), row = b*H*Wp + h*Wp + w'
    # H-pairs: tile-aligned split (inner factor Wp == 8) + max over parity.
    wmax4 = wmax.reshape(B * Hp, 2, Wp, C2)
    m = jnp.maximum(wmax4[:, 0, :, :], wmax4[:, 1, :, :]).reshape(B * Hp * Wp, C2)

    # ---- BatchNorm2d(C2): training-mode batch statistics (biased var, as torch) ----
    mean = jnp.mean(m, axis=0, keepdims=True)
    var = jnp.mean((m - mean) ** 2, axis=0, keepdims=True)
    z = (m - mean) * jax.lax.rsqrt(var + 1e-5) * gamma_ref[...] + beta_ref[...]

    # ---- AdaptiveAvgPool2d((5,5)) as ONE block-diagonal matmul ----
    # pm_ref: (25*B, B*Hp*Wp), row p*B + b -> pooled row layout (p, b).
    pf_ref[...] = jnp.dot(pm_ref[...], z, preferred_element_type=jnp.float32)  # (25B, C2)

    # ---- flatten to FC layout in VMEM (no wrapper transpose / HBM round trip) ----
    # feat[b, p*C2 + c] = pooled[b, p, c]; fc1 weights use the same row order.
    for p in range(25):
        feat_ref[:, p * C2:(p + 1) * C2] = pf_ref[p * B:(p + 1) * B, :]

    # ---- Linear(25*C2,128) + ReLU + Dropout + Linear(128,bits) + gumbel_softmax ----
    # TODO(synk): Dropout(0.5) is stochastic train-mode only; treated as eval-mode identity.
    h = jnp.maximum(
        jnp.dot(feat_ref[...], w1f_ref[...], preferred_element_type=jnp.float32)
        + b1f_ref[...], 0.0)                                  # (B, 128)
    logits = jnp.dot(h, w2f_ref[...], preferred_element_type=jnp.float32) + b2f_ref[...]
    y = logits + g_ref[...]                  # (logits + gumbel) / tau, tau = 1
    y = y - jnp.max(y, axis=-1, keepdims=True)
    e = jnp.exp(y)
    o_ref[...] = e * pl.reciprocal(jnp.sum(e, axis=-1, keepdims=True), approx=True)


# ------------------------------- plain-JAX glue ------------------------------
def _adaptive_pool_vec(in_size, out_size):
    P = np.zeros((out_size, in_size), dtype=np.float32)
    for i in range(out_size):
        s = (i * in_size) // out_size
        e = -(-((i + 1) * in_size) // out_size)   # ceil
        P[i, s:e] = 1.0 / (e - s)
    return P


def _block_diag_pool_mat(B, Hp, Wp):
    # (25*B, B*Hp*Wp): row p*B + b pools batch b's (Hp,Wp) grid onto (5,5) cell p.
    Ph = _adaptive_pool_vec(Hp, 5)
    Pw = _adaptive_pool_vec(Wp, 5)
    pm = np.einsum("ih,jw->ijhw", Ph, Pw).reshape(25, Hp * Wp)
    blk = np.zeros((25 * B, B * Hp * Wp), np.float32)
    for b in range(B):
        for p in range(25):
            blk[p * B + b, b * Hp * Wp:(b + 1) * Hp * Wp] = pm[p]
    return jnp.asarray(blk)


def listener_forward(x_nchw, params):
    B, _, H, W = x_nchw.shape
    x = x_nchw.reshape(B, H, W, 1).astype(jnp.float32)   # NCHW (C=1) -> NHWC, metadata only
    C1 = params["conv1_w"].shape[-1]
    C2 = params["conv2_w"].shape[-1]
    bits = params["fc2_w"].shape[-1]

    args = (x,
            params["conv1_w"], params["conv1_b"],
            params["conv2_w"], params["conv2_b"],
            params["bn_gamma"], params["bn_beta"],
            params["pool_mat"],
            params["fc1_w"], params["fc1_b"],
            params["fc2_w"], params["fc2_b"],
            params["gumbel"])

    # All shapes here are kilobyte-scale, so everything runs as one grid step
    # with whole-array blocks.  If B grows, add a batch grid axis marked
    # "parallel" and tile against v7x's 32 MiB scoped VMEM.
    return pl.pallas_call(
        listener_kernel,
        grid=(1,),
        in_specs=[_whole_spec(a.shape) for a in args],
        out_specs=_whole_spec((B, bits)),
        out_shape=jax.ShapeDtypeStruct((B, bits), jnp.float32),
        scratch_shapes=[
            pltpu.VMEM((B, H + 2, W + 2, 1), jnp.float32),    # padded conv1 input
            pltpu.VMEM((B, H + 2, W + 2, C1), jnp.float32),   # padded conv2 input
            pltpu.VMEM((B * H * W, 9 * C1), jnp.float32),     # conv2 im2col patches
            pltpu.VMEM((B * H * W, C2), jnp.float32),         # conv2 output
            pltpu.VMEM((B * 25, C2), jnp.float32),            # adaptive-pool output
            pltpu.VMEM((B, 25 * C2), jnp.float32),            # flattened FC features
        ],
        compiler_params=pltpu.CompilerParams(dimension_semantics=("arbitrary",)),
    )(*args)


if __name__ == "__main__":
    bits = 8
    B, H, W = 2, 16, 16
    C1, C2 = bits * 2, bits * 4
    Hp, Wp = H // 2, W // 2

    key = jax.random.PRNGKey(0)
    ks = jax.random.split(key, 8)
    x = jax.random.normal(ks[0], (B, 1, H, W), jnp.float32)

    # Weight layouts expected by the kernel (a real torch port would permute
    # the torch tensors at trace time, which is free):
    #   conv1_w[k, 0, cout]        = torch_conv1.weight[cout, 0, k//3, k%3]
    #   conv2_w[k*C1 + cin, cout]  = torch_conv2.weight[cout, cin, k//3, k%3]
    #   fc1_w[p*C2 + c, n]         = torch_fc1.weight[n, c*25 + p]
    params = dict(
        conv1_w=0.3 * jax.random.normal(ks[1], (9, 1, C1), jnp.float32),
        conv1_b=0.01 * jnp.ones((1, C1), jnp.float32),
        conv2_w=0.1 * jax.random.normal(ks[2], (9 * C1, C2), jnp.float32),
        conv2_b=0.01 * jnp.ones((1, C2), jnp.float32),
        bn_gamma=jnp.ones((1, C2), jnp.float32),     # BatchNorm2d default init
        bn_beta=jnp.zeros((1, C2), jnp.float32),
        pool_mat=_block_diag_pool_mat(B, Hp, Wp),
        fc1_w=0.05 * jax.random.normal(ks[3], (25 * C2, 128), jnp.float32),
        fc1_b=jnp.zeros((1, 128), jnp.float32),
        fc2_w=0.1 * jax.random.normal(ks[4], (128, bits), jnp.float32),
        fc2_b=jnp.zeros((1, bits), jnp.float32),
        gumbel=jax.random.gumbel(ks[5], (B, bits), jnp.float32),  # -log(Exp(1)) noise
    )

    out = jax.block_until_ready(listener_forward(x, params))
    assert out.shape == (B, bits), out.shape
    assert bool(jnp.all(jnp.isfinite(out)))
    row_sums = jnp.sum(out, axis=-1)
    assert bool(jnp.all(jnp.abs(row_sums - 1.0) < 2e-3))   # approx reciprocal tolerance
    print("KERNEL_OK")
</pallas_src>

<mosaic_0001>
module attributes {stable_mosaic.version = 11 : i64} {
  func.func @listener_kernel(%arg0: i32, %arg1: memref<2x16x16x1xf32, #tpu.memory_space<vmem>>, %arg2: memref<9x1x16xf32, #tpu.memory_space<vmem>>, %arg3: memref<1x16xf32, #tpu.memory_space<vmem>>, %arg4: memref<144x32xf32, #tpu.memory_space<vmem>>, %arg5: memref<1x32xf32, #tpu.memory_space<vmem>>, %arg6: memref<1x32xf32, #tpu.memory_space<vmem>>, %arg7: memref<1x32xf32, #tpu.memory_space<vmem>>, %arg8: memref<50x128xf32, #tpu.memory_space<vmem>>, %arg9: memref<800x128xf32, #tpu.memory_space<vmem>>, %arg10: memref<1x128xf32, #tpu.memory_space<vmem>>, %arg11: memref<128x8xf32, #tpu.memory_space<vmem>>, %arg12: memref<1x8xf32, #tpu.memory_space<vmem>>, %arg13: memref<2x8xf32, #tpu.memory_space<vmem>>, %arg14: memref<2x8xf32, #tpu.memory_space<vmem>>, %arg15: memref<2x18x18x1xf32, #tpu.memory_space<vmem>>, %arg16: memref<2x18x18x16xf32, #tpu.memory_space<vmem>>, %arg17: memref<512x144xf32, #tpu.memory_space<vmem>>, %arg18: memref<512x32xf32, #tpu.memory_space<vmem>>, %arg19: memref<50x32xf32, #tpu.memory_space<vmem>>, %arg20: memref<2x800xf32, #tpu.memory_space<vmem>>) attributes {dimension_semantics = [#tpu.dimension_semantics<arbitrary>], iteration_bounds = array<i64: 1>, scalar_prefetch = 0 : i64, scratch_operands = 6 : i64, tpu.core_type = #tpu.core_type<tc>, window_params = [{pipeline_mode = #tpu.pipeline_mode<synchronous>, transform_indices = @transform_0, window_bounds = array<i64: 2, 16, 16, 1>}, {pipeline_mode = #tpu.pipeline_mode<synchronous>, transform_indices = @transform_1, window_bounds = array<i64: 9, 1, 16>}, {pipeline_mode = #tpu.pipeline_mode<synchronous>, transform_indices = @transform_2, window_bounds = array<i64: 1, 16>}, {pipeline_mode = #tpu.pipeline_mode<synchronous>, transform_indices = @transform_3, window_bounds = array<i64: 144, 32>}, {pipeline_mode = #tpu.pipeline_mode<synchronous>, transform_indices = @transform_4, window_bounds = array<i64: 1, 32>}, {pipeline_mode = #tpu.pipeline_mode<synchronous>, transform_indices = @transform_5, window_bounds = array<i64: 1, 32>}, {pipeline_mode = #tpu.pipeline_mode<synchronous>, transform_indices = @transform_6, window_bounds = array<i64: 1, 32>}, {pipeline_mode = #tpu.pipeline_mode<synchronous>, transform_indices = @transform_7, window_bounds = array<i64: 50, 128>}, {pipeline_mode = #tpu.pipeline_mode<synchronous>, transform_indices = @transform_8, window_bounds = array<i64: 800, 128>}, {pipeline_mode = #tpu.pipeline_mode<synchronous>, transform_indices = @transform_9, window_bounds = array<i64: 1, 128>}, {pipeline_mode = #tpu.pipeline_mode<synchronous>, transform_indices = @transform_10, window_bounds = array<i64: 128, 8>}, {pipeline_mode = #tpu.pipeline_mode<synchronous>, transform_indices = @transform_11, window_bounds = array<i64: 1, 8>}, {pipeline_mode = #tpu.pipeline_mode<synchronous>, transform_indices = @transform_12, window_bounds = array<i64: 2, 8>}, {pipeline_mode = #tpu.pipeline_mode<synchronous>, transform_indices = @transform_13, window_bounds = array<i64: 2, 8>}]} {
    %cst = arith.constant 0.000000e+00 : f32
    %0 = vector.broadcast %cst : f32 to vector<2x18x18x1xf32>
    %c0 = arith.constant 0 : index
    %c0_0 = arith.constant 0 : index
    %c0_1 = arith.constant 0 : index
    %c0_2 = arith.constant 0 : index
    %1 = vector.load %arg15[%c0, %c0_0, %c0_1, %c0_2] : memref<2x18x18x1xf32, #tpu.memory_space<vmem>>, vector<2x18x18x1xf32>
    tpu.vector_store %arg15[%c0, %c0_0, %c0_1, %c0_2], %0 {strides = array<i32>} : memref<2x18x18x1xf32, #tpu.memory_space<vmem>>, vector<2x18x18x1xf32>,
    %c0_3 = arith.constant 0 : index
    %c0_4 = arith.constant 0 : index
    %c0_5 = arith.constant 0 : index
    %c0_6 = arith.constant 0 : index
    %2 = vector.load %arg1[%c0_3, %c0_4, %c0_5, %c0_6] : memref<2x16x16x1xf32, #tpu.memory_space<vmem>>, vector<2x16x16x1xf32>
    %c0_7 = arith.constant 0 : index
    %c1 = arith.constant 1 : index
    %c1_8 = arith.constant 1 : index
    %c0_9 = arith.constant 0 : index
    %3 = vector.load %arg15[%c0_7, %c1, %c1_8, %c0_9] : memref<2x18x18x1xf32, #tpu.memory_space<vmem>>, vector<2x16x16x1xf32>
    tpu.vector_store %arg15[%c0_7, %c1, %c1_8, %c0_9], %2 {strides = array<i32>} : memref<2x18x18x1xf32, #tpu.memory_space<vmem>>, vector<2x16x16x1xf32>,
    %c0_10 = arith.constant 0 : index
    %c0_11 = arith.constant 0 : index
    %c0_12 = arith.constant 0 : index
    %c0_13 = arith.constant 0 : index
    %4 = vector.load %arg15[%c0_10, %c0_11, %c0_12, %c0_13] : memref<2x18x18x1xf32, #tpu.memory_space<vmem>>, vector<2x18x18x1xf32>
    %cst_14 = arith.constant 0.000000e+00 : f32
    %5 = vector.broadcast %cst_14 : f32 to vector<512x16xf32>
    %6 = vector.extract_strided_slice %4 {offsets = [0, 0, 0, 0], sizes = [2, 16, 16, 1], strides = [1, 1, 1, 1]} : vector<2x18x18x1xf32> to vector<2x16x16x1xf32>
    %7 = vector.shape_cast %6 : vector<2x16x16x1xf32> to vector<512x1xf32>
    %c0_15 = arith.constant 0 : index
    %c0_16 = arith.constant 0 : index
    %c0_17 = arith.constant 0 : index
    %8 = vector.load %arg2[%c0_15, %c0_16, %c0_17] : memref<9x1x16xf32, #tpu.memory_space<vmem>>, vector<1x1x16xf32>
    %9 = vector.shape_cast %8 : vector<1x1x16xf32> to vector<1x16xf32>
    %10 = vector.broadcast %7 : vector<512x1xf32> to vector<512x16xf32>
    %11 = vector.broadcast %9 : vector<1x16xf32> to vector<512x16xf32>
    %12 = arith.mulf %10, %11 : vector<512x16xf32>
    %13 = arith.addf %5, %12 : vector<512x16xf32>
    %14 = vector.extract_strided_slice %4 {offsets = [0, 0, 1, 0], sizes = [2, 16, 16, 1], strides = [1, 1, 1, 1]} : vector<2x18x18x1xf32> to vector<2x16x16x1xf32>
    %15 = vector.shape_cast %14 : vector<2x16x16x1xf32> to vector<512x1xf32>
    %c1_18 = arith.constant 1 : index
    %c0_19 = arith.constant 0 : index
    %c0_20 = arith.constant 0 : index
    %16 = vector.load %arg2[%c1_18, %c0_19, %c0_20] : memref<9x1x16xf32, #tpu.memory_space<vmem>>, vector<1x1x16xf32>
    %17 = vector.shape_cast %16 : vector<1x1x16xf32> to vector<1x16xf32>
    %18 = vector.broadcast %15 : vector<512x1xf32> to vector<512x16xf32>
    %19 = vector.broadcast %17 : vector<1x16xf32> to vector<512x16xf32>
    %20 = arith.mulf %18, %19 : vector<512x16xf32>
    %21 = arith.addf %13, %20 : vector<512x16xf32>
    %22 = vector.extract_strided_slice %4 {offsets = [0, 0, 2, 0], sizes = [2, 16, 16, 1], strides = [1, 1, 1, 1]} : vector<2x18x18x1xf32> to vector<2x16x16x1xf32>
    %23 = vector.shape_cast %22 : vector<2x16x16x1xf32> to vector<512x1xf32>
    %c2 = arith.constant 2 : index
    %c0_21 = arith.constant 0 : index
    %c0_22 = arith.constant 0 : index
    %24 = vector.load %arg2[%c2, %c0_21, %c0_22] : memref<9x1x16xf32, #tpu.memory_space<vmem>>, vector<1x1x16xf32>
    %25 = vector.shape_cast %24 : vector<1x1x16xf32> to vector<1x16xf32>
    %26 = vector.broadcast %23 : vector<512x1xf32> to vector<512x16xf32>
    %27 = vector.broadcast %25 : vector<1x16xf32> to vector<512x16xf32>
    %28 = arith.mulf %26, %27 : vector<512x16xf32>
    %29 = arith.addf %21, %28 : vector<512x16xf32>
    %30 = vector.extract_strided_slice %4 {offsets = [0, 1, 0, 0], sizes = [2, 16, 16, 1], strides = [1, 1, 1, 1]} : vector<2x18x18x1xf32> to vector<2x16x16x1xf32>
    %31 = vector.shape_cast %30 : vector<2x16x16x1xf32> to vector<512x1xf32>
    %c3 = arith.constant 3 : index
    %c0_23 = arith.constant 0 : index
    %c0_24 = arith.constant 0 : index
    %32 = vector.load %arg2[%c3, %c0_23, %c0_24] : memref<9x1x16xf32, #tpu.memory_space<vmem>>, vector<1x1x16xf32>
    %33 = vector.shape_cast %32 : vector<1x1x16xf32> to vector<1x16xf32>
    %34 = vector.broadcast %31 : vector<512x1xf32> to vector<512x16xf32>
    %35 = vector.broadcast %33 : vector<1x16xf32> to vector<512x16xf32>
    %36 = arith.mulf %34, %35 : vector<512x16xf32>
    %37 = arith.addf %29, %36 : vector<512x16xf32>
    %38 = vector.extract_strided_slice %4 {offsets = [0, 1, 1, 0], sizes = [2, 16, 16, 1], strides = [1, 1, 1, 1]} : vector<2x18x18x1xf32> to vector<2x16x16x1xf32>
    %39 = vector.shape_cast %38 : vector<2x16x16x1xf32> to vector<512x1xf32>
    %c4 = arith.constant 4 : index
    %c0_25 = arith.constant 0 : index
    %c0_26 = arith.constant 0 : index
    %40 = vector.load %arg2[%c4, %c0_25, %c0_26] : memref<9x1x16xf32, #tpu.memory_space<vmem>>, vector<1x1x16xf32>
    %41 = vector.shape_cast %40 : vector<1x1x16xf32> to vector<1x16xf32>
    %42 = vector.broadcast %39 : vector<512x1xf32> to vector<512x16xf32>
    %43 = vector.broadcast %41 : vector<1x16xf32> to vector<512x16xf32>
    %44 = arith.mulf %42, %43 : vector<512x16xf32>
    %45 = arith.addf %37, %44 : vector<512x16xf32>
    %46 = vector.extract_strided_slice %4 {offsets = [0, 1, 2, 0], sizes = [2, 16, 16, 1], strides = [1, 1, 1, 1]} : vector<2x18x18x1xf32> to vector<2x16x16x1xf32>
    %47 = vector.shape_cast %46 : vector<2x16x16x1xf32> to vector<512x1xf32>
    %c5 = arith.constant 5 : index
    %c0_27 = arith.constant 0 : index
    %c0_28 = arith.constant 0 : index
    %48 = vector.load %arg2[%c5, %c0_27, %c0_28] : memref<9x1x16xf32, #tpu.memory_space<vmem>>, vector<1x1x16xf32>
    %49 = vector.shape_cast %48 : vector<1x1x16xf32> to vector<1x16xf32>
    %50 = vector.broadcast %47 : vector<512x1xf32> to vector<512x16xf32>
    %51 = vector.broadcast %49 : vector<1x16xf32> to vector<512x16xf32>
    %52 = arith.mulf %50, %51 : vector<512x16xf32>
    %53 = arith.addf %45, %52 : vector<512x16xf32>
    %54 = vector.extract_strided_slice %4 {offsets = [0, 2, 0, 0], sizes = [2, 16, 16, 1], strides = [1, 1, 1, 1]} : vector<2x18x18x1xf32> to vector<2x16x16x1xf32>
    %55 = vector.shape_cast %54 : vector<2x16x16x1xf32> to vector<512x1xf32>
    %c6 = arith.constant 6 : index
    %c0_29 = arith.constant 0 : index
    %c0_30 = arith.constant 0 : index
    %56 = vector.load %arg2[%c6, %c0_29, %c0_30] : memref<9x1x16xf32, #tpu.memory_space<vmem>>, vector<1x1x16xf32>
    %57 = vector.shape_cast %56 : vector<1x1x16xf32> to vector<1x16xf32>
    %58 = vector.broadcast %55 : vector<512x1xf32> to vector<512x16xf32>
    %59 = vector.broadcast %57 : vector<1x16xf32> to vector<512x16xf32>
    %60 = arith.mulf %58, %59 : vector<512x16xf32>
    %61 = arith.addf %53, %60 : vector<512x16xf32>
    %62 = vector.extract_strided_slice %4 {offsets = [0, 2, 1, 0], sizes = [2, 16, 16, 1], strides = [1, 1, 1, 1]} : vector<2x18x18x1xf32> to vector<2x16x16x1xf32>
    %63 = vector.shape_cast %62 : vector<2x16x16x1xf32> to vector<512x1xf32>
    %c7 = arith.constant 7 : index
    %c0_31 = arith.constant 0 : index
    %c0_32 = arith.constant 0 : index
    %64 = vector.load %arg2[%c7, %c0_31, %c0_32] : memref<9x1x16xf32, #tpu.memory_space<vmem>>, vector<1x1x16xf32>
    %65 = vector.shape_cast %64 : vector<1x1x16xf32> to vector<1x16xf32>
    %66 = vector.broadcast %63 : vector<512x1xf32> to vector<512x16xf32>
    %67 = vector.broadcast %65 : vector<1x16xf32> to vector<512x16xf32>
    %68 = arith.mulf %66, %67 : vector<512x16xf32>
    %69 = arith.addf %61, %68 : vector<512x16xf32>
    %70 = vector.extract_strided_slice %4 {offsets = [0, 2, 2, 0], sizes = [2, 16, 16, 1], strides = [1, 1, 1, 1]} : vector<2x18x18x1xf32> to vector<2x16x16x1xf32>
    %71 = vector.shape_cast %70 : vector<2x16x16x1xf32> to vector<512x1xf32>
    %c8 = arith.constant 8 : index
    %c0_33 = arith.constant 0 : index
    %c0_34 = arith.constant 0 : index
    %72 = vector.load %arg2[%c8, %c0_33, %c0_34] : memref<9x1x16xf32, #tpu.memory_space<vmem>>, vector<1x1x16xf32>
    %73 = vector.shape_cast %72 : vector<1x1x16xf32> to vector<1x16xf32>
    %74 = vector.broadcast %71 : vector<512x1xf32> to vector<512x16xf32>
    %75 = vector.broadcast %73 : vector<1x16xf32> to vector<512x16xf32>
    %76 = arith.mulf %74, %75 : vector<512x16xf32>
    %77 = arith.addf %69, %76 : vector<512x16xf32>
    %c0_35 = arith.constant 0 : index
    %c0_36 = arith.constant 0 : index
    %78 = vector.load %arg3[%c0_35, %c0_36] : memref<1x16xf32, #tpu.memory_space<vmem>>, vector<1x16xf32>
    %79 = vector.broadcast %78 : vector<1x16xf32> to vector<512x16xf32>
    %80 = arith.addf %77, %79 : vector<512x16xf32>
    %cst_37 = arith.constant 0.000000e+00 : f32
    %81 = vector.broadcast %cst_37 : f32 to vector<512x16xf32>
    %82 = arith.maximumf %80, %81 : vector<512x16xf32>
    %cst_38 = arith.constant 0.000000e+00 : f32
    %83 = vector.broadcast %cst_38 : f32 to vector<2x18x18x16xf32>
    %c0_39 = arith.constant 0 : index
    %c0_40 = arith.constant 0 : index
    %c0_41 = arith.constant 0 : index
    %c0_42 = arith.constant 0 : index
    %84 = vector.load %arg16[%c0_39, %c0_40, %c0_41, %c0_42] : memref<2x18x18x16xf32, #tpu.memory_space<vmem>>, vector<2x18x18x16xf32>
    tpu.vector_store %arg16[%c0_39, %c0_40, %c0_41, %c0_42], %83 {strides = array<i32>} : memref<2x18x18x16xf32, #tpu.memory_space<vmem>>, vector<2x18x18x16xf32>,
    %85 = vector.shape_cast %82 : vector<512x16xf32> to vector<2x16x16x16xf32>
    %c0_43 = arith.constant 0 : index
    %c1_44 = arith.constant 1 : index
    %c1_45 = arith.constant 1 : index
    %c0_46 = arith.constant 0 : index
    %86 = vector.load %arg16[%c0_43, %c1_44, %c1_45, %c0_46] : memref<2x18x18x16xf32, #tpu.memory_space<vmem>>, vector<2x16x16x16xf32>
    tpu.vector_store %arg16[%c0_43, %c1_44, %c1_45, %c0_46], %85 {strides = array<i32>} : memref<2x18x18x16xf32, #tpu.memory_space<vmem>>, vector<2x16x16x16xf32>,
    %c0_47 = arith.constant 0 : index
    %c0_48 = arith.constant 0 : index
    %c0_49 = arith.constant 0 : index
    %c0_50 = arith.constant 0 : index
    %87 = vector.load %arg16[%c0_47, %c0_48, %c0_49, %c0_50] : memref<2x18x18x16xf32, #tpu.memory_space<vmem>>, vector<2x18x18x16xf32>
    %88 = vector.extract_strided_slice %87 {offsets = [0, 0, 0, 0], sizes = [2, 16, 16, 16], strides = [1, 1, 1, 1]} : vector<2x18x18x16xf32> to vector<2x16x16x16xf32>
    %89 = vector.shape_cast %88 : vector<2x16x16x16xf32> to vector<512x16xf32>
    %c0_51 = arith.constant 0 : index
    %c0_52 = arith.constant 0 : index
    %90 = vector.load %arg17[%c0_51, %c0_52] : memref<512x144xf32, #tpu.memory_space<vmem>>, vector<512x16xf32>
    tpu.vector_store %arg17[%c0_51, %c0_52], %89 {strides = array<i32>} : memref<512x144xf32, #tpu.memory_space<vmem>>, vector<512x16xf32>,
    %91 = vector.extract_strided_slice %87 {offsets = [0, 0, 1, 0], sizes = [2, 16, 16, 16], strides = [1, 1, 1, 1]} : vector<2x18x18x16xf32> to vector<2x16x16x16xf32>
    %92 = vector.shape_cast %91 : vector<2x16x16x16xf32> to vector<512x16xf32>
    %c0_53 = arith.constant 0 : index
    %c16 = arith.constant 16 : index
    %93 = vector.load %arg17[%c0_53, %c16] : memref<512x144xf32, #tpu.memory_space<vmem>>, vector<512x16xf32>
    tpu.vector_store %arg17[%c0_53, %c16], %92 {strides = array<i32>} : memref<512x144xf32, #tpu.memory_space<vmem>>, vector<512x16xf32>,
    %94 = vector.extract_strided_slice %87 {offsets = [0, 0, 2, 0], sizes = [2, 16, 16, 16], strides = [1, 1, 1, 1]} : vector<2x18x18x16xf32> to vector<2x16x16x16xf32>
    %95 = vector.shape_cast %94 : vector<2x16x16x16xf32> to vector<512x16xf32>
    %c0_54 = arith.constant 0 : index
    %c32 = arith.constant 32 : index
    %96 = vector.load %arg17[%c0_54, %c32] : memref<512x144xf32, #tpu.memory_space<vmem>>, vector<512x16xf32>
    tpu.vector_store %arg17[%c0_54, %c32], %95 {strides = array<i32>} : memref<512x144xf32, #tpu.memory_space<vmem>>, vector<512x16xf32>,
    %97 = vector.extract_strided_slice %87 {offsets = [0, 1, 0, 0], sizes = [2, 16, 16, 16], strides = [1, 1, 1, 1]} : vector<2x18x18x16xf32> to vector<2x16x16x16xf32>
    %98 = vector.shape_cast %97 : vector<2x16x16x16xf32> to vector<512x16xf32>
    %c0_55 = arith.constant 0 : index
    %c48 = arith.constant 48 : index
    %99 = vector.load %arg17[%c0_55, %c48] : memref<512x144xf32, #tpu.memory_space<vmem>>, vector<512x16xf32>
    tpu.vector_store %arg17[%c0_55, %c48], %98 {strides = array<i32>} : memref<512x144xf32, #tpu.memory_space<vmem>>, vector<512x16xf32>,
    %100 = vector.extract_strided_slice %87 {offsets = [0, 1, 1, 0], sizes = [2, 16, 16, 16], strides = [1, 1, 1, 1]} : vector<2x18x18x16xf32> to vector<2x16x16x16xf32>
    %101 = vector.shape_cast %100 : vector<2x16x16x16xf32> to vector<512x16xf32>
    %c0_56 = arith.constant 0 : index
    %c64 = arith.constant 64 : index
    %102 = vector.load %arg17[%c0_56, %c64] : memref<512x144xf32, #tpu.memory_space<vmem>>, vector<512x16xf32>
    tpu.vector_store %arg17[%c0_56, %c64], %101 {strides = array<i32>} : memref<512x144xf32, #tpu.memory_space<vmem>>, vector<512x16xf32>,
    %103 = vector.extract_strided_slice %87 {offsets = [0, 1, 2, 0], sizes = [2, 16, 16, 16], strides = [1, 1, 1, 1]} : vector<2x18x18x16xf32> to vector<2x16x16x16xf32>
    %104 = vector.shape_cast %103 : vector<2x16x16x16xf32> to vector<512x16xf32>
    %c0_57 = arith.constant 0 : index
    %c80 = arith.constant 80 : index
    %105 = vector.load %arg17[%c0_57, %c80] : memref<512x144xf32, #tpu.memory_space<vmem>>, vector<512x16xf32>
    tpu.vector_store %arg17[%c0_57, %c80], %104 {strides = array<i32>} : memref<512x144xf32, #tpu.memory_space<vmem>>, vector<512x16xf32>,
    %106 = vector.extract_strided_slice %87 {offsets = [0, 2, 0, 0], sizes = [2, 16, 16, 16], strides = [1, 1, 1, 1]} : vector<2x18x18x16xf32> to vector<2x16x16x16xf32>
    %107 = vector.shape_cast %106 : vector<2x16x16x16xf32> to vector<512x16xf32>
    %c0_58 = arith.constant 0 : index
    %c96 = arith.constant 96 : index
    %108 = vector.load %arg17[%c0_58, %c96] : memref<512x144xf32, #tpu.memory_space<vmem>>, vector<512x16xf32>
    tpu.vector_store %arg17[%c0_58, %c96], %107 {strides = array<i32>} : memref<512x144xf32, #tpu.memory_space<vmem>>, vector<512x16xf32>,
    %109 = vector.extract_strided_slice %87 {offsets = [0, 2, 1, 0], sizes = [2, 16, 16, 16], strides = [1, 1, 1, 1]} : vector<2x18x18x16xf32> to vector<2x16x16x16xf32>
    %110 = vector.shape_cast %109 : vector<2x16x16x16xf32> to vector<512x16xf32>
    %c0_59 = arith.constant 0 : index
    %c112 = arith.constant 112 : index
    %111 = vector.load %arg17[%c0_59, %c112] : memref<512x144xf32, #tpu.memory_space<vmem>>, vector<512x16xf32>
    tpu.vector_store %arg17[%c0_59, %c112], %110 {strides = array<i32>} : memref<512x144xf32, #tpu.memory_space<vmem>>, vector<512x16xf32>,
    %112 = vector.extract_strided_slice %87 {offsets = [0, 2, 2, 0], sizes = [2, 16, 16, 16], strides = [1, 1, 1, 1]} : vector<2x18x18x16xf32> to vector<2x16x16x16xf32>
    %113 = vector.shape_cast %112 : vector<2x16x16x16xf32> to vector<512x16xf32>
    %c0_60 = arith.constant 0 : index
    %c128 = arith.constant 128 : index
    %114 = vector.load %arg17[%c0_60, %c128] : memref<512x144xf32, #tpu.memory_space<vmem>>, vector<512x16xf32>
    tpu.vector_store %arg17[%c0_60, %c128], %113 {strides = array<i32>} : memref<512x144xf32, #tpu.memory_space<vmem>>, vector<512x16xf32>,
    %c0_61 = arith.constant 0 : index
    %c0_62 = arith.constant 0 : index
    %115 = vector.load %arg17[%c0_61, %c0_62] : memref<512x144xf32, #tpu.memory_space<vmem>>, vector<512x144xf32>
    %c0_63 = arith.constant 0 : index
    %c0_64 = arith.constant 0 : index
    %116 = vector.load %arg4[%c0_63, %c0_64] : memref<144x32xf32, #tpu.memory_space<vmem>>, vector<144x32xf32>
    %cst_65 = arith.constant dense<0.000000e+00> : vector<512x32xf32>
    %117 = tpu.matmul %115, %116, %cst_65 {dimension_numbers = #tpu.dot_dimension_numbers<[1], [0], [0], [1], [0, 0, 1, 1], [], []>} : vector<512x144xf32>, vector<144x32xf32>, vector<512x32xf32> -> vector<512x32xf32>
    %c0_66 = arith.constant 0 : index
    %c0_67 = arith.constant 0 : index
    %118 = vector.load %arg5[%c0_66, %c0_67] : memref<1x32xf32, #tpu.memory_space<vmem>>, vector<1x32xf32>
    %119 = vector.broadcast %118 : vector<1x32xf32> to vector<512x32xf32>
    %120 = arith.addf %117, %119 : vector<512x32xf32>
    %cst_68 = arith.constant 0.000000e+00 : f32
    %121 = vector.broadcast %cst_68 : f32 to vector<512x32xf32>
    %122 = arith.maximumf %120, %121 : vector<512x32xf32>
    %c0_69 = arith.constant 0 : index
    %c0_70 = arith.constant 0 : index
    %123 = vector.load %arg18[%c0_69, %c0_70] : memref<512x32xf32, #tpu.memory_space<vmem>>, vector<512x32xf32>
    tpu.vector_store %arg18[%c0_69, %c0_70], %122 {strides = array<i32>} : memref<512x32xf32, #tpu.memory_space<vmem>>, vector<512x32xf32>,
    %c0_71 = arith.constant 0 : index
    %c0_72 = arith.constant 0 : index
    %124 = tpu.strided_load %arg18[%c0_71, %c0_72] {strides = array<i32: 2, 1>} : memref<512x32xf32, #tpu.memory_space<vmem>>, vector<256x32xf32>
    %c1_73 = arith.constant 1 : index
    %c0_74 = arith.constant 0 : index
    %125 = tpu.strided_load %arg18[%c1_73, %c0_74] {strides = array<i32: 2, 1>} : memref<512x32xf32, #tpu.memory_space<vmem>>, vector<256x32xf32>
    %126 = arith.maximumf %124, %125 : vector<256x32xf32>
    %127 = vector.shape_cast %126 : vector<256x32xf32> to vector<16x2x8x32xf32>
    %128 = vector.extract_strided_slice %127 {offsets = [0, 0, 0, 0], sizes = [16, 1, 8, 32], strides = [1, 1, 1, 1]} : vector<16x2x8x32xf32> to vector<16x1x8x32xf32>
    %129 = vector.shape_cast %128 : vector<16x1x8x32xf32> to vector<16x8x32xf32>
    %130 = vector.extract_strided_slice %127 {offsets = [0, 1, 0, 0], sizes = [16, 1, 8, 32], strides = [1, 1, 1, 1]} : vector<16x2x8x32xf32> to vector<16x1x8x32xf32>
    %131 = vector.shape_cast %130 : vector<16x1x8x32xf32> to vector<16x8x32xf32>
    %132 = arith.maximumf %129, %131 : vector<16x8x32xf32>
    %133 = vector.shape_cast %132 : vector<16x8x32xf32> to vector<128x32xf32>
    %cst_75 = arith.constant dense<0.000000e+00> : vector<32xf32>
    %134 = vector.multi_reduction <add>, %133, %cst_75 [0] : vector<128x32xf32> to vector<32xf32>
    %135 = vector.shape_cast %134 : vector<32xf32> to vector<1x32xf32>
    %cst_76 = arith.constant 1.280000e+02 : f32
    %136 = vector.broadcast %cst_76 : f32 to vector<1x32xf32>
    %137 = arith.divf %135, %136 : vector<1x32xf32>
    %138 = vector.broadcast %137 : vector<1x32xf32> to vector<128x32xf32>
    %139 = arith.subf %133, %138 : vector<128x32xf32>
    %140 = arith.mulf %139, %139 : vector<128x32xf32>
    %cst_77 = arith.constant dense<0.000000e+00> : vector<32xf32>
    %141 = vector.multi_reduction <add>, %140, %cst_77 [0] : vector<128x32xf32> to vector<32xf32>
    %142 = vector.shape_cast %141 : vector<32xf32> to vector<1x32xf32>
    %cst_78 = arith.constant 1.280000e+02 : f32
    %143 = vector.broadcast %cst_78 : f32 to vector<1x32xf32>
    %144 = arith.divf %142, %143 : vector<1x32xf32>
    %145 = vector.broadcast %137 : vector<1x32xf32> to vector<128x32xf32>
    %146 = arith.subf %133, %145 : vector<128x32xf32>
    %cst_79 = arith.constant 9.99999974E-6 : f32
    %147 = vector.broadcast %cst_79 : f32 to vector<1x32xf32>
    %148 = arith.addf %144, %147 : vector<1x32xf32>
    %149 = math.rsqrt %148 : vector<1x32xf32>
    %150 = vector.broadcast %149 : vector<1x32xf32> to vector<128x32xf32>
    %151 = arith.mulf %146, %150 : vector<128x32xf32>
    %c0_80 = arith.constant 0 : index
    %c0_81 = arith.constant 0 : index
    %152 = vector.load %arg6[%c0_80, %c0_81] : memref<1x32xf32, #tpu.memory_space<vmem>>, vector<1x32xf32>
    %153 = vector.broadcast %152 : vector<1x32xf32> to vector<128x32xf32>
    %154 = arith.mulf %151, %153 : vector<128x32xf32>
    %c0_82 = arith.constant 0 : index
    %c0_83 = arith.constant 0 : index
    %155 = vector.load %arg7[%c0_82, %c0_83] : memref<1x32xf32, #tpu.memory_space<vmem>>, vector<1x32xf32>
    %156 = vector.broadcast %155 : vector<1x32xf32> to vector<128x32xf32>
    %157 = arith.addf %154, %156 : vector<128x32xf32>
    %c0_84 = arith.constant 0 : index
    %c0_85 = arith.constant 0 : index
    %158 = vector.load %arg8[%c0_84, %c0_85] : memref<50x128xf32, #tpu.memory_space<vmem>>, vector<50x128xf32>
    %cst_86 = arith.constant dense<0.000000e+00> : vector<50x32xf32>
    %159 = tpu.matmul %158, %157, %cst_86 {dimension_numbers = #tpu.dot_dimension_numbers<[1], [0], [0], [1], [0, 0, 1, 1], [], []>} : vector<50x128xf32>, vector<128x32xf32>, vector<50x32xf32> -> vector<50x32xf32>
    %c0_87 = arith.constant 0 : index
    %c0_88 = arith.constant 0 : index
    %160 = vector.load %arg19[%c0_87, %c0_88] : memref<50x32xf32, #tpu.memory_space<vmem>>, vector<50x32xf32>
    tpu.vector_store %arg19[%c0_87, %c0_88], %159 {strides = array<i32>} : memref<50x32xf32, #tpu.memory_space<vmem>>, vector<50x32xf32>,
    %c0_89 = arith.constant 0 : index
    %c0_90 = arith.constant 0 : index
    %161 = vector.load %arg19[%c0_89, %c0_90] : memref<50x32xf32, #tpu.memory_space<vmem>>, vector<2x32xf32>
    %c0_91 = arith.constant 0 : index
    %c0_92 = arith.constant 0 : index
    %162 = vector.load %arg20[%c0_91, %c0_92] : memref<2x800xf32, #tpu.memory_space<vmem>>, vector<2x32xf32>
    tpu.vector_store %arg20[%c0_91, %c0_92], %161 {strides = array<i32>} : memref<2x800xf32, #tpu.memory_space<vmem>>, vector<2x32xf32>,
    %c2_93 = arith.constant 2 : index
    %c0_94 = arith.constant 0 : index
    %163 = vector.load %arg19[%c2_93, %c0_94] : memref<50x32xf32, #tpu.memory_space<vmem>>, vector<2x32xf32>
    %c0_95 = arith.constant 0 : index
    %c32_96 = arith.constant 32 : index
    %164 = vector.load %arg20[%c0_95, %c32_96] : memref<2x800xf32, #tpu.memory_space<vmem>>, vector<2x32xf32>
    tpu.vector_store %arg20[%c0_95, %c32_96], %163 {strides = array<i32>} : memref<2x800xf32, #tpu.memory_space<vmem>>, vector<2x32xf32>,
    %c4_97 = arith.constant 4 : index
    %c0_98 = arith.constant 0 : index
    %165 = vector.load %arg19[%c4_97, %c0_98] : memref<50x32xf32, #tpu.memory_space<vmem>>, vector<2x32xf32>
    %c0_99 = arith.constant 0 : index
    %c64_100 = arith.constant 64 : index
    %166 = vector.load %arg20[%c0_99, %c64_100] : memref<2x800xf32, #tpu.memory_space<vmem>>, vector<2x32xf32>
    tpu.vector_store %arg20[%c0_99, %c64_100], %165 {strides = array<i32>} : memref<2x800xf32, #tpu.memory_space<vmem>>, vector<2x32xf32>,
    %c6_101 = arith.constant 6 : index
    %c0_102 = arith.constant 0 : index
    %167 = vector.load %arg19[%c6_101, %c0_102] : memref<50x32xf32, #tpu.memory_space<vmem>>, vector<2x32xf32>
    %c0_103 = arith.constant 0 : index
    %c96_104 = arith.constant 96 : index
    %168 = vector.load %arg20[%c0_103, %c96_104] : memref<2x800xf32, #tpu.memory_space<vmem>>, vector<2x32xf32>
    tpu.vector_store %arg20[%c0_103, %c96_104], %167 {strides = array<i32>} : memref<2x800xf32, #tpu.memory_space<vmem>>, vector<2x32xf32>,
    %c8_105 = arith.constant 8 : index
    %c0_106 = arith.constant 0 : index
    %169 = vector.load %arg19[%c8_105, %c0_106] : memref<50x32xf32, #tpu.memory_space<vmem>>, vector<2x32xf32>
    %c0_107 = arith.constant 0 : index
    %c128_108 = arith.constant 128 : index
    %170 = vector.load %arg20[%c0_107, %c128_108] : memref<2x800xf32, #tpu.memory_space<vmem>>, vector<2x32xf32>
    tpu.vector_store %arg20[%c0_107, %c128_108], %169 {strides = array<i32>} : memref<2x800xf32, #tpu.memory_space<vmem>>, vector<2x32xf32>,
    %c10 = arith.constant 10 : index
    %c0_109 = arith.constant 0 : index
    %171 = vector.load %arg19[%c10, %c0_109] : memref<50x32xf32, #tpu.memory_space<vmem>>, vector<2x32xf32>
    %c0_110 = arith.constant 0 : index
    %c160 = arith.constant 160 : index
    %172 = vector.load %arg20[%c0_110, %c160] : memref<2x800xf32, #tpu.memory_space<vmem>>, vector<2x32xf32>
    tpu.vector_store %arg20[%c0_110, %c160], %171 {strides = array<i32>} : memref<2x800xf32, #tpu.memory_space<vmem>>, vector<2x32xf32>,
    %c12 = arith.constant 12 : index
    %c0_111 = arith.constant 0 : index
    %173 = vector.load %arg19[%c12, %c0_111] : memref<50x32xf32, #tpu.memory_space<vmem>>, vector<2x32xf32>
    %c0_112 = arith.constant 0 : index
    %c192 = arith.constant 192 : index
    %174 = vector.load %arg20[%c0_112, %c192] : memref<2x800xf32, #tpu.memory_space<vmem>>, vector<2x32xf32>
    tpu.vector_store %arg20[%c0_112, %c192], %173 {strides = array<i32>} : memref<2x800xf32, #tpu.memory_space<vmem>>, vector<2x32xf32>,
    %c14 = arith.constant 14 : index
    %c0_113 = arith.constant 0 : index
    %175 = vector.load %arg19[%c14, %c0_113] : memref<50x32xf32, #tpu.memory_space<vmem>>, vector<2x32xf32>
    %c0_114 = arith.constant 0 : index
    %c224 = arith.constant 224 : index
    %176 = vector.load %arg20[%c0_114, %c224] : memref<2x800xf32, #tpu.memory_space<vmem>>, vector<2x32xf32>
    tpu.vector_store %arg20[%c0_114, %c224], %175 {strides = array<i32>} : memref<2x800xf32, #tpu.memory_space<vmem>>, vector<2x32xf32>,
    %c16_115 = arith.constant 16 : index
    %c0_116 = arith.constant 0 : index
    %177 = vector.load %arg19[%c16_115, %c0_116] : memref<50x32xf32, #tpu.memory_space<vmem>>, vector<2x32xf32>
    %c0_117 = arith.constant 0 : index
    %c256 = arith.constant 256 : index
    %178 = vector.load %arg20[%c0_117, %c256] : memref<2x800xf32, #tpu.memory_space<vmem>>, vector<2x32xf32>
    tpu.vector_store %arg20[%c0_117, %c256], %177 {strides = array<i32>} : memref<2x800xf32, #tpu.memory_space<vmem>>, vector<2x32xf32>,
    %c18 = arith.constant 18 : index
    %c0_118 = arith.constant 0 : index
    %179 = vector.load %arg19[%c18, %c0_118] : memref<50x32xf32, #tpu.memory_space<vmem>>, vector<2x32xf32>
    %c0_119 = arith.constant 0 : index
    %c288 = arith.constant 288 : index
    %180 = vector.load %arg20[%c0_119, %c288] : memref<2x800xf32, #tpu.memory_space<vmem>>, vector<2x32xf32>
    tpu.vector_store %arg20[%c0_119, %c288], %179 {strides = array<i32>} : memref<2x800xf32, #tpu.memory_space<vmem>>, vector<2x32xf32>,
    %c20 = arith.constant 20 : index
    %c0_120 = arith.constant 0 : index
    %181 = vector.load %arg19[%c20, %c0_120] : memref<50x32xf32, #tpu.memory_space<vmem>>, vector<2x32xf32>
    %c0_121 = arith.constant 0 : index
    %c320 = arith.constant 320 : index
    %182 = vector.load %arg20[%c0_121, %c320] : memref<2x800xf32, #tpu.memory_space<vmem>>, vector<2x32xf32>
    tpu.vector_store %arg20[%c0_121, %c320], %181 {strides = array<i32>} : memref<2x800xf32, #tpu.memory_space<vmem>>, vector<2x32xf32>,
    %c22 = arith.constant 22 : index
    %c0_122 = arith.constant 0 : index
    %183 = vector.load %arg19[%c22, %c0_122] : memref<50x32xf32, #tpu.memory_space<vmem>>, vector<2x32xf32>
    %c0_123 = arith.constant 0 : index
    %c352 = arith.constant 352 : index
    %184 = vector.load %arg20[%c0_123, %c352] : memref<2x800xf32, #tpu.memory_space<vmem>>, vector<2x32xf32>
    tpu.vector_store %arg20[%c0_123, %c352], %183 {strides = array<i32>} : memref<2x800xf32, #tpu.memory_space<vmem>>, vector<2x32xf32>,
    %c24 = arith.constant 24 : index
    %c0_124 = arith.constant 0 : index
    %185 = vector.load %arg19[%c24, %c0_124] : memref<50x32xf32, #tpu.memory_space<vmem>>, vector<2x32xf32>
    %c0_125 = arith.constant 0 : index
    %c384 = arith.constant 384 : index
    %186 = vector.load %arg20[%c0_125, %c384] : memref<2x800xf32, #tpu.memory_space<vmem>>, vector<2x32xf32>
    tpu.vector_store %arg20[%c0_125, %c384], %185 {strides = array<i32>} : memref<2x800xf32, #tpu.memory_space<vmem>>, vector<2x32xf32>,
    %c26 = arith.constant 26 : index
    %c0_126 = arith.constant 0 : index
    %187 = vector.load %arg19[%c26, %c0_126] : memref<50x32xf32, #tpu.memory_space<vmem>>, vector<2x32xf32>
    %c0_127 = arith.constant 0 : index
    %c416 = arith.constant 416 : index
    %188 = vector.load %arg20[%c0_127, %c416] : memref<2x800xf32, #tpu.memory_space<vmem>>, vector<2x32xf32>
    tpu.vector_store %arg20[%c0_127, %c416], %187 {strides = array<i32>} : memref<2x800xf32, #tpu.memory_space<vmem>>, vector<2x32xf32>,
    %c28 = arith.constant 28 : index
    %c0_128 = arith.constant 0 : index
    %189 = vector.load %arg19[%c28, %c0_128] : memref<50x32xf32, #tpu.memory_space<vmem>>, vector<2x32xf32>
    %c0_129 = arith.constant 0 : index
    %c448 = arith.constant 448 : index
    %190 = vector.load %arg20[%c0_129, %c448] : memref<2x800xf32, #tpu.memory_space<vmem>>, vector<2x32xf32>
    tpu.vector_store %arg20[%c0_129, %c448], %189 {strides = array<i32>} : memref<2x800xf32, #tpu.memory_space<vmem>>, vector<2x32xf32>,
    %c30 = arith.constant 30 : index
    %c0_130 = arith.constant 0 : index
    %191 = vector.load %arg19[%c30, %c0_130] : memref<50x32xf32, #tpu.memory_space<vmem>>, vector<2x32xf32>
    %c0_131 = arith.constant 0 : index
    %c480 = arith.constant 480 : index
    %192 = vector.load %arg20[%c0_131, %c480] : memref<2x800xf32, #tpu.memory_space<vmem>>, vector<2x32xf32>
    tpu.vector_store %arg20[%c0_131, %c480], %191 {strides = array<i32>} : memref<2x800xf32, #tpu.memory_space<vmem>>, vector<2x32xf32>,
    %c32_132 = arith.constant 32 : index
    %c0_133 = arith.constant 0 : index
    %193 = vector.load %arg19[%c32_132, %c0_133] : memref<50x32xf32, #tpu.memory_space<vmem>>, vector<2x32xf32>
    %c0_134 = arith.constant 0 : index
    %c512 = arith.constant 512 : index
    %194 = vector.load %arg20[%c0_134, %c512] : memref<2x800xf32, #tpu.memory_space<vmem>>, vector<2x32xf32>
    tpu.vector_store %arg20[%c0_134, %c512], %193 {strides = array<i32>} : memref<2x800xf32, #tpu.memory_space<vmem>>, vector<2x32xf32>,
    %c34 = arith.constant 34 : index
    %c0_135 = arith.constant 0 : index
    %195 = vector.load %arg19[%c34, %c0_135] : memref<50x32xf32, #tpu.memory_space<vmem>>, vector<2x32xf32>
    %c0_136 = arith.constant 0 : index
    %c544 = arith.constant 544 : index
    %196 = vector.load %arg20[%c0_136, %c544] : memref<2x800xf32, #tpu.memory_space<vmem>>, vector<2x32xf32>
    tpu.vector_store %arg20[%c0_136, %c544], %195 {strides = array<i32>} : memref<2x800xf32, #tpu.memory_space<vmem>>, vector<2x32xf32>,
    %c36 = arith.constant 36 : index
    %c0_137 = arith.constant 0 : index
    %197 = vector.load %arg19[%c36, %c0_137] : memref<50x32xf32, #tpu.memory_space<vmem>>, vector<2x32xf32>
    %c0_138 = arith.constant 0 : index
    %c576 = arith.constant 576 : index
    %198 = vector.load %arg20[%c0_138, %c576] : memref<2x800xf32, #tpu.memory_space<vmem>>, vector<2x32xf32>
    tpu.vector_store %arg20[%c0_138, %c576], %197 {strides = array<i32>} : memref<2x800xf32, #tpu.memory_space<vmem>>, vector<2x32xf32>,
    %c38 = arith.constant 38 : index
    %c0_139 = arith.constant 0 : index
    %199 = vector.load %arg19[%c38, %c0_139] : memref<50x32xf32, #tpu.memory_space<vmem>>, vector<2x32xf32>
    %c0_140 = arith.constant 0 : index
    %c608 = arith.constant 608 : index
    %200 = vector.load %arg20[%c0_140, %c608] : memref<2x800xf32, #tpu.memory_space<vmem>>, vector<2x32xf32>
    tpu.vector_store %arg20[%c0_140, %c608], %199 {strides = array<i32>} : memref<2x800xf32, #tpu.memory_space<vmem>>, vector<2x32xf32>,
    %c40 = arith.constant 40 : index
    %c0_141 = arith.constant 0 : index
    %201 = vector.load %arg19[%c40, %c0_141] : memref<50x32xf32, #tpu.memory_space<vmem>>, vector<2x32xf32>
    %c0_142 = arith.constant 0 : index
    %c640 = arith.constant 640 : index
    %202 = vector.load %arg20[%c0_142, %c640] : memref<2x800xf32, #tpu.memory_space<vmem>>, vector<2x32xf32>
    tpu.vector_store %arg20[%c0_142, %c640], %201 {strides = array<i32>} : memref<2x800xf32, #tpu.memory_space<vmem>>, vector<2x32xf32>,
    %c42 = arith.constant 42 : index
    %c0_143 = arith.constant 0 : index
    %203 = vector.load %arg19[%c42, %c0_143] : memref<50x32xf32, #tpu.memory_space<vmem>>, vector<2x32xf32>
    %c0_144 = arith.constant 0 : index
    %c672 = arith.constant 672 : index
    %204 = vector.load %arg20[%c0_144, %c672] : memref<2x800xf32, #tpu.memory_space<vmem>>, vector<2x32xf32>
    tpu.vector_store %arg20[%c0_144, %c672], %203 {strides = array<i32>} : memref<2x800xf32, #tpu.memory_space<vmem>>, vector<2x32xf32>,
    %c44 = arith.constant 44 : index
    %c0_145 = arith.constant 0 : index
    %205 = vector.load %arg19[%c44, %c0_145] : memref<50x32xf32, #tpu.memory_space<vmem>>, vector<2x32xf32>
    %c0_146 = arith.constant 0 : index
    %c704 = arith.constant 704 : index
    %206 = vector.load %arg20[%c0_146, %c704] : memref<2x800xf32, #tpu.memory_space<vmem>>, vector<2x32xf32>
    tpu.vector_store %arg20[%c0_146, %c704], %205 {strides = array<i32>} : memref<2x800xf32, #tpu.memory_space<vmem>>, vector<2x32xf32>,
    %c46 = arith.constant 46 : index
    %c0_147 = arith.constant 0 : index
    %207 = vector.load %arg19[%c46, %c0_147] : memref<50x32xf32, #tpu.memory_space<vmem>>, vector<2x32xf32>
    %c0_148 = arith.constant 0 : index
    %c736 = arith.constant 736 : index
    %208 = vector.load %arg20[%c0_148, %c736] : memref<2x800xf32, #tpu.memory_space<vmem>>, vector<2x32xf32>
    tpu.vector_store %arg20[%c0_148, %c736], %207 {strides = array<i32>} : memref<2x800xf32, #tpu.memory_space<vmem>>, vector<2x32xf32>,
    %c48_149 = arith.constant 48 : index
    %c0_150 = arith.constant 0 : index
    %209 = vector.load %arg19[%c48_149, %c0_150] : memref<50x32xf32, #tpu.memory_space<vmem>>, vector<2x32xf32>
    %c0_151 = arith.constant 0 : index
    %c768 = arith.constant 768 : index
    %210 = vector.load %arg20[%c0_151, %c768] : memref<2x800xf32, #tpu.memory_space<vmem>>, vector<2x32xf32>
    tpu.vector_store %arg20[%c0_151, %c768], %209 {strides = array<i32>} : memref<2x800xf32, #tpu.memory_space<vmem>>, vector<2x32xf32>,
    %c0_152 = arith.constant 0 : index
    %c0_153 = arith.constant 0 : index
    %211 = vector.load %arg20[%c0_152, %c0_153] : memref<2x800xf32, #tpu.memory_space<vmem>>, vector<2x800xf32>
    %c0_154 = arith.constant 0 : index
    %c0_155 = arith.constant 0 : index
    %212 = vector.load %arg9[%c0_154, %c0_155] : memref<800x128xf32, #tpu.memory_space<vmem>>, vector<800x128xf32>
    %cst_156 = arith.constant dense<0.000000e+00> : vector<2x128xf32>
    %213 = tpu.matmul %211, %212, %cst_156 {dimension_numbers = #tpu.dot_dimension_numbers<[1], [0], [0], [1], [0, 0, 1, 1], [], []>} : vector<2x800xf32>, vector<800x128xf32>, vector<2x128xf32> -> vector<2x128xf32>
    %c0_157 = arith.constant 0 : index
    %c0_158 = arith.constant 0 : index
    %214 = vector.load %arg10[%c0_157, %c0_158] : memref<1x128xf32, #tpu.memory_space<vmem>>, vector<1x128xf32>
    %215 = vector.broadcast %214 : vector<1x128xf32> to vector<2x128xf32>
    %216 = arith.addf %213, %215 : vector<2x128xf32>
    %cst_159 = arith.constant 0.000000e+00 : f32
    %217 = vector.broadcast %cst_159 : f32 to vector<2x128xf32>
    %218 = arith.maximumf %216, %217 : vector<2x128xf32>
    %c0_160 = arith.constant 0 : index
    %c0_161 = arith.constant 0 : index
    %219 = vector.load %arg11[%c0_160, %c0_161] : memref<128x8xf32, #tpu.memory_space<vmem>>, vector<128x8xf32>
    %cst_162 = arith.constant dense<0.000000e+00> : vector<2x8xf32>
    %220 = tpu.matmul %218, %219, %cst_162 {dimension_numbers = #tpu.dot_dimension_numbers<[1], [0], [0], [1], [0, 0, 1, 1], [], []>} : vector<2x128xf32>, vector<128x8xf32>, vector<2x8xf32> -> vector<2x8xf32>
    %c0_163 = arith.constant 0 : index
    %c0_164 = arith.constant 0 : index
    %221 = vector.load %arg12[%c0_163, %c0_164] : memref<1x8xf32, #tpu.memory_space<vmem>>, vector<1x8xf32>
    %222 = vector.broadcast %221 : vector<1x8xf32> to vector<2x8xf32>
    %223 = arith.addf %220, %222 : vector<2x8xf32>
    %c0_165 = arith.constant 0 : index
    %c0_166 = arith.constant 0 : index
    %224 = vector.load %arg13[%c0_165, %c0_166] : memref<2x8xf32, #tpu.memory_space<vmem>>, vector<2x8xf32>
    %225 = arith.addf %223, %224 : vector<2x8xf32>
    %cst_167 = arith.constant dense<0xFF800000> : vector<2xf32>
    %226 = vector.multi_reduction <maximumf>, %225, %cst_167 [1] : vector<2x8xf32> to vector<2xf32>
    %227 = vector.shape_cast %226 : vector<2xf32> to vector<2x1xf32>
    %228 = vector.broadcast %227 : vector<2x1xf32> to vector<2x8xf32>
    %229 = arith.subf %225, %228 : vector<2x8xf32>
    %230 = math.exp %229 : vector<2x8xf32>
    %cst_168 = arith.constant dense<0.000000e+00> : vector<2xf32>
    %231 = vector.multi_reduction <add>, %230, %cst_168 [1] : vector<2x8xf32> to vector<2xf32>
    %232 = vector.shape_cast %231 : vector<2xf32> to vector<2x1xf32>
    %233 = tpu.reciprocal %232 {approx = true} : vector<2x1xf32> -> vector<2x1xf32>
    %234 = vector.broadcast %233 : vector<2x1xf32> to vector<2x8xf32>
    %235 = arith.mulf %230, %234 : vector<2x8xf32>
    %c0_169 = arith.constant 0 : index
    %c0_170 = arith.constant 0 : index
    %236 = vector.load %arg14[%c0_169, %c0_170] : memref<2x8xf32, #tpu.memory_space<vmem>>, vector<2x8xf32>
    tpu.vector_store %arg14[%c0_169, %c0_170], %235 {strides = array<i32>} : memref<2x8xf32, #tpu.memory_space<vmem>>, vector<2x8xf32>,
    return
  }
  func.func @transform_0(%arg0: i32) -> (i32, i32, i32, i32) {
    %c0_i32 = arith.constant 0 : i32
    %c0_i32_0 = arith.constant 0 : i32
    %c0_i32_1 = arith.constant 0 : i32
    %c0_i32_2 = arith.constant 0 : i32
    %c0_i32_3 = arith.constant 0 : i32
    return %c0_i32, %c0_i32_0, %c0_i32_1, %c0_i32_2 : i32, i32, i32, i32
  }
  func.func @transform_1(%arg0: i32) -> (i32, i32, i32) {
    %c0_i32 = arith.constant 0 : i32
    %c0_i32_0 = arith.constant 0 : i32
    %c0_i32_1 = arith.constant 0 : i32
    %c0_i32_2 = arith.constant 0 : i32
    return %c0_i32, %c0_i32_0, %c0_i32_1 : i32, i32, i32
  }
  func.func @transform_2(%arg0: i32) -> (i32, i32) {
    %c0_i32 = arith.constant 0 : i32
    %c0_i32_0 = arith.constant 0 : i32
    %c0_i32_1 = arith.constant 0 : i32
    return %c0_i32, %c0_i32_0 : i32, i32
  }
  func.func @transform_3(%arg0: i32) -> (i32, i32) {
    %c0_i32 = arith.constant 0 : i32
    %c0_i32_0 = arith.constant 0 : i32
    %c0_i32_1 = arith.constant 0 : i32
    return %c0_i32, %c0_i32_0 : i32, i32
  }
  func.func @transform_4(%arg0: i32) -> (i32, i32) {
    %c0_i32 = arith.constant 0 : i32
    %c0_i32_0 = arith.constant 0 : i32
    %c0_i32_1 = arith.constant 0 : i32
    return %c0_i32, %c0_i32_0 : i32, i32
  }
  func.func @transform_5(%arg0: i32) -> (i32, i32) {
    %c0_i32 = arith.constant 0 : i32
    %c0_i32_0 = arith.constant 0 : i32
    %c0_i32_1 = arith.constant 0 : i32
    return %c0_i32, %c0_i32_0 : i32, i32
  }
  func.func @transform_6(%arg0: i32) -> (i32, i32) {
    %c0_i32 = arith.constant 0 : i32
    %c0_i32_0 = arith.constant 0 : i32
    %c0_i32_1 = arith.constant 0 : i32
    return %c0_i32, %c0_i32_0 : i32, i32
  }
  func.func @transform_7(%arg0: i32) -> (i32, i32) {
    %c0_i32 = arith.constant 0 : i32
    %c0_i32_0 = arith.constant 0 : i32
    %c0_i32_1 = arith.constant 0 : i32
    return %c0_i32, %c0_i32_0 : i32, i32
  }
  func.func @transform_8(%arg0: i32) -> (i32, i32) {
    %c0_i32 = arith.constant 0 : i32
    %c0_i32_0 = arith.constant 0 : i32
    %c0_i32_1 = arith.constant 0 : i32
    return %c0_i32, %c0_i32_0 : i32, i32
  }
  func.func @transform_9(%arg0: i32) -> (i32, i32) {
    %c0_i32 = arith.constant 0 : i32
    %c0_i32_0 = arith.constant 0 : i32
    %c0_i32_1 = arith.constant 0 : i32
    return %c0_i32, %c0_i32_0 : i32, i32
  }
  func.func @transform_10(%arg0: i32) -> (i32, i32) {
    %c0_i32 = arith.constant 0 : i32
    %c0_i32_0 = arith.constant 0 : i32
    %c0_i32_1 = arith.constant 0 : i32
    return %c0_i32, %c0_i32_0 : i32, i32
  }
  func.func @transform_11(%arg0: i32) -> (i32, i32) {
    %c0_i32 = arith.constant 0 : i32
    %c0_i32_0 = arith.constant 0 : i32
    %c0_i32_1 = arith.constant 0 : i32
    return %c0_i32, %c0_i32_0 : i32, i32
  }
  func.func @transform_12(%arg0: i32) -> (i32, i32) {
    %c0_i32 = arith.constant 0 : i32
    %c0_i32_0 = arith.constant 0 : i32
    %c0_i32_1 = arith.constant 0 : i32
    return %c0_i32, %c0_i32_0 : i32, i32
  }
  func.func @transform_13(%arg0: i32) -> (i32, i32) {
    %c0_i32 = arith.constant 0 : i32
    %c0_i32_0 = arith.constant 0 : i32
    %c0_i32_1 = arith.constant 0 : i32
    return %c0_i32, %c0_i32_0 : i32, i32
  }
}

</mosaic_0001>

<llo_original>
// kernel: tpu_custom_call.1
$region0: #{tpu_custom_call.1}
  #allocation0 [shape = 'u32[]', space=smem, size = 0x4, offset = 0x4, fixed_abs, tag = 'smem constant byte address 0x4 - core index']
  #allocation1 [shape = 'u32[144,128]{1,0:T(1,128)}', space=vmem, size = 0x12000, scoped, tag = 'internal scratch']
  #allocation2 [shape = 'f32[2,18,18,1]{3,2,1,0:T(8,128)}', space=vmem, size = 0x6c000, scoped, tag = 'scratch operand']
  #allocation3 [shape = 'f32[2,18,18,16]{3,2,1,0:T(8,128)}', space=vmem, size = 0x6c000, scoped, tag = 'scratch operand']
  #allocation4 [shape = 'f32[512,144]{1,0:T(8,128)}', space=vmem, size = 0x80000, scoped, tag = 'scratch operand']
  #allocation5 [shape = 'f32[512,32]{1,0:T(8,128)}', space=vmem, size = 0x40000, scoped, tag = 'scratch operand']
  #allocation6 [shape = 'f32[50,32]{1,0:T(8,128)}', space=vmem, size = 0x7000, scoped, tag = 'scratch operand']
  #allocation7 [shape = 'f32[2,800]{1,0:T(2,128)}', space=vmem, size = 0x1c00, scoped, tag = 'scratch operand']
  %s0 = inlined_call_operand.vmem [shape: f32[2,16,16,1], index: 0, kind: input, shape index: {}]
  %s1 = inlined_call_operand.vmem [shape: f32[9,1,16], index: 1, kind: input, shape index: {}]
  %s2 = inlined_call_operand.vmem [shape: f32[1,16], index: 2, kind: input, shape index: {}]
  %s3 = inlined_call_operand.vmem [shape: f32[144,32], index: 3, kind: input, shape index: {}]
  %s4 = inlined_call_operand.vmem [shape: f32[1,32], index: 4, kind: input, shape index: {}]
  %s5 = inlined_call_operand.vmem [shape: f32[1,32], index: 5, kind: input, shape index: {}]
  %s6 = inlined_call_operand.vmem [shape: f32[1,32], index: 6, kind: input, shape index: {}]
  %s7 = inlined_call_operand.vmem [shape: f32[50,128], index: 7, kind: input, shape index: {}]
  %s8 = inlined_call_operand.vmem [shape: f32[800,128], index: 8, kind: input, shape index: {}]
  %s9 = inlined_call_operand.vmem [shape: f32[1,128], index: 9, kind: input, shape index: {}]
  %s10 = inlined_call_operand.vmem [shape: f32[128,8], index: 10, kind: input, shape index: {}]
  %s11 = inlined_call_operand.vmem [shape: f32[1,8], index: 11, kind: input, shape index: {}]
  %s12 = inlined_call_operand.vmem [shape: f32[2,8], index: 12, kind: input, shape index: {}]
  %s13 = inlined_call_operand.hbm [shape: f32[2,8], index: 13, kind: output, shape index: {}]
  %s14 = sld [smem:[#allocation0]]
  $region62: #{tpu_custom_call.1} parent=0
    _
  %s16 = ssub.s32 1, %s14
  %s17 = scalar_select 0, %s16, %s14
  $region1: #{tpu_custom_call.1} parent=0
    #allocation8 [shape = 'u8[1024]{0}', space=vmem, size = 0x400, scoped, tag = 'output window, operand 0, single buffered']
    #allocation9 [shape = 's32[1]{0}', space=sflag, size = 0x4, scoped, tag = 'scoped memory for tpu_custom_call.1']
    %18 = vsyncpa [#allocation9], 0
    // Predicated region
    $region2: #{tpu_custom_call.1} parent=1 // pred_check
      _
    $region3: #{tpu_custom_call.1} parent=1 // pred_check_branch
      %20 = sbr.rel (0) target = $region5
    $region4: #{tpu_custom_call.1} parent=1 // pred_region
      _
    $region5: #{tpu_custom_call.1} parent=1 // pred_fallthru
      _
    // Predicated region
    $region6: #{tpu_custom_call.1} parent=1 // pred_check
      _
    $region7: #{tpu_custom_call.1} parent=1 // pred_check_branch
      %22 = sbr.rel (0) target = $region9
    $region8: #{tpu_custom_call.1} parent=1 // pred_region
      _
    $region9: #{tpu_custom_call.1} parent=1 // pred_fallthru
      _
    // Predicated region
    $region10: #{tpu_custom_call.1} parent=1 // pred_check
      _
    $region11: #{tpu_custom_call.1} parent=1 // pred_check_branch
      %24 = sbr.rel (0) target = $region13
    $region12: #{tpu_custom_call.1} parent=1 // pred_region
      _
    $region13: #{tpu_custom_call.1} parent=1 // pred_fallthru
      _
    // Predicated region
    $region14: #{tpu_custom_call.1} parent=1 // pred_check
      _
    $region15: #{tpu_custom_call.1} parent=1 // pred_check_branch
      %26 = sbr.rel (0) target = $region17
    $region16: #{tpu_custom_call.1} parent=1 // pred_region
      _
    $region17: #{tpu_custom_call.1} parent=1 // pred_fallthru
      _
    // Predicated region
    $region18: #{tpu_custom_call.1} parent=1 // pred_check
      _
    $region19: #{tpu_custom_call.1} parent=1 // pred_check_branch
      %28 = sbr.rel (0) target = $region21
    $region20: #{tpu_custom_call.1} parent=1 // pred_region
      _
    $region21: #{tpu_custom_call.1} parent=1 // pred_fallthru
      _
    // Predicated region
    $region22: #{tpu_custom_call.1} parent=1 // pred_check
      _
    $region23: #{tpu_custom_call.1} parent=1 // pred_check_branch
      %30 = sbr.rel (0) target = $region25
    $region24: #{tpu_custom_call.1} parent=1 // pred_region
      _
    $region25: #{tpu_custom_call.1} parent=1 // pred_fallthru
      _
    // Predicated region
    $region26: #{tpu_custom_call.1} parent=1 // pred_check
      _
    $region27: #{tpu_custom_call.1} parent=1 // pred_check_branch
      %32 = sbr.rel (0) target = $region29
    $region28: #{tpu_custom_call.1} parent=1 // pred_region
      _
    $region29: #{tpu_custom_call.1} parent=1 // pred_fallthru
      _
    // Predicated region
    $region30: #{tpu_custom_call.1} parent=1 // pred_check
      _
    $region31: #{tpu_custom_call.1} parent=1 // pred_check_branch
      %34 = sbr.rel (0) target = $region33
    $region32: #{tpu_custom_call.1} parent=1 // pred_region
      _
    $region33: #{tpu_custom_call.1} parent=1 // pred_fallthru
      _
    // Predicated region
    $region34: #{tpu_custom_call.1} parent=1 // pred_check
      _
    $region35: #{tpu_custom_call.1} parent=1 // pred_check_branch
      %36 = sbr.rel (0) target = $region37
    $region36: #{tpu_custom_call.1} parent=1 // pred_region
      _
    $region37: #{tpu_custom_call.1} parent=1 // pred_fallthru
      _
    // Predicated region
    $region38: #{tpu_custom_call.1} parent=1 // pred_check
      _
    $region39: #{tpu_custom_call.1} parent=1 // pred_check_branch
      %38 = sbr.rel (0) target = $region41
    $region40: #{tpu_custom_call.1} parent=1 // pred_region
      _
    $region41: #{tpu_custom_call.1} parent=1 // pred_fallthru
      _
    // Predicated region
    $region42: #{tpu_custom_call.1} parent=1 // pred_check
      _
    $region43: #{tpu_custom_call.1} parent=1 // pred_check_branch
      %40 = sbr.rel (0) target = $region45
    $region44: #{tpu_custom_call.1} parent=1 // pred_region
      _
    $region45: #{tpu_custom_call.1} parent=1 // pred_fallthru
      _
    // Predicated region
    $region46: #{tpu_custom_call.1} parent=1 // pred_check
      _
    $region47: #{tpu_custom_call.1} parent=1 // pred_check_branch
      %42 = sbr.rel (0) target = $region49
    $region48: #{tpu_custom_call.1} parent=1 // pred_region
      _
    $region49: #{tpu_custom_call.1} parent=1 // pred_fallthru
      _
    // Predicated region
    $region50: #{tpu_custom_call.1} parent=1 // pred_check
      _
    $region51: #{tpu_custom_call.1} parent=1 // pred_check_branch
      %44 = sbr.rel (0) target = $region53
    $region52: #{tpu_custom_call.1} parent=1 // pred_region
      _
    $region53: #{tpu_custom_call.1} parent=1 // pred_fallthru
      _
    %vm45 = vcmask 7168
    %46 = vst.msk [vmem:[#allocation2] sm:$0xff] %vm45, 0.0
    %47 = vst.msk [vmem:[#allocation2 + $0x8] sm:$0xff] %vm45, 0.0
    %vm48 = vcmask 1024
    %49 = vst.msk [vmem:[#allocation2 + $0x10] sm:$0x3] %vm48, 0.0
    %50 = vst.msk [vmem:[#allocation2 + $0x18] sm:$0xff] %vm45, 0.0
    %51 = vst.msk [vmem:[#allocation2 + $0x20] sm:$0xff] %vm45, 0.0
    %52 = vst.msk [vmem:[#allocation2 + $0x28] sm:$0x3] %vm48, 0.0
    %53 = vst.msk [vmem:[#allocation2 + $0x30] sm:$0xff] %vm45, 0.0
    %54 = vst.msk [vmem:[#allocation2 + $0x38] sm:$0xff] %vm45, 0.0
    %55 = vst.msk [vmem:[#allocation2 + $0x40] sm:$0x3] %vm48, 0.0
    %56 = vst.msk [vmem:[#allocation2 + $0x48] sm:$0xff] %vm45, 0.0
    %57 = vst.msk [vmem:[#allocation2 + $0x50] sm:$0xff] %vm45, 0.0
    %58 = vst.msk [vmem:[#allocation2 + $0x58] sm:$0x3] %vm48, 0.0
    %59 = vst.msk [vmem:[#allocation2 + $0x60] sm:$0xff] %vm45, 0.0
    %60 = vst.msk [vmem:[#allocation2 + $0x68] sm:$0xff] %vm45, 0.0
    %61 = vst.msk [vmem:[#allocation2 + $0x70] sm:$0x3] %vm48, 0.0
    %62 = vst.msk [vmem:[#allocation2 + $0x78] sm:$0xff] %vm45, 0.0
    %63 = vst.msk [vmem:[#allocation2 + $0x80] sm:$0xff] %vm45, 0.0
    %64 = vst.msk [vmem:[#allocation2 + $0x88] sm:$0x3] %vm48, 0.0
    %65 = vst.msk [vmem:[#allocation2 + $0x90] sm:$0xff] %vm45, 0.0
    %66 = vst.msk [vmem:[#allocation2 + $0x98] sm:$0xff] %vm45, 0.0
    %67 = vst.msk [vmem:[#allocation2 + $0xa0] sm:$0x3] %vm48, 0.0
    %68 = vst.msk [vmem:[#allocation2 + $0xa8] sm:$0xff] %vm45, 0.0
    %69 = vst.msk [vmem:[#allocation2 + $0xb0] sm:$0xff] %vm45, 0.0
    %70 = vst.msk [vmem:[#allocation2 + $0xb8] sm:$0x3] %vm48, 0.0
    %71 = vst.msk [vmem:[#allocation2 + $0xc0] sm:$0xff] %vm45, 0.0
    %72 = vst.msk [vmem:[#allocation2 + $0xc8] sm:$0xff] %vm45, 0.0
    %73 = vst.msk [vmem:[#allocation2 + $0xd0] sm:$0x3] %vm48, 0.0
    %74 = vst.msk [vmem:[#allocation2 + $0xd8] sm:$0xff] %vm45, 0.0
    %75 = vst.msk [vmem:[#allocation2 + $0xe0] sm:$0xff] %vm45, 0.0
    %76 = vst.msk [vmem:[#allocation2 + $0xe8] sm:$0x3] %vm48, 0.0
    %77 = vst.msk [vmem:[#allocation2 + $0xf0] sm:$0xff] %vm45, 0.0
    %78 = vst.msk [vmem:[#allocation2 + $0xf8] sm:$0xff] %vm45, 0.0
    %79 = vst.msk [vmem:[#allocation2 + $0x100] sm:$0x3] %vm48, 0.0
    %80 = vst.msk [vmem:[#allocation2 + $0x108] sm:$0xff] %vm45, 0.0
    %81 = vst.msk [vmem:[#allocation2 + $0x110] sm:$0xff] %vm45, 0.0
    %82 = vst.msk [vmem:[#allocation2 + $0x118] sm:$0x3] %vm48, 0.0
    %83 = vst.msk [vmem:[#allocation2 + $0x120] sm:$0xff] %vm45, 0.0
    %84 = vst.msk [vmem:[#allocation2 + $0x128] sm:$0xff] %vm45, 0.0
    %85 = vst.msk [vmem:[#allocation2 + $0x130] sm:$0x3] %vm48, 0.0
    %86 = vst.msk [vmem:[#allocation2 + $0x138] sm:$0xff] %vm45, 0.0
    %87 = vst.msk [vmem:[#allocation2 + $0x140] sm:$0xff] %vm45, 0.0
    %88 = vst.msk [vmem:[#allocation2 + $0x148] sm:$0x3] %vm48, 0.0
    %89 = vst.msk [vmem:[#allocation2 + $0x150] sm:$0xff] %vm45, 0.0
    %90 = vst.msk [vmem:[#allocation2 + $0x158] sm:$0xff] %vm45, 0.0
    %91 = vst.msk [vmem:[#allocation2 + $0x160] sm:$0x3] %vm48, 0.0
    %92 = vst.msk [vmem:[#allocation2 + $0x168] sm:$0xff] %vm45, 0.0
    %93 = vst.msk [vmem:[#allocation2 + $0x170] sm:$0xff] %vm45, 0.0
    %94 = vst.msk [vmem:[#allocation2 + $0x178] sm:$0x3] %vm48, 0.0
    %95 = vst.msk [vmem:[#allocation2 + $0x180] sm:$0xff] %vm45, 0.0
    %96 = vst.msk [vmem:[#allocation2 + $0x188] sm:$0xff] %vm45, 0.0
    %97 = vst.msk [vmem:[#allocation2 + $0x190] sm:$0x3] %vm48, 0.0
    %98 = vst.msk [vmem:[#allocation2 + $0x198] sm:$0xff] %vm45, 0.0
    %99 = vst.msk [vmem:[#allocation2 + $0x1a0] sm:$0xff] %vm45, 0.0
    %100 = vst.msk [vmem:[#allocation2 + $0x1a8] sm:$0x3] %vm48, 0.0
    %101 = vst.msk [vmem:[#allocation2 + $0x1b0] sm:$0xff] %vm45, 0.0
    %102 = vst.msk [vmem:[#allocation2 + $0x1b8] sm:$0xff] %vm45, 0.0
    %103 = vst.msk [vmem:[#allocation2 + $0x1c0] sm:$0x3] %vm48, 0.0
    %104 = vst.msk [vmem:[#allocation2 + $0x1c8] sm:$0xff] %vm45, 0.0
    %105 = vst.msk [vmem:[#allocation2 + $0x1d0] sm:$0xff] %vm45, 0.0
    %106 = vst.msk [vmem:[#allocation2 + $0x1d8] sm:$0x3] %vm48, 0.0
    %107 = vst.msk [vmem:[#allocation2 + $0x1e0] sm:$0xff] %vm45, 0.0
    %108 = vst.msk [vmem:[#allocation2 + $0x1e8] sm:$0xff] %vm45, 0.0
    %109 = vst.msk [vmem:[#allocation2 + $0x1f0] sm:$0x3] %vm48, 0.0
    %110 = vst.msk [vmem:[#allocation2 + $0x1f8] sm:$0xff] %vm45, 0.0
    %111 = vst.msk [vmem:[#allocation2 + $0x200] sm:$0xff] %vm45, 0.0
    %112 = vst.msk [vmem:[#allocation2 + $0x208] sm:$0x3] %vm48, 0.0
    %113 = vst.msk [vmem:[#allocation2 + $0x210] sm:$0xff] %vm45, 0.0
    %114 = vst.msk [vmem:[#allocation2 + $0x218] sm:$0xff] %vm45, 0.0
    %115 = vst.msk [vmem:[#allocation2 + $0x220] sm:$0x3] %vm48, 0.0
    %116 = vst.msk [vmem:[#allocation2 + $0x228] sm:$0xff] %vm45, 0.0
    %117 = vst.msk [vmem:[#allocation2 + $0x230] sm:$0xff] %vm45, 0.0
    %118 = vst.msk [vmem:[#allocation2 + $0x238] sm:$0x3] %vm48, 0.0
    %119 = vst.msk [vmem:[#allocation2 + $0x240] sm:$0xff] %vm45, 0.0
    %120 = vst.msk [vmem:[#allocation2 + $0x248] sm:$0xff] %vm45, 0.0
    %121 = vst.msk [vmem:[#allocation2 + $0x250] sm:$0x3] %vm48, 0.0
    %122 = vst.msk [vmem:[#allocation2 + $0x258] sm:$0xff] %vm45, 0.0
    %123 = vst.msk [vmem:[#allocation2 + $0x260] sm:$0xff] %vm45, 0.0
    %124 = vst.msk [vmem:[#allocation2 + $0x268] sm:$0x3] %vm48, 0.0
    %125 = vst.msk [vmem:[#allocation2 + $0x270] sm:$0xff] %vm45, 0.0
    %126 = vst.msk [vmem:[#allocation2 + $0x278] sm:$0xff] %vm45, 0.0
    %127 = vst.msk [vmem:[#allocation2 + $0x280] sm:$0x3] %vm48, 0.0
    %128 = vst.msk [vmem:[#allocation2 + $0x288] sm:$0xff] %vm45, 0.0
    %129 = vst.msk [vmem:[#allocation2 + $0x290] sm:$0xff] %vm45, 0.0
    %130 = vst.msk [vmem:[#allocation2 + $0x298] sm:$0x3] %vm48, 0.0
    %131 = vst.msk [vmem:[#allocation2 + $0x2a0] sm:$0xff] %vm45, 0.0
    %132 = vst.msk [vmem:[#allocation2 + $0x2a8] sm:$0xff] %vm45, 0.0
    %133 = vst.msk [vmem:[#allocation2 + $0x2b0] sm:$0x3] %vm48, 0.0
    %134 = vst.msk [vmem:[#allocation2 + $0x2b8] sm:$0xff] %vm45, 0.0
    %135 = vst.msk [vmem:[#allocation2 + $0x2c0] sm:$0xff] %vm45, 0.0
    %136 = vst.msk [vmem:[#allocation2 + $0x2c8] sm:$0x3] %vm48, 0.0
    %137 = vst.msk [vmem:[#allocation2 + $0x2d0] sm:$0xff] %vm45, 0.0
    %138 = vst.msk [vmem:[#allocation2 + $0x2d8] sm:$0xff] %vm45, 0.0
    %139 = vst.msk [vmem:[#allocation2 + $0x2e0] sm:$0x3] %vm48, 0.0
    %140 = vst.msk [vmem:[#allocation2 + $0x2e8] sm:$0xff] %vm45, 0.0
    %141 = vst.msk [vmem:[#allocation2 + $0x2f0] sm:$0xff] %vm45, 0.0
    %142 = vst.msk [vmem:[#allocation2 + $0x2f8] sm:$0x3] %vm48, 0.0
    %143 = vst.msk [vmem:[#allocation2 + $0x300] sm:$0xff] %vm45, 0.0
    %144 = vst.msk [vmem:[#allocation2 + $0x308] sm:$0xff] %vm45, 0.0
    %145 = vst.msk [vmem:[#allocation2 + $0x310] sm:$0x3] %vm48, 0.0
    %146 = vst.msk [vmem:[#allocation2 + $0x318] sm:$0xff] %vm45, 0.0
    %147 = vst.msk [vmem:[#allocation2 + $0x320] sm:$0xff] %vm45, 0.0
    %148 = vst.msk [vmem:[#allocation2 + $0x328] sm:$0x3] %vm48, 0.0
    %149 = vst.msk [vmem:[#allocation2 + $0x330] sm:$0xff] %vm45, 0.0
    %150 = vst.msk [vmem:[#allocation2 + $0x338] sm:$0xff] %vm45, 0.0
    %151 = vst.msk [vmem:[#allocation2 + $0x340] sm:$0x3] %vm48, 0.0
    %152 = vst.msk [vmem:[#allocation2 + $0x348] sm:$0xff] %vm45, 0.0
    %153 = vst.msk [vmem:[#allocation2 + $0x350] sm:$0xff] %vm45, 0.0
    %154 = vst.msk [vmem:[#allocation2 + $0x358] sm:$0x3] %vm48, 0.0
    %v155 = vld [vmem:[%s0] sm:$0xff]
    %v156 = vld [vmem:[%s0 + $0x8] sm:$0xff]
    %v157 = vld [vmem:[%s0 + $0x10] sm:$0xff]
    %v158 = vld [vmem:[%s0 + $0x18] sm:$0xff]
    %v159 = vld [vmem:[%s0 + $0x20] sm:$0xff]
    %v160 = vld [vmem:[%s0 + $0x28] sm:$0xff]
    %v161 = vld [vmem:[%s0 + $0x30] sm:$0xff]
    %v162 = vld [vmem:[%s0 + $0x38] sm:$0xff]
    %v163 = vld [vmem:[%s0 + $0x40] sm:$0xff]
    %v164 = vld [vmem:[%s0 + $0x48] sm:$0xff]
    %v165 = vld [vmem:[%s0 + $0x50] sm:$0xff]
    %v166 = vld [vmem:[%s0 + $0x58] sm:$0xff]
    %v167 = vld [vmem:[%s0 + $0x60] sm:$0xff]
    %v168 = vld [vmem:[%s0 + $0x68] sm:$0xff]
    %v169 = vld [vmem:[%s0 + $0x70] sm:$0xff]
    %v170 = vld [vmem:[%s0 + $0x78] sm:$0xff]
    %v171 = vld [vmem:[%s0 + $0x80] sm:$0xff]
    %v172 = vld [vmem:[%s0 + $0x88] sm:$0xff]
    %v173 = vld [vmem:[%s0 + $0x90] sm:$0xff]
    %v174 = vld [vmem:[%s0 + $0x98] sm:$0xff]
    %v175 = vld [vmem:[%s0 + $0xa0] sm:$0xff]
    %v176 = vld [vmem:[%s0 + $0xa8] sm:$0xff]
    %v177 = vld [vmem:[%s0 + $0xb0] sm:$0xff]
    %v178 = vld [vmem:[%s0 + $0xb8] sm:$0xff]
    %v179 = vld [vmem:[%s0 + $0xc0] sm:$0xff]
    %v180 = vld [vmem:[%s0 + $0xc8] sm:$0xff]
    %v181 = vld [vmem:[%s0 + $0xd0] sm:$0xff]
    %v182 = vld [vmem:[%s0 + $0xd8] sm:$0xff]
    %v183 = vld [vmem:[%s0 + $0xe0] sm:$0xff]
    %v184 = vld [vmem:[%s0 + $0xe8] sm:$0xff]
    %v185 = vld [vmem:[%s0 + $0xf0] sm:$0xff]
    %v186 = vld [vmem:[%s0 + $0xf8] sm:$0xff]
    %v187 = vld [vmem:[%s0 + $0x100] sm:$0xff]
    %v188 = vld [vmem:[%s0 + $0x108] sm:$0xff]
    %v189 = vld [vmem:[%s0 + $0x110] sm:$0xff]
    %v190 = vld [vmem:[%s0 + $0x118] sm:$0xff]
    %v191 = vld [vmem:[%s0 + $0x120] sm:$0xff]
    %v192 = vld [vmem:[%s0 + $0x128] sm:$0xff]
    %v193 = vld [vmem:[%s0 + $0x130] sm:$0xff]
    %v194 = vld [vmem:[%s0 + $0x138] sm:$0xff]
    %v195 = vld [vmem:[%s0 + $0x140] sm:$0xff]
    %v196 = vld [vmem:[%s0 + $0x148] sm:$0xff]
    %v197 = vld [vmem:[%s0 + $0x150] sm:$0xff]
    %v198 = vld [vmem:[%s0 + $0x158] sm:$0xff]
    %v199 = vld [vmem:[%s0 + $0x160] sm:$0xff]
    %v200 = vld [vmem:[%s0 + $0x168] sm:$0xff]
    %v201 = vld [vmem:[%s0 + $0x170] sm:$0xff]
    %v202 = vld [vmem:[%s0 + $0x178] sm:$0xff]
    %v203 = vld [vmem:[%s0 + $0x180] sm:$0xff]
    %v204 = vld [vmem:[%s0 + $0x188] sm:$0xff]
    %v205 = vld [vmem:[%s0 + $0x190] sm:$0xff]
    %v206 = vld [vmem:[%s0 + $0x198] sm:$0xff]
    %v207 = vld [vmem:[%s0 + $0x1a0] sm:$0xff]
    %v208 = vld [vmem:[%s0 + $0x1a8] sm:$0xff]
    %v209 = vld [vmem:[%s0 + $0x1b0] sm:$0xff]
    %v210 = vld [vmem:[%s0 + $0x1b8] sm:$0xff]
    %v211 = vld [vmem:[%s0 + $0x1c0] sm:$0xff]
    %v212 = vld [vmem:[%s0 + $0x1c8] sm:$0xff]
    %v213 = vld [vmem:[%s0 + $0x1d0] sm:$0xff]
    %v214 = vld [vmem:[%s0 + $0x1d8] sm:$0xff]
    %v215 = vld [vmem:[%s0 + $0x1e0] sm:$0xff]
    %v216 = vld [vmem:[%s0 + $0x1e8] sm:$0xff]
    %v217 = vld [vmem:[%s0 + $0x1f0] sm:$0xff]
    %v218 = vld [vmem:[%s0 + $0x1f8] sm:$0xff]
    %s219 = scalar_lea.vmem [#allocation2], 24
    %220 = vst.msk [vmem:[%s219 + $0x1] sm:$0xff] %vm45, %v155
    %221 = vst.msk [vmem:[%s219 + $0x9] sm:$0xff] %vm45, %v156
    %222 = vst.msk [vmem:[%s219 + $0x19] sm:$0xff] %vm45, %v157
    %223 = vst.msk [vmem:[%s219 + $0x21] sm:$0xff] %vm45, %v158
    %224 = vst.msk [vmem:[%s219 + $0x31] sm:$0xff] %vm45, %v159
    %225 = vst.msk [vmem:[%s219 + $0x39] sm:$0xff] %vm45, %v160
    %226 = vst.msk [vmem:[%s219 + $0x49] sm:$0xff] %vm45, %v161
    %227 = vst.msk [vmem:[%s219 + $0x51] sm:$0xff] %vm45, %v162
    %228 = vst.msk [vmem:[%s219 + $0x61] sm:$0xff] %vm45, %v163
    %229 = vst.msk [vmem:[%s219 + $0x69] sm:$0xff] %vm45, %v164
    %230 = vst.msk [vmem:[%s219 + $0x79] sm:$0xff] %vm45, %v165
    %231 = vst.msk [vmem:[%s219 + $0x81] sm:$0xff] %vm45, %v166
    %232 = vst.msk [vmem:[%s219 + $0x91] sm:$0xff] %vm45, %v167
    %233 = vst.msk [vmem:[%s219 + $0x99] sm:$0xff] %vm45, %v168
    %234 = vst.msk [vmem:[%s219 + $0xa9] sm:$0xff] %vm45, %v169
    %235 = vst.msk [vmem:[%s219 + $0xb1] sm:$0xff] %vm45, %v170
    %236 = vst.msk [vmem:[%s219 + $0xc1] sm:$0xff] %vm45, %v171
    %237 = vst.msk [vmem:[%s219 + $0xc9] sm:$0xff] %vm45, %v172
    %238 = vst.msk [vmem:[%s219 + $0xd9] sm:$0xff] %vm45, %v173
    %239 = vst.msk [vmem:[%s219 + $0xe1] sm:$0xff] %vm45, %v174
    %240 = vst.msk [vmem:[%s219 + $0xf1] sm:$0xff] %vm45, %v175
    %241 = vst.msk [vmem:[%s219 + $0xf9] sm:$0xff] %vm45, %v176
    %242 = vst.msk [vmem:[%s219 + $0x109] sm:$0xff] %vm45, %v177
    %243 = vst.msk [vmem:[%s219 + $0x111] sm:$0xff] %vm45, %v178
    %244 = vst.msk [vmem:[%s219 + $0x121] sm:$0xff] %vm45, %v179
    %245 = vst.msk [vmem:[%s219 + $0x129] sm:$0xff] %vm45, %v180
    %246 = vst.msk [vmem:[%s219 + $0x139] sm:$0xff] %vm45, %v181
    %247 = vst.msk [vmem:[%s219 + $0x141] sm:$0xff] %vm45, %v182
    %248 = vst.msk [vmem:[%s219 + $0x151] sm:$0xff] %vm45, %v183
    %249 = vst.msk [vmem:[%s219 + $0x159] sm:$0xff] %vm45, %v184
    %250 = vst.msk [vmem:[%s219 + $0x169] sm:$0xff] %vm45, %v185
    %251 = vst.msk [vmem:[%s219 + $0x171] sm:$0xff] %vm45, %v186
    %252 = vst.msk [vmem:[%s219 + $0x1b1] sm:$0xff] %vm45, %v187
    %253 = vst.msk [vmem:[%s219 + $0x1b9] sm:$0xff] %vm45, %v188
    %254 = vst.msk [vmem:[%s219 + $0x1c9] sm:$0xff] %vm45, %v189
    %255 = vst.msk [vmem:[%s219 + $0x1d1] sm:$0xff] %vm45, %v190
    %256 = vst.msk [vmem:[%s219 + $0x1e1] sm:$0xff] %vm45, %v191
    %257 = vst.msk [vmem:[%s219 + $0x1e9] sm:$0xff] %vm45, %v192
    %258 = vst.msk [vmem:[%s219 + $0x1f9] sm:$0xff] %vm45, %v193
    %259 = vst.msk [vmem:[%s219 + $0x201] sm:$0xff] %vm45, %v194
    %260 = vst.msk [vmem:[%s219 + $0x211] sm:$0xff] %vm45, %v195
    %261 = vst.msk [vmem:[%s219 + $0x219] sm:$0xff] %vm45, %v196
    %262 = vst.msk [vmem:[%s219 + $0x229] sm:$0xff] %vm45, %v197
    %263 = vst.msk [vmem:[%s219 + $0x231] sm:$0xff] %vm45, %v198
    %264 = vst.msk [vmem:[%s219 + $0x241] sm:$0xff] %vm45, %v199
    %265 = vst.msk [vmem:[%s219 + $0x249] sm:$0xff] %vm45, %v200
    %266 = vst.msk [vmem:[%s219 + $0x259] sm:$0xff] %vm45, %v201
    %267 = vst.msk [vmem:[%s219 + $0x261] sm:$0xff] %vm45, %v202
    %268 = vst.msk [vmem:[%s219 + $0x271] sm:$0xff] %vm45, %v203
    %269 = vst.msk [vmem:[%s219 + $0x279] sm:$0xff] %vm45, %v204
    %270 = vst.msk [vmem:[%s219 + $0x289] sm:$0xff] %vm45, %v205
    %271 = vst.msk [vmem:[%s219 + $0x291] sm:$0xff] %vm45, %v206
    %272 = vst.msk [vmem:[%s219 + $0x2a1] sm:$0xff] %vm45, %v207
    %273 = vst.msk [vmem:[%s219 + $0x2a9] sm:$0xff] %vm45, %v208
    %274 = vst.msk [vmem:[%s219 + $0x2b9] sm:$0xff] %vm45, %v209
    %275 = vst.msk [vmem:[%s219 + $0x2c1] sm:$0xff] %vm45, %v210
    %276 = vst.msk [vmem:[%s219 + $0x2d1] sm:$0xff] %vm45, %v211
    %277 = vst.msk [vmem:[%s219 + $0x2d9] sm:$0xff] %vm45, %v212
    %278 = vst.msk [vmem:[%s219 + $0x2e9] sm:$0xff] %vm45, %v213
    %279 = vst.msk [vmem:[%s219 + $0x2f1] sm:$0xff] %vm45, %v214
    %280 = vst.msk [vmem:[%s219 + $0x301] sm:$0xff] %vm45, %v215
    %281 = vst.msk [vmem:[%s219 + $0x309] sm:$0xff] %vm45, %v216
    %282 = vst.msk [vmem:[%s219 + $0x319] sm:$0xff] %vm45, %v217
    %283 = vst.msk [vmem:[%s219 + $0x321] sm:$0xff] %vm45, %v218
    %v284 = vld [vmem:[#allocation2] sm:$0xff]
    %v285 = vld [vmem:[#allocation2 + $0x8] sm:$0xff]
    %v286 = vld [vmem:[#allocation2 + $0x10] sm:$0x3]
    %v287 = vld [vmem:[#allocation2 + $0x18] sm:$0xff]
    %v288 = vld [vmem:[#allocation2 + $0x20] sm:$0xff]
    %v289 = vld [vmem:[#allocation2 + $0x28] sm:$0x3]
    %v290 = vld [vmem:[#allocation2 + $0x30] sm:$0xff]
    %v291 = vld [vmem:[#allocation2 + $0x38] sm:$0xff]
    %v292 = vld [vmem:[#allocation2 + $0x40] sm:$0x3]
    %v293 = vld [vmem:[#allocation2 + $0x48] sm:$0xff]
    %v294 = vld [vmem:[#allocation2 + $0x50] sm:$0xff]
    %v295 = vld [vmem:[#allocation2 + $0x58] sm:$0x3]
    %v296 = vld [vmem:[#allocation2 + $0x60] sm:$0xff]
    %v297 = vld [vmem:[#allocation2 + $0x68] sm:$0xff]
    %v298 = vld [vmem:[#allocation2 + $0x70] sm:$0x3]
    %v299 = vld [vmem:[#allocation2 + $0x78] sm:$0xff]
    %v300 = vld [vmem:[#allocation2 + $0x80] sm:$0xff]
    %v301 = vld [vmem:[#allocation2 + $0x88] sm:$0x3]
    %v302 = vld [vmem:[#allocation2 + $0x90] sm:$0xff]
    %v303 = vld [vmem:[#allocation2 + $0x98] sm:$0xff]
    %v304 = vld [vmem:[#allocation2 + $0xa0] sm:$0x3]
    %v305 = vld [vmem:[#allocation2 + $0xa8] sm:$0xff]
    %v306 = vld [vmem:[#allocation2 + $0xb0] sm:$0xff]
    %v307 = vld [vmem:[#allocation2 + $0xb8] sm:$0x3]
    %v308 = vld [vmem:[#allocation2 + $0xc0] sm:$0xff]
    %v309 = vld [vmem:[#allocation2 + $0xc8] sm:$0xff]
    %v310 = vld [vmem:[#allocation2 + $0xd0] sm:$0x3]
    %v311 = vld [vmem:[#allocation2 + $0xd8] sm:$0xff]
    %v312 = vld [vmem:[#allocation2 + $0xe0] sm:$0xff]
    %v313 = vld [vmem:[#allocation2 + $0xe8] sm:$0x3]
    %v314 = vld [vmem:[#allocation2 + $0xf0] sm:$0xff]
    %v315 = vld [vmem:[#allocation2 + $0xf8] sm:$0xff]
    %v316 = vld [vmem:[#allocation2 + $0x100] sm:$0x3]
    %v317 = vld [vmem:[#allocation2 + $0x108] sm:$0xff]
    %v318 = vld [vmem:[#allocation2 + $0x110] sm:$0xff]
    %v319 = vld [vmem:[#allocation2 + $0x118] sm:$0x3]
    %v320 = vld [vmem:[#allocation2 + $0x120] sm:$0xff]
    %v321 = vld [vmem:[#allocation2 + $0x128] sm:$0xff]
    %v322 = vld [vmem:[#allocation2 + $0x130] sm:$0x3]
    %v323 = vld [vmem:[#allocation2 + $0x138] sm:$0xff]
    %v324 = vld [vmem:[#allocation2 + $0x140] sm:$0xff]
    %v325 = vld [vmem:[#allocation2 + $0x148] sm:$0x3]
    %v326 = vld [vmem:[#allocation2 + $0x150] sm:$0xff]
    %v327 = vld [vmem:[#allocation2 + $0x158] sm:$0xff]
    %v328 = vld [vmem:[#allocation2 + $0x160] sm:$0x3]
    %v329 = vld [vmem:[#allocation2 + $0x168] sm:$0xff]
    %v330 = vld [vmem:[#allocation2 + $0x170] sm:$0xff]
    %v331 = vld [vmem:[#allocation2 + $0x178] sm:$0x3]
    %v332 = vld [vmem:[#allocation2 + $0x180] sm:$0xff]
    %v333 = vld [vmem:[#allocation2 + $0x188] sm:$0xff]
    %v334 = vld [vmem:[#allocation2 + $0x190] sm:$0x3]
    %v335 = vld [vmem:[#allocation2 + $0x198] sm:$0xff]
    %v336 = vld [vmem:[#allocation2 + $0x1a0] sm:$0xff]
    %v337 = vld [vmem:[#allocation2 + $0x1a8] sm:$0x3]
    %v338 = vld [vmem:[#allocation2 + $0x1b0] sm:$0xff]
    %v339 = vld [vmem:[#allocation2 + $0x1b8] sm:$0xff]
    %v340 = vld [vmem:[#allocation2 + $0x1c0] sm:$0x3]
    %v341 = vld [vmem:[#allocation2 + $0x1c8] sm:$0xff]
    %v342 = vld [vmem:[#allocation2 + $0x1d0] sm:$0xff]
    %v343 = vld [vmem:[#allocation2 + $0x1d8] sm:$0x3]
    %v344 = vld [vmem:[#allocation2 + $0x1e0] sm:$0xff]
    %v345 = vld [vmem:[#allocation2 + $0x1e8] sm:$0xff]
    %v346 = vld [vmem:[#allocation2 + $0x1f0] sm:$0x3]
    %v347 = vld [vmem:[#allocation2 + $0x1f8] sm:$0xff]
    %v348 = vld [vmem:[#allocation2 + $0x200] sm:$0xff]
    %v349 = vld [vmem:[#allocation2 + $0x208] sm:$0x3]
    %v350 = vld [vmem:[#allocation2 + $0x210] sm:$0xff]
    %v351 = vld [vmem:[#allocation2 + $0x218] sm:$0xff]
    %v352 = vld [vmem:[#allocation2 + $0x220] sm:$0x3]
    %v353 = vld [vmem:[#allocation2 + $0x228] sm:$0xff]
    %v354 = vld [vmem:[#allocation2 + $0x230] sm:$0xff]
    %v355 = vld [vmem:[#allocation2 + $0x238] sm:$0x3]
    %v356 = vld [vmem:[#allocation2 + $0x240] sm:$0xff]
    %v357 = vld [vmem:[#allocation2 + $0x248] sm:$0xff]
    %v358 = vld [vmem:[#allocation2 + $0x250] sm:$0x3]
    %v359 = vld [vmem:[#allocation2 + $0x258] sm:$0xff]
    %v360 = vld [vmem:[#allocation2 + $0x260] sm:$0xff]
    %v361 = vld [vmem:[#allocation2 + $0x268] sm:$0x3]
    %v362 = vld [vmem:[#allocation2 + $0x270] sm:$0xff]
    %v363 = vld [vmem:[#allocation2 + $0x278] sm:$0xff]
    %v364 = vld [vmem:[#allocation2 + $0x280] sm:$0x3]
    %v365 = vld [vmem:[#allocation2 + $0x288] sm:$0xff]
    %v366 = vld [vmem:[#allocation2 + $0x290] sm:$0xff]
    %v367 = vld [vmem:[#allocation2 + $0x298] sm:$0x3]
    %v368 = vld [vmem:[#allocation2 + $0x2a0] sm:$0xff]
    %v369 = vld [vmem:[#allocation2 + $0x2a8] sm:$0xff]
    %v370 = vld [vmem:[#allocation2 + $0x2b0] sm:$0x3]
    %v371 = vld [vmem:[#allocation2 + $0x2b8] sm:$0xff]
    %v372 = vld [vmem:[#allocation2 + $0x2c0] sm:$0xff]
    %v373 = vld [vmem:[#allocation2 + $0x2c8] sm:$0x3]
    %v374 = vld [vmem:[#allocation2 + $0x2d0] sm:$0xff]
    %v375 = vld [vmem:[#allocation2 + $0x2d8] sm:$0xff]
    %v376 = vld [vmem:[#allocation2 + $0x2e0] sm:$0x3]
    %v377 = vld [vmem:[#allocation2 + $0x2e8] sm:$0xff]
    %v378 = vld [vmem:[#allocation2 + $0x2f0] sm:$0xff]
    %v379 = vld [vmem:[#allocation2 + $0x2f8] sm:$0x3]
    %v380 = vld [vmem:[#allocation2 + $0x300] sm:$0xff]
    %v381 = vld [vmem:[#allocation2 + $0x308] sm:$0xff]
    %v382 = vld [vmem:[#allocation2 + $0x310] sm:$0x3]
    %v383 = vld [vmem:[#allocation2 + $0x318] sm:$0xff]
    %v384 = vld [vmem:[#allocation2 + $0x320] sm:$0xff]
    %v385 = vld [vmem:[#allocation2 + $0x328] sm:$0x3]
    %v386 = vld [vmem:[#allocation2 + $0x330] sm:$0xff]
    %v387 = vld [vmem:[#allocation2 + $0x338] sm:$0xff]
    %v388 = vld [vmem:[#allocation2 + $0x340] sm:$0x3]
    %v389 = vld [vmem:[#allocation2 + $0x348] sm:$0xff]
    %v390 = vld [vmem:[#allocation2 + $0x350] sm:$0xff]
    %v391 = vld [vmem:[#allocation2 + $0x358] sm:$0x3]
    %v392 = vld [vmem:[%s1] sm:$0x1]
    %394 = vset.pattern.permute.xlu0 0
    %395 = vperm.xlu0 %394, %v284
    %v396 = vpop.permute.xlu0 %395
    %399 = vset.pattern.permute.xlu0 0
    %400 = vperm.xlu0 %399, %v285
    %v401 = vpop.permute.xlu0 %400
    %404 = vset.pattern.permute.xlu0 0
    %405 = vperm.xlu0 %404, %v287
    %v406 = vpop.permute.xlu0 %405
    %409 = vset.pattern.permute.xlu0 0
    %410 = vperm.xlu0 %409, %v288
    %v411 = vpop.permute.xlu0 %410
    %414 = vset.pattern.permute.xlu0 0
    %415 = vperm.xlu0 %414, %v290
    %v416 = vpop.permute.xlu0 %415
    %419 = vset.pattern.permute.xlu0 0
    %420 = vperm.xlu0 %419, %v291
    %v421 = vpop.permute.xlu0 %420
    %424 = vset.pattern.permute.xlu0 0
    %425 = vperm.xlu0 %424, %v293
    %v426 = vpop.permute.xlu0 %425
    %429 = vset.pattern.permute.xlu0 0
    %430 = vperm.xlu0 %429, %v294
    %v431 = vpop.permute.xlu0 %430
    %434 = vset.pattern.permute.xlu0 0
    %435 = vperm.xlu0 %434, %v296
    %v436 = vpop.permute.xlu0 %435
    %439 = vset.pattern.permute.xlu0 0
    %440 = vperm.xlu0 %439, %v297
    %v441 = vpop.permute.xlu0 %440
    %444 = vset.pattern.permute.xlu0 0
    %445 = vperm.xlu0 %444, %v299
    %v446 = vpop.permute.xlu0 %445
    %449 = vset.pattern.permute.xlu0 0
    %450 = vperm.xlu0 %449, %v300
    %v451 = vpop.permute.xlu0 %450
    %454 = vset.pattern.permute.xlu0 0
    %455 = vperm.xlu0 %454, %v302
    %v456 = vpop.permute.xlu0 %455
    %459 = vset.pattern.permute.xlu0 0
    %460 = vperm.xlu0 %459, %v303
    %v461 = vpop.permute.xlu0 %460
    %464 = vset.pattern.permute.xlu0 0
    %465 = vperm.xlu0 %464, %v305
    %v466 = vpop.permute.xlu0 %465
    %469 = vset.pattern.permute.xlu0 0
    %470 = vperm.xlu0 %469, %v306
    %v471 = vpop.permute.xlu0 %470
    %474 = vset.pattern.permute.xlu0 0
    %475 = vperm.xlu0 %474, %v308
    %v476 = vpop.permute.xlu0 %475
    %479 = vset.pattern.permute.xlu0 0
    %480 = vperm.xlu0 %479, %v309
    %v481 = vpop.permute.xlu0 %480
    %484 = vset.pattern.permute.xlu0 0
    %485 = vperm.xlu0 %484, %v311
    %v486 = vpop.permute.xlu0 %485
    %489 = vset.pattern.permute.xlu0 0
    %490 = vperm.xlu0 %489, %v312
    %v491 = vpop.permute.xlu0 %490
    %494 = vset.pattern.permute.xlu0 0
    %495 = vperm.xlu0 %494, %v314
    %v496 = vpop.permute.xlu0 %495
    %499 = vset.pattern.permute.xlu0 0
    %500 = vperm.xlu0 %499, %v315
    %v501 = vpop.permute.xlu0 %500
    %504 = vset.pattern.permute.xlu0 0
    %505 = vperm.xlu0 %504, %v317
    %v506 = vpop.permute.xlu0 %505
    %509 = vset.pattern.permute.xlu0 0
    %510 = vperm.xlu0 %509, %v318
    %v511 = vpop.permute.xlu0 %510
    %514 = vset.pattern.permute.xlu0 0
    %515 = vperm.xlu0 %514, %v320
    %v516 = vpop.permute.xlu0 %515
    %519 = vset.pattern.permute.xlu0 0
    %520 = vperm.xlu0 %519, %v321
    %v521 = vpop.permute.xlu0 %520
    %524 = vset.pattern.permute.xlu0 0
    %525 = vperm.xlu0 %524, %v323
    %v526 = vpop.permute.xlu0 %525
    %529 = vset.pattern.permute.xlu0 0
    %530 = vperm.xlu0 %529, %v324
    %v531 = vpop.permute.xlu0 %530
    %534 = vset.pattern.permute.xlu0 0
    %535 = vperm.xlu0 %534, %v326
    %v536 = vpop.permute.xlu0 %535
    %539 = vset.pattern.permute.xlu0 0
    %540 = vperm.xlu0 %539, %v327
    %v541 = vpop.permute.xlu0 %540
    %544 = vset.pattern.permute.xlu0 0
    %545 = vperm.xlu0 %544, %v329
    %v546 = vpop.permute.xlu0 %545
    %549 = vset.pattern.permute.xlu0 0
    %550 = vperm.xlu0 %549, %v330
    %v551 = vpop.permute.xlu0 %550
    %554 = vset.pattern.permute.xlu0 0
    %555 = vperm.xlu0 %554, %v338
    %v556 = vpop.permute.xlu0 %555
    %559 = vset.pattern.permute.xlu0 0
    %560 = vperm.xlu0 %559, %v339
    %v561 = vpop.permute.xlu0 %560
    %564 = vset.pattern.permute.xlu0 0
    %565 = vperm.xlu0 %564, %v341
    %v566 = vpop.permute.xlu0 %565
    %569 = vset.pattern.permute.xlu0 0
    %570 = vperm.xlu0 %569, %v342
    %v571 = vpop.permute.xlu0 %570
    %574 = vset.pattern.permute.xlu0 0
    %575 = vperm.xlu0 %574, %v344
    %v576 = vpop.permute.xlu0 %575
    %579 = vset.pattern.permute.xlu0 0
    %580 = vperm.xlu0 %579, %v345
    %v581 = vpop.permute.xlu0 %580
    %584 = vset.pattern.permute.xlu0 0
    %585 = vperm.xlu0 %584, %v347
    %v586 = vpop.permute.xlu0 %585
    %589 = vset.pattern.permute.xlu0 0
    %590 = vperm.xlu0 %589, %v348
    %v591 = vpop.permute.xlu0 %590
    %594 = vset.pattern.permute.xlu0 0
    %595 = vperm.xlu0 %594, %v350
    %v596 = vpop.permute.xlu0 %595
    %599 = vset.pattern.permute.xlu0 0
    %600 = vperm.xlu0 %599, %v351
    %v601 = vpop.permute.xlu0 %600
    %604 = vset.pattern.permute.xlu0 0
    %605 = vperm.xlu0 %604, %v353
    %v606 = vpop.permute.xlu0 %605
    %609 = vset.pattern.permute.xlu0 0
    %610 = vperm.xlu0 %609, %v354
    %v611 = vpop.permute.xlu0 %610
    %614 = vset.pattern.permute.xlu0 0
    %615 = vperm.xlu0 %614, %v356
    %v616 = vpop.permute.xlu0 %615
    %619 = vset.pattern.permute.xlu0 0
    %620 = vperm.xlu0 %619, %v357
    %v621 = vpop.permute.xlu0 %620
    %624 = vset.pattern.permute.xlu0 0
    %625 = vperm.xlu0 %624, %v359
    %v626 = vpop.permute.xlu0 %625
    %629 = vset.pattern.permute.xlu0 0
    %630 = vperm.xlu0 %629, %v360
    %v631 = vpop.permute.xlu0 %630
    %634 = vset.pattern.permute.xlu0 0
    %635 = vperm.xlu0 %634, %v362
    %v636 = vpop.permute.xlu0 %635
    %639 = vset.pattern.permute.xlu0 0
    %640 = vperm.xlu0 %639, %v363
    %v641 = vpop.permute.xlu0 %640
    %644 = vset.pattern.permute.xlu0 0
    %645 = vperm.xlu0 %644, %v365
    %v646 = vpop.permute.xlu0 %645
    %649 = vset.pattern.permute.xlu0 0
    %650 = vperm.xlu0 %649, %v366
    %v651 = vpop.permute.xlu0 %650
    %654 = vset.pattern.permute.xlu0 0
    %655 = vperm.xlu0 %654, %v368
    %v656 = vpop.permute.xlu0 %655
    %659 = vset.pattern.permute.xlu0 0
    %660 = vperm.xlu0 %659, %v369
    %v661 = vpop.permute.xlu0 %660
    %664 = vset.pattern.permute.xlu0 0
    %665 = vperm.xlu0 %664, %v371
    %v666 = vpop.permute.xlu0 %665
    %669 = vset.pattern.permute.xlu0 0
    %670 = vperm.xlu0 %669, %v372
    %v671 = vpop.permute.xlu0 %670
    %674 = vset.pattern.permute.xlu0 0
    %675 = vperm.xlu0 %674, %v374
    %v676 = vpop.permute.xlu0 %675
    %679 = vset.pattern.permute.xlu0 0
    %680 = vperm.xlu0 %679, %v375
    %v681 = vpop.permute.xlu0 %680
    %684 = vset.pattern.permute.xlu0 0
    %685 = vperm.xlu0 %684, %v377
    %v686 = vpop.permute.xlu0 %685
    %689 = vset.pattern.permute.xlu0 0
    %690 = vperm.xlu0 %689, %v378
    %v691 = vpop.permute.xlu0 %690
    %694 = vset.pattern.permute.xlu0 0
    %695 = vperm.xlu0 %694, %v380
    %v696 = vpop.permute.xlu0 %695
    %699 = vset.pattern.permute.xlu0 0
    %700 = vperm.xlu0 %699, %v381
    %v701 = vpop.permute.xlu0 %700
    %704 = vset.pattern.permute.xlu0 0
    %705 = vperm.xlu0 %704, %v383
    %v706 = vpop.permute.xlu0 %705
    %709 = vset.pattern.permute.xlu0 0
    %710 = vperm.xlu0 %709, %v384
    %v711 = vpop.permute.xlu0 %710
    %v714 = vlaneseq
    %v715 = vshrl.u32 %v714, 7
    %v716 = vsub.s32 0, %v715
    %v717 = vrot.slane %v392, %v716
    %v719 = vmul.f32 %v396, %v717
    %v720 = vmul.f32 %v401, %v717
    %v721 = vmul.f32 %v406, %v717
    %v722 = vmul.f32 %v411, %v717
    %v723 = vmul.f32 %v416, %v717
    %v724 = vmul.f32 %v421, %v717
    %v725 = vmul.f32 %v426, %v717
    %v726 = vmul.f32 %v431, %v717
    %v727 = vmul.f32 %v436, %v717
    %v728 = vmul.f32 %v441, %v717
    %v729 = vmul.f32 %v446, %v717
    %v730 = vmul.f32 %v451, %v717
    %v731 = vmul.f32 %v456, %v717
    %v732 = vmul.f32 %v461, %v717
    %v733 = vmul.f32 %v466, %v717
    %v734 = vmul.f32 %v471, %v717
    %v735 = vmul.f32 %v476, %v717
    %v736 = vmul.f32 %v481, %v717
    %v737 = vmul.f32 %v486, %v717
    %v738 = vmul.f32 %v491, %v717
    %v739 = vmul.f32 %v496, %v717
    %v740 = vmul.f32 %v501, %v717
    %v741 = vmul.f32 %v506, %v717
    %v742 = vmul.f32 %v511, %v717
    %v743 = vmul.f32 %v516, %v717
    %v744 = vmul.f32 %v521, %v717
    %v745 = vmul.f32 %v526, %v717
    %v746 = vmul.f32 %v531, %v717
    %v747 = vmul.f32 %v536, %v717
    %v748 = vmul.f32 %v541, %v717
    %v749 = vmul.f32 %v546, %v717
    %v750 = vmul.f32 %v551, %v717
    %v751 = vmul.f32 %v556, %v717
    %v752 = vmul.f32 %v561, %v717
    %v753 = vmul.f32 %v566, %v717
    %v754 = vmul.f32 %v571, %v717
    %v755 = vmul.f32 %v576, %v717
    %v756 = vmul.f32 %v581, %v717
    %v757 = vmul.f32 %v586, %v717
    %v758 = vmul.f32 %v591, %v717
    %v759 = vmul.f32 %v596, %v717
    %v760 = vmul.f32 %v601, %v717
    %v761 = vmul.f32 %v606, %v717
    %v762 = vmul.f32 %v611, %v717
    %v763 = vmul.f32 %v616, %v717
    %v764 = vmul.f32 %v621, %v717
    %v765 = vmul.f32 %v626, %v717
    %v766 = vmul.f32 %v631, %v717
    %v767 = vmul.f32 %v636, %v717
    %v768 = vmul.f32 %v641, %v717
    %v769 = vmul.f32 %v646, %v717
    %v770 = vmul.f32 %v651, %v717
    %v771 = vmul.f32 %v656, %v717
    %v772 = vmul.f32 %v661, %v717
    %v773 = vmul.f32 %v666, %v717
    %v774 = vmul.f32 %v671, %v717
    %v775 = vmul.f32 %v676, %v717
    %v776 = vmul.f32 %v681, %v717
    %v777 = vmul.f32 %v686, %v717
    %v778 = vmul.f32 %v691, %v717
    %v779 = vmul.f32 %v696, %v717
    %v780 = vmul.f32 %v701, %v717
    %v781 = vmul.f32 %v706, %v717
    %v782 = vmul.f32 %v711, %v717
    %v783 = vadd.f32 %v719, 0.0
    %v784 = vadd.f32 %v720, 0.0
    %v785 = vadd.f32 %v721, 0.0
    %v786 = vadd.f32 %v722, 0.0
    %v787 = vadd.f32 %v723, 0.0
    %v788 = vadd.f32 %v724, 0.0
    %v789 = vadd.f32 %v725, 0.0
    %v790 = vadd.f32 %v726, 0.0
    %v791 = vadd.f32 %v727, 0.0
    %v792 = vadd.f32 %v728, 0.0
    %v793 = vadd.f32 %v729, 0.0
    %v794 = vadd.f32 %v730, 0.0
    %v795 = vadd.f32 %v731, 0.0
    %v796 = vadd.f32 %v732, 0.0
    %v797 = vadd.f32 %v733, 0.0
    %v798 = vadd.f32 %v734, 0.0
    %v799 = vadd.f32 %v735, 0.0
    %v800 = vadd.f32 %v736, 0.0
    %v801 = vadd.f32 %v737, 0.0
    %v802 = vadd.f32 %v738, 0.0
    %v803 = vadd.f32 %v739, 0.0
    %v804 = vadd.f32 %v740, 0.0
    %v805 = vadd.f32 %v741, 0.0
    %v806 = vadd.f32 %v742, 0.0
    %v807 = vadd.f32 %v743, 0.0
    %v808 = vadd.f32 %v744, 0.0
    %v809 = vadd.f32 %v745, 0.0
    %v810 = vadd.f32 %v746, 0.0
    %v811 = vadd.f32 %v747, 0.0
    %v812 = vadd.f32 %v748, 0.0
    %v813 = vadd.f32 %v749, 0.0
    %v814 = vadd.f32 %v750, 0.0
    %v815 = vadd.f32 %v751, 0.0
    %v816 = vadd.f32 %v752, 0.0
    %v817 = vadd.f32 %v753, 0.0
    %v818 = vadd.f32 %v754, 0.0
    %v819 = vadd.f32 %v755, 0.0
    %v820 = vadd.f32 %v756, 0.0
    %v821 = vadd.f32 %v757, 0.0
    %v822 = vadd.f32 %v758, 0.0
    %v823 = vadd.f32 %v759, 0.0
    %v824 = vadd.f32 %v760, 0.0
    %v825 = vadd.f32 %v761, 0.0
    %v826 = vadd.f32 %v762, 0.0
    %v827 = vadd.f32 %v763, 0.0
    %v828 = vadd.f32 %v764, 0.0
    %v829 = vadd.f32 %v765, 0.0
    %v830 = vadd.f32 %v766, 0.0
    %v831 = vadd.f32 %v767, 0.0
    %v832 = vadd.f32 %v768, 0.0
    %v833 = vadd.f32 %v769, 0.0
    %v834 = vadd.f32 %v770, 0.0
    %v835 = vadd.f32 %v771, 0.0
    %v836 = vadd.f32 %v772, 0.0
    %v837 = vadd.f32 %v773, 0.0
    %v838 = vadd.f32 %v774, 0.0
    %v839 = vadd.f32 %v775, 0.0
    %v840 = vadd.f32 %v776, 0.0
    %v841 = vadd.f32 %v777, 0.0
    %v842 = vadd.f32 %v778, 0.0
    %v843 = vadd.f32 %v779, 0.0
    %v844 = vadd.f32 %v780, 0.0
    %v845 = vadd.f32 %v781, 0.0
    %v846 = vadd.f32 %v782, 0.0
    %vm879 = vcmask 1046528
    %v880 = vrot.slane %v284, 1
    %v881 = vrot.slane %v285, 1
    %v882 = vsel %vm879, %v880, %v881
    %v883 = vrot.slane %v286, 1
    %v884 = vsel %vm879, %v881, %v883
    %v885 = vrot.slane %v287, 1
    %v886 = vrot.slane %v288, 1
    %v887 = vsel %vm879, %v885, %v886
    %v888 = vrot.slane %v289, 1
    %v889 = vsel %vm879, %v886, %v888
    %v890 = vrot.slane %v290, 1
    %v891 = vrot.slane %v291, 1
    %v892 = vsel %vm879, %v890, %v891
    %v893 = vrot.slane %v292, 1
    %v894 = vsel %vm879, %v891, %v893
    %v895 = vrot.slane %v293, 1
    %v896 = vrot.slane %v294, 1
    %v897 = vsel %vm879, %v895, %v896
    %v898 = vrot.slane %v295, 1
    %v899 = vsel %vm879, %v896, %v898
    %v900 = vrot.slane %v296, 1
    %v901 = vrot.slane %v297, 1
    %v902 = vsel %vm879, %v900, %v901
    %v903 = vrot.slane %v298, 1
    %v904 = vsel %vm879, %v901, %v903
    %v905 = vrot.slane %v299, 1
    %v906 = vrot.slane %v300, 1
    %v907 = vsel %vm879, %v905, %v906
    %v908 = vrot.slane %v301, 1
    %v909 = vsel %vm879, %v906, %v908
    %v910 = vrot.slane %v302, 1
    %v911 = vrot.slane %v303, 1
    %v912 = vsel %vm879, %v910, %v911
    %v913 = vrot.slane %v304, 1
    %v914 = vsel %vm879, %v911, %v913
    %v915 = vrot.slane %v305, 1
    %v916 = vrot.slane %v306, 1
    %v917 = vsel %vm879, %v915, %v916
    %v918 = vrot.slane %v307, 1
    %v919 = vsel %vm879, %v916, %v918
    %v920 = vrot.slane %v308, 1
    %v921 = vrot.slane %v309, 1
    %v922 = vsel %vm879, %v920, %v921
    %v923 = vrot.slane %v310, 1
    %v924 = vsel %vm879, %v921, %v923
    %v925 = vrot.slane %v311, 1
    %v926 = vrot.slane %v312, 1
    %v927 = vsel %vm879, %v925, %v926
    %v928 = vrot.slane %v313, 1
    %v929 = vsel %vm879, %v926, %v928
    %v930 = vrot.slane %v314, 1
    %v931 = vrot.slane %v315, 1
    %v932 = vsel %vm879, %v930, %v931
    %v933 = vrot.slane %v316, 1
    %v934 = vsel %vm879, %v931, %v933
    %v935 = vrot.slane %v317, 1
    %v936 = vrot.slane %v318, 1
    %v937 = vsel %vm879, %v935, %v936
    %v938 = vrot.slane %v319, 1
    %v939 = vsel %vm879, %v936, %v938
    %v940 = vrot.slane %v320, 1
    %v941 = vrot.slane %v321, 1
    %v942 = vsel %vm879, %v940, %v941
    %v943 = vrot.slane %v322, 1
    %v944 = vsel %vm879, %v941, %v943
    %v945 = vrot.slane %v323, 1
    %v946 = vrot.slane %v324, 1
    %v947 = vsel %vm879, %v945, %v946
    %v948 = vrot.slane %v325, 1
    %v949 = vsel %vm879, %v946, %v948
    %v950 = vrot.slane %v326, 1
    %v951 = vrot.slane %v327, 1
    %v952 = vsel %vm879, %v950, %v951
    %v953 = vrot.slane %v328, 1
    %v954 = vsel %vm879, %v951, %v953
    %v955 = vrot.slane %v329, 1
    %v956 = vrot.slane %v330, 1
    %v957 = vsel %vm879, %v955, %v956
    %v958 = vrot.slane %v331, 1
    %v959 = vsel %vm879, %v956, %v958
    %v960 = vrot.slane %v338, 1
    %v961 = vrot.slane %v339, 1
    %v962 = vsel %vm879, %v960, %v961
    %v963 = vrot.slane %v340, 1
    %v964 = vsel %vm879, %v961, %v963
    %v965 = vrot.slane %v341, 1
    %v966 = vrot.slane %v342, 1
    %v967 = vsel %vm879, %v965, %v966
    %v968 = vrot.slane %v343, 1
    %v969 = vsel %vm879, %v966, %v968
    %v970 = vrot.slane %v344, 1
    %v971 = vrot.slane %v345, 1
    %v972 = vsel %vm879, %v970, %v971
    %v973 = vrot.slane %v346, 1
    %v974 = vsel %vm879, %v971, %v973
    %v975 = vrot.slane %v347, 1
    %v976 = vrot.slane %v348, 1
    %v977 = vsel %vm879, %v975, %v976
    %v978 = vrot.slane %v349, 1
    %v979 = vsel %vm879, %v976, %v978
    %v980 = vrot.slane %v350, 1
    %v981 = vrot.slane %v351, 1
    %v982 = vsel %vm879, %v980, %v981
    %v983 = vrot.slane %v352, 1
    %v984 = vsel %vm879, %v981, %v983
    %v985 = vrot.slane %v353, 1
    %v986 = vrot.slane %v354, 1
    %v987 = vsel %vm879, %v985, %v986
    %v988 = vrot.slane %v355, 1
    %v989 = vsel %vm879, %v986, %v988
    %v990 = vrot.slane %v356, 1
    %v991 = vrot.slane %v357, 1
    %v992 = vsel %vm879, %v990, %v991
    %v993 = vrot.slane %v358, 1
    %v994 = vsel %vm879, %v991, %v993
    %v995 = vrot.slane %v359, 1
    %v996 = vrot.slane %v360, 1
    %v997 = vsel %vm879, %v995, %v996
    %v998 = vrot.slane %v361, 1
    %v999 = vsel %vm879, %v996, %v998
    %v1000 = vrot.slane %v362, 1
    %v1001 = vrot.slane %v363, 1
    %v1002 = vsel %vm879, %v1000, %v1001
    %v1003 = vrot.slane %v364, 1
    %v1004 = vsel %vm879, %v1001, %v1003
    %v1005 = vrot.slane %v365, 1
    %v1006 = vrot.slane %v366, 1
    %v1007 = vsel %vm879, %v1005, %v1006
    %v1008 = vrot.slane %v367, 1
    %v1009 = vsel %vm879, %v1006, %v1008
    %v1010 = vrot.slane %v368, 1
    %v1011 = vrot.slane %v369, 1
    %v1012 = vsel %vm879, %v1010, %v1011
    %v1013 = vrot.slane %v370, 1
    %v1014 = vsel %vm879, %v1011, %v1013
    %v1015 = vrot.slane %v371, 1
    %v1016 = vrot.slane %v372, 1
    %v1017 = vsel %vm879, %v1015, %v1016
    %v1018 = vrot.slane %v373, 1
    %v1019 = vsel %vm879, %v1016, %v1018
    %v1020 = vrot.slane %v374, 1
    %v1021 = vrot.slane %v375, 1
    %v1022 = vsel %vm879, %v1020, %v1021
    %v1023 = vrot.slane %v376, 1
    %v1024 = vsel %vm879, %v1021, %v1023
    %v1025 = vrot.slane %v377, 1
    %v1026 = vrot.slane %v378, 1
    %v1027 = vsel %vm879, %v1025, %v1026
    %v1028 = vrot.slane %v379, 1
    %v1029 = vsel %vm879, %v1026, %v1028
    %v1030 = vrot.slane %v380, 1
    %v1031 = vrot.slane %v381, 1
    %v1032 = vsel %vm879, %v1030, %v1031
    %v1033 = vrot.slane %v382, 1
    %v1034 = vsel %vm879, %v1031, %v1033
    %v1035 = vrot.slane %v383, 1
    %v1036 = vrot.slane %v384, 1
    %v1037 = vsel %vm879, %v1035, %v1036
    %v1038 = vrot.slane %v385, 1
    %v1039 = vsel %vm879, %v1036, %v1038
    %s1040 = scalar_lea.vmem %s1, 1
    %v1041 = vld [vmem:[%s1040] sm:$0x1]
    %1042 = vset.pattern.permute.xlu0 0
    %1043 = vperm.xlu0 %1042, %v882
    %v1044 = vpop.permute.xlu0 %1043
    %1046 = vset.pattern.permute.xlu0 0
    %1047 = vperm.xlu0 %1046, %v884
    %v1048 = vpop.permute.xlu0 %1047
    %1050 = vset.pattern.permute.xlu0 0
    %1051 = vperm.xlu0 %1050, %v887
    %v1052 = vpop.permute.xlu0 %1051
    %1054 = vset.pattern.permute.xlu0 0
    %1055 = vperm.xlu0 %1054, %v889
    %v1056 = vpop.permute.xlu0 %1055
    %1058 = vset.pattern.permute.xlu0 0
    %1059 = vperm.xlu0 %1058, %v892
    %v1060 = vpop.permute.xlu0 %1059
    %1062 = vset.pattern.permute.xlu0 0
    %1063 = vperm.xlu0 %1062, %v894
    %v1064 = vpop.permute.xlu0 %1063
    %1066 = vset.pattern.permute.xlu0 0
    %1067 = vperm.xlu0 %1066, %v897
    %v1068 = vpop.permute.xlu0 %1067
    %1070 = vset.pattern.permute.xlu0 0
    %1071 = vperm.xlu0 %1070, %v899
    %v1072 = vpop.permute.xlu0 %1071
    %1074 = vset.pattern.permute.xlu0 0
    %1075 = vperm.xlu0 %1074, %v902
    %v1076 = vpop.permute.xlu0 %1075
    %1078 = vset.pattern.permute.xlu0 0
    %1079 = vperm.xlu0 %1078, %v904
    %v1080 = vpop.permute.xlu0 %1079
    %1082 = vset.pattern.permute.xlu0 0
    %1083 = vperm.xlu0 %1082, %v907
    %v1084 = vpop.permute.xlu0 %1083
    %1086 = vset.pattern.permute.xlu0 0
    %1087 = vperm.xlu0 %1086, %v909
    %v1088 = vpop.permute.xlu0 %1087
    %1090 = vset.pattern.permute.xlu0 0
    %1091 = vperm.xlu0 %1090, %v912
    %v1092 = vpop.permute.xlu0 %1091
    %1094 = vset.pattern.permute.xlu0 0
    %1095 = vperm.xlu0 %1094, %v914
    %v1096 = vpop.permute.xlu0 %1095
    %1098 = vset.pattern.permute.xlu0 0
    %1099 = vperm.xlu0 %1098, %v917
    %v1100 = vpop.permute.xlu0 %1099
    %1102 = vset.pattern.permute.xlu0 0
    %1103 = vperm.xlu0 %1102, %v919
    %v1104 = vpop.permute.xlu0 %1103
    %1106 = vset.pattern.permute.xlu0 0
    %1107 = vperm.xlu0 %1106, %v922
    %v1108 = vpop.permute.xlu0 %1107
    %1110 = vset.pattern.permute.xlu0 0
    %1111 = vperm.xlu0 %1110, %v924
    %v1112 = vpop.permute.xlu0 %1111
    %1114 = vset.pattern.permute.xlu0 0
    %1115 = vperm.xlu0 %1114, %v927
    %v1116 = vpop.permute.xlu0 %1115
    %1118 = vset.pattern.permute.xlu0 0
    %1119 = vperm.xlu0 %1118, %v929
    %v1120 = vpop.permute.xlu0 %1119
    %1122 = vset.pattern.permute.xlu0 0
    %1123 = vperm.xlu0 %1122, %v932
    %v1124 = vpop.permute.xlu0 %1123
    %1126 = vset.pattern.permute.xlu0 0
    %1127 = vperm.xlu0 %1126, %v934
    %v1128 = vpop.permute.xlu0 %1127
    %1130 = vset.pattern.permute.xlu0 0
    %1131 = vperm.xlu0 %1130, %v937
    %v1132 = vpop.permute.xlu0 %1131
    %1134 = vset.pattern.permute.xlu0 0
    %1135 = vperm.xlu0 %1134, %v939
    %v1136 = vpop.permute.xlu0 %1135
    %1138 = vset.pattern.permute.xlu0 0
    %1139 = vperm.xlu0 %1138, %v942
    %v1140 = vpop.permute.xlu0 %1139
    %1142 = vset.pattern.permute.xlu0 0
    %1143 = vperm.xlu0 %1142, %v944
    %v1144 = vpop.permute.xlu0 %1143
    %1146 = vset.pattern.permute.xlu0 0
    %1147 = vperm.xlu0 %1146, %v947
    %v1148 = vpop.permute.xlu0 %1147
    %1150 = vset.pattern.permute.xlu0 0
    %1151 = vperm.xlu0 %1150, %v949
    %v1152 = vpop.permute.xlu0 %1151
    %1154 = vset.pattern.permute.xlu0 0
    %1155 = vperm.xlu0 %1154, %v952
    %v1156 = vpop.permute.xlu0 %1155
    %1158 = vset.pattern.permute.xlu0 0
    %1159 = vperm.xlu0 %1158, %v954
    %v1160 = vpop.permute.xlu0 %1159
    %1162 = vset.pattern.permute.xlu0 0
    %1163 = vperm.xlu0 %1162, %v957
    %v1164 = vpop.permute.xlu0 %1163
    %1166 = vset.pattern.permute.xlu0 0
    %1167 = vperm.xlu0 %1166, %v959
    %v1168 = vpop.permute.xlu0 %1167
    %1170 = vset.pattern.permute.xlu0 0
    %1171 = vperm.xlu0 %1170, %v962
    %v1172 = vpop.permute.xlu0 %1171
    %1174 = vset.pattern.permute.xlu0 0
    %1175 = vperm.xlu0 %1174, %v964
    %v1176 = vpop.permute.xlu0 %1175
    %1178 = vset.pattern.permute.xlu0 0
    %1179 = vperm.xlu0 %1178, %v967
    %v1180 = vpop.permute.xlu0 %1179
    %1182 = vset.pattern.permute.xlu0 0
    %1183 = vperm.xlu0 %1182, %v969
    %v1184 = vpop.permute.xlu0 %1183
    %1186 = vset.pattern.permute.xlu0 0
    %1187 = vperm.xlu0 %1186, %v972
    %v1188 = vpop.permute.xlu0 %1187
    %1190 = vset.pattern.permute.xlu0 0
    %1191 = vperm.xlu0 %1190, %v974
    %v1192 = vpop.permute.xlu0 %1191
    %1194 = vset.pattern.permute.xlu0 0
    %1195 = vperm.xlu0 %1194, %v977
    %v1196 = vpop.permute.xlu0 %1195
    %1198 = vset.pattern.permute.xlu0 0
    %1199 = vperm.xlu0 %1198, %v979
    %v1200 = vpop.permute.xlu0 %1199
    %1202 = vset.pattern.permute.xlu0 0
    %1203 = vperm.xlu0 %1202, %v982
    %v1204 = vpop.permute.xlu0 %1203
    %1206 = vset.pattern.permute.xlu0 0
    %1207 = vperm.xlu0 %1206, %v984
    %v1208 = vpop.permute.xlu0 %1207
    %1210 = vset.pattern.permute.xlu0 0
    %1211 = vperm.xlu0 %1210, %v987
    %v1212 = vpop.permute.xlu0 %1211
    %1214 = vset.pattern.permute.xlu0 0
    %1215 = vperm.xlu0 %1214, %v989
    %v1216 = vpop.permute.xlu0 %1215
    %1218 = vset.pattern.permute.xlu0 0
    %1219 = vperm.xlu0 %1218, %v992
    %v1220 = vpop.permute.xlu0 %1219
    %1222 = vset.pattern.permute.xlu0 0
    %1223 = vperm.xlu0 %1222, %v994
    %v1224 = vpop.permute.xlu0 %1223
    %1226 = vset.pattern.permute.xlu0 0
    %1227 = vperm.xlu0 %1226, %v997
    %v1228 = vpop.permute.xlu0 %1227
    %1230 = vset.pattern.permute.xlu0 0
    %1231 = vperm.xlu0 %1230, %v999
    %v1232 = vpop.permute.xlu0 %1231
    %1234 = vset.pattern.permute.xlu0 0
    %1235 = vperm.xlu0 %1234, %v1002
    %v1236 = vpop.permute.xlu0 %1235
    %1238 = vset.pattern.permute.xlu0 0
    %1239 = vperm.xlu0 %1238, %v1004
    %v1240 = vpop.permute.xlu0 %1239
    %1242 = vset.pattern.permute.xlu0 0
    %1243 = vperm.xlu0 %1242, %v1007
    %v1244 = vpop.permute.xlu0 %1243
    %1246 = vset.pattern.permute.xlu0 0
    %1247 = vperm.xlu0 %1246, %v1009
    %v1248 = vpop.permute.xlu0 %1247
    %1250 = vset.pattern.permute.xlu0 0
    %1251 = vperm.xlu0 %1250, %v1012
    %v1252 = vpop.permute.xlu0 %1251
    %1254 = vset.pattern.permute.xlu0 0
    %1255 = vperm.xlu0 %1254, %v1014
    %v1256 = vpop.permute.xlu0 %1255
    %1258 = vset.pattern.permute.xlu0 0
    %1259 = vperm.xlu0 %1258, %v1017
    %v1260 = vpop.permute.xlu0 %1259
    %1262 = vset.pattern.permute.xlu0 0
    %1263 = vperm.xlu0 %1262, %v1019
    %v1264 = vpop.permute.xlu0 %1263
    %1266 = vset.pattern.permute.xlu0 0
    %1267 = vperm.xlu0 %1266, %v1022
    %v1268 = vpop.permute.xlu0 %1267
    %1270 = vset.pattern.permute.xlu0 0
    %1271 = vperm.xlu0 %1270, %v1024
    %v1272 = vpop.permute.xlu0 %1271
    %1274 = vset.pattern.permute.xlu0 0
    %1275 = vperm.xlu0 %1274, %v1027
    %v1276 = vpop.permute.xlu0 %1275
    %1278 = vset.pattern.permute.xlu0 0
    %1279 = vperm.xlu0 %1278, %v1029
    %v1280 = vpop.permute.xlu0 %1279
    %1282 = vset.pattern.permute.xlu0 0
    %1283 = vperm.xlu0 %1282, %v1032
    %v1284 = vpop.permute.xlu0 %1283
    %1286 = vset.pattern.permute.xlu0 0
    %1287 = vperm.xlu0 %1286, %v1034
    %v1288 = vpop.permute.xlu0 %1287
    %1290 = vset.pattern.permute.xlu0 0
    %1291 = vperm.xlu0 %1290, %v1037
    %v1292 = vpop.permute.xlu0 %1291
    %1294 = vset.pattern.permute.xlu0 0
    %1295 = vperm.xlu0 %1294, %v1039
    %v1296 = vpop.permute.xlu0 %1295
    %v1299 = vlaneseq
    %v1300 = vshrl.u32 %v1299, 7
    %v1301 = vsub.s32 0, %v1300
    %v1302 = vrot.slane %v1041, %v1301
    %v1304 = vmul.f32 %v1044, %v1302
    %v1305 = vmul.f32 %v1048, %v1302
    %v1306 = vmul.f32 %v1052, %v1302
    %v1307 = vmul.f32 %v1056, %v1302
    %v1308 = vmul.f32 %v1060, %v1302
    %v1309 = vmul.f32 %v1064, %v1302
    %v1310 = vmul.f32 %v1068, %v1302
    %v1311 = vmul.f32 %v1072, %v1302
    %v1312 = vmul.f32 %v1076, %v1302
    %v1313 = vmul.f32 %v1080, %v1302
    %v1314 = vmul.f32 %v1084, %v1302
    %v1315 = vmul.f32 %v1088, %v1302
    %v1316 = vmul.f32 %v1092, %v1302
    %v1317 = vmul.f32 %v1096, %v1302
    %v1318 = vmul.f32 %v1100, %v1302
    %v1319 = vmul.f32 %v1104, %v1302
    %v1320 = vmul.f32 %v1108, %v1302
    %v1321 = vmul.f32 %v1112, %v1302
    %v1322 = vmul.f32 %v1116, %v1302
    %v1323 = vmul.f32 %v1120, %v1302
    %v1324 = vmul.f32 %v1124, %v1302
    %v1325 = vmul.f32 %v1128, %v1302
    %v1326 = vmul.f32 %v1132, %v1302
    %v1327 = vmul.f32 %v1136, %v1302
    %v1328 = vmul.f32 %v1140, %v1302
    %v1329 = vmul.f32 %v1144, %v1302
    %v1330 = vmul.f32 %v1148, %v1302
    %v1331 = vmul.f32 %v1152, %v1302
    %v1332 = vmul.f32 %v1156, %v1302
    %v1333 = vmul.f32 %v1160, %v1302
    %v1334 = vmul.f32 %v1164, %v1302
    %v1335 = vmul.f32 %v1168, %v1302
    %v1336 = vmul.f32 %v1172, %v1302
    %v1337 = vmul.f32 %v1176, %v1302
    %v1338 = vmul.f32 %v1180, %v1302
    %v1339 = vmul.f32 %v1184, %v1302
    %v1340 = vmul.f32 %v1188, %v1302
    %v1341 = vmul.f32 %v1192, %v1302
    %v1342 = vmul.f32 %v1196, %v1302
    %v1343 = vmul.f32 %v1200, %v1302
    %v1344 = vmul.f32 %v1204, %v1302
    %v1345 = vmul.f32 %v1208, %v1302
    %v1346 = vmul.f32 %v1212, %v1302
    %v1347 = vmul.f32 %v1216, %v1302
    %v1348 = vmul.f32 %v1220, %v1302
    %v1349 = vmul.f32 %v1224, %v1302
    %v1350 = vmul.f32 %v1228, %v1302
    %v1351 = vmul.f32 %v1232, %v1302
    %v1352 = vmul.f32 %v1236, %v1302
    %v1353 = vmul.f32 %v1240, %v1302
    %v1354 = vmul.f32 %v1244, %v1302
    %v1355 = vmul.f32 %v1248, %v1302
    %v1356 = vmul.f32 %v1252, %v1302
    %v1357 = vmul.f32 %v1256, %v1302
    %v1358 = vmul.f32 %v1260, %v1302
    %v1359 = vmul.f32 %v1264, %v1302
    %v1360 = vmul.f32 %v1268, %v1302
    %v1361 = vmul.f32 %v1272, %v1302
    %v1362 = vmul.f32 %v1276, %v1302
    %v1363 = vmul.f32 %v1280, %v1302
    %v1364 = vmul.f32 %v1284, %v1302
    %v1365 = vmul.f32 %v1288, %v1302
    %v1366 = vmul.f32 %v1292, %v1302
    %v1367 = vmul.f32 %v1296, %v1302
    %v1368 = vadd.f32 %v783, %v1304
    %v1369 = vadd.f32 %v784, %v1305
    %v1370 = vadd.f32 %v785, %v1306
    %v1371 = vadd.f32 %v786, %v1307
    %v1372 = vadd.f32 %v787, %v1308
    %v1373 = vadd.f32 %v788, %v1309
    %v1374 = vadd.f32 %v789, %v1310
    %v1375 = vadd.f32 %v790, %v1311
    %v1376 = vadd.f32 %v791, %v1312
    %v1377 = vadd.f32 %v792, %v1313
    %v1378 = vadd.f32 %v793, %v1314
    %v1379 = vadd.f32 %v794, %v1315
    %v1380 = vadd.f32 %v795, %v1316
    %v1381 = vadd.f32 %v796, %v1317
    %v1382 = vadd.f32 %v797, %v1318
    %v1383 = vadd.f32 %v798, %v1319
    %v1384 = vadd.f32 %v799, %v1320
    %v1385 = vadd.f32 %v800, %v1321
    %v1386 = vadd.f32 %v801, %v1322
    %v1387 = vadd.f32 %v802, %v1323
    %v1388 = vadd.f32 %v803, %v1324
    %v1389 = vadd.f32 %v804, %v1325
    %v1390 = vadd.f32 %v805, %v1326
    %v1391 = vadd.f32 %v806, %v1327
    %v1392 = vadd.f32 %v807, %v1328
    %v1393 = vadd.f32 %v808, %v1329
    %v1394 = vadd.f32 %v809, %v1330
    %v1395 = vadd.f32 %v810, %v1331
    %v1396 = vadd.f32 %v811, %v1332
    %v1397 = vadd.f32 %v812, %v1333
    %v1398 = vadd.f32 %v813, %v1334
    %v1399 = vadd.f32 %v814, %v1335
    %v1400 = vadd.f32 %v815, %v1336
    %v1401 = vadd.f32 %v816, %v1337
    %v1402 = vadd.f32 %v817, %v1338
    %v1403 = vadd.f32 %v818, %v1339
    %v1404 = vadd.f32 %v819, %v1340
    %v1405 = vadd.f32 %v820, %v1341
    %v1406 = vadd.f32 %v821, %v1342
    %v1407 = vadd.f32 %v822, %v1343
    %v1408 = vadd.f32 %v823, %v1344
    %v1409 = vadd.f32 %v824, %v1345
    %v1410 = vadd.f32 %v825, %v1346
    %v1411 = vadd.f32 %v826, %v1347
    %v1412 = vadd.f32 %v827, %v1348
    %v1413 = vadd.f32 %v828, %v1349
    %v1414 = vadd.f32 %v829, %v1350
    %v1415 = vadd.f32 %v830, %v1351
    %v1416 = vadd.f32 %v831, %v1352
    %v1417 = vadd.f32 %v832, %v1353
    %v1418 = vadd.f32 %v833, %v1354
    %v1419 = vadd.f32 %v834, %v1355
    %v1420 = vadd.f32 %v835, %v1356
    %v1421 = vadd.f32 %v836, %v1357
    %v1422 = vadd.f32 %v837, %v1358
    %v1423 = vadd.f32 %v838, %v1359
    %v1424 = vadd.f32 %v839, %v1360
    %v1425 = vadd.f32 %v840, %v1361
    %v1426 = vadd.f32 %v841, %v1362
    %v1427 = vadd.f32 %v842, %v1363
    %v1428 = vadd.f32 %v843, %v1364
    %v1429 = vadd.f32 %v844, %v1365
    %v1430 = vadd.f32 %v845, %v1366
    %v1431 = vadd.f32 %v846, %v1367
    %vm1432 = vcmask 1045504
    %v1433 = vrot.slane %v284, 2
    %v1434 = vrot.slane %v285, 2
    %v1435 = vsel %vm1432, %v1433, %v1434
    %v1436 = vrot.slane %v286, 2
    %v1437 = vsel %vm1432, %v1434, %v1436
    %v1438 = vrot.slane %v287, 2
    %v1439 = vrot.slane %v288, 2
    %v1440 = vsel %vm1432, %v1438, %v1439
    %v1441 = vrot.slane %v289, 2
    %v1442 = vsel %vm1432, %v1439, %v1441
    %v1443 = vrot.slane %v290, 2
    %v1444 = vrot.slane %v291, 2
    %v1445 = vsel %vm1432, %v1443, %v1444
    %v1446 = vrot.slane %v292, 2
    %v1447 = vsel %vm1432, %v1444, %v1446
    %v1448 = vrot.slane %v293, 2
    %v1449 = vrot.slane %v294, 2
    %v1450 = vsel %vm1432, %v1448, %v1449
    %v1451 = vrot.slane %v295, 2
    %v1452 = vsel %vm1432, %v1449, %v1451
    %v1453 = vrot.slane %v296, 2
    %v1454 = vrot.slane %v297, 2
    %v1455 = vsel %vm1432, %v1453, %v1454
    %v1456 = vrot.slane %v298, 2
    %v1457 = vsel %vm1432, %v1454, %v1456
    %v1458 = vrot.slane %v299, 2
    %v1459 = vrot.slane %v300, 2
    %v1460 = vsel %vm1432, %v1458, %v1459
    %v1461 = vrot.slane %v301, 2
    %v1462 = vsel %vm1432, %v1459, %v1461
    %v1463 = vrot.slane %v302, 2
    %v1464 = vrot.slane %v303, 2
    %v1465 = vsel %vm1432, %v1463, %v1464
    %v1466 = vrot.slane %v304, 2
    %v1467 = vsel %vm1432, %v1464, %v1466
    %v1468 = vrot.slane %v305, 2
    %v1469 = vrot.slane %v306, 2
    %v1470 = vsel %vm1432, %v1468, %v1469
    %v1471 = vrot.slane %v307, 2
    %v1472 = vsel %vm1432, %v1469, %v1471
    %v1473 = vrot.slane %v308, 2
    %v1474 = vrot.slane %v309, 2
    %v1475 = vsel %vm1432, %v1473, %v1474
    %v1476 = vrot.slane %v310, 2
    %v1477 = vsel %vm1432, %v1474, %v1476
    %v1478 = vrot.slane %v311, 2
    %v1479 = vrot.slane %v312, 2
    %v1480 = vsel %vm1432, %v1478, %v1479
    %v1481 = vrot.slane %v313, 2
    %v1482 = vsel %vm1432, %v1479, %v1481
    %v1483 = vrot.slane %v314, 2
    %v1484 = vrot.slane %v315, 2
    %v1485 = vsel %vm1432, %v1483, %v1484
    %v1486 = vrot.slane %v316, 2
    %v1487 = vsel %vm1432, %v1484, %v1486
    %v1488 = vrot.slane %v317, 2
    %v1489 = vrot.slane %v318, 2
    %v1490 = vsel %vm1432, %v1488, %v1489
    %v1491 = vrot.slane %v319, 2
    %v1492 = vsel %vm1432, %v1489, %v1491
    %v1493 = vrot.slane %v320, 2
    %v1494 = vrot.slane %v321, 2
    %v1495 = vsel %vm1432, %v1493, %v1494
    %v1496 = vrot.slane %v322, 2
    %v1497 = vsel %vm1432, %v1494, %v1496
    %v1498 = vrot.slane %v323, 2
    %v1499 = vrot.slane %v324, 2
    %v1500 = vsel %vm1432, %v1498, %v1499
    %v1501 = vrot.slane %v325, 2
    %v1502 = vsel %vm1432, %v1499, %v1501
    %v1503 = vrot.slane %v326, 2
    %v1504 = vrot.slane %v327, 2
    %v1505 = vsel %vm1432, %v1503, %v1504
    %v1506 = vrot.slane %v328, 2
    %v1507 = vsel %vm1432, %v1504, %v1506
    %v1508 = vrot.slane %v329, 2
    %v1509 = vrot.slane %v330, 2
    %v1510 = vsel %vm1432, %v1508, %v1509
    %v1511 = vrot.slane %v331, 2
    %v1512 = vsel %vm1432, %v1509, %v1511
    %v1513 = vrot.slane %v338, 2
    %v1514 = vrot.slane %v339, 2
    %v1515 = vsel %vm1432, %v1513, %v1514
    %v1516 = vrot.slane %v340, 2
    %v1517 = vsel %vm1432, %v1514, %v1516
    %v1518 = vrot.slane %v341, 2
    %v1519 = vrot.slane %v342, 2
    %v1520 = vsel %vm1432, %v1518, %v1519
    %v1521 = vrot.slane %v343, 2
    %v1522 = vsel %vm1432, %v1519, %v1521
    %v1523 = vrot.slane %v344, 2
    %v1524 = vrot.slane %v345, 2
    %v1525 = vsel %vm1432, %v1523, %v1524
    %v1526 = vrot.slane %v346, 2
    %v1527 = vsel %vm1432, %v1524, %v1526
    %v1528 = vrot.slane %v347, 2
    %v1529 = vrot.slane %v348, 2
    %v1530 = vsel %vm1432, %v1528, %v1529
    %v1531 = vrot.slane %v349, 2
    %v1532 = vsel %vm1432, %v1529, %v1531
    %v1533 = vrot.slane %v350, 2
    %v1534 = vrot.slane %v351, 2
    %v1535 = vsel %vm1432, %v1533, %v1534
    %v1536 = vrot.slane %v352, 2
    %v1537 = vsel %vm1432, %v1534, %v1536
    %v1538 = vrot.slane %v353, 2
    %v1539 = vrot.slane %v354, 2
    %v1540 = vsel %vm1432, %v1538, %v1539
    %v1541 = vrot.slane %v355, 2
    %v1542 = vsel %vm1432, %v1539, %v1541
    %v1543 = vrot.slane %v356, 2
    %v1544 = vrot.slane %v357, 2
    %v1545 = vsel %vm1432, %v1543, %v1544
    %v1546 = vrot.slane %v358, 2
    %v1547 = vsel %vm1432, %v1544, %v1546
    %v1548 = vrot.slane %v359, 2
    %v1549 = vrot.slane %v360, 2
    %v1550 = vsel %vm1432, %v1548, %v1549
    %v1551 = vrot.slane %v361, 2
    %v1552 = vsel %vm1432, %v1549, %v1551
    %v1553 = vrot.slane %v362, 2
    %v1554 = vrot.slane %v363, 2
    %v1555 = vsel %vm1432, %v1553, %v1554
    %v1556 = vrot.slane %v364, 2
    %v1557 = vsel %vm1432, %v1554, %v1556
    %v1558 = vrot.slane %v365, 2
    %v1559 = vrot.slane %v366, 2
    %v1560 = vsel %vm1432, %v1558, %v1559
    %v1561 = vrot.slane %v367, 2
    %v1562 = vsel %vm1432, %v1559, %v1561
    %v1563 = vrot.slane %v368, 2
    %v1564 = vrot.slane %v369, 2
    %v1565 = vsel %vm1432, %v1563, %v1564
    %v1566 = vrot.slane %v370, 2
    %v1567 = vsel %vm1432, %v1564, %v1566
    %v1568 = vrot.slane %v371, 2
    %v1569 = vrot.slane %v372, 2
    %v1570 = vsel %vm1432, %v1568, %v1569
    %v1571 = vrot.slane %v373, 2
    %v1572 = vsel %vm1432, %v1569, %v1571
    %v1573 = vrot.slane %v374, 2
    %v1574 = vrot.slane %v375, 2
    %v1575 = vsel %vm1432, %v1573, %v1574
    %v1576 = vrot.slane %v376, 2
    %v1577 = vsel %vm1432, %v1574, %v1576
    %v1578 = vrot.slane %v377, 2
    %v1579 = vrot.slane %v378, 2
    %v1580 = vsel %vm1432, %v1578, %v1579
    %v1581 = vrot.slane %v379, 2
    %v1582 = vsel %vm1432, %v1579, %v1581
    %v1583 = vrot.slane %v380, 2
    %v1584 = vrot.slane %v381, 2
    %v1585 = vsel %vm1432, %v1583, %v1584
    %v1586 = vrot.slane %v382, 2
    %v1587 = vsel %vm1432, %v1584, %v1586
    %v1588 = vrot.slane %v383, 2
    %v1589 = vrot.slane %v384, 2
    %v1590 = vsel %vm1432, %v1588, %v1589
    %v1591 = vrot.slane %v385, 2
    %v1592 = vsel %vm1432, %v1589, %v1591
    %s1593 = scalar_lea.vmem %s1, 2
    %v1594 = vld [vmem:[%s1593] sm:$0x1]
    %1595 = vset.pattern.permute.xlu0 0
    %1596 = vperm.xlu0 %1595, %v1435
    %v1597 = vpop.permute.xlu0 %1596
    %1599 = vset.pattern.permute.xlu0 0
    %1600 = vperm.xlu0 %1599, %v1437
    %v1601 = vpop.permute.xlu0 %1600
    %1603 = vset.pattern.permute.xlu0 0
    %1604 = vperm.xlu0 %1603, %v1440
    %v1605 = vpop.permute.xlu0 %1604
    %1607 = vset.pattern.permute.xlu0 0
    %1608 = vperm.xlu0 %1607, %v1442
    %v1609 = vpop.permute.xlu0 %1608
    %1611 = vset.pattern.permute.xlu0 0
    %1612 = vperm.xlu0 %1611, %v1445
    %v1613 = vpop.permute.xlu0 %1612
    %1615 = vset.pattern.permute.xlu0 0
    %1616 = vperm.xlu0 %1615, %v1447
    %v1617 = vpop.permute.xlu0 %1616
    %1619 = vset.pattern.permute.xlu0 0
    %1620 = vperm.xlu0 %1619, %v1450
    %v1621 = vpop.permute.xlu0 %1620
    %1623 = vset.pattern.permute.xlu0 0
    %1624 = vperm.xlu0 %1623, %v1452
    %v1625 = vpop.permute.xlu0 %1624
    %1627 = vset.pattern.permute.xlu0 0
    %1628 = vperm.xlu0 %1627, %v1455
    %v1629 = vpop.permute.xlu0 %1628
    %1631 = vset.pattern.permute.xlu0 0
    %1632 = vperm.xlu0 %1631, %v1457
    %v1633 = vpop.permute.xlu0 %1632
    %1635 = vset.pattern.permute.xlu0 0
    %1636 = vperm.xlu0 %1635, %v1460
    %v1637 = vpop.permute.xlu0 %1636
    %1639 = vset.pattern.permute.xlu0 0
    %1640 = vperm.xlu0 %1639, %v1462
    %v1641 = vpop.permute.xlu0 %1640
    %1643 = vset.pattern.permute.xlu0 0
    %1644 = vperm.xlu0 %1643, %v1465
    %v1645 = vpop.permute.xlu0 %1644
    %1647 = vset.pattern.permute.xlu0 0
    %1648 = vperm.xlu0 %1647, %v1467
    %v1649 = vpop.permute.xlu0 %1648
    %1651 = vset.pattern.permute.xlu0 0
    %1652 = vperm.xlu0 %1651, %v1470
    %v1653 = vpop.permute.xlu0 %1652
    %1655 = vset.pattern.permute.xlu0 0
    %1656 = vperm.xlu0 %1655, %v1472
    %v1657 = vpop.permute.xlu0 %1656
    %1659 = vset.pattern.permute.xlu0 0
    %1660 = vperm.xlu0 %1659, %v1475
    %v1661 = vpop.permute.xlu0 %1660
    %1663 = vset.pattern.permute.xlu0 0
    %1664 = vperm.xlu0 %1663, %v1477
    %v1665 = vpop.permute.xlu0 %1664
    %1667 = vset.pattern.permute.xlu0 0
    %1668 = vperm.xlu0 %1667, %v1480
    %v1669 = vpop.permute.xlu0 %1668
    %1671 = vset.pattern.permute.xlu0 0
    %1672 = vperm.xlu0 %1671, %v1482
    %v1673 = vpop.permute.xlu0 %1672
    %1675 = vset.pattern.permute.xlu0 0
    %1676 = vperm.xlu0 %1675, %v1485
    %v1677 = vpop.permute.xlu0 %1676
    %1679 = vset.pattern.permute.xlu0 0
    %1680 = vperm.xlu0 %1679, %v1487
    %v1681 = vpop.permute.xlu0 %1680
    %1683 = vset.pattern.permute.xlu0 0
    %1684 = vperm.xlu0 %1683, %v1490
    %v1685 = vpop.permute.xlu0 %1684
    %1687 = vset.pattern.permute.xlu0 0
    %1688 = vperm.xlu0 %1687, %v1492
    %v1689 = vpop.permute.xlu0 %1688
    %1691 = vset.pattern.permute.xlu0 0
    %1692 = vperm.xlu0 %1691, %v1495
    %v1693 = vpop.permute.xlu0 %1692
    %1695 = vset.pattern.permute.xlu0 0
    %1696 = vperm.xlu0 %1695, %v1497
    %v1697 = vpop.permute.xlu0 %1696
    %1699 = vset.pattern.permute.xlu0 0
    %1700 = vperm.xlu0 %1699, %v1500
    %v1701 = vpop.permute.xlu0 %1700
    %1703 = vset.pattern.permute.xlu0 0
    %1704 = vperm.xlu0 %1703, %v1502
    %v1705 = vpop.permute.xlu0 %1704
    %1707 = vset.pattern.permute.xlu0 0
    %1708 = vperm.xlu0 %1707, %v1505
    %v1709 = vpop.permute.xlu0 %1708
    %1711 = vset.pattern.permute.xlu0 0
    %1712 = vperm.xlu0 %1711, %v1507
    %v1713 = vpop.permute.xlu0 %1712
    %1715 = vset.pattern.permute.xlu0 0
    %1716 = vperm.xlu0 %1715, %v1510
    %v1717 = vpop.permute.xlu0 %1716
    %1719 = vset.pattern.permute.xlu0 0
    %1720 = vperm.xlu0 %1719, %v1512
    %v1721 = vpop.permute.xlu0 %1720
    %1723 = vset.pattern.permute.xlu0 0
    %1724 = vperm.xlu0 %1723, %v1515
    %v1725 = vpop.permute.xlu0 %1724
    %1727 = vset.pattern.permute.xlu0 0
    %1728 = vperm.xlu0 %1727, %v1517
    %v1729 = vpop.permute.xlu0 %1728
    %1731 = vset.pattern.permute.xlu0 0
    %1732 = vperm.xlu0 %1731, %v1520
    %v1733 = vpop.permute.xlu0 %1732
    %1735 = vset.pattern.permute.xlu0 0
    %1736 = vperm.xlu0 %1735, %v1522
    %v1737 = vpop.permute.xlu0 %1736
    %1739 = vset.pattern.permute.xlu0 0
    %1740 = vperm.xlu0 %1739, %v1525
    %v1741 = vpop.permute.xlu0 %1740
    %1743 = vset.pattern.permute.xlu0 0
    %1744 = vperm.xlu0 %1743, %v1527
    %v1745 = vpop.permute.xlu0 %1744
    %1747 = vset.pattern.permute.xlu0 0
    %1748 = vperm.xlu0 %1747, %v1530
    %v1749 = vpop.permute.xlu0 %1748
    %1751 = vset.pattern.permute.xlu0 0
    %1752 = vperm.xlu0 %1751, %v1532
    %v1753 = vpop.permute.xlu0 %1752
    %1755 = vset.pattern.permute.xlu0 0
    %1756 = vperm.xlu0 %1755, %v1535
    %v1757 = vpop.permute.xlu0 %1756
    %1759 = vset.pattern.permute.xlu0 0
    %1760 = vperm.xlu0 %1759, %v1537
    %v1761 = vpop.permute.xlu0 %1760
    %1763 = vset.pattern.permute.xlu0 0
    %1764 = vperm.xlu0 %1763, %v1540
    %v1765 = vpop.permute.xlu0 %1764
    %1767 = vset.pattern.permute.xlu0 0
    %1768 = vperm.xlu0 %1767, %v1542
    %v1769 = vpop.permute.xlu0 %1768
    %1771 = vset.pattern.permute.xlu0 0
    %1772 = vperm.xlu0 %1771, %v1545
    %v1773 = vpop.permute.xlu0 %1772
    %1775 = vset.pattern.permute.xlu0 0
    %1776 = vperm.xlu0 %1775, %v1547
    %v1777 = vpop.permute.xlu0 %1776
    %1779 = vset.pattern.permute.xlu0 0
    %1780 = vperm.xlu0 %1779, %v1550
    %v1781 = vpop.permute.xlu0 %1780
    %1783 = vset.pattern.permute.xlu0 0
    %1784 = vperm.xlu0 %1783, %v1552
    %v1785 = vpop.permute.xlu0 %1784
    %1787 = vset.pattern.permute.xlu0 0
    %1788 = vperm.xlu0 %1787, %v1555
    %v1789 = vpop.permute.xlu0 %1788
    %1791 = vset.pattern.permute.xlu0 0
    %1792 = vperm.xlu0 %1791, %v1557
    %v1793 = vpop.permute.xlu0 %1792
    %1795 = vset.pattern.permute.xlu0 0
    %1796 = vperm.xlu0 %1795, %v1560
    %v1797 = vpop.permute.xlu0 %1796
    %1799 = vset.pattern.permute.xlu0 0
    %1800 = vperm.xlu0 %1799, %v1562
    %v1801 = vpop.permute.xlu0 %1800
    %1803 = vset.pattern.permute.xlu0 0
    %1804 = vperm.xlu0 %1803, %v1565
    %v1805 = vpop.permute.xlu0 %1804
    %1807 = vset.pattern.permute.xlu0 0
    %1808 = vperm.xlu0 %1807, %v1567
    %v1809 = vpop.permute.xlu0 %1808
    %1811 = vset.pattern.permute.xlu0 0
    %1812 = vperm.xlu0 %1811, %v1570
    %v1813 = vpop.permute.xlu0 %1812
    %1815 = vset.pattern.permute.xlu0 0
    %1816 = vperm.xlu0 %1815, %v1572
    %v1817 = vpop.permute.xlu0 %1816
    %1819 = vset.pattern.permute.xlu0 0
    %1820 = vperm.xlu0 %1819, %v1575
    %v1821 = vpop.permute.xlu0 %1820
    %1823 = vset.pattern.permute.xlu0 0
    %1824 = vperm.xlu0 %1823, %v1577
    %v1825 = vpop.permute.xlu0 %1824
    %1827 = vset.pattern.permute.xlu0 0
    %1828 = vperm.xlu0 %1827, %v1580
    %v1829 = vpop.permute.xlu0 %1828
    %1831 = vset.pattern.permute.xlu0 0
    %1832 = vperm.xlu0 %1831, %v1582
    %v1833 = vpop.permute.xlu0 %1832
    %1835 = vset.pattern.permute.xlu0 0
    %1836 = vperm.xlu0 %1835, %v1585
    %v1837 = vpop.permute.xlu0 %1836
    %1839 = vset.pattern.permute.xlu0 0
    %1840 = vperm.xlu0 %1839, %v1587
    %v1841 = vpop.permute.xlu0 %1840
    %1843 = vset.pattern.permute.xlu0 0
    %1844 = vperm.xlu0 %1843, %v1590
    %v1845 = vpop.permute.xlu0 %1844
    %1847 = vset.pattern.permute.xlu0 0
    %1848 = vperm.xlu0 %1847, %v1592
    %v1849 = vpop.permute.xlu0 %1848
    %v1852 = vlaneseq
    %v1853 = vshrl.u32 %v1852, 7
    %v1854 = vsub.s32 0, %v1853
    %v1855 = vrot.slane %v1594, %v1854
    %v1857 = vmul.f32 %v1597, %v1855
    %v1858 = vmul.f32 %v1601, %v1855
    %v1859 = vmul.f32 %v1605, %v1855
    %v1860 = vmul.f32 %v1609, %v1855
    %v1861 = vmul.f32 %v1613, %v1855
    %v1862 = vmul.f32 %v1617, %v1855
    %v1863 = vmul.f32 %v1621, %v1855
    %v1864 = vmul.f32 %v1625, %v1855
    %v1865 = vmul.f32 %v1629, %v1855
    %v1866 = vmul.f32 %v1633, %v1855
    %v1867 = vmul.f32 %v1637, %v1855
    %v1868 = vmul.f32 %v1641, %v1855
    %v1869 = vmul.f32 %v1645, %v1855
    %v1870 = vmul.f32 %v1649, %v1855
    %v1871 = vmul.f32 %v1653, %v1855
    %v1872 = vmul.f32 %v1657, %v1855
    %v1873 = vmul.f32 %v1661, %v1855
    %v1874 = vmul.f32 %v1665, %v1855
    %v1875 = vmul.f32 %v1669, %v1855
    %v1876 = vmul.f32 %v1673, %v1855
    %v1877 = vmul.f32 %v1677, %v1855
    %v1878 = vmul.f32 %v1681, %v1855
    %v1879 = vmul.f32 %v1685, %v1855
    %v1880 = vmul.f32 %v1689, %v1855
    %v1881 = vmul.f32 %v1693, %v1855
    %v1882 = vmul.f32 %v1697, %v1855
    %v1883 = vmul.f32 %v1701, %v1855
    %v1884 = vmul.f32 %v1705, %v1855
    %v1885 = vmul.f32 %v1709, %v1855
    %v1886 = vmul.f32 %v1713, %v1855
    %v1887 = vmul.f32 %v1717, %v1855
    %v1888 = vmul.f32 %v1721, %v1855
    %v1889 = vmul.f32 %v1725, %v1855
    %v1890 = vmul.f32 %v1729, %v1855
    %v1891 = vmul.f32 %v1733, %v1855
    %v1892 = vmul.f32 %v1737, %v1855
    %v1893 = vmul.f32 %v1741, %v1855
    %v1894 = vmul.f32 %v1745, %v1855
    %v1895 = vmul.f32 %v1749, %v1855
    %v1896 = vmul.f32 %v1753, %v1855
    %v1897 = vmul.f32 %v1757, %v1855
    %v1898 = vmul.f32 %v1761, %v1855
    %v1899 = vmul.f32 %v1765, %v1855
    %v1900 = vmul.f32 %v1769, %v1855
    %v1901 = vmul.f32 %v1773, %v1855
    %v1902 = vmul.f32 %v1777, %v1855
    %v1903 = vmul.f32 %v1781, %v1855
    %v1904 = vmul.f32 %v1785, %v1855
    %v1905 = vmul.f32 %v1789, %v1855
    %v1906 = vmul.f32 %v1793, %v1855
    %v1907 = vmul.f32 %v1797, %v1855
    %v1908 = vmul.f32 %v1801, %v1855
    %v1909 = vmul.f32 %v1805, %v1855
    %v1910 = vmul.f32 %v1809, %v1855
    %v1911 = vmul.f32 %v1813, %v1855
    %v1912 = vmul.f32 %v1817, %v1855
    %v1913 = vmul.f32 %v1821, %v1855
    %v1914 = vmul.f32 %v1825, %v1855
    %v1915 = vmul.f32 %v1829, %v1855
    %v1916 = vmul.f32 %v1833, %v1855
    %v1917 = vmul.f32 %v1837, %v1855
    %v1918 = vmul.f32 %v1841, %v1855
    %v1919 = vmul.f32 %v1845, %v1855
    %v1920 = vmul.f32 %v1849, %v1855
    %v1921 = vadd.f32 %v1368, %v1857
    %v1922 = vadd.f32 %v1369, %v1858
    %v1923 = vadd.f32 %v1370, %v1859
    %v1924 = vadd.f32 %v1371, %v1860
    %v1925 = vadd.f32 %v1372, %v1861
    %v1926 = vadd.f32 %v1373, %v1862
    %v1927 = vadd.f32 %v1374, %v1863
    %v1928 = vadd.f32 %v1375, %v1864
    %v1929 = vadd.f32 %v1376, %v1865
    %v1930 = vadd.f32 %v1377, %v1866
    %v1931 = vadd.f32 %v1378, %v1867
    %v1932 = vadd.f32 %v1379, %v1868
    %v1933 = vadd.f32 %v1380, %v1869
    %v1934 = vadd.f32 %v1381, %v1870
    %v1935 = vadd.f32 %v1382, %v1871
    %v1936 = vadd.f32 %v1383, %v1872
    %v1937 = vadd.f32 %v1384, %v1873
    %v1938 = vadd.f32 %v1385, %v1874
    %v1939 = vadd.f32 %v1386, %v1875
    %v1940 = vadd.f32 %v1387, %v1876
    %v1941 = vadd.f32 %v1388, %v1877
    %v1942 = vadd.f32 %v1389, %v1878
    %v1943 = vadd.f32 %v1390, %v1879
    %v1944 = vadd.f32 %v1391, %v1880
    %v1945 = vadd.f32 %v1392, %v1881
    %v1946 = vadd.f32 %v1393, %v1882
    %v1947 = vadd.f32 %v1394, %v1883
    %v1948 = vadd.f32 %v1395, %v1884
    %v1949 = vadd.f32 %v1396, %v1885
    %v1950 = vadd.f32 %v1397, %v1886
    %v1951 = vadd.f32 %v1398, %v1887
    %v1952 = vadd.f32 %v1399, %v1888
    %v1953 = vadd.f32 %v1400, %v1889
    %v1954 = vadd.f32 %v1401, %v1890
    %v1955 = vadd.f32 %v1402, %v1891
    %v1956 = vadd.f32 %v1403, %v1892
    %v1957 = vadd.f32 %v1404, %v1893
    %v1958 = vadd.f32 %v1405, %v1894
    %v1959 = vadd.f32 %v1406, %v1895
    %v1960 = vadd.f32 %v1407, %v1896
    %v1961 = vadd.f32 %v1408, %v1897
    %v1962 = vadd.f32 %v1409, %v1898
    %v1963 = vadd.f32 %v1410, %v1899
    %v1964 = vadd.f32 %v1411, %v1900
    %v1965 = vadd.f32 %v1412, %v1901
    %v1966 = vadd.f32 %v1413, %v1902
    %v1967 = vadd.f32 %v1414, %v1903
    %v1968 = vadd.f32 %v1415, %v1904
    %v1969 = vadd.f32 %v1416, %v1905
    %v1970 = vadd.f32 %v1417, %v1906
    %v1971 = vadd.f32 %v1418, %v1907
    %v1972 = vadd.f32 %v1419, %v1908
    %v1973 = vadd.f32 %v1420, %v1909
    %v1974 = vadd.f32 %v1421, %v1910
    %v1975 = vadd.f32 %v1422, %v1911
    %v1976 = vadd.f32 %v1423, %v1912
    %v1977 = vadd.f32 %v1424, %v1913
    %v1978 = vadd.f32 %v1425, %v1914
    %v1979 = vadd.f32 %v1426, %v1915
    %v1980 = vadd.f32 %v1427, %v1916
    %v1981 = vadd.f32 %v1428, %v1917
    %v1982 = vadd.f32 %v1429, %v1918
    %v1983 = vadd.f32 %v1430, %v1919
    %v1984 = vadd.f32 %v1431, %v1920
    %s1985 = scalar_lea.vmem %s1, 3
    %v1986 = vld [vmem:[%s1985] sm:$0x1]
    %1988 = vset.pattern.permute.xlu0 0
    %1989 = vperm.xlu0 %1988, %v332
    %v1990 = vpop.permute.xlu0 %1989
    %1993 = vset.pattern.permute.xlu0 0
    %1994 = vperm.xlu0 %1993, %v333
    %v1995 = vpop.permute.xlu0 %1994
    %1998 = vset.pattern.permute.xlu0 0
    %1999 = vperm.xlu0 %1998, %v386
    %v2000 = vpop.permute.xlu0 %1999
    %2003 = vset.pattern.permute.xlu0 0
    %2004 = vperm.xlu0 %2003, %v387
    %v2005 = vpop.permute.xlu0 %2004
    %v2008 = vlaneseq
    %v2009 = vshrl.u32 %v2008, 7
    %v2010 = vsub.s32 0, %v2009
    %v2011 = vrot.slane %v1986, %v2010
    %v2013 = vmul.f32 %v406, %v2011
    %v2014 = vmul.f32 %v411, %v2011
    %v2015 = vmul.f32 %v416, %v2011
    %v2016 = vmul.f32 %v421, %v2011
    %v2017 = vmul.f32 %v426, %v2011
    %v2018 = vmul.f32 %v431, %v2011
    %v2019 = vmul.f32 %v436, %v2011
    %v2020 = vmul.f32 %v441, %v2011
    %v2021 = vmul.f32 %v446, %v2011
    %v2022 = vmul.f32 %v451, %v2011
    %v2023 = vmul.f32 %v456, %v2011
    %v2024 = vmul.f32 %v461, %v2011
    %v2025 = vmul.f32 %v466, %v2011
    %v2026 = vmul.f32 %v471, %v2011
    %v2027 = vmul.f32 %v476, %v2011
    %v2028 = vmul.f32 %v481, %v2011
    %v2029 = vmul.f32 %v486, %v2011
    %v2030 = vmul.f32 %v491, %v2011
    %v2031 = vmul.f32 %v496, %v2011
    %v2032 = vmul.f32 %v501, %v2011
    %v2033 = vmul.f32 %v506, %v2011
    %v2034 = vmul.f32 %v511, %v2011
    %v2035 = vmul.f32 %v516, %v2011
    %v2036 = vmul.f32 %v521, %v2011
    %v2037 = vmul.f32 %v526, %v2011
    %v2038 = vmul.f32 %v531, %v2011
    %v2039 = vmul.f32 %v536, %v2011
    %v2040 = vmul.f32 %v541, %v2011
    %v2041 = vmul.f32 %v546, %v2011
    %v2042 = vmul.f32 %v551, %v2011
    %v2043 = vmul.f32 %v1990, %v2011
    %v2044 = vmul.f32 %v1995, %v2011
    %v2045 = vmul.f32 %v566, %v2011
    %v2046 = vmul.f32 %v571, %v2011
    %v2047 = vmul.f32 %v576, %v2011
    %v2048 = vmul.f32 %v581, %v2011
    %v2049 = vmul.f32 %v586, %v2011
    %v2050 = vmul.f32 %v591, %v2011
    %v2051 = vmul.f32 %v596, %v2011
    %v2052 = vmul.f32 %v601, %v2011
    %v2053 = vmul.f32 %v606, %v2011
    %v2054 = vmul.f32 %v611, %v2011
    %v2055 = vmul.f32 %v616, %v2011
    %v2056 = vmul.f32 %v621, %v2011
    %v2057 = vmul.f32 %v626, %v2011
    %v2058 = vmul.f32 %v631, %v2011
    %v2059 = vmul.f32 %v636, %v2011
    %v2060 = vmul.f32 %v641, %v2011
    %v2061 = vmul.f32 %v646, %v2011
    %v2062 = vmul.f32 %v651, %v2011
    %v2063 = vmul.f32 %v656, %v2011
    %v2064 = vmul.f32 %v661, %v2011
    %v2065 = vmul.f32 %v666, %v2011
    %v2066 = vmul.f32 %v671, %v2011
    %v2067 = vmul.f32 %v676, %v2011
    %v2068 = vmul.f32 %v681, %v2011
    %v2069 = vmul.f32 %v686, %v2011
    %v2070 = vmul.f32 %v691, %v2011
    %v2071 = vmul.f32 %v696, %v2011
    %v2072 = vmul.f32 %v701, %v2011
    %v2073 = vmul.f32 %v706, %v2011
    %v2074 = vmul.f32 %v711, %v2011
    %v2075 = vmul.f32 %v2000, %v2011
    %v2076 = vmul.f32 %v2005, %v2011
    %v2077 = vadd.f32 %v1921, %v2013
    %v2078 = vadd.f32 %v1922, %v2014
    %v2079 = vadd.f32 %v1923, %v2015
    %v2080 = vadd.f32 %v1924, %v2016
    %v2081 = vadd.f32 %v1925, %v2017
    %v2082 = vadd.f32 %v1926, %v2018
    %v2083 = vadd.f32 %v1927, %v2019
    %v2084 = vadd.f32 %v1928, %v2020
    %v2085 = vadd.f32 %v1929, %v2021
    %v2086 = vadd.f32 %v1930, %v2022
    %v2087 = vadd.f32 %v1931, %v2023
    %v2088 = vadd.f32 %v1932, %v2024
    %v2089 = vadd.f32 %v1933, %v2025
    %v2090 = vadd.f32 %v1934, %v2026
    %v2091 = vadd.f32 %v1935, %v2027
    %v2092 = vadd.f32 %v1936, %v2028
    %v2093 = vadd.f32 %v1937, %v2029
    %v2094 = vadd.f32 %v1938, %v2030
    %v2095 = vadd.f32 %v1939, %v2031
    %v2096 = vadd.f32 %v1940, %v2032
    %v2097 = vadd.f32 %v1941, %v2033
    %v2098 = vadd.f32 %v1942, %v2034
    %v2099 = vadd.f32 %v1943, %v2035
    %v2100 = vadd.f32 %v1944, %v2036
    %v2101 = vadd.f32 %v1945, %v2037
    %v2102 = vadd.f32 %v1946, %v2038
    %v2103 = vadd.f32 %v1947, %v2039
    %v2104 = vadd.f32 %v1948, %v2040
    %v2105 = vadd.f32 %v1949, %v2041
    %v2106 = vadd.f32 %v1950, %v2042
    %v2107 = vadd.f32 %v1951, %v2043
    %v2108 = vadd.f32 %v1952, %v2044
    %v2109 = vadd.f32 %v1953, %v2045
    %v2110 = vadd.f32 %v1954, %v2046
    %v2111 = vadd.f32 %v1955, %v2047
    %v2112 = vadd.f32 %v1956, %v2048
    %v2113 = vadd.f32 %v1957, %v2049
    %v2114 = vadd.f32 %v1958, %v2050
    %v2115 = vadd.f32 %v1959, %v2051
    %v2116 = vadd.f32 %v1960, %v2052
    %v2117 = vadd.f32 %v1961, %v2053
    %v2118 = vadd.f32 %v1962, %v2054
    %v2119 = vadd.f32 %v1963, %v2055
    %v2120 = vadd.f32 %v1964, %v2056
    %v2121 = vadd.f32 %v1965, %v2057
    %v2122 = vadd.f32 %v1966, %v2058
    %v2123 = vadd.f32 %v1967, %v2059
    %v2124 = vadd.f32 %v1968, %v2060
    %v2125 = vadd.f32 %v1969, %v2061
    %v2126 = vadd.f32 %v1970, %v2062
    %v2127 = vadd.f32 %v1971, %v2063
    %v2128 = vadd.f32 %v1972, %v2064
    %v2129 = vadd.f32 %v1973, %v2065
    %v2130 = vadd.f32 %v1974, %v2066
    %v2131 = vadd.f32 %v1975, %v2067
    %v2132 = vadd.f32 %v1976, %v2068
    %v2133 = vadd.f32 %v1977, %v2069
    %v2134 = vadd.f32 %v1978, %v2070
    %v2135 = vadd.f32 %v1979, %v2071
    %v2136 = vadd.f32 %v1980, %v2072
    %v2137 = vadd.f32 %v1981, %v2073
    %v2138 = vadd.f32 %v1982, %v2074
    %v2139 = vadd.f32 %v1983, %v2075
    %v2140 = vadd.f32 %v1984, %v2076
    %v2143 = vrot.slane %v332, 1
    %v2144 = vrot.slane %v333, 1
    %v2145 = vsel %vm879, %v2143, %v2144
    %v2146 = vrot.slane %v334, 1
    %v2147 = vsel %vm879, %v2144, %v2146
    %v2148 = vrot.slane %v386, 1
    %v2149 = vrot.slane %v387, 1
    %v2150 = vsel %vm879, %v2148, %v2149
    %v2151 = vrot.slane %v388, 1
    %v2152 = vsel %vm879, %v2149, %v2151
    %s2153 = scalar_lea.vmem %s1, 4
    %v2154 = vld [vmem:[%s2153] sm:$0x1]
    %2155 = vset.pattern.permute.xlu0 0
    %2156 = vperm.xlu0 %2155, %v2145
    %v2157 = vpop.permute.xlu0 %2156
    %2159 = vset.pattern.permute.xlu0 0
    %2160 = vperm.xlu0 %2159, %v2147
    %v2161 = vpop.permute.xlu0 %2160
    %2163 = vset.pattern.permute.xlu0 0
    %2164 = vperm.xlu0 %2163, %v2150
    %v2165 = vpop.permute.xlu0 %2164
    %2167 = vset.pattern.permute.xlu0 0
    %2168 = vperm.xlu0 %2167, %v2152
    %v2169 = vpop.permute.xlu0 %2168
    %v2172 = vlaneseq
    %v2173 = vshrl.u32 %v2172, 7
    %v2174 = vsub.s32 0, %v2173
    %v2175 = vrot.slane %v2154, %v2174
    %v2177 = vmul.f32 %v1052, %v2175
    %v2178 = vmul.f32 %v1056, %v2175
    %v2179 = vmul.f32 %v1060, %v2175
    %v2180 = vmul.f32 %v1064, %v2175
    %v2181 = vmul.f32 %v1068, %v2175
    %v2182 = vmul.f32 %v1072, %v2175
    %v2183 = vmul.f32 %v1076, %v2175
    %v2184 = vmul.f32 %v1080, %v2175
    %v2185 = vmul.f32 %v1084, %v2175
    %v2186 = vmul.f32 %v1088, %v2175
    %v2187 = vmul.f32 %v1092, %v2175
    %v2188 = vmul.f32 %v1096, %v2175
    %v2189 = vmul.f32 %v1100, %v2175
    %v2190 = vmul.f32 %v1104, %v2175
    %v2191 = vmul.f32 %v1108, %v2175
    %v2192 = vmul.f32 %v1112, %v2175
    %v2193 = vmul.f32 %v1116, %v2175
    %v2194 = vmul.f32 %v1120, %v2175
    %v2195 = vmul.f32 %v1124, %v2175
    %v2196 = vmul.f32 %v1128, %v2175
    %v2197 = vmul.f32 %v1132, %v2175
    %v2198 = vmul.f32 %v1136, %v2175
    %v2199 = vmul.f32 %v1140, %v2175
    %v2200 = vmul.f32 %v1144, %v2175
    %v2201 = vmul.f32 %v1148, %v2175
    %v2202 = vmul.f32 %v1152, %v2175
    %v2203 = vmul.f32 %v1156, %v2175
    %v2204 = vmul.f32 %v1160, %v2175
    %v2205 = vmul.f32 %v1164, %v2175
    %v2206 = vmul.f32 %v1168, %v2175
    %v2207 = vmul.f32 %v2157, %v2175
    %v2208 = vmul.f32 %v2161, %v2175
    %v2209 = vmul.f32 %v1180, %v2175
    %v2210 = vmul.f32 %v1184, %v2175
    %v2211 = vmul.f32 %v1188, %v2175
    %v2212 = vmul.f32 %v1192, %v2175
    %v2213 = vmul.f32 %v1196, %v2175
    %v2214 = vmul.f32 %v1200, %v2175
    %v2215 = vmul.f32 %v1204, %v2175
    %v2216 = vmul.f32 %v1208, %v2175
    %v2217 = vmul.f32 %v1212, %v2175
    %v2218 = vmul.f32 %v1216, %v2175
    %v2219 = vmul.f32 %v1220, %v2175
    %v2220 = vmul.f32 %v1224, %v2175
    %v2221 = vmul.f32 %v1228, %v2175
    %v2222 = vmul.f32 %v1232, %v2175
    %v2223 = vmul.f32 %v1236, %v2175
    %v2224 = vmul.f32 %v1240, %v2175
    %v2225 = vmul.f32 %v1244, %v2175
    %v2226 = vmul.f32 %v1248, %v2175
    %v2227 = vmul.f32 %v1252, %v2175
    %v2228 = vmul.f32 %v1256, %v2175
    %v2229 = vmul.f32 %v1260, %v2175
    %v2230 = vmul.f32 %v1264, %v2175
    %v2231 = vmul.f32 %v1268, %v2175
    %v2232 = vmul.f32 %v1272, %v2175
    %v2233 = vmul.f32 %v1276, %v2175
    %v2234 = vmul.f32 %v1280, %v2175
    %v2235 = vmul.f32 %v1284, %v2175
    %v2236 = vmul.f32 %v1288, %v2175
    %v2237 = vmul.f32 %v1292, %v2175
    %v2238 = vmul.f32 %v1296, %v2175
    %v2239 = vmul.f32 %v2165, %v2175
    %v2240 = vmul.f32 %v2169, %v2175
    %v2241 = vadd.f32 %v2077, %v2177
    %v2242 = vadd.f32 %v2078, %v2178
    %v2243 = vadd.f32 %v2079, %v2179
    %v2244 = vadd.f32 %v2080, %v2180
    %v2245 = vadd.f32 %v2081, %v2181
    %v2246 = vadd.f32 %v2082, %v2182
    %v2247 = vadd.f32 %v2083, %v2183
    %v2248 = vadd.f32 %v2084, %v2184
    %v2249 = vadd.f32 %v2085, %v2185
    %v2250 = vadd.f32 %v2086, %v2186
    %v2251 = vadd.f32 %v2087, %v2187
    %v2252 = vadd.f32 %v2088, %v2188
    %v2253 = vadd.f32 %v2089, %v2189
    %v2254 = vadd.f32 %v2090, %v2190
    %v2255 = vadd.f32 %v2091, %v2191
    %v2256 = vadd.f32 %v2092, %v2192
    %v2257 = vadd.f32 %v2093, %v2193
    %v2258 = vadd.f32 %v2094, %v2194
    %v2259 = vadd.f32 %v2095, %v2195
    %v2260 = vadd.f32 %v2096, %v2196
    %v2261 = vadd.f32 %v2097, %v2197
    %v2262 = vadd.f32 %v2098, %v2198
    %v2263 = vadd.f32 %v2099, %v2199
    %v2264 = vadd.f32 %v2100, %v2200
    %v2265 = vadd.f32 %v2101, %v2201
    %v2266 = vadd.f32 %v2102, %v2202
    %v2267 = vadd.f32 %v2103, %v2203
    %v2268 = vadd.f32 %v2104, %v2204
    %v2269 = vadd.f32 %v2105, %v2205
    %v2270 = vadd.f32 %v2106, %v2206
    %v2271 = vadd.f32 %v2107, %v2207
    %v2272 = vadd.f32 %v2108, %v2208
    %v2273 = vadd.f32 %v2109, %v2209
    %v2274 = vadd.f32 %v2110, %v2210
    %v2275 = vadd.f32 %v2111, %v2211
    %v2276 = vadd.f32 %v2112, %v2212
    %v2277 = vadd.f32 %v2113, %v2213
    %v2278 = vadd.f32 %v2114, %v2214
    %v2279 = vadd.f32 %v2115, %v2215
    %v2280 = vadd.f32 %v2116, %v2216
    %v2281 = vadd.f32 %v2117, %v2217
    %v2282 = vadd.f32 %v2118, %v2218
    %v2283 = vadd.f32 %v2119, %v2219
    %v2284 = vadd.f32 %v2120, %v2220
    %v2285 = vadd.f32 %v2121, %v2221
    %v2286 = vadd.f32 %v2122, %v2222
    %v2287 = vadd.f32 %v2123, %v2223
    %v2288 = vadd.f32 %v2124, %v2224
    %v2289 = vadd.f32 %v2125, %v2225
    %v2290 = vadd.f32 %v2126, %v2226
    %v2291 = vadd.f32 %v2127, %v2227
    %v2292 = vadd.f32 %v2128, %v2228
    %v2293 = vadd.f32 %v2129, %v2229
    %v2294 = vadd.f32 %v2130, %v2230
    %v2295 = vadd.f32 %v2131, %v2231
    %v2296 = vadd.f32 %v2132, %v2232
    %v2297 = vadd.f32 %v2133, %v2233
    %v2298 = vadd.f32 %v2134, %v2234
    %v2299 = vadd.f32 %v2135, %v2235
    %v2300 = vadd.f32 %v2136, %v2236
    %v2301 = vadd.f32 %v2137, %v2237
    %v2302 = vadd.f32 %v2138, %v2238
    %v2303 = vadd.f32 %v2139, %v2239
    %v2304 = vadd.f32 %v2140, %v2240
    %v2305 = vrot.slane %v332, 2
    %v2306 = vrot.slane %v333, 2
    %v2307 = vsel %vm1432, %v2305, %v2306
    %v2308 = vrot.slane %v334, 2
    %v2309 = vsel %vm1432, %v2306, %v2308
    %v2310 = vrot.slane %v386, 2
    %v2311 = vrot.slane %v387, 2
    %v2312 = vsel %vm1432, %v2310, %v2311
    %v2313 = vrot.slane %v388, 2
    %v2314 = vsel %vm1432, %v2311, %v2313
    %s2315 = scalar_lea.vmem %s1, 5
    %v2316 = vld [vmem:[%s2315] sm:$0x1]
    %2317 = vset.pattern.permute.xlu0 0
    %2318 = vperm.xlu0 %2317, %v2307
    %v2319 = vpop.permute.xlu0 %2318
    %2321 = vset.pattern.permute.xlu0 0
    %2322 = vperm.xlu0 %2321, %v2309
    %v2323 = vpop.permute.xlu0 %2322
    %2325 = vset.pattern.permute.xlu0 0
    %2326 = vperm.xlu0 %2325, %v2312
    %v2327 = vpop.permute.xlu0 %2326
    %2329 = vset.pattern.permute.xlu0 0
    %2330 = vperm.xlu0 %2329, %v2314
    %v2331 = vpop.permute.xlu0 %2330
    %v2334 = vlaneseq
    %v2335 = vshrl.u32 %v2334, 7
    %v2336 = vsub.s32 0, %v2335
    %v2337 = vrot.slane %v2316, %v2336
    %v2339 = vmul.f32 %v1605, %v2337
    %v2340 = vmul.f32 %v1609, %v2337
    %v2341 = vmul.f32 %v1613, %v2337
    %v2342 = vmul.f32 %v1617, %v2337
    %v2343 = vmul.f32 %v1621, %v2337
    %v2344 = vmul.f32 %v1625, %v2337
    %v2345 = vmul.f32 %v1629, %v2337
    %v2346 = vmul.f32 %v1633, %v2337
    %v2347 = vmul.f32 %v1637, %v2337
    %v2348 = vmul.f32 %v1641, %v2337
    %v2349 = vmul.f32 %v1645, %v2337
    %v2350 = vmul.f32 %v1649, %v2337
    %v2351 = vmul.f32 %v1653, %v2337
    %v2352 = vmul.f32 %v1657, %v2337
    %v2353 = vmul.f32 %v1661, %v2337
    %v2354 = vmul.f32 %v1665, %v2337
    %v2355 = vmul.f32 %v1669, %v2337
    %v2356 = vmul.f32 %v1673, %v2337
    %v2357 = vmul.f32 %v1677, %v2337
    %v2358 = vmul.f32 %v1681, %v2337
    %v2359 = vmul.f32 %v1685, %v2337
    %v2360 = vmul.f32 %v1689, %v2337
    %v2361 = vmul.f32 %v1693, %v2337
    %v2362 = vmul.f32 %v1697, %v2337
    %v2363 = vmul.f32 %v1701, %v2337
    %v2364 = vmul.f32 %v1705, %v2337
    %v2365 = vmul.f32 %v1709, %v2337
    %v2366 = vmul.f32 %v1713, %v2337
    %v2367 = vmul.f32 %v1717, %v2337
    %v2368 = vmul.f32 %v1721, %v2337
    %v2369 = vmul.f32 %v2319, %v2337
    %v2370 = vmul.f32 %v2323, %v2337
    %v2371 = vmul.f32 %v1733, %v2337
    %v2372 = vmul.f32 %v1737, %v2337
    %v2373 = vmul.f32 %v1741, %v2337
    %v2374 = vmul.f32 %v1745, %v2337
    %v2375 = vmul.f32 %v1749, %v2337
    %v2376 = vmul.f32 %v1753, %v2337
    %v2377 = vmul.f32 %v1757, %v2337
    %v2378 = vmul.f32 %v1761, %v2337
    %v2379 = vmul.f32 %v1765, %v2337
    %v2380 = vmul.f32 %v1769, %v2337
    %v2381 = vmul.f32 %v1773, %v2337
    %v2382 = vmul.f32 %v1777, %v2337
    %v2383 = vmul.f32 %v1781, %v2337
    %v2384 = vmul.f32 %v1785, %v2337
    %v2385 = vmul.f32 %v1789, %v2337
    %v2386 = vmul.f32 %v1793, %v2337
    %v2387 = vmul.f32 %v1797, %v2337
    %v2388 = vmul.f32 %v1801, %v2337
    %v2389 = vmul.f32 %v1805, %v2337
    %v2390 = vmul.f32 %v1809, %v2337
    %v2391 = vmul.f32 %v1813, %v2337
    %v2392 = vmul.f32 %v1817, %v2337
    %v2393 = vmul.f32 %v1821, %v2337
    %v2394 = vmul.f32 %v1825, %v2337
    %v2395 = vmul.f32 %v1829, %v2337
    %v2396 = vmul.f32 %v1833, %v2337
    %v2397 = vmul.f32 %v1837, %v2337
    %v2398 = vmul.f32 %v1841, %v2337
    %v2399 = vmul.f32 %v1845, %v2337
    %v2400 = vmul.f32 %v1849, %v2337
    %v2401 = vmul.f32 %v2327, %v2337
    %v2402 = vmul.f32 %v2331, %v2337
    %v2403 = vadd.f32 %v2241, %v2339
    %v2404 = vadd.f32 %v2242, %v2340
    %v2405 = vadd.f32 %v2243, %v2341
    %v2406 = vadd.f32 %v2244, %v2342
    %v2407 = vadd.f32 %v2245, %v2343
    %v2408 = vadd.f32 %v2246, %v2344
    %v2409 = vadd.f32 %v2247, %v2345
    %v2410 = vadd.f32 %v2248, %v2346
    %v2411 = vadd.f32 %v2249, %v2347
    %v2412 = vadd.f32 %v2250, %v2348
    %v2413 = vadd.f32 %v2251, %v2349
    %v2414 = vadd.f32 %v2252, %v2350
    %v2415 = vadd.f32 %v2253, %v2351
    %v2416 = vadd.f32 %v2254, %v2352
    %v2417 = vadd.f32 %v2255, %v2353
    %v2418 = vadd.f32 %v2256, %v2354
    %v2419 = vadd.f32 %v2257, %v2355
    %v2420 = vadd.f32 %v2258, %v2356
    %v2421 = vadd.f32 %v2259, %v2357
    %v2422 = vadd.f32 %v2260, %v2358
    %v2423 = vadd.f32 %v2261, %v2359
    %v2424 = vadd.f32 %v2262, %v2360
    %v2425 = vadd.f32 %v2263, %v2361
    %v2426 = vadd.f32 %v2264, %v2362
    %v2427 = vadd.f32 %v2265, %v2363
    %v2428 = vadd.f32 %v2266, %v2364
    %v2429 = vadd.f32 %v2267, %v2365
    %v2430 = vadd.f32 %v2268, %v2366
    %v2431 = vadd.f32 %v2269, %v2367
    %v2432 = vadd.f32 %v2270, %v2368
    %v2433 = vadd.f32 %v2271, %v2369
    %v2434 = vadd.f32 %v2272, %v2370
    %v2435 = vadd.f32 %v2273, %v2371
    %v2436 = vadd.f32 %v2274, %v2372
    %v2437 = vadd.f32 %v2275, %v2373
    %v2438 = vadd.f32 %v2276, %v2374
    %v2439 = vadd.f32 %v2277, %v2375
    %v2440 = vadd.f32 %v2278, %v2376
    %v2441 = vadd.f32 %v2279, %v2377
    %v2442 = vadd.f32 %v2280, %v2378
    %v2443 = vadd.f32 %v2281, %v2379
    %v2444 = vadd.f32 %v2282, %v2380
    %v2445 = vadd.f32 %v2283, %v2381
    %v2446 = vadd.f32 %v2284, %v2382
    %v2447 = vadd.f32 %v2285, %v2383
    %v2448 = vadd.f32 %v2286, %v2384
    %v2449 = vadd.f32 %v2287, %v2385
    %v2450 = vadd.f32 %v2288, %v2386
    %v2451 = vadd.f32 %v2289, %v2387
    %v2452 = vadd.f32 %v2290, %v2388
    %v2453 = vadd.f32 %v2291, %v2389
    %v2454 = vadd.f32 %v2292, %v2390
    %v2455 = vadd.f32 %v2293, %v2391
    %v2456 = vadd.f32 %v2294, %v2392
    %v2457 = vadd.f32 %v2295, %v2393
    %v2458 = vadd.f32 %v2296, %v2394
    %v2459 = vadd.f32 %v2297, %v2395
    %v2460 = vadd.f32 %v2298, %v2396
    %v2461 = vadd.f32 %v2299, %v2397
    %v2462 = vadd.f32 %v2300, %v2398
    %v2463 = vadd.f32 %v2301, %v2399
    %v2464 = vadd.f32 %v2302, %v2400
    %v2465 = vadd.f32 %v2303, %v2401
    %v2466 = vadd.f32 %v2304, %v2402
    %s2467 = scalar_lea.vmem %s1, 6
    %v2468 = vld [vmem:[%s2467] sm:$0x1]
    %2470 = vset.pattern.permute.xlu0 0
    %2471 = vperm.xlu0 %2470, %v335
    %v2472 = vpop.permute.xlu0 %2471
    %2475 = vset.pattern.permute.xlu0 0
    %2476 = vperm.xlu0 %2475, %v336
    %v2477 = vpop.permute.xlu0 %2476
    %2480 = vset.pattern.permute.xlu0 0
    %2481 = vperm.xlu0 %2480, %v389
    %v2482 = vpop.permute.xlu0 %2481
    %2485 = vset.pattern.permute.xlu0 0
    %2486 = vperm.xlu0 %2485, %v390
    %v2487 = vpop.permute.xlu0 %2486
    %v2490 = vlaneseq
    %v2491 = vshrl.u32 %v2490, 7
    %v2492 = vsub.s32 0, %v2491
    %v2493 = vrot.slane %v2468, %v2492
    %v2495 = vmul.f32 %v416, %v2493
    %v2496 = vmul.f32 %v421, %v2493
    %v2497 = vmul.f32 %v426, %v2493
    %v2498 = vmul.f32 %v431, %v2493
    %v2499 = vmul.f32 %v436, %v2493
    %v2500 = vmul.f32 %v441, %v2493
    %v2501 = vmul.f32 %v446, %v2493
    %v2502 = vmul.f32 %v451, %v2493
    %v2503 = vmul.f32 %v456, %v2493
    %v2504 = vmul.f32 %v461, %v2493
    %v2505 = vmul.f32 %v466, %v2493
    %v2506 = vmul.f32 %v471, %v2493
    %v2507 = vmul.f32 %v476, %v2493
    %v2508 = vmul.f32 %v481, %v2493
    %v2509 = vmul.f32 %v486, %v2493
    %v2510 = vmul.f32 %v491, %v2493
    %v2511 = vmul.f32 %v496, %v2493
    %v2512 = vmul.f32 %v501, %v2493
    %v2513 = vmul.f32 %v506, %v2493
    %v2514 = vmul.f32 %v511, %v2493
    %v2515 = vmul.f32 %v516, %v2493
    %v2516 = vmul.f32 %v521, %v2493
    %v2517 = vmul.f32 %v526, %v2493
    %v2518 = vmul.f32 %v531, %v2493
    %v2519 = vmul.f32 %v536, %v2493
    %v2520 = vmul.f32 %v541, %v2493
    %v2521 = vmul.f32 %v546, %v2493
    %v2522 = vmul.f32 %v551, %v2493
    %v2523 = vmul.f32 %v1990, %v2493
    %v2524 = vmul.f32 %v1995, %v2493
    %v2525 = vmul.f32 %v2472, %v2493
    %v2526 = vmul.f32 %v2477, %v2493
    %v2527 = vmul.f32 %v576, %v2493
    %v2528 = vmul.f32 %v581, %v2493
    %v2529 = vmul.f32 %v586, %v2493
    %v2530 = vmul.f32 %v591, %v2493
    %v2531 = vmul.f32 %v596, %v2493
    %v2532 = vmul.f32 %v601, %v2493
    %v2533 = vmul.f32 %v606, %v2493
    %v2534 = vmul.f32 %v611, %v2493
    %v2535 = vmul.f32 %v616, %v2493
    %v2536 = vmul.f32 %v621, %v2493
    %v2537 = vmul.f32 %v626, %v2493
    %v2538 = vmul.f32 %v631, %v2493
    %v2539 = vmul.f32 %v636, %v2493
    %v2540 = vmul.f32 %v641, %v2493
    %v2541 = vmul.f32 %v646, %v2493
    %v2542 = vmul.f32 %v651, %v2493
    %v2543 = vmul.f32 %v656, %v2493
    %v2544 = vmul.f32 %v661, %v2493
    %v2545 = vmul.f32 %v666, %v2493
    %v2546 = vmul.f32 %v671, %v2493
    %v2547 = vmul.f32 %v676, %v2493
    %v2548 = vmul.f32 %v681, %v2493
    %v2549 = vmul.f32 %v686, %v2493
    %v2550 = vmul.f32 %v691, %v2493
    %v2551 = vmul.f32 %v696, %v2493
    %v2552 = vmul.f32 %v701, %v2493
    %v2553 = vmul.f32 %v706, %v2493
    %v2554 = vmul.f32 %v711, %v2493
    %v2555 = vmul.f32 %v2000, %v2493
    %v2556 = vmul.f32 %v2005, %v2493
    %v2557 = vmul.f32 %v2482, %v2493
    %v2558 = vmul.f32 %v2487, %v2493
    %v2559 = vadd.f32 %v2403, %v2495
    %v2560 = vadd.f32 %v2404, %v2496
    %v2561 = vadd.f32 %v2405, %v2497
    %v2562 = vadd.f32 %v2406, %v2498
    %v2563 = vadd.f32 %v2407, %v2499
    %v2564 = vadd.f32 %v2408, %v2500
    %v2565 = vadd.f32 %v2409, %v2501
    %v2566 = vadd.f32 %v2410, %v2502
    %v2567 = vadd.f32 %v2411, %v2503
    %v2568 = vadd.f32 %v2412, %v2504
    %v2569 = vadd.f32 %v2413, %v2505
    %v2570 = vadd.f32 %v2414, %v2506
    %v2571 = vadd.f32 %v2415, %v2507
    %v2572 = vadd.f32 %v2416, %v2508
    %v2573 = vadd.f32 %v2417, %v2509
    %v2574 = vadd.f32 %v2418, %v2510
    %v2575 = vadd.f32 %v2419, %v2511
    %v2576 = vadd.f32 %v2420, %v2512
    %v2577 = vadd.f32 %v2421, %v2513
    %v2578 = vadd.f32 %v2422, %v2514
    %v2579 = vadd.f32 %v2423, %v2515
    %v2580 = vadd.f32 %v2424, %v2516
    %v2581 = vadd.f32 %v2425, %v2517
    %v2582 = vadd.f32 %v2426, %v2518
    %v2583 = vadd.f32 %v2427, %v2519
    %v2584 = vadd.f32 %v2428, %v2520
    %v2585 = vadd.f32 %v2429, %v2521
    %v2586 = vadd.f32 %v2430, %v2522
    %v2587 = vadd.f32 %v2431, %v2523
    %v2588 = vadd.f32 %v2432, %v2524
    %v2589 = vadd.f32 %v2433, %v2525
    %v2590 = vadd.f32 %v2434, %v2526
    %v2591 = vadd.f32 %v2435, %v2527
    %v2592 = vadd.f32 %v2436, %v2528
    %v2593 = vadd.f32 %v2437, %v2529
    %v2594 = vadd.f32 %v2438, %v2530
    %v2595 = vadd.f32 %v2439, %v2531
    %v2596 = vadd.f32 %v2440, %v2532
    %v2597 = vadd.f32 %v2441, %v2533
    %v2598 = vadd.f32 %v2442, %v2534
    %v2599 = vadd.f32 %v2443, %v2535
    %v2600 = vadd.f32 %v2444, %v2536
    %v2601 = vadd.f32 %v2445, %v2537
    %v2602 = vadd.f32 %v2446, %v2538
    %v2603 = vadd.f32 %v2447, %v2539
    %v2604 = vadd.f32 %v2448, %v2540
    %v2605 = vadd.f32 %v2449, %v2541
    %v2606 = vadd.f32 %v2450, %v2542
    %v2607 = vadd.f32 %v2451, %v2543
    %v2608 = vadd.f32 %v2452, %v2544
    %v2609 = vadd.f32 %v2453, %v2545
    %v2610 = vadd.f32 %v2454, %v2546
    %v2611 = vadd.f32 %v2455, %v2547
    %v2612 = vadd.f32 %v2456, %v2548
    %v2613 = vadd.f32 %v2457, %v2549
    %v2614 = vadd.f32 %v2458, %v2550
    %v2615 = vadd.f32 %v2459, %v2551
    %v2616 = vadd.f32 %v2460, %v2552
    %v2617 = vadd.f32 %v2461, %v2553
    %v2618 = vadd.f32 %v2462, %v2554
    %v2619 = vadd.f32 %v2463, %v2555
    %v2620 = vadd.f32 %v2464, %v2556
    %v2621 = vadd.f32 %v2465, %v2557
    %v2622 = vadd.f32 %v2466, %v2558
    %v2625 = vrot.slane %v335, 1
    %v2626 = vrot.slane %v336, 1
    %v2627 = vsel %vm879, %v2625, %v2626
    %v2628 = vrot.slane %v337, 1
    %v2629 = vsel %vm879, %v2626, %v2628
    %v2630 = vrot.slane %v389, 1
    %v2631 = vrot.slane %v390, 1
    %v2632 = vsel %vm879, %v2630, %v2631
    %v2633 = vrot.slane %v391, 1
    %v2634 = vsel %vm879, %v2631, %v2633
    %s2635 = scalar_lea.vmem %s1, 7
    %v2636 = vld [vmem:[%s2635] sm:$0x1]
    %2637 = vset.pattern.permute.xlu0 0
    %2638 = vperm.xlu0 %2637, %v2627
    %v2639 = vpop.permute.xlu0 %2638
    %2641 = vset.pattern.permute.xlu0 0
    %2642 = vperm.xlu0 %2641, %v2629
    %v2643 = vpop.permute.xlu0 %2642
    %2645 = vset.pattern.permute.xlu0 0
    %2646 = vperm.xlu0 %2645, %v2632
    %v2647 = vpop.permute.xlu0 %2646
    %2649 = vset.pattern.permute.xlu0 0
    %2650 = vperm.xlu0 %2649, %v2634
    %v2651 = vpop.permute.xlu0 %2650
    %v2654 = vlaneseq
    %v2655 = vshrl.u32 %v2654, 7
    %v2656 = vsub.s32 0, %v2655
    %v2657 = vrot.slane %v2636, %v2656
    %v2659 = vmul.f32 %v1060, %v2657
    %v2660 = vmul.f32 %v1064, %v2657
    %v2661 = vmul.f32 %v1068, %v2657
    %v2662 = vmul.f32 %v1072, %v2657
    %v2663 = vmul.f32 %v1076, %v2657
    %v2664 = vmul.f32 %v1080, %v2657
    %v2665 = vmul.f32 %v1084, %v2657
    %v2666 = vmul.f32 %v1088, %v2657
    %v2667 = vmul.f32 %v1092, %v2657
    %v2668 = vmul.f32 %v1096, %v2657
    %v2669 = vmul.f32 %v1100, %v2657
    %v2670 = vmul.f32 %v1104, %v2657
    %v2671 = vmul.f32 %v1108, %v2657
    %v2672 = vmul.f32 %v1112, %v2657
    %v2673 = vmul.f32 %v1116, %v2657
    %v2674 = vmul.f32 %v1120, %v2657
    %v2675 = vmul.f32 %v1124, %v2657
    %v2676 = vmul.f32 %v1128, %v2657
    %v2677 = vmul.f32 %v1132, %v2657
    %v2678 = vmul.f32 %v1136, %v2657
    %v2679 = vmul.f32 %v1140, %v2657
    %v2680 = vmul.f32 %v1144, %v2657
    %v2681 = vmul.f32 %v1148, %v2657
    %v2682 = vmul.f32 %v1152, %v2657
    %v2683 = vmul.f32 %v1156, %v2657
    %v2684 = vmul.f32 %v1160, %v2657
    %v2685 = vmul.f32 %v1164, %v2657
    %v2686 = vmul.f32 %v1168, %v2657
    %v2687 = vmul.f32 %v2157, %v2657
    %v2688 = vmul.f32 %v2161, %v2657
    %v2689 = vmul.f32 %v2639, %v2657
    %v2690 = vmul.f32 %v2643, %v2657
    %v2691 = vmul.f32 %v1188, %v2657
    %v2692 = vmul.f32 %v1192, %v2657
    %v2693 = vmul.f32 %v1196, %v2657
    %v2694 = vmul.f32 %v1200, %v2657
    %v2695 = vmul.f32 %v1204, %v2657
    %v2696 = vmul.f32 %v1208, %v2657
    %v2697 = vmul.f32 %v1212, %v2657
    %v2698 = vmul.f32 %v1216, %v2657
    %v2699 = vmul.f32 %v1220, %v2657
    %v2700 = vmul.f32 %v1224, %v2657
    %v2701 = vmul.f32 %v1228, %v2657
    %v2702 = vmul.f32 %v1232, %v2657
    %v2703 = vmul.f32 %v1236, %v2657
    %v2704 = vmul.f32 %v1240, %v2657
    %v2705 = vmul.f32 %v1244, %v2657
    %v2706 = vmul.f32 %v1248, %v2657
    %v2707 = vmul.f32 %v1252, %v2657
    %v2708 = vmul.f32 %v1256, %v2657
    %v2709 = vmul.f32 %v1260, %v2657
    %v2710 = vmul.f32 %v1264, %v2657
    %v2711 = vmul.f32 %v1268, %v2657
    %v2712 = vmul.f32 %v1272, %v2657
    %v2713 = vmul.f32 %v1276, %v2657
    %v2714 = vmul.f32 %v1280, %v2657
    %v2715 = vmul.f32 %v1284, %v2657
    %v2716 = vmul.f32 %v1288, %v2657
    %v2717 = vmul.f32 %v1292, %v2657
    %v2718 = vmul.f32 %v1296, %v2657
    %v2719 = vmul.f32 %v2165, %v2657
    %v2720 = vmul.f32 %v2169, %v2657
    %v2721 = vmul.f32 %v2647, %v2657
    %v2722 = vmul.f32 %v2651, %v2657
    %v2723 = vadd.f32 %v2559, %v2659
    %v2724 = vadd.f32 %v2560, %v2660
    %v2725 = vadd.f32 %v2561, %v2661
    %v2726 = vadd.f32 %v2562, %v2662
    %v2727 = vadd.f32 %v2563, %v2663
    %v2728 = vadd.f32 %v2564, %v2664
    %v2729 = vadd.f32 %v2565, %v2665
    %v2730 = vadd.f32 %v2566, %v2666
    %v2731 = vadd.f32 %v2567, %v2667
    %v2732 = vadd.f32 %v2568, %v2668
    %v2733 = vadd.f32 %v2569, %v2669
    %v2734 = vadd.f32 %v2570, %v2670
    %v2735 = vadd.f32 %v2571, %v2671
    %v2736 = vadd.f32 %v2572, %v2672
    %v2737 = vadd.f32 %v2573, %v2673
    %v2738 = vadd.f32 %v2574, %v2674
    %v2739 = vadd.f32 %v2575, %v2675
    %v2740 = vadd.f32 %v2576, %v2676
    %v2741 = vadd.f32 %v2577, %v2677
    %v2742 = vadd.f32 %v2578, %v2678
    %v2743 = vadd.f32 %v2579, %v2679
    %v2744 = vadd.f32 %v2580, %v2680
    %v2745 = vadd.f32 %v2581, %v2681
    %v2746 = vadd.f32 %v2582, %v2682
    %v2747 = vadd.f32 %v2583, %v2683
    %v2748 = vadd.f32 %v2584, %v2684
    %v2749 = vadd.f32 %v2585, %v2685
    %v2750 = vadd.f32 %v2586, %v2686
    %v2751 = vadd.f32 %v2587, %v2687
    %v2752 = vadd.f32 %v2588, %v2688
    %v2753 = vadd.f32 %v2589, %v2689
    %v2754 = vadd.f32 %v2590, %v2690
    %v2755 = vadd.f32 %v2591, %v2691
    %v2756 = vadd.f32 %v2592, %v2692
    %v2757 = vadd.f32 %v2593, %v2693
    %v2758 = vadd.f32 %v2594, %v2694
    %v2759 = vadd.f32 %v2595, %v2695
    %v2760 = vadd.f32 %v2596, %v2696
    %v2761 = vadd.f32 %v2597, %v2697
    %v2762 = vadd.f32 %v2598, %v2698
    %v2763 = vadd.f32 %v2599, %v2699
    %v2764 = vadd.f32 %v2600, %v2700
    %v2765 = vadd.f32 %v2601, %v2701
    %v2766 = vadd.f32 %v2602, %v2702
    %v2767 = vadd.f32 %v2603, %v2703
    %v2768 = vadd.f32 %v2604, %v2704
    %v2769 = vadd.f32 %v2605, %v2705
    %v2770 = vadd.f32 %v2606, %v2706
    %v2771 = vadd.f32 %v2607, %v2707
    %v2772 = vadd.f32 %v2608, %v2708
    %v2773 = vadd.f32 %v2609, %v2709
    %v2774 = vadd.f32 %v2610, %v2710
    %v2775 = vadd.f32 %v2611, %v2711
    %v2776 = vadd.f32 %v2612, %v2712
    %v2777 = vadd.f32 %v2613, %v2713
    %v2778 = vadd.f32 %v2614, %v2714
    %v2779 = vadd.f32 %v2615, %v2715
    %v2780 = vadd.f32 %v2616, %v2716
    %v2781 = vadd.f32 %v2617, %v2717
    %v2782 = vadd.f32 %v2618, %v2718
    %v2783 = vadd.f32 %v2619, %v2719
    %v2784 = vadd.f32 %v2620, %v2720
    %v2785 = vadd.f32 %v2621, %v2721
    %v2786 = vadd.f32 %v2622, %v2722
    %v2787 = vrot.slane %v335, 2
    %v2788 = vrot.slane %v336, 2
    %v2789 = vsel %vm1432, %v2787, %v2788
    %v2790 = vrot.slane %v337, 2
    %v2791 = vsel %vm1432, %v2788, %v2790
    %v2792 = vrot.slane %v389, 2
    %v2793 = vrot.slane %v390, 2
    %v2794 = vsel %vm1432, %v2792, %v2793
    %v2795 = vrot.slane %v391, 2
    %v2796 = vsel %vm1432, %v2793, %v2795
    %s2797 = scalar_lea.vmem %s1, 8
    %v2798 = vld [vmem:[%s2797] sm:$0x1]
    %2799 = vset.pattern.permute.xlu0 0
    %2800 = vperm.xlu0 %2799, %v2789
    %v2801 = vpop.permute.xlu0 %2800
    %2803 = vset.pattern.permute.xlu0 0
    %2804 = vperm.xlu0 %2803, %v2791
    %v2805 = vpop.permute.xlu0 %2804
    %2807 = vset.pattern.permute.xlu0 0
    %2808 = vperm.xlu0 %2807, %v2794
    %v2809 = vpop.permute.xlu0 %2808
    %2811 = vset.pattern.permute.xlu0 0
    %2812 = vperm.xlu0 %2811, %v2796
    %v2813 = vpop.permute.xlu0 %2812
    %v2816 = vlaneseq
    %v2817 = vshrl.u32 %v2816, 7
    %v2818 = vsub.s32 0, %v2817
    %v2819 = vrot.slane %v2798, %v2818
    %v2821 = vmul.f32 %v1613, %v2819
    %v2822 = vmul.f32 %v1617, %v2819
    %v2823 = vmul.f32 %v1621, %v2819
    %v2824 = vmul.f32 %v1625, %v2819
    %v2825 = vmul.f32 %v1629, %v2819
    %v2826 = vmul.f32 %v1633, %v2819
    %v2827 = vmul.f32 %v1637, %v2819
    %v2828 = vmul.f32 %v1641, %v2819
    %v2829 = vmul.f32 %v1645, %v2819
    %v2830 = vmul.f32 %v1649, %v2819
    %v2831 = vmul.f32 %v1653, %v2819
    %v2832 = vmul.f32 %v1657, %v2819
    %v2833 = vmul.f32 %v1661, %v2819
    %v2834 = vmul.f32 %v1665, %v2819
    %v2835 = vmul.f32 %v1669, %v2819
    %v2836 = vmul.f32 %v1673, %v2819
    %v2837 = vmul.f32 %v1677, %v2819
    %v2838 = vmul.f32 %v1681, %v2819
    %v2839 = vmul.f32 %v1685, %v2819
    %v2840 = vmul.f32 %v1689, %v2819
    %v2841 = vmul.f32 %v1693, %v2819
    %v2842 = vmul.f32 %v1697, %v2819
    %v2843 = vmul.f32 %v1701, %v2819
    %v2844 = vmul.f32 %v1705, %v2819
    %v2845 = vmul.f32 %v1709, %v2819
    %v2846 = vmul.f32 %v1713, %v2819
    %v2847 = vmul.f32 %v1717, %v2819
    %v2848 = vmul.f32 %v1721, %v2819
    %v2849 = vmul.f32 %v2319, %v2819
    %v2850 = vmul.f32 %v2323, %v2819
    %v2851 = vmul.f32 %v2801, %v2819
    %v2852 = vmul.f32 %v2805, %v2819
    %v2853 = vmul.f32 %v1741, %v2819
    %v2854 = vmul.f32 %v1745, %v2819
    %v2855 = vmul.f32 %v1749, %v2819
    %v2856 = vmul.f32 %v1753, %v2819
    %v2857 = vmul.f32 %v1757, %v2819
    %v2858 = vmul.f32 %v1761, %v2819
    %v2859 = vmul.f32 %v1765, %v2819
    %v2860 = vmul.f32 %v1769, %v2819
    %v2861 = vmul.f32 %v1773, %v2819
    %v2862 = vmul.f32 %v1777, %v2819
    %v2863 = vmul.f32 %v1781, %v2819
    %v2864 = vmul.f32 %v1785, %v2819
    %v2865 = vmul.f32 %v1789, %v2819
    %v2866 = vmul.f32 %v1793, %v2819
    %v2867 = vmul.f32 %v1797, %v2819
    %v2868 = vmul.f32 %v1801, %v2819
    %v2869 = vmul.f32 %v1805, %v2819
    %v2870 = vmul.f32 %v1809, %v2819
    %v2871 = vmul.f32 %v1813, %v2819
    %v2872 = vmul.f32 %v1817, %v2819
    %v2873 = vmul.f32 %v1821, %v2819
    %v2874 = vmul.f32 %v1825, %v2819
    %v2875 = vmul.f32 %v1829, %v2819
    %v2876 = vmul.f32 %v1833, %v2819
    %v2877 = vmul.f32 %v1837, %v2819
    %v2878 = vmul.f32 %v1841, %v2819
    %v2879 = vmul.f32 %v1845, %v2819
    %v2880 = vmul.f32 %v1849, %v2819
    %v2881 = vmul.f32 %v2327, %v2819
    %v2882 = vmul.f32 %v2331, %v2819
    %v2883 = vmul.f32 %v2809, %v2819
    %v2884 = vmul.f32 %v2813, %v2819
    %v2885 = vadd.f32 %v2723, %v2821
    %v2886 = vadd.f32 %v2724, %v2822
    %v2887 = vadd.f32 %v2725, %v2823
    %v2888 = vadd.f32 %v2726, %v2824
    %v2889 = vadd.f32 %v2727, %v2825
    %v2890 = vadd.f32 %v2728, %v2826
    %v2891 = vadd.f32 %v2729, %v2827
    %v2892 = vadd.f32 %v2730, %v2828
    %v2893 = vadd.f32 %v2731, %v2829
    %v2894 = vadd.f32 %v2732, %v2830
    %v2895 = vadd.f32 %v2733, %v2831
    %v2896 = vadd.f32 %v2734, %v2832
    %v2897 = vadd.f32 %v2735, %v2833
    %v2898 = vadd.f32 %v2736, %v2834
    %v2899 = vadd.f32 %v2737, %v2835
    %v2900 = vadd.f32 %v2738, %v2836
    %v2901 = vadd.f32 %v2739, %v2837
    %v2902 = vadd.f32 %v2740, %v2838
    %v2903 = vadd.f32 %v2741, %v2839
    %v2904 = vadd.f32 %v2742, %v2840
    %v2905 = vadd.f32 %v2743, %v2841
    %v2906 = vadd.f32 %v2744, %v2842
    %v2907 = vadd.f32 %v2745, %v2843
    %v2908 = vadd.f32 %v2746, %v2844
    %v2909 = vadd.f32 %v2747, %v2845
    %v2910 = vadd.f32 %v2748, %v2846
    %v2911 = vadd.f32 %v2749, %v2847
    %v2912 = vadd.f32 %v2750, %v2848
    %v2913 = vadd.f32 %v2751, %v2849
    %v2914 = vadd.f32 %v2752, %v2850
    %v2915 = vadd.f32 %v2753, %v2851
    %v2916 = vadd.f32 %v2754, %v2852
    %v2917 = vadd.f32 %v2755, %v2853
    %v2918 = vadd.f32 %v2756, %v2854
    %v2919 = vadd.f32 %v2757, %v2855
    %v2920 = vadd.f32 %v2758, %v2856
    %v2921 = vadd.f32 %v2759, %v2857
    %v2922 = vadd.f32 %v2760, %v2858
    %v2923 = vadd.f32 %v2761, %v2859
    %v2924 = vadd.f32 %v2762, %v2860
    %v2925 = vadd.f32 %v2763, %v2861
    %v2926 = vadd.f32 %v2764, %v2862
    %v2927 = vadd.f32 %v2765, %v2863
    %v2928 = vadd.f32 %v2766, %v2864
    %v2929 = vadd.f32 %v2767, %v2865
    %v2930 = vadd.f32 %v2768, %v2866
    %v2931 = vadd.f32 %v2769, %v2867
    %v2932 = vadd.f32 %v2770, %v2868
    %v2933 = vadd.f32 %v2771, %v2869
    %v2934 = vadd.f32 %v2772, %v2870
    %v2935 = vadd.f32 %v2773, %v2871
    %v2936 = vadd.f32 %v2774, %v2872
    %v2937 = vadd.f32 %v2775, %v2873
    %v2938 = vadd.f32 %v2776, %v2874
    %v2939 = vadd.f32 %v2777, %v2875
    %v2940 = vadd.f32 %v2778, %v2876
    %v2941 = vadd.f32 %v2779, %v2877
    %v2942 = vadd.f32 %v2780, %v2878
    %v2943 = vadd.f32 %v2781, %v2879
    %v2944 = vadd.f32 %v2782, %v2880
    %v2945 = vadd.f32 %v2783, %v2881
    %v2946 = vadd.f32 %v2784, %v2882
    %v2947 = vadd.f32 %v2785, %v2883
    %v2948 = vadd.f32 %v2786, %v2884
    %v2949 = vld [vmem:[%s2] sm:$0x1]
    %v2951 = vlaneseq
    %v2952 = vshrl.u32 %v2951, 7
    %v2953 = vsub.s32 0, %v2952
    %v2954 = vrot.slane %v2949, %v2953
    %v2956 = vadd.f32 %v2885, %v2954
    %v2957 = vadd.f32 %v2886, %v2954
    %v2958 = vadd.f32 %v2887, %v2954
    %v2959 = vadd.f32 %v2888, %v2954
    %v2960 = vadd.f32 %v2889, %v2954
    %v2961 = vadd.f32 %v2890, %v2954
    %v2962 = vadd.f32 %v2891, %v2954
    %v2963 = vadd.f32 %v2892, %v2954
    %v2964 = vadd.f32 %v2893, %v2954
    %v2965 = vadd.f32 %v2894, %v2954
    %v2966 = vadd.f32 %v2895, %v2954
    %v2967 = vadd.f32 %v2896, %v2954
    %v2968 = vadd.f32 %v2897, %v2954
    %v2969 = vadd.f32 %v2898, %v2954
    %v2970 = vadd.f32 %v2899, %v2954
    %v2971 = vadd.f32 %v2900, %v2954
    %v2972 = vadd.f32 %v2901, %v2954
    %v2973 = vadd.f32 %v2902, %v2954
    %v2974 = vadd.f32 %v2903, %v2954
    %v2975 = vadd.f32 %v2904, %v2954
    %v2976 = vadd.f32 %v2905, %v2954
    %v2977 = vadd.f32 %v2906, %v2954
    %v2978 = vadd.f32 %v2907, %v2954
    %v2979 = vadd.f32 %v2908, %v2954
    %v2980 = vadd.f32 %v2909, %v2954
    %v2981 = vadd.f32 %v2910, %v2954
    %v2982 = vadd.f32 %v2911, %v2954
    %v2983 = vadd.f32 %v2912, %v2954
    %v2984 = vadd.f32 %v2913, %v2954
    %v2985 = vadd.f32 %v2914, %v2954
    %v2986 = vadd.f32 %v2915, %v2954
    %v2987 = vadd.f32 %v2916, %v2954
    %v2988 = vadd.f32 %v2917, %v2954
    %v2989 = vadd.f32 %v2918, %v2954
    %v2990 = vadd.f32 %v2919, %v2954
    %v2991 = vadd.f32 %v2920, %v2954
    %v2992 = vadd.f32 %v2921, %v2954
    %v2993 = vadd.f32 %v2922, %v2954
    %v2994 = vadd.f32 %v2923, %v2954
    %v2995 = vadd.f32 %v2924, %v2954
    %v2996 = vadd.f32 %v2925, %v2954
    %v2997 = vadd.f32 %v2926, %v2954
    %v2998 = vadd.f32 %v2927, %v2954
    %v2999 = vadd.f32 %v2928, %v2954
    %v3000 = vadd.f32 %v2929, %v2954
    %v3001 = vadd.f32 %v2930, %v2954
    %v3002 = vadd.f32 %v2931, %v2954
    %v3003 = vadd.f32 %v2932, %v2954
    %v3004 = vadd.f32 %v2933, %v2954
    %v3005 = vadd.f32 %v2934, %v2954
    %v3006 = vadd.f32 %v2935, %v2954
    %v3007 = vadd.f32 %v2936, %v2954
    %v3008 = vadd.f32 %v2937, %v2954
    %v3009 = vadd.f32 %v2938, %v2954
    %v3010 = vadd.f32 %v2939, %v2954
    %v3011 = vadd.f32 %v2940, %v2954
    %v3012 = vadd.f32 %v2941, %v2954
    %v3013 = vadd.f32 %v2942, %v2954
    %v3014 = vadd.f32 %v2943, %v2954
    %v3015 = vadd.f32 %v2944, %v2954
    %v3016 = vadd.f32 %v2945, %v2954
    %v3017 = vadd.f32 %v2946, %v2954
    %v3018 = vadd.f32 %v2947, %v2954
    %v3019 = vadd.f32 %v2948, %v2954
    %v3020 = vmax.f32 %v2956, 0.0
    %v3021 = vmax.f32 %v2957, 0.0
    %v3022 = vmax.f32 %v2958, 0.0
    %v3023 = vmax.f32 %v2959, 0.0
    %v3024 = vmax.f32 %v2960, 0.0
    %v3025 = vmax.f32 %v2961, 0.0
    %v3026 = vmax.f32 %v2962, 0.0
    %v3027 = vmax.f32 %v2963, 0.0
    %v3028 = vmax.f32 %v2964, 0.0
    %v3029 = vmax.f32 %v2965, 0.0
    %v3030 = vmax.f32 %v2966, 0.0
    %v3031 = vmax.f32 %v2967, 0.0
    %v3032 = vmax.f32 %v2968, 0.0
    %v3033 = vmax.f32 %v2969, 0.0
    %v3034 = vmax.f32 %v2970, 0.0
    %v3035 = vmax.f32 %v2971, 0.0
    %v3036 = vmax.f32 %v2972, 0.0
    %v3037 = vmax.f32 %v2973, 0.0
    %v3038 = vmax.f32 %v2974, 0.0
    %v3039 = vmax.f32 %v2975, 0.0
    %v3040 = vmax.f32 %v2976, 0.0
    %v3041 = vmax.f32 %v2977, 0.0
    %v3042 = vmax.f32 %v2978, 0.0
    %v3043 = vmax.f32 %v2979, 0.0
    %v3044 = vmax.f32 %v2980, 0.0
    %v3045 = vmax.f32 %v2981, 0.0
    %v3046 = vmax.f32 %v2982, 0.0
    %v3047 = vmax.f32 %v2983, 0.0
    %v3048 = vmax.f32 %v2984, 0.0
    %v3049 = vmax.f32 %v2985, 0.0
    %v3050 = vmax.f32 %v2986, 0.0
    %v3051 = vmax.f32 %v2987, 0.0
    %v3052 = vmax.f32 %v2988, 0.0
    %v3053 = vmax.f32 %v2989, 0.0
    %v3054 = vmax.f32 %v2990, 0.0
    %v3055 = vmax.f32 %v2991, 0.0
    %v3056 = vmax.f32 %v2992, 0.0
    %v3057 = vmax.f32 %v2993, 0.0
    %v3058 = vmax.f32 %v2994, 0.0
    %v3059 = vmax.f32 %v2995, 0.0
    %v3060 = vmax.f32 %v2996, 0.0
    %v3061 = vmax.f32 %v2997, 0.0
    %v3062 = vmax.f32 %v2998, 0.0
    %v3063 = vmax.f32 %v2999, 0.0
    %v3064 = vmax.f32 %v3000, 0.0
    %v3065 = vmax.f32 %v3001, 0.0
    %v3066 = vmax.f32 %v3002, 0.0
    %v3067 = vmax.f32 %v3003, 0.0
    %v3068 = vmax.f32 %v3004, 0.0
    %v3069 = vmax.f32 %v3005, 0.0
    %v3070 = vmax.f32 %v3006, 0.0
    %v3071 = vmax.f32 %v3007, 0.0
    %v3072 = vmax.f32 %v3008, 0.0
    %v3073 = vmax.f32 %v3009, 0.0
    %v3074 = vmax.f32 %v3010, 0.0
    %v3075 = vmax.f32 %v3011, 0.0
    %v3076 = vmax.f32 %v3012, 0.0
    %v3077 = vmax.f32 %v3013, 0.0
    %v3078 = vmax.f32 %v3014, 0.0
    %v3079 = vmax.f32 %v3015, 0.0
    %v3080 = vmax.f32 %v3016, 0.0
    %v3081 = vmax.f32 %v3017, 0.0
    %v3082 = vmax.f32 %v3018, 0.0
    %v3083 = vmax.f32 %v3019, 0.0
    %vm3084 = vcmask 130048
    %3085 = vst.msk [vmem:[#allocation3] sm:$0xff] %vm3084, 0.0
    %3086 = vst.msk [vmem:[#allocation3 + $0x8] sm:$0xff] %vm3084, 0.0
    %vm3087 = vcmask 123904
    %3088 = vst.msk [vmem:[#allocation3 + $0x10] sm:$0x3] %vm3087, 0.0
    %3089 = vst.msk [vmem:[#allocation3 + $0x18] sm:$0xff] %vm3084, 0.0
    %3090 = vst.msk [vmem:[#allocation3 + $0x20] sm:$0xff] %vm3084, 0.0
    %3091 = vst.msk [vmem:[#allocation3 + $0x28] sm:$0x3] %vm3087, 0.0
    %3092 = vst.msk [vmem:[#allocation3 + $0x30] sm:$0xff] %vm3084, 0.0
    %3093 = vst.msk [vmem:[#allocation3 + $0x38] sm:$0xff] %vm3084, 0.0
    %3094 = vst.msk [vmem:[#allocation3 + $0x40] sm:$0x3] %vm3087, 0.0
    %3095 = vst.msk [vmem:[#allocation3 + $0x48] sm:$0xff] %vm3084, 0.0
    %3096 = vst.msk [vmem:[#allocation3 + $0x50] sm:$0xff] %vm3084, 0.0
    %3097 = vst.msk [vmem:[#allocation3 + $0x58] sm:$0x3] %vm3087, 0.0
    %3098 = vst.msk [vmem:[#allocation3 + $0x60] sm:$0xff] %vm3084, 0.0
    %3099 = vst.msk [vmem:[#allocation3 + $0x68] sm:$0xff] %vm3084, 0.0
    %3100 = vst.msk [vmem:[#allocation3 + $0x70] sm:$0x3] %vm3087, 0.0
    %3101 = vst.msk [vmem:[#allocation3 + $0x78] sm:$0xff] %vm3084, 0.0
    %3102 = vst.msk [vmem:[#allocation3 + $0x80] sm:$0xff] %vm3084, 0.0
    %3103 = vst.msk [vmem:[#allocation3 + $0x88] sm:$0x3] %vm3087, 0.0
    %3104 = vst.msk [vmem:[#allocation3 + $0x90] sm:$0xff] %vm3084, 0.0
    %3105 = vst.msk [vmem:[#allocation3 + $0x98] sm:$0xff] %vm3084, 0.0
    %3106 = vst.msk [vmem:[#allocation3 + $0xa0] sm:$0x3] %vm3087, 0.0
    %3107 = vst.msk [vmem:[#allocation3 + $0xa8] sm:$0xff] %vm3084, 0.0
    %3108 = vst.msk [vmem:[#allocation3 + $0xb0] sm:$0xff] %vm3084, 0.0
    %3109 = vst.msk [vmem:[#allocation3 + $0xb8] sm:$0x3] %vm3087, 0.0
    %3110 = vst.msk [vmem:[#allocation3 + $0xc0] sm:$0xff] %vm3084, 0.0
    %3111 = vst.msk [vmem:[#allocation3 + $0xc8] sm:$0xff] %vm3084, 0.0
    %3112 = vst.msk [vmem:[#allocation3 + $0xd0] sm:$0x3] %vm3087, 0.0
    %3113 = vst.msk [vmem:[#allocation3 + $0xd8] sm:$0xff] %vm3084, 0.0
    %3114 = vst.msk [vmem:[#allocation3 + $0xe0] sm:$0xff] %vm3084, 0.0
    %3115 = vst.msk [vmem:[#allocation3 + $0xe8] sm:$0x3] %vm3087, 0.0
    %3116 = vst.msk [vmem:[#allocation3 + $0xf0] sm:$0xff] %vm3084, 0.0
    %3117 = vst.msk [vmem:[#allocation3 + $0xf8] sm:$0xff] %vm3084, 0.0
    %3118 = vst.msk [vmem:[#allocation3 + $0x100] sm:$0x3] %vm3087, 0.0
    %3119 = vst.msk [vmem:[#allocation3 + $0x108] sm:$0xff] %vm3084, 0.0
    %3120 = vst.msk [vmem:[#allocation3 + $0x110] sm:$0xff] %vm3084, 0.0
    %3121 = vst.msk [vmem:[#allocation3 + $0x118] sm:$0x3] %vm3087, 0.0
    %3122 = vst.msk [vmem:[#allocation3 + $0x120] sm:$0xff] %vm3084, 0.0
    %3123 = vst.msk [vmem:[#allocation3 + $0x128] sm:$0xff] %vm3084, 0.0
    %3124 = vst.msk [vmem:[#allocation3 + $0x130] sm:$0x3] %vm3087, 0.0
    %3125 = vst.msk [vmem:[#allocation3 + $0x138] sm:$0xff] %vm3084, 0.0
    %3126 = vst.msk [vmem:[#allocation3 + $0x140] sm:$0xff] %vm3084, 0.0
    %3127 = vst.msk [vmem:[#allocation3 + $0x148] sm:$0x3] %vm3087, 0.0
    %3128 = vst.msk [vmem:[#allocation3 + $0x150] sm:$0xff] %vm3084, 0.0
    %3129 = vst.msk [vmem:[#allocation3 + $0x158] sm:$0xff] %vm3084, 0.0
    %3130 = vst.msk [vmem:[#allocation3 + $0x160] sm:$0x3] %vm3087, 0.0
    %3131 = vst.msk [vmem:[#allocation3 + $0x168] sm:$0xff] %vm3084, 0.0
    %3132 = vst.msk [vmem:[#allocation3 + $0x170] sm:$0xff] %vm3084, 0.0
    %3133 = vst.msk [vmem:[#allocation3 + $0x178] sm:$0x3] %vm3087, 0.0
    %3134 = vst.msk [vmem:[#allocation3 + $0x180] sm:$0xff] %vm3084, 0.0
    %3135 = vst.msk [vmem:[#allocation3 + $0x188] sm:$0xff] %vm3084, 0.0
    %3136 = vst.msk [vmem:[#allocation3 + $0x190] sm:$0x3] %vm3087, 0.0
    %3137 = vst.msk [vmem:[#allocation3 + $0x198] sm:$0xff] %vm3084, 0.0
    %3138 = vst.msk [vmem:[#allocation3 + $0x1a0] sm:$0xff] %vm3084, 0.0
    %3139 = vst.msk [vmem:[#allocation3 + $0x1a8] sm:$0x3] %vm3087, 0.0
    %3140 = vst.msk [vmem:[#allocation3 + $0x1b0] sm:$0xff] %vm3084, 0.0
    %3141 = vst.msk [vmem:[#allocation3 + $0x1b8] sm:$0xff] %vm3084, 0.0
    %3142 = vst.msk [vmem:[#allocation3 + $0x1c0] sm:$0x3] %vm3087, 0.0
    %3143 = vst.msk [vmem:[#allocation3 + $0x1c8] sm:$0xff] %vm3084, 0.0
    %3144 = vst.msk [vmem:[#allocation3 + $0x1d0] sm:$0xff] %vm3084, 0.0
    %3145 = vst.msk [vmem:[#allocation3 + $0x1d8] sm:$0x3] %vm3087, 0.0
    %3146 = vst.msk [vmem:[#allocation3 + $0x1e0] sm:$0xff] %vm3084, 0.0
    %3147 = vst.msk [vmem:[#allocation3 + $0x1e8] sm:$0xff] %vm3084, 0.0
    %3148 = vst.msk [vmem:[#allocation3 + $0x1f0] sm:$0x3] %vm3087, 0.0
    %3149 = vst.msk [vmem:[#allocation3 + $0x1f8] sm:$0xff] %vm3084, 0.0
    %3150 = vst.msk [vmem:[#allocation3 + $0x200] sm:$0xff] %vm3084, 0.0
    %3151 = vst.msk [vmem:[#allocation3 + $0x208] sm:$0x3] %vm3087, 0.0
    %3152 = vst.msk [vmem:[#allocation3 + $0x210] sm:$0xff] %vm3084, 0.0
    %3153 = vst.msk [vmem:[#allocation3 + $0x218] sm:$0xff] %vm3084, 0.0
    %3154 = vst.msk [vmem:[#allocation3 + $0x220] sm:$0x3] %vm3087, 0.0
    %3155 = vst.msk [vmem:[#allocation3 + $0x228] sm:$0xff] %vm3084, 0.0
    %3156 = vst.msk [vmem:[#allocation3 + $0x230] sm:$0xff] %vm3084, 0.0
    %3157 = vst.msk [vmem:[#allocation3 + $0x238] sm:$0x3] %vm3087, 0.0
    %3158 = vst.msk [vmem:[#allocation3 + $0x240] sm:$0xff] %vm3084, 0.0
    %3159 = vst.msk [vmem:[#allocation3 + $0x248] sm:$0xff] %vm3084, 0.0
    %3160 = vst.msk [vmem:[#allocation3 + $0x250] sm:$0x3] %vm3087, 0.0
    %3161 = vst.msk [vmem:[#allocation3 + $0x258] sm:$0xff] %vm3084, 0.0
    %3162 = vst.msk [vmem:[#allocation3 + $0x260] sm:$0xff] %vm3084, 0.0
    %3163 = vst.msk [vmem:[#allocation3 + $0x268] sm:$0x3] %vm3087, 0.0
    %3164 = vst.msk [vmem:[#allocation3 + $0x270] sm:$0xff] %vm3084, 0.0
    %3165 = vst.msk [vmem:[#allocation3 + $0x278] sm:$0xff] %vm3084, 0.0
    %3166 = vst.msk [vmem:[#allocation3 + $0x280] sm:$0x3] %vm3087, 0.0
    %3167 = vst.msk [vmem:[#allocation3 + $0x288] sm:$0xff] %vm3084, 0.0
    %3168 = vst.msk [vmem:[#allocation3 + $0x290] sm:$0xff] %vm3084, 0.0
    %3169 = vst.msk [vmem:[#allocation3 + $0x298] sm:$0x3] %vm3087, 0.0
    %3170 = vst.msk [vmem:[#allocation3 + $0x2a0] sm:$0xff] %vm3084, 0.0
    %3171 = vst.msk [vmem:[#allocation3 + $0x2a8] sm:$0xff] %vm3084, 0.0
    %3172 = vst.msk [vmem:[#allocation3 + $0x2b0] sm:$0x3] %vm3087, 0.0
    %3173 = vst.msk [vmem:[#allocation3 + $0x2b8] sm:$0xff] %vm3084, 0.0
    %3174 = vst.msk [vmem:[#allocation3 + $0x2c0] sm:$0xff] %vm3084, 0.0
    %3175 = vst.msk [vmem:[#allocation3 + $0x2c8] sm:$0x3] %vm3087, 0.0
    %3176 = vst.msk [vmem:[#allocation3 + $0x2d0] sm:$0xff] %vm3084, 0.0
    %3177 = vst.msk [vmem:[#allocation3 + $0x2d8] sm:$0xff] %vm3084, 0.0
    %3178 = vst.msk [vmem:[#allocation3 + $0x2e0] sm:$0x3] %vm3087, 0.0
    %3179 = vst.msk [vmem:[#allocation3 + $0x2e8] sm:$0xff] %vm3084, 0.0
    %3180 = vst.msk [vmem:[#allocation3 + $0x2f0] sm:$0xff] %vm3084, 0.0
    %3181 = vst.msk [vmem:[#allocation3 + $0x2f8] sm:$0x3] %vm3087, 0.0
    %3182 = vst.msk [vmem:[#allocation3 + $0x300] sm:$0xff] %vm3084, 0.0
    %3183 = vst.msk [vmem:[#allocation3 + $0x308] sm:$0xff] %vm3084, 0.0
    %3184 = vst.msk [vmem:[#allocation3 + $0x310] sm:$0x3] %vm3087, 0.0
    %3185 = vst.msk [vmem:[#allocation3 + $0x318] sm:$0xff] %vm3084, 0.0
    %3186 = vst.msk [vmem:[#allocation3 + $0x320] sm:$0xff] %vm3084, 0.0
    %3187 = vst.msk [vmem:[#allocation3 + $0x328] sm:$0x3] %vm3087, 0.0
    %3188 = vst.msk [vmem:[#allocation3 + $0x330] sm:$0xff] %vm3084, 0.0
    %3189 = vst.msk [vmem:[#allocation3 + $0x338] sm:$0xff] %vm3084, 0.0
    %3190 = vst.msk [vmem:[#allocation3 + $0x340] sm:$0x3] %vm3087, 0.0
    %3191 = vst.msk [vmem:[#allocation3 + $0x348] sm:$0xff] %vm3084, 0.0
    %3192 = vst.msk [vmem:[#allocation3 + $0x350] sm:$0xff] %vm3084, 0.0
    %3193 = vst.msk [vmem:[#allocation3 + $0x358] sm:$0x3] %vm3087, 0.0
    %s3194 = scalar_lea.vmem [#allocation3], 24
    %3195 = vst.msk [vmem:[%s3194 + $0x1] sm:$0xff] %vm3084, %v3020
    %3196 = vst.msk [vmem:[%s3194 + $0x9] sm:$0xff] %vm3084, %v3021
    %3197 = vst.msk [vmem:[%s3194 + $0x19] sm:$0xff] %vm3084, %v3022
    %3198 = vst.msk [vmem:[%s3194 + $0x21] sm:$0xff] %vm3084, %v3023
    %3199 = vst.msk [vmem:[%s3194 + $0x31] sm:$0xff] %vm3084, %v3024
    %3200 = vst.msk [vmem:[%s3194 + $0x39] sm:$0xff] %vm3084, %v3025
    %3201 = vst.msk [vmem:[%s3194 + $0x49] sm:$0xff] %vm3084, %v3026
    %3202 = vst.msk [vmem:[%s3194 + $0x51] sm:$0xff] %vm3084, %v3027
    %3203 = vst.msk [vmem:[%s3194 + $0x61] sm:$0xff] %vm3084, %v3028
    %3204 = vst.msk [vmem:[%s3194 + $0x69] sm:$0xff] %vm3084, %v3029
    %3205 = vst.msk [vmem:[%s3194 + $0x79] sm:$0xff] %vm3084, %v3030
    %3206 = vst.msk [vmem:[%s3194 + $0x81] sm:$0xff] %vm3084, %v3031
    %3207 = vst.msk [vmem:[%s3194 + $0x91] sm:$0xff] %vm3084, %v3032
    %3208 = vst.msk [vmem:[%s3194 + $0x99] sm:$0xff] %vm3084, %v3033
    %3209 = vst.msk [vmem:[%s3194 + $0xa9] sm:$0xff] %vm3084, %v3034
    %3210 = vst.msk [vmem:[%s3194 + $0xb1] sm:$0xff] %vm3084, %v3035
    %3211 = vst.msk [vmem:[%s3194 + $0xc1] sm:$0xff] %vm3084, %v3036
    %3212 = vst.msk [vmem:[%s3194 + $0xc9] sm:$0xff] %vm3084, %v3037
    %3213 = vst.msk [vmem:[%s3194 + $0xd9] sm:$0xff] %vm3084, %v3038
    %3214 = vst.msk [vmem:[%s3194 + $0xe1] sm:$0xff] %vm3084, %v3039
    %3215 = vst.msk [vmem:[%s3194 + $0xf1] sm:$0xff] %vm3084, %v3040
    %3216 = vst.msk [vmem:[%s3194 + $0xf9] sm:$0xff] %vm3084, %v3041
    %3217 = vst.msk [vmem:[%s3194 + $0x109] sm:$0xff] %vm3084, %v3042
    %3218 = vst.msk [vmem:[%s3194 + $0x111] sm:$0xff] %vm3084, %v3043
    %3219 = vst.msk [vmem:[%s3194 + $0x121] sm:$0xff] %vm3084, %v3044
    %3220 = vst.msk [vmem:[%s3194 + $0x129] sm:$0xff] %vm3084, %v3045
    %3221 = vst.msk [vmem:[%s3194 + $0x139] sm:$0xff] %vm3084, %v3046
    %3222 = vst.msk [vmem:[%s3194 + $0x141] sm:$0xff] %vm3084, %v3047
    %3223 = vst.msk [vmem:[%s3194 + $0x151] sm:$0xff] %vm3084, %v3048
    %3224 = vst.msk [vmem:[%s3194 + $0x159] sm:$0xff] %vm3084, %v3049
    %3225 = vst.msk [vmem:[%s3194 + $0x169] sm:$0xff] %vm3084, %v3050
    %3226 = vst.msk [vmem:[%s3194 + $0x171] sm:$0xff] %vm3084, %v3051
    %3227 = vst.msk [vmem:[%s3194 + $0x1b1] sm:$0xff] %vm3084, %v3052
    %3228 = vst.msk [vmem:[%s3194 + $0x1b9] sm:$0xff] %vm3084, %v3053
    %3229 = vst.msk [vmem:[%s3194 + $0x1c9] sm:$0xff] %vm3084, %v3054
    %3230 = vst.msk [vmem:[%s3194 + $0x1d1] sm:$0xff] %vm3084, %v3055
    %3231 = vst.msk [vmem:[%s3194 + $0x1e1] sm:$0xff] %vm3084, %v3056
    %3232 = vst.msk [vmem:[%s3194 + $0x1e9] sm:$0xff] %vm3084, %v3057
    %3233 = vst.msk [vmem:[%s3194 + $0x1f9] sm:$0xff] %vm3084, %v3058
    %3234 = vst.msk [vmem:[%s3194 + $0x201] sm:$0xff] %vm3084, %v3059
    %3235 = vst.msk [vmem:[%s3194 + $0x211] sm:$0xff] %vm3084, %v3060
    %3236 = vst.msk [vmem:[%s3194 + $0x219] sm:$0xff] %vm3084, %v3061
    %3237 = vst.msk [vmem:[%s3194 + $0x229] sm:$0xff] %vm3084, %v3062
    %3238 = vst.msk [vmem:[%s3194 + $0x231] sm:$0xff] %vm3084, %v3063
    %3239 = vst.msk [vmem:[%s3194 + $0x241] sm:$0xff] %vm3084, %v3064
    %3240 = vst.msk [vmem:[%s3194 + $0x249] sm:$0xff] %vm3084, %v3065
    %3241 = vst.msk [vmem:[%s3194 + $0x259] sm:$0xff] %vm3084, %v3066
    %3242 = vst.msk [vmem:[%s3194 + $0x261] sm:$0xff] %vm3084, %v3067
    %3243 = vst.msk [vmem:[%s3194 + $0x271] sm:$0xff] %vm3084, %v3068
    %3244 = vst.msk [vmem:[%s3194 + $0x279] sm:$0xff] %vm3084, %v3069
    %3245 = vst.msk [vmem:[%s3194 + $0x289] sm:$0xff] %vm3084, %v3070
    %3246 = vst.msk [vmem:[%s3194 + $0x291] sm:$0xff] %vm3084, %v3071
    %3247 = vst.msk [vmem:[%s3194 + $0x2a1] sm:$0xff] %vm3084, %v3072
    %3248 = vst.msk [vmem:[%s3194 + $0x2a9] sm:$0xff] %vm3084, %v3073
    %3249 = vst.msk [vmem:[%s3194 + $0x2b9] sm:$0xff] %vm3084, %v3074
    %3250 = vst.msk [vmem:[%s3194 + $0x2c1] sm:$0xff] %vm3084, %v3075
    %3251 = vst.msk [vmem:[%s3194 + $0x2d1] sm:$0xff] %vm3084, %v3076
    %3252 = vst.msk [vmem:[%s3194 + $0x2d9] sm:$0xff] %vm3084, %v3077
    %3253 = vst.msk [vmem:[%s3194 + $0x2e9] sm:$0xff] %vm3084, %v3078
    %3254 = vst.msk [vmem:[%s3194 + $0x2f1] sm:$0xff] %vm3084, %v3079
    %3255 = vst.msk [vmem:[%s3194 + $0x301] sm:$0xff] %vm3084, %v3080
    %3256 = vst.msk [vmem:[%s3194 + $0x309] sm:$0xff] %vm3084, %v3081
    %3257 = vst.msk [vmem:[%s3194 + $0x319] sm:$0xff] %vm3084, %v3082
    %3258 = vst.msk [vmem:[%s3194 + $0x321] sm:$0xff] %vm3084, %v3083
    %v3259 = vld [vmem:[#allocation3] sm:$0xff]
    %v3260 = vld [vmem:[#allocation3 + $0x8] sm:$0xff]
    %v3261 = vld [vmem:[#allocation3 + $0x10] sm:$0x3]
    %v3262 = vld [vmem:[#allocation3 + $0x18] sm:$0xff]
    %v3263 = vld [vmem:[#allocation3 + $0x20] sm:$0xff]
    %v3264 = vld [vmem:[#allocation3 + $0x28] sm:$0x3]
    %v3265 = vld [vmem:[#allocation3 + $0x30] sm:$0xff]
    %v3266 = vld [vmem:[#allocation3 + $0x38] sm:$0xff]
    %v3267 = vld [vmem:[#allocation3 + $0x40] sm:$0x3]
    %v3268 = vld [vmem:[#allocation3 + $0x48] sm:$0xff]
    %v3269 = vld [vmem:[#allocation3 + $0x50] sm:$0xff]
    %v3270 = vld [vmem:[#allocation3 + $0x58] sm:$0x3]
    %v3271 = vld [vmem:[#allocation3 + $0x60] sm:$0xff]
    %v3272 = vld [vmem:[#allocation3 + $0x68] sm:$0xff]
    %v3273 = vld [vmem:[#allocation3 + $0x70] sm:$0x3]
    %v3274 = vld [vmem:[#allocation3 + $0x78] sm:$0xff]
    %v3275 = vld [vmem:[#allocation3 + $0x80] sm:$0xff]
    %v3276 = vld [vmem:[#allocation3 + $0x88] sm:$0x3]
    %v3277 = vld [vmem:[#allocation3 + $0x90] sm:$0xff]
    %v3278 = vld [vmem:[#allocation3 + $0x98] sm:$0xff]
    %v3279 = vld [vmem:[#allocation3 + $0xa0] sm:$0x3]
    %v3280 = vld [vmem:[#allocation3 + $0xa8] sm:$0xff]
    %v3281 = vld [vmem:[#allocation3 + $0xb0] sm:$0xff]
    %v3282 = vld [vmem:[#allocation3 + $0xb8] sm:$0x3]
    %v3283 = vld [vmem:[#allocation3 + $0xc0] sm:$0xff]
    %v3284 = vld [vmem:[#allocation3 + $0xc8] sm:$0xff]
    %v3285 = vld [vmem:[#allocation3 + $0xd0] sm:$0x3]
    %v3286 = vld [vmem:[#allocation3 + $0xd8] sm:$0xff]
    %v3287 = vld [vmem:[#allocation3 + $0xe0] sm:$0xff]
    %v3288 = vld [vmem:[#allocation3 + $0xe8] sm:$0x3]
    %v3289 = vld [vmem:[#allocation3 + $0xf0] sm:$0xff]
    %v3290 = vld [vmem:[#allocation3 + $0xf8] sm:$0xff]
    %v3291 = vld [vmem:[#allocation3 + $0x100] sm:$0x3]
    %v3292 = vld [vmem:[#allocation3 + $0x108] sm:$0xff]
    %v3293 = vld [vmem:[#allocation3 + $0x110] sm:$0xff]
    %v3294 = vld [vmem:[#allocation3 + $0x118] sm:$0x3]
    %v3295 = vld [vmem:[#allocation3 + $0x120] sm:$0xff]
    %v3296 = vld [vmem:[#allocation3 + $0x128] sm:$0xff]
    %v3297 = vld [vmem:[#allocation3 + $0x130] sm:$0x3]
    %v3298 = vld [vmem:[#allocation3 + $0x138] sm:$0xff]
    %v3299 = vld [vmem:[#allocation3 + $0x140] sm:$0xff]
    %v3300 = vld [vmem:[#allocation3 + $0x148] sm:$0x3]
    %v3301 = vld [vmem:[#allocation3 + $0x150] sm:$0xff]
    %v3302 = vld [vmem:[#allocation3 + $0x158] sm:$0xff]
    %v3303 = vld [vmem:[#allocation3 + $0x160] sm:$0x3]
    %v3304 = vld [vmem:[#allocation3 + $0x168] sm:$0xff]
    %v3305 = vld [vmem:[#allocation3 + $0x170] sm:$0xff]
    %v3306 = vld [vmem:[#allocation3 + $0x178] sm:$0x3]
    %v3307 = vld [vmem:[#allocation3 + $0x180] sm:$0xff]
    %v3308 = vld [vmem:[#allocation3 + $0x188] sm:$0xff]
    %v3309 = vld [vmem:[#allocation3 + $0x190] sm:$0x3]
    %v3310 = vld [vmem:[#allocation3 + $0x198] sm:$0xff]
    %v3311 = vld [vmem:[#allocation3 + $0x1a0] sm:$0xff]
    %v3312 = vld [vmem:[#allocation3 + $0x1a8] sm:$0x3]
    %v3313 = vld [vmem:[#allocation3 + $0x1b0] sm:$0xff]
    %v3314 = vld [vmem:[#allocation3 + $0x1b8] sm:$0xff]
    %v3315 = vld [vmem:[#allocation3 + $0x1c0] sm:$0x3]
    %v3316 = vld [vmem:[#allocation3 + $0x1c8] sm:$0xff]
    %v3317 = vld [vmem:[#allocation3 + $0x1d0] sm:$0xff]
    %v3318 = vld [vmem:[#allocation3 + $0x1d8] sm:$0x3]
    %v3319 = vld [vmem:[#allocation3 + $0x1e0] sm:$0xff]
    %v3320 = vld [vmem:[#allocation3 + $0x1e8] sm:$0xff]
    %v3321 = vld [vmem:[#allocation3 + $0x1f0] sm:$0x3]
    %v3322 = vld [vmem:[#allocation3 + $0x1f8] sm:$0xff]
    %v3323 = vld [vmem:[#allocation3 + $0x200] sm:$0xff]
    %v3324 = vld [vmem:[#allocation3 + $0x208] sm:$0x3]
    %v3325 = vld [vmem:[#allocation3 + $0x210] sm:$0xff]
    %v3326 = vld [vmem:[#allocation3 + $0x218] sm:$0xff]
    %v3327 = vld [vmem:[#allocation3 + $0x220] sm:$0x3]
    %v3328 = vld [vmem:[#allocation3 + $0x228] sm:$0xff]
    %v3329 = vld [vmem:[#allocation3 + $0x230] sm:$0xff]
    %v3330 = vld [vmem:[#allocation3 + $0x238] sm:$0x3]
    %v3331 = vld [vmem:[#allocation3 + $0x240] sm:$0xff]
    %v3332 = vld [vmem:[#allocation3 + $0x248] sm:$0xff]
    %v3333 = vld [vmem:[#allocation3 + $0x250] sm:$0x3]
    %v3334 = vld [vmem:[#allocation3 + $0x258] sm:$0xff]
    %v3335 = vld [vmem:[#allocation3 + $0x260] sm:$0xff]
    %v3336 = vld [vmem:[#allocation3 + $0x268] sm:$0x3]
    %v3337 = vld [vmem:[#allocation3 + $0x270] sm:$0xff]
    %v3338 = vld [vmem:[#allocation3 + $0x278] sm:$0xff]
    %v3339 = vld [vmem:[#allocation3 + $0x280] sm:$0x3]
    %v3340 = vld [vmem:[#allocation3 + $0x288] sm:$0xff]
    %v3341 = vld [vmem:[#allocation3 + $0x290] sm:$0xff]
    %v3342 = vld [vmem:[#allocation3 + $0x298] sm:$0x3]
    %v3343 = vld [vmem:[#allocation3 + $0x2a0] sm:$0xff]
    %v3344 = vld [vmem:[#allocation3 + $0x2a8] sm:$0xff]
    %v3345 = vld [vmem:[#allocation3 + $0x2b0] sm:$0x3]
    %v3346 = vld [vmem:[#allocation3 + $0x2b8] sm:$0xff]
    %v3347 = vld [vmem:[#allocation3 + $0x2c0] sm:$0xff]
    %v3348 = vld [vmem:[#allocation3 + $0x2c8] sm:$0x3]
    %v3349 = vld [vmem:[#allocation3 + $0x2d0] sm:$0xff]
    %v3350 = vld [vmem:[#allocation3 + $0x2d8] sm:$0xff]
    %v3351 = vld [vmem:[#allocation3 + $0x2e0] sm:$0x3]
    %v3352 = vld [vmem:[#allocation3 + $0x2e8] sm:$0xff]
    %v3353 = vld [vmem:[#allocation3 + $0x2f0] sm:$0xff]
    %v3354 = vld [vmem:[#allocation3 + $0x2f8] sm:$0x3]
    %v3355 = vld [vmem:[#allocation3 + $0x300] sm:$0xff]
    %v3356 = vld [vmem:[#allocation3 + $0x308] sm:$0xff]
    %v3357 = vld [vmem:[#allocation3 + $0x310] sm:$0x3]
    %v3358 = vld [vmem:[#allocation3 + $0x318] sm:$0xff]
    %v3359 = vld [vmem:[#allocation3 + $0x320] sm:$0xff]
    %v3360 = vld [vmem:[#allocation3 + $0x328] sm:$0x3]
    %v3361 = vld [vmem:[#allocation3 + $0x330] sm:$0xff]
    %v3362 = vld [vmem:[#allocation3 + $0x338] sm:$0xff]
    %v3363 = vld [vmem:[#allocation3 + $0x340] sm:$0x3]
    %v3364 = vld [vmem:[#allocation3 + $0x348] sm:$0xff]
    %v3365 = vld [vmem:[#allocation3 + $0x350] sm:$0xff]
    %v3366 = vld [vmem:[#allocation3 + $0x358] sm:$0x3]
    %3367 = vst.msk [vmem:[#allocation4] sm:$0xff] %vm3084, %v3259
    %3368 = vst.msk [vmem:[#allocation4 + $0x10] sm:$0xff] %vm3084, %v3260
    %3369 = vst.msk [vmem:[#allocation4 + $0x20] sm:$0xff] %vm3084, %v3262
    %3370 = vst.msk [vmem:[#allocation4 + $0x30] sm:$0xff] %vm3084, %v3263
    %3371 = vst.msk [vmem:[#allocation4 + $0x40] sm:$0xff] %vm3084, %v3265
    %3372 = vst.msk [vmem:[#allocation4 + $0x50] sm:$0xff] %vm3084, %v3266
    %3373 = vst.msk [vmem:[#allocation4 + $0x60] sm:$0xff] %vm3084, %v3268
    %3374 = vst.msk [vmem:[#allocation4 + $0x70] sm:$0xff] %vm3084, %v3269
    %3375 = vst.msk [vmem:[#allocation4 + $0x80] sm:$0xff] %vm3084, %v3271
    %3376 = vst.msk [vmem:[#allocation4 + $0x90] sm:$0xff] %vm3084, %v3272
    %3377 = vst.msk [vmem:[#allocation4 + $0xa0] sm:$0xff] %vm3084, %v3274
    %3378 = vst.msk [vmem:[#allocation4 + $0xb0] sm:$0xff] %vm3084, %v3275
    %3379 = vst.msk [vmem:[#allocation4 + $0xc0] sm:$0xff] %vm3084, %v3277
    %3380 = vst.msk [vmem:[#allocation4 + $0xd0] sm:$0xff] %vm3084, %v3278
    %3381 = vst.msk [vmem:[#allocation4 + $0xe0] sm:$0xff] %vm3084, %v3280
    %3382 = vst.msk [vmem:[#allocation4 + $0xf0] sm:$0xff] %vm3084, %v3281
    %3383 = vst.msk [vmem:[#allocation4 + $0x100] sm:$0xff] %vm3084, %v3283
    %3384 = vst.msk [vmem:[#allocation4 + $0x110] sm:$0xff] %vm3084, %v3284
    %3385 = vst.msk [vmem:[#allocation4 + $0x120] sm:$0xff] %vm3084, %v3286
    %3386 = vst.msk [vmem:[#allocation4 + $0x130] sm:$0xff] %vm3084, %v3287
    %3387 = vst.msk [vmem:[#allocation4 + $0x140] sm:$0xff] %vm3084, %v3289
    %3388 = vst.msk [vmem:[#allocation4 + $0x150] sm:$0xff] %vm3084, %v3290
    %3389 = vst.msk [vmem:[#allocation4 + $0x160] sm:$0xff] %vm3084, %v3292
    %3390 = vst.msk [vmem:[#allocation4 + $0x170] sm:$0xff] %vm3084, %v3293
    %3391 = vst.msk [vmem:[#allocation4 + $0x180] sm:$0xff] %vm3084, %v3295
    %3392 = vst.msk [vmem:[#allocation4 + $0x190] sm:$0xff] %vm3084, %v3296
    %3393 = vst.msk [vmem:[#allocation4 + $0x1a0] sm:$0xff] %vm3084, %v3298
    %3394 = vst.msk [vmem:[#allocation4 + $0x1b0] sm:$0xff] %vm3084, %v3299
    %3395 = vst.msk [vmem:[#allocation4 + $0x1c0] sm:$0xff] %vm3084, %v3301
    %3396 = vst.msk [vmem:[#allocation4 + $0x1d0] sm:$0xff] %vm3084, %v3302
    %3397 = vst.msk [vmem:[#allocation4 + $0x1e0] sm:$0xff] %vm3084, %v3304
    %3398 = vst.msk [vmem:[#allocation4 + $0x1f0] sm:$0xff] %vm3084, %v3305
    %3399 = vst.msk [vmem:[#allocation4 + $0x200] sm:$0xff] %vm3084, %v3313
    %3400 = vst.msk [vmem:[#allocation4 + $0x210] sm:$0xff] %vm3084, %v3314
    %3401 = vst.msk [vmem:[#allocation4 + $0x220] sm:$0xff] %vm3084, %v3316
    %3402 = vst.msk [vmem:[#allocation4 + $0x230] sm:$0xff] %vm3084, %v3317
    %3403 = vst.msk [vmem:[#allocation4 + $0x240] sm:$0xff] %vm3084, %v3319
    %3404 = vst.msk [vmem:[#allocation4 + $0x250] sm:$0xff] %vm3084, %v3320
    %3405 = vst.msk [vmem:[#allocation4 + $0x260] sm:$0xff] %vm3084, %v3322
    %3406 = vst.msk [vmem:[#allocation4 + $0x270] sm:$0xff] %vm3084, %v3323
    %3407 = vst.msk [vmem:[#allocation4 + $0x280] sm:$0xff] %vm3084, %v3325
    %3408 = vst.msk [vmem:[#allocation4 + $0x290] sm:$0xff] %vm3084, %v3326
    %3409 = vst.msk [vmem:[#allocation4 + $0x2a0] sm:$0xff] %vm3084, %v3328
    %3410 = vst.msk [vmem:[#allocation4 + $0x2b0] sm:$0xff] %vm3084, %v3329
    %3411 = vst.msk [vmem:[#allocation4 + $0x2c0] sm:$0xff] %vm3084, %v3331
    %3412 = vst.msk [vmem:[#allocation4 + $0x2d0] sm:$0xff] %vm3084, %v3332
    %3413 = vst.msk [vmem:[#allocation4 + $0x2e0] sm:$0xff] %vm3084, %v3334
    %3414 = vst.msk [vmem:[#allocation4 + $0x2f0] sm:$0xff] %vm3084, %v3335
    %3415 = vst.msk [vmem:[#allocation4 + $0x300] sm:$0xff] %vm3084, %v3337
    %3416 = vst.msk [vmem:[#allocation4 + $0x310] sm:$0xff] %vm3084, %v3338
    %3417 = vst.msk [vmem:[#allocation4 + $0x320] sm:$0xff] %vm3084, %v3340
    %3418 = vst.msk [vmem:[#allocation4 + $0x330] sm:$0xff] %vm3084, %v3341
    %3419 = vst.msk [vmem:[#allocation4 + $0x340] sm:$0xff] %vm3084, %v3343
    %3420 = vst.msk [vmem:[#allocation4 + $0x350] sm:$0xff] %vm3084, %v3344
    %3421 = vst.msk [vmem:[#allocation4 + $0x360] sm:$0xff] %vm3084, %v3346
    %3422 = vst.msk [vmem:[#allocation4 + $0x370] sm:$0xff] %vm3084, %v3347
    %3423 = vst.msk [vmem:[#allocation4 + $0x380] sm:$0xff] %vm3084, %v3349
    %3424 = vst.msk [vmem:[#allocation4 + $0x390] sm:$0xff] %vm3084, %v3350
    %3425 = vst.msk [vmem:[#allocation4 + $0x3a0] sm:$0xff] %vm3084, %v3352
    %3426 = vst.msk [vmem:[#allocation4 + $0x3b0] sm:$0xff] %vm3084, %v3353
    %3427 = vst.msk [vmem:[#allocation4 + $0x3c0] sm:$0xff] %vm3084, %v3355
    %3428 = vst.msk [vmem:[#allocation4 + $0x3d0] sm:$0xff] %vm3084, %v3356
    %3429 = vst.msk [vmem:[#allocation4 + $0x3e0] sm:$0xff] %vm3084, %v3358
    %3430 = vst.msk [vmem:[#allocation4 + $0x3f0] sm:$0xff] %vm3084, %v3359
    %v3527 = vrot.slane %v3259, 1
    %v3528 = vrot.slane %v3260, 1
    %v3529 = vsel %vm879, %v3527, %v3528
    %v3530 = vrot.slane %v3261, 1
    %v3531 = vsel %vm879, %v3528, %v3530
    %v3532 = vrot.slane %v3262, 1
    %v3533 = vrot.slane %v3263, 1
    %v3534 = vsel %vm879, %v3532, %v3533
    %v3535 = vrot.slane %v3264, 1
    %v3536 = vsel %vm879, %v3533, %v3535
    %v3537 = vrot.slane %v3265, 1
    %v3538 = vrot.slane %v3266, 1
    %v3539 = vsel %vm879, %v3537, %v3538
    %v3540 = vrot.slane %v3267, 1
    %v3541 = vsel %vm879, %v3538, %v3540
    %v3542 = vrot.slane %v3268, 1
    %v3543 = vrot.slane %v3269, 1
    %v3544 = vsel %vm879, %v3542, %v3543
    %v3545 = vrot.slane %v3270, 1
    %v3546 = vsel %vm879, %v3543, %v3545
    %v3547 = vrot.slane %v3271, 1
    %v3548 = vrot.slane %v3272, 1
    %v3549 = vsel %vm879, %v3547, %v3548
    %v3550 = vrot.slane %v3273, 1
    %v3551 = vsel %vm879, %v3548, %v3550
    %v3552 = vrot.slane %v3274, 1
    %v3553 = vrot.slane %v3275, 1
    %v3554 = vsel %vm879, %v3552, %v3553
    %v3555 = vrot.slane %v3276, 1
    %v3556 = vsel %vm879, %v3553, %v3555
    %v3557 = vrot.slane %v3277, 1
    %v3558 = vrot.slane %v3278, 1
    %v3559 = vsel %vm879, %v3557, %v3558
    %v3560 = vrot.slane %v3279, 1
    %v3561 = vsel %vm879, %v3558, %v3560
    %v3562 = vrot.slane %v3280, 1
    %v3563 = vrot.slane %v3281, 1
    %v3564 = vsel %vm879, %v3562, %v3563
    %v3565 = vrot.slane %v3282, 1
    %v3566 = vsel %vm879, %v3563, %v3565
    %v3567 = vrot.slane %v3283, 1
    %v3568 = vrot.slane %v3284, 1
    %v3569 = vsel %vm879, %v3567, %v3568
    %v3570 = vrot.slane %v3285, 1
    %v3571 = vsel %vm879, %v3568, %v3570
    %v3572 = vrot.slane %v3286, 1
    %v3573 = vrot.slane %v3287, 1
    %v3574 = vsel %vm879, %v3572, %v3573
    %v3575 = vrot.slane %v3288, 1
    %v3576 = vsel %vm879, %v3573, %v3575
    %v3577 = vrot.slane %v3289, 1
    %v3578 = vrot.slane %v3290, 1
    %v3579 = vsel %vm879, %v3577, %v3578
    %v3580 = vrot.slane %v3291, 1
    %v3581 = vsel %vm879, %v3578, %v3580
    %v3582 = vrot.slane %v3292, 1
    %v3583 = vrot.slane %v3293, 1
    %v3584 = vsel %vm879, %v3582, %v3583
    %v3585 = vrot.slane %v3294, 1
    %v3586 = vsel %vm879, %v3583, %v3585
    %v3587 = vrot.slane %v3295, 1
    %v3588 = vrot.slane %v3296, 1
    %v3589 = vsel %vm879, %v3587, %v3588
    %v3590 = vrot.slane %v3297, 1
    %v3591 = vsel %vm879, %v3588, %v3590
    %v3592 = vrot.slane %v3298, 1
    %v3593 = vrot.slane %v3299, 1
    %v3594 = vsel %vm879, %v3592, %v3593
    %v3595 = vrot.slane %v3300, 1
    %v3596 = vsel %vm879, %v3593, %v3595
    %v3597 = vrot.slane %v3301, 1
    %v3598 = vrot.slane %v3302, 1
    %v3599 = vsel %vm879, %v3597, %v3598
    %v3600 = vrot.slane %v3303, 1
    %v3601 = vsel %vm879, %v3598, %v3600
    %v3602 = vrot.slane %v3304, 1
    %v3603 = vrot.slane %v3305, 1
    %v3604 = vsel %vm879, %v3602, %v3603
    %v3605 = vrot.slane %v3306, 1
    %v3606 = vsel %vm879, %v3603, %v3605
    %v3607 = vrot.slane %v3313, 1
    %v3608 = vrot.slane %v3314, 1
    %v3609 = vsel %vm879, %v3607, %v3608
    %v3610 = vrot.slane %v3315, 1
    %v3611 = vsel %vm879, %v3608, %v3610
    %v3612 = vrot.slane %v3316, 1
    %v3613 = vrot.slane %v3317, 1
    %v3614 = vsel %vm879, %v3612, %v3613
    %v3615 = vrot.slane %v3318, 1
    %v3616 = vsel %vm879, %v3613, %v3615
    %v3617 = vrot.slane %v3319, 1
    %v3618 = vrot.slane %v3320, 1
    %v3619 = vsel %vm879, %v3617, %v3618
    %v3620 = vrot.slane %v3321, 1
    %v3621 = vsel %vm879, %v3618, %v3620
    %v3622 = vrot.slane %v3322, 1
    %v3623 = vrot.slane %v3323, 1
    %v3624 = vsel %vm879, %v3622, %v3623
    %v3625 = vrot.slane %v3324, 1
    %v3626 = vsel %vm879, %v3623, %v3625
    %v3627 = vrot.slane %v3325, 1
    %v3628 = vrot.slane %v3326, 1
    %v3629 = vsel %vm879, %v3627, %v3628
    %v3630 = vrot.slane %v3327, 1
    %v3631 = vsel %vm879, %v3628, %v3630
    %v3632 = vrot.slane %v3328, 1
    %v3633 = vrot.slane %v3329, 1
    %v3634 = vsel %vm879, %v3632, %v3633
    %v3635 = vrot.slane %v3330, 1
    %v3636 = vsel %vm879, %v3633, %v3635
    %v3637 = vrot.slane %v3331, 1
    %v3638 = vrot.slane %v3332, 1
    %v3639 = vsel %vm879, %v3637, %v3638
    %v3640 = vrot.slane %v3333, 1
    %v3641 = vsel %vm879, %v3638, %v3640
    %v3642 = vrot.slane %v3334, 1
    %v3643 = vrot.slane %v3335, 1
    %v3644 = vsel %vm879, %v3642, %v3643
    %v3645 = vrot.slane %v3336, 1
    %v3646 = vsel %vm879, %v3643, %v3645
    %v3647 = vrot.slane %v3337, 1
    %v3648 = vrot.slane %v3338, 1
    %v3649 = vsel %vm879, %v3647, %v3648
    %v3650 = vrot.slane %v3339, 1
    %v3651 = vsel %vm879, %v3648, %v3650
    %v3652 = vrot.slane %v3340, 1
    %v3653 = vrot.slane %v3341, 1
    %v3654 = vsel %vm879, %v3652, %v3653
    %v3655 = vrot.slane %v3342, 1
    %v3656 = vsel %vm879, %v3653, %v3655
    %v3657 = vrot.slane %v3343, 1
    %v3658 = vrot.slane %v3344, 1
    %v3659 = vsel %vm879, %v3657, %v3658
    %v3660 = vrot.slane %v3345, 1
    %v3661 = vsel %vm879, %v3658, %v3660
    %v3662 = vrot.slane %v3346, 1
    %v3663 = vrot.slane %v3347, 1
    %v3664 = vsel %vm879, %v3662, %v3663
    %v3665 = vrot.slane %v3348, 1
    %v3666 = vsel %vm879, %v3663, %v3665
    %v3667 = vrot.slane %v3349, 1
    %v3668 = vrot.slane %v3350, 1
    %v3669 = vsel %vm879, %v3667, %v3668
    %v3670 = vrot.slane %v3351, 1
    %v3671 = vsel %vm879, %v3668, %v3670
    %v3672 = vrot.slane %v3352, 1
    %v3673 = vrot.slane %v3353, 1
    %v3674 = vsel %vm879, %v3672, %v3673
    %v3675 = vrot.slane %v3354, 1
    %v3676 = vsel %vm879, %v3673, %v3675
    %v3677 = vrot.slane %v3355, 1
    %v3678 = vrot.slane %v3356, 1
    %v3679 = vsel %vm879, %v3677, %v3678
    %v3680 = vrot.slane %v3357, 1
    %v3681 = vsel %vm879, %v3678, %v3680
    %v3682 = vrot.slane %v3358, 1
    %v3683 = vrot.slane %v3359, 1
    %v3684 = vsel %vm879, %v3682, %v3683
    %v3685 = vrot.slane %v3360, 1
    %v3686 = vsel %vm879, %v3683, %v3685
    %3687 = vrot.lane.b32.xlu0 %v3529, 16
    %v3688 = vpop.permute.xlu0 %3687
    %3689 = vrot.lane.b32.xlu0 %v3531, 16
    %v3690 = vpop.permute.xlu0 %3689
    %3691 = vrot.lane.b32.xlu0 %v3534, 16
    %v3692 = vpop.permute.xlu0 %3691
    %3693 = vrot.lane.b32.xlu0 %v3536, 16
    %v3694 = vpop.permute.xlu0 %3693
    %3695 = vrot.lane.b32.xlu0 %v3539, 16
    %v3696 = vpop.permute.xlu0 %3695
    %3697 = vrot.lane.b32.xlu0 %v3541, 16
    %v3698 = vpop.permute.xlu0 %3697
    %3699 = vrot.lane.b32.xlu0 %v3544, 16
    %v3700 = vpop.permute.xlu0 %3699
    %3701 = vrot.lane.b32.xlu0 %v3546, 16
    %v3702 = vpop.permute.xlu0 %3701
    %3703 = vrot.lane.b32.xlu0 %v3549, 16
    %v3704 = vpop.permute.xlu0 %3703
    %3705 = vrot.lane.b32.xlu0 %v3551, 16
    %v3706 = vpop.permute.xlu0 %3705
    %3707 = vrot.lane.b32.xlu0 %v3554, 16
    %v3708 = vpop.permute.xlu0 %3707
    %3709 = vrot.lane.b32.xlu0 %v3556, 16
    %v3710 = vpop.permute.xlu0 %3709
    %3711 = vrot.lane.b32.xlu0 %v3559, 16
    %v3712 = vpop.permute.xlu0 %3711
    %3713 = vrot.lane.b32.xlu0 %v3561, 16
    %v3714 = vpop.permute.xlu0 %3713
    %3715 = vrot.lane.b32.xlu0 %v3564, 16
    %v3716 = vpop.permute.xlu0 %3715
    %3717 = vrot.lane.b32.xlu0 %v3566, 16
    %v3718 = vpop.permute.xlu0 %3717
    %3719 = vrot.lane.b32.xlu0 %v3569, 16
    %v3720 = vpop.permute.xlu0 %3719
    %3721 = vrot.lane.b32.xlu0 %v3571, 16
    %v3722 = vpop.permute.xlu0 %3721
    %3723 = vrot.lane.b32.xlu0 %v3574, 16
    %v3724 = vpop.permute.xlu0 %3723
    %3725 = vrot.lane.b32.xlu0 %v3576, 16
    %v3726 = vpop.permute.xlu0 %3725
    %3727 = vrot.lane.b32.xlu0 %v3579, 16
    %v3728 = vpop.permute.xlu0 %3727
    %3729 = vrot.lane.b32.xlu0 %v3581, 16
    %v3730 = vpop.permute.xlu0 %3729
    %3731 = vrot.lane.b32.xlu0 %v3584, 16
    %v3732 = vpop.permute.xlu0 %3731
    %3733 = vrot.lane.b32.xlu0 %v3586, 16
    %v3734 = vpop.permute.xlu0 %3733
    %3735 = vrot.lane.b32.xlu0 %v3589, 16
    %v3736 = vpop.permute.xlu0 %3735
    %3737 = vrot.lane.b32.xlu0 %v3591, 16
    %v3738 = vpop.permute.xlu0 %3737
    %3739 = vrot.lane.b32.xlu0 %v3594, 16
    %v3740 = vpop.permute.xlu0 %3739
    %3741 = vrot.lane.b32.xlu0 %v3596, 16
    %v3742 = vpop.permute.xlu0 %3741
    %3743 = vrot.lane.b32.xlu0 %v3599, 16
    %v3744 = vpop.permute.xlu0 %3743
    %3745 = vrot.lane.b32.xlu0 %v3601, 16
    %v3746 = vpop.permute.xlu0 %3745
    %3747 = vrot.lane.b32.xlu0 %v3604, 16
    %v3748 = vpop.permute.xlu0 %3747
    %3749 = vrot.lane.b32.xlu0 %v3606, 16
    %v3750 = vpop.permute.xlu0 %3749
    %3751 = vrot.lane.b32.xlu0 %v3609, 16
    %v3752 = vpop.permute.xlu0 %3751
    %3753 = vrot.lane.b32.xlu0 %v3611, 16
    %v3754 = vpop.permute.xlu0 %3753
    %3755 = vrot.lane.b32.xlu0 %v3614, 16
    %v3756 = vpop.permute.xlu0 %3755
    %3757 = vrot.lane.b32.xlu0 %v3616, 16
    %v3758 = vpop.permute.xlu0 %3757
    %3759 = vrot.lane.b32.xlu0 %v3619, 16
    %v3760 = vpop.permute.xlu0 %3759
    %3761 = vrot.lane.b32.xlu0 %v3621, 16
    %v3762 = vpop.permute.xlu0 %3761
    %3763 = vrot.lane.b32.xlu0 %v3624, 16
    %v3764 = vpop.permute.xlu0 %3763
    %3765 = vrot.lane.b32.xlu0 %v3626, 16
    %v3766 = vpop.permute.xlu0 %3765
    %3767 = vrot.lane.b32.xlu0 %v3629, 16
    %v3768 = vpop.permute.xlu0 %3767
    %3769 = vrot.lane.b32.xlu0 %v3631, 16
    %v3770 = vpop.permute.xlu0 %3769
    %3771 = vrot.lane.b32.xlu0 %v3634, 16
    %v3772 = vpop.permute.xlu0 %3771
    %3773 = vrot.lane.b32.xlu0 %v3636, 16
    %v3774 = vpop.permute.xlu0 %3773
    %3775 = vrot.lane.b32.xlu0 %v3639, 16
    %v3776 = vpop.permute.xlu0 %3775
    %3777 = vrot.lane.b32.xlu0 %v3641, 16
    %v3778 = vpop.permute.xlu0 %3777
    %3779 = vrot.lane.b32.xlu0 %v3644, 16
    %v3780 = vpop.permute.xlu0 %3779
    %3781 = vrot.lane.b32.xlu0 %v3646, 16
    %v3782 = vpop.permute.xlu0 %3781
    %3783 = vrot.lane.b32.xlu0 %v3649, 16
    %v3784 = vpop.permute.xlu0 %3783
    %3785 = vrot.lane.b32.xlu0 %v3651, 16
    %v3786 = vpop.permute.xlu0 %3785
    %3787 = vrot.lane.b32.xlu0 %v3654, 16
    %v3788 = vpop.permute.xlu0 %3787
    %3789 = vrot.lane.b32.xlu0 %v3656, 16
    %v3790 = vpop.permute.xlu0 %3789
    %3791 = vrot.lane.b32.xlu0 %v3659, 16
    %v3792 = vpop.permute.xlu0 %3791
    %3793 = vrot.lane.b32.xlu0 %v3661, 16
    %v3794 = vpop.permute.xlu0 %3793
    %3795 = vrot.lane.b32.xlu0 %v3664, 16
    %v3796 = vpop.permute.xlu0 %3795
    %3797 = vrot.lane.b32.xlu0 %v3666, 16
    %v3798 = vpop.permute.xlu0 %3797
    %3799 = vrot.lane.b32.xlu0 %v3669, 16
    %v3800 = vpop.permute.xlu0 %3799
    %3801 = vrot.lane.b32.xlu0 %v3671, 16
    %v3802 = vpop.permute.xlu0 %3801
    %3803 = vrot.lane.b32.xlu0 %v3674, 16
    %v3804 = vpop.permute.xlu0 %3803
    %3805 = vrot.lane.b32.xlu0 %v3676, 16
    %v3806 = vpop.permute.xlu0 %3805
    %3807 = vrot.lane.b32.xlu0 %v3679, 16
    %v3808 = vpop.permute.xlu0 %3807
    %3809 = vrot.lane.b32.xlu0 %v3681, 16
    %v3810 = vpop.permute.xlu0 %3809
    %3811 = vrot.lane.b32.xlu0 %v3684, 16
    %v3812 = vpop.permute.xlu0 %3811
    %3813 = vrot.lane.b32.xlu0 %v3686, 16
    %v3814 = vpop.permute.xlu0 %3813
    %vm3879 = vcmask 261248
    %3880 = vst.msk [vmem:[#allocation4] sm:$0xff] %vm3879, %v3688
    %3881 = vst.msk [vmem:[#allocation4 + $0x10] sm:$0xff] %vm3879, %v3690
    %3882 = vst.msk [vmem:[#allocation4 + $0x20] sm:$0xff] %vm3879, %v3692
    %3883 = vst.msk [vmem:[#allocation4 + $0x30] sm:$0xff] %vm3879, %v3694
    %3884 = vst.msk [vmem:[#allocation4 + $0x40] sm:$0xff] %vm3879, %v3696
    %3885 = vst.msk [vmem:[#allocation4 + $0x50] sm:$0xff] %vm3879, %v3698
    %3886 = vst.msk [vmem:[#allocation4 + $0x60] sm:$0xff] %vm3879, %v3700
    %3887 = vst.msk [vmem:[#allocation4 + $0x70] sm:$0xff] %vm3879, %v3702
    %3888 = vst.msk [vmem:[#allocation4 + $0x80] sm:$0xff] %vm3879, %v3704
    %3889 = vst.msk [vmem:[#allocation4 + $0x90] sm:$0xff] %vm3879, %v3706
    %3890 = vst.msk [vmem:[#allocation4 + $0xa0] sm:$0xff] %vm3879, %v3708
    %3891 = vst.msk [vmem:[#allocation4 + $0xb0] sm:$0xff] %vm3879, %v3710
    %3892 = vst.msk [vmem:[#allocation4 + $0xc0] sm:$0xff] %vm3879, %v3712
    %3893 = vst.msk [vmem:[#allocation4 + $0xd0] sm:$0xff] %vm3879, %v3714
    %3894 = vst.msk [vmem:[#allocation4 + $0xe0] sm:$0xff] %vm3879, %v3716
    %3895 = vst.msk [vmem:[#allocation4 + $0xf0] sm:$0xff] %vm3879, %v3718
    %3896 = vst.msk [vmem:[#allocation4 + $0x100] sm:$0xff] %vm3879, %v3720
    %3897 = vst.msk [vmem:[#allocation4 + $0x110] sm:$0xff] %vm3879, %v3722
    %3898 = vst.msk [vmem:[#allocation4 + $0x120] sm:$0xff] %vm3879, %v3724
    %3899 = vst.msk [vmem:[#allocation4 + $0x130] sm:$0xff] %vm3879, %v3726
    %3900 = vst.msk [vmem:[#allocation4 + $0x140] sm:$0xff] %vm3879, %v3728
    %3901 = vst.msk [vmem:[#allocation4 + $0x150] sm:$0xff] %vm3879, %v3730
    %3902 = vst.msk [vmem:[#allocation4 + $0x160] sm:$0xff] %vm3879, %v3732
    %3903 = vst.msk [vmem:[#allocation4 + $0x170] sm:$0xff] %vm3879, %v3734
    %3904 = vst.msk [vmem:[#allocation4 + $0x180] sm:$0xff] %vm3879, %v3736
    %3905 = vst.msk [vmem:[#allocation4 + $0x190] sm:$0xff] %vm3879, %v3738
    %3906 = vst.msk [vmem:[#allocation4 + $0x1a0] sm:$0xff] %vm3879, %v3740
    %3907 = vst.msk [vmem:[#allocation4 + $0x1b0] sm:$0xff] %vm3879, %v3742
    %3908 = vst.msk [vmem:[#allocation4 + $0x1c0] sm:$0xff] %vm3879, %v3744
    %3909 = vst.msk [vmem:[#allocation4 + $0x1d0] sm:$0xff] %vm3879, %v3746
    %3910 = vst.msk [vmem:[#allocation4 + $0x1e0] sm:$0xff] %vm3879, %v3748
    %3911 = vst.msk [vmem:[#allocation4 + $0x1f0] sm:$0xff] %vm3879, %v3750
    %3912 = vst.msk [vmem:[#allocation4 + $0x200] sm:$0xff] %vm3879, %v3752
    %3913 = vst.msk [vmem:[#allocation4 + $0x210] sm:$0xff] %vm3879, %v3754
    %3914 = vst.msk [vmem:[#allocation4 + $0x220] sm:$0xff] %vm3879, %v3756
    %3915 = vst.msk [vmem:[#allocation4 + $0x230] sm:$0xff] %vm3879, %v3758
    %3916 = vst.msk [vmem:[#allocation4 + $0x240] sm:$0xff] %vm3879, %v3760
    %3917 = vst.msk [vmem:[#allocation4 + $0x250] sm:$0xff] %vm3879, %v3762
    %3918 = vst.msk [vmem:[#allocation4 + $0x260] sm:$0xff] %vm3879, %v3764
    %3919 = vst.msk [vmem:[#allocation4 + $0x270] sm:$0xff] %vm3879, %v3766
    %3920 = vst.msk [vmem:[#allocation4 + $0x280] sm:$0xff] %vm3879, %v3768
    %3921 = vst.msk [vmem:[#allocation4 + $0x290] sm:$0xff] %vm3879, %v3770
    %3922 = vst.msk [vmem:[#allocation4 + $0x2a0] sm:$0xff] %vm3879, %v3772
    %3923 = vst.msk [vmem:[#allocation4 + $0x2b0] sm:$0xff] %vm3879, %v3774
    %3924 = vst.msk [vmem:[#allocation4 + $0x2c0] sm:$0xff] %vm3879, %v3776
    %3925 = vst.msk [vmem:[#allocation4 + $0x2d0] sm:$0xff] %vm3879, %v3778
    %3926 = vst.msk [vmem:[#allocation4 + $0x2e0] sm:$0xff] %vm3879, %v3780
    %3927 = vst.msk [vmem:[#allocation4 + $0x2f0] sm:$0xff] %vm3879, %v3782
    %3928 = vst.msk [vmem:[#allocation4 + $0x300] sm:$0xff] %vm3879, %v3784
    %3929 = vst.msk [vmem:[#allocation4 + $0x310] sm:$0xff] %vm3879, %v3786
    %3930 = vst.msk [vmem:[#allocation4 + $0x320] sm:$0xff] %vm3879, %v3788
    %3931 = vst.msk [vmem:[#allocation4 + $0x330] sm:$0xff] %vm3879, %v3790
    %3932 = vst.msk [vmem:[#allocation4 + $0x340] sm:$0xff] %vm3879, %v3792
    %3933 = vst.msk [vmem:[#allocation4 + $0x350] sm:$0xff] %vm3879, %v3794
    %3934 = vst.msk [vmem:[#allocation4 + $0x360] sm:$0xff] %vm3879, %v3796
    %3935 = vst.msk [vmem:[#allocation4 + $0x370] sm:$0xff] %vm3879, %v3798
    %3936 = vst.msk [vmem:[#allocation4 + $0x380] sm:$0xff] %vm3879, %v3800
    %3937 = vst.msk [vmem:[#allocation4 + $0x390] sm:$0xff] %vm3879, %v3802
    %3938 = vst.msk [vmem:[#allocation4 + $0x3a0] sm:$0xff] %vm3879, %v3804
    %3939 = vst.msk [vmem:[#allocation4 + $0x3b0] sm:$0xff] %vm3879, %v3806
    %3940 = vst.msk [vmem:[#allocation4 + $0x3c0] sm:$0xff] %vm3879, %v3808
    %3941 = vst.msk [vmem:[#allocation4 + $0x3d0] sm:$0xff] %vm3879, %v3810
    %3942 = vst.msk [vmem:[#allocation4 + $0x3e0] sm:$0xff] %vm3879, %v3812
    %3943 = vst.msk [vmem:[#allocation4 + $0x3f0] sm:$0xff] %vm3879, %v3814
    %v3944 = vrot.slane %v3259, 2
    %v3945 = vrot.slane %v3260, 2
    %v3946 = vsel %vm1432, %v3944, %v3945
    %v3947 = vrot.slane %v3261, 2
    %v3948 = vsel %vm1432, %v3945, %v3947
    %v3949 = vrot.slane %v3262, 2
    %v3950 = vrot.slane %v3263, 2
    %v3951 = vsel %vm1432, %v3949, %v3950
    %v3952 = vrot.slane %v3264, 2
    %v3953 = vsel %vm1432, %v3950, %v3952
    %v3954 = vrot.slane %v3265, 2
    %v3955 = vrot.slane %v3266, 2
    %v3956 = vsel %vm1432, %v3954, %v3955
    %v3957 = vrot.slane %v3267, 2
    %v3958 = vsel %vm1432, %v3955, %v3957
    %v3959 = vrot.slane %v3268, 2
    %v3960 = vrot.slane %v3269, 2
    %v3961 = vsel %vm1432, %v3959, %v3960
    %v3962 = vrot.slane %v3270, 2
    %v3963 = vsel %vm1432, %v3960, %v3962
    %v3964 = vrot.slane %v3271, 2
    %v3965 = vrot.slane %v3272, 2
    %v3966 = vsel %vm1432, %v3964, %v3965
    %v3967 = vrot.slane %v3273, 2
    %v3968 = vsel %vm1432, %v3965, %v3967
    %v3969 = vrot.slane %v3274, 2
    %v3970 = vrot.slane %v3275, 2
    %v3971 = vsel %vm1432, %v3969, %v3970
    %v3972 = vrot.slane %v3276, 2
    %v3973 = vsel %vm1432, %v3970, %v3972
    %v3974 = vrot.slane %v3277, 2
    %v3975 = vrot.slane %v3278, 2
    %v3976 = vsel %vm1432, %v3974, %v3975
    %v3977 = vrot.slane %v3279, 2
    %v3978 = vsel %vm1432, %v3975, %v3977
    %v3979 = vrot.slane %v3280, 2
    %v3980 = vrot.slane %v3281, 2
    %v3981 = vsel %vm1432, %v3979, %v3980
    %v3982 = vrot.slane %v3282, 2
    %v3983 = vsel %vm1432, %v3980, %v3982
    %v3984 = vrot.slane %v3283, 2
    %v3985 = vrot.slane %v3284, 2
    %v3986 = vsel %vm1432, %v3984, %v3985
    %v3987 = vrot.slane %v3285, 2
    %v3988 = vsel %vm1432, %v3985, %v3987
    %v3989 = vrot.slane %v3286, 2
    %v3990 = vrot.slane %v3287, 2
    %v3991 = vsel %vm1432, %v3989, %v3990
    %v3992 = vrot.slane %v3288, 2
    %v3993 = vsel %vm1432, %v3990, %v3992
    %v3994 = vrot.slane %v3289, 2
    %v3995 = vrot.slane %v3290, 2
    %v3996 = vsel %vm1432, %v3994, %v3995
    %v3997 = vrot.slane %v3291, 2
    %v3998 = vsel %vm1432, %v3995, %v3997
    %v3999 = vrot.slane %v3292, 2
    %v4000 = vrot.slane %v3293, 2
    %v4001 = vsel %vm1432, %v3999, %v4000
    %v4002 = vrot.slane %v3294, 2
    %v4003 = vsel %vm1432, %v4000, %v4002
    %v4004 = vrot.slane %v3295, 2
    %v4005 = vrot.slane %v3296, 2
    %v4006 = vsel %vm1432, %v4004, %v4005
    %v4007 = vrot.slane %v3297, 2
    %v4008 = vsel %vm1432, %v4005, %v4007
    %v4009 = vrot.slane %v3298, 2
    %v4010 = vrot.slane %v3299, 2
    %v4011 = vsel %vm1432, %v4009, %v4010
    %v4012 = vrot.slane %v3300, 2
    %v4013 = vsel %vm1432, %v4010, %v4012
    %v4014 = vrot.slane %v3301, 2
    %v4015 = vrot.slane %v3302, 2
    %v4016 = vsel %vm1432, %v4014, %v4015
    %v4017 = vrot.slane %v3303, 2
    %v4018 = vsel %vm1432, %v4015, %v4017
    %v4019 = vrot.slane %v3304, 2
    %v4020 = vrot.slane %v3305, 2
    %v4021 = vsel %vm1432, %v4019, %v4020
    %v4022 = vrot.slane %v3306, 2
    %v4023 = vsel %vm1432, %v4020, %v4022
    %v4024 = vrot.slane %v3313, 2
    %v4025 = vrot.slane %v3314, 2
    %v4026 = vsel %vm1432, %v4024, %v4025
    %v4027 = vrot.slane %v3315, 2
    %v4028 = vsel %vm1432, %v4025, %v4027
    %v4029 = vrot.slane %v3316, 2
    %v4030 = vrot.slane %v3317, 2
    %v4031 = vsel %vm1432, %v4029, %v4030
    %v4032 = vrot.slane %v3318, 2
    %v4033 = vsel %vm1432, %v4030, %v4032
    %v4034 = vrot.slane %v3319, 2
    %v4035 = vrot.slane %v3320, 2
    %v4036 = vsel %vm1432, %v4034, %v4035
    %v4037 = vrot.slane %v3321, 2
    %v4038 = vsel %vm1432, %v4035, %v4037
    %v4039 = vrot.slane %v3322, 2
    %v4040 = vrot.slane %v3323, 2
    %v4041 = vsel %vm1432, %v4039, %v4040
    %v4042 = vrot.slane %v3324, 2
    %v4043 = vsel %vm1432, %v4040, %v4042
    %v4044 = vrot.slane %v3325, 2
    %v4045 = vrot.slane %v3326, 2
    %v4046 = vsel %vm1432, %v4044, %v4045
    %v4047 = vrot.slane %v3327, 2
    %v4048 = vsel %vm1432, %v4045, %v4047
    %v4049 = vrot.slane %v3328, 2
    %v4050 = vrot.slane %v3329, 2
    %v4051 = vsel %vm1432, %v4049, %v4050
    %v4052 = vrot.slane %v3330, 2
    %v4053 = vsel %vm1432, %v4050, %v4052
    %v4054 = vrot.slane %v3331, 2
    %v4055 = vrot.slane %v3332, 2
    %v4056 = vsel %vm1432, %v4054, %v4055
    %v4057 = vrot.slane %v3333, 2
    %v4058 = vsel %vm1432, %v4055, %v4057
    %v4059 = vrot.slane %v3334, 2
    %v4060 = vrot.slane %v3335, 2
    %v4061 = vsel %vm1432, %v4059, %v4060
    %v4062 = vrot.slane %v3336, 2
    %v4063 = vsel %vm1432, %v4060, %v4062
    %v4064 = vrot.slane %v3337, 2
    %v4065 = vrot.slane %v3338, 2
    %v4066 = vsel %vm1432, %v4064, %v4065
    %v4067 = vrot.slane %v3339, 2
    %v4068 = vsel %vm1432, %v4065, %v4067
    %v4069 = vrot.slane %v3340, 2
    %v4070 = vrot.slane %v3341, 2
    %v4071 = vsel %vm1432, %v4069, %v4070
    %v4072 = vrot.slane %v3342, 2
    %v4073 = vsel %vm1432, %v4070, %v4072
    %v4074 = vrot.slane %v3343, 2
    %v4075 = vrot.slane %v3344, 2
    %v4076 = vsel %vm1432, %v4074, %v4075
    %v4077 = vrot.slane %v3345, 2
    %v4078 = vsel %vm1432, %v4075, %v4077
    %v4079 = vrot.slane %v3346, 2
    %v4080 = vrot.slane %v3347, 2
    %v4081 = vsel %vm1432, %v4079, %v4080
    %v4082 = vrot.slane %v3348, 2
    %v4083 = vsel %vm1432, %v4080, %v4082
    %v4084 = vrot.slane %v3349, 2
    %v4085 = vrot.slane %v3350, 2
    %v4086 = vsel %vm1432, %v4084, %v4085
    %v4087 = vrot.slane %v3351, 2
    %v4088 = vsel %vm1432, %v4085, %v4087
    %v4089 = vrot.slane %v3352, 2
    %v4090 = vrot.slane %v3353, 2
    %v4091 = vsel %vm1432, %v4089, %v4090
    %v4092 = vrot.slane %v3354, 2
    %v4093 = vsel %vm1432, %v4090, %v4092
    %v4094 = vrot.slane %v3355, 2
    %v4095 = vrot.slane %v3356, 2
    %v4096 = vsel %vm1432, %v4094, %v4095
    %v4097 = vrot.slane %v3357, 2
    %v4098 = vsel %vm1432, %v4095, %v4097
    %v4099 = vrot.slane %v3358, 2
    %v4100 = vrot.slane %v3359, 2
    %v4101 = vsel %vm1432, %v4099, %v4100
    %v4102 = vrot.slane %v3360, 2
    %v4103 = vsel %vm1432, %v4100, %v4102
    %4104 = vrot.lane.b32.xlu0 %v3946, 32
    %v4105 = vpop.permute.xlu0 %4104
    %4106 = vrot.lane.b32.xlu0 %v3948, 32
    %v4107 = vpop.permute.xlu0 %4106
    %4108 = vrot.lane.b32.xlu0 %v3951, 32
    %v4109 = vpop.permute.xlu0 %4108
    %4110 = vrot.lane.b32.xlu0 %v3953, 32
    %v4111 = vpop.permute.xlu0 %4110
    %4112 = vrot.lane.b32.xlu0 %v3956, 32
    %v4113 = vpop.permute.xlu0 %4112
    %4114 = vrot.lane.b32.xlu0 %v3958, 32
    %v4115 = vpop.permute.xlu0 %4114
    %4116 = vrot.lane.b32.xlu0 %v3961, 32
    %v4117 = vpop.permute.xlu0 %4116
    %4118 = vrot.lane.b32.xlu0 %v3963, 32
    %v4119 = vpop.permute.xlu0 %4118
    %4120 = vrot.lane.b32.xlu0 %v3966, 32
    %v4121 = vpop.permute.xlu0 %4120
    %4122 = vrot.lane.b32.xlu0 %v3968, 32
    %v4123 = vpop.permute.xlu0 %4122
    %4124 = vrot.lane.b32.xlu0 %v3971, 32
    %v4125 = vpop.permute.xlu0 %4124
    %4126 = vrot.lane.b32.xlu0 %v3973, 32
    %v4127 = vpop.permute.xlu0 %4126
    %4128 = vrot.lane.b32.xlu0 %v3976, 32
    %v4129 = vpop.permute.xlu0 %4128
    %4130 = vrot.lane.b32.xlu0 %v3978, 32
    %v4131 = vpop.permute.xlu0 %4130
    %4132 = vrot.lane.b32.xlu0 %v3981, 32
    %v4133 = vpop.permute.xlu0 %4132
    %4134 = vrot.lane.b32.xlu0 %v3983, 32
    %v4135 = vpop.permute.xlu0 %4134
    %4136 = vrot.lane.b32.xlu0 %v3986, 32
    %v4137 = vpop.permute.xlu0 %4136
    %4138 = vrot.lane.b32.xlu0 %v3988, 32
    %v4139 = vpop.permute.xlu0 %4138
    %4140 = vrot.lane.b32.xlu0 %v3991, 32
    %v4141 = vpop.permute.xlu0 %4140
    %4142 = vrot.lane.b32.xlu0 %v3993, 32
    %v4143 = vpop.permute.xlu0 %4142
    %4144 = vrot.lane.b32.xlu0 %v3996, 32
    %v4145 = vpop.permute.xlu0 %4144
    %4146 = vrot.lane.b32.xlu0 %v3998, 32
    %v4147 = vpop.permute.xlu0 %4146
    %4148 = vrot.lane.b32.xlu0 %v4001, 32
    %v4149 = vpop.permute.xlu0 %4148
    %4150 = vrot.lane.b32.xlu0 %v4003, 32
    %v4151 = vpop.permute.xlu0 %4150
    %4152 = vrot.lane.b32.xlu0 %v4006, 32
    %v4153 = vpop.permute.xlu0 %4152
    %4154 = vrot.lane.b32.xlu0 %v4008, 32
    %v4155 = vpop.permute.xlu0 %4154
    %4156 = vrot.lane.b32.xlu0 %v4011, 32
    %v4157 = vpop.permute.xlu0 %4156
    %4158 = vrot.lane.b32.xlu0 %v4013, 32
    %v4159 = vpop.permute.xlu0 %4158
    %4160 = vrot.lane.b32.xlu0 %v4016, 32
    %v4161 = vpop.permute.xlu0 %4160
    %4162 = vrot.lane.b32.xlu0 %v4018, 32
    %v4163 = vpop.permute.xlu0 %4162
    %4164 = vrot.lane.b32.xlu0 %v4021, 32
    %v4165 = vpop.permute.xlu0 %4164
    %4166 = vrot.lane.b32.xlu0 %v4023, 32
    %v4167 = vpop.permute.xlu0 %4166
    %4168 = vrot.lane.b32.xlu0 %v4026, 32
    %v4169 = vpop.permute.xlu0 %4168
    %4170 = vrot.lane.b32.xlu0 %v4028, 32
    %v4171 = vpop.permute.xlu0 %4170
    %4172 = vrot.lane.b32.xlu0 %v4031, 32
    %v4173 = vpop.permute.xlu0 %4172
    %4174 = vrot.lane.b32.xlu0 %v4033, 32
    %v4175 = vpop.permute.xlu0 %4174
    %4176 = vrot.lane.b32.xlu0 %v4036, 32
    %v4177 = vpop.permute.xlu0 %4176
    %4178 = vrot.lane.b32.xlu0 %v4038, 32
    %v4179 = vpop.permute.xlu0 %4178
    %4180 = vrot.lane.b32.xlu0 %v4041, 32
    %v4181 = vpop.permute.xlu0 %4180
    %4182 = vrot.lane.b32.xlu0 %v4043, 32
    %v4183 = vpop.permute.xlu0 %4182
    %4184 = vrot.lane.b32.xlu0 %v4046, 32
    %v4185 = vpop.permute.xlu0 %4184
    %4186 = vrot.lane.b32.xlu0 %v4048, 32
    %v4187 = vpop.permute.xlu0 %4186
    %4188 = vrot.lane.b32.xlu0 %v4051, 32
    %v4189 = vpop.permute.xlu0 %4188
    %4190 = vrot.lane.b32.xlu0 %v4053, 32
    %v4191 = vpop.permute.xlu0 %4190
    %4192 = vrot.lane.b32.xlu0 %v4056, 32
    %v4193 = vpop.permute.xlu0 %4192
    %4194 = vrot.lane.b32.xlu0 %v4058, 32
    %v4195 = vpop.permute.xlu0 %4194
    %4196 = vrot.lane.b32.xlu0 %v4061, 32
    %v4197 = vpop.permute.xlu0 %4196
    %4198 = vrot.lane.b32.xlu0 %v4063, 32
    %v4199 = vpop.permute.xlu0 %4198
    %4200 = vrot.lane.b32.xlu0 %v4066, 32
    %v4201 = vpop.permute.xlu0 %4200
    %4202 = vrot.lane.b32.xlu0 %v4068, 32
    %v4203 = vpop.permute.xlu0 %4202
    %4204 = vrot.lane.b32.xlu0 %v4071, 32
    %v4205 = vpop.permute.xlu0 %4204
    %4206 = vrot.lane.b32.xlu0 %v4073, 32
    %v4207 = vpop.permute.xlu0 %4206
    %4208 = vrot.lane.b32.xlu0 %v4076, 32
    %v4209 = vpop.permute.xlu0 %4208
    %4210 = vrot.lane.b32.xlu0 %v4078, 32
    %v4211 = vpop.permute.xlu0 %4210
    %4212 = vrot.lane.b32.xlu0 %v4081, 32
    %v4213 = vpop.permute.xlu0 %4212
    %4214 = vrot.lane.b32.xlu0 %v4083, 32
    %v4215 = vpop.permute.xlu0 %4214
    %4216 = vrot.lane.b32.xlu0 %v4086, 32
    %v4217 = vpop.permute.xlu0 %4216
    %4218 = vrot.lane.b32.xlu0 %v4088, 32
    %v4219 = vpop.permute.xlu0 %4218
    %4220 = vrot.lane.b32.xlu0 %v4091, 32
    %v4221 = vpop.permute.xlu0 %4220
    %4222 = vrot.lane.b32.xlu0 %v4093, 32
    %v4223 = vpop.permute.xlu0 %4222
    %4224 = vrot.lane.b32.xlu0 %v4096, 32
    %v4225 = vpop.permute.xlu0 %4224
    %4226 = vrot.lane.b32.xlu0 %v4098, 32
    %v4227 = vpop.permute.xlu0 %4226
    %4228 = vrot.lane.b32.xlu0 %v4101, 32
    %v4229 = vpop.permute.xlu0 %4228
    %4230 = vrot.lane.b32.xlu0 %v4103, 32
    %v4231 = vpop.permute.xlu0 %4230
    %vm4296 = vcmask 392448
    %4297 = vst.msk [vmem:[#allocation4] sm:$0xff] %vm4296, %v4105
    %4298 = vst.msk [vmem:[#allocation4 + $0x10] sm:$0xff] %vm4296, %v4107
    %4299 = vst.msk [vmem:[#allocation4 + $0x20] sm:$0xff] %vm4296, %v4109
    %4300 = vst.msk [vmem:[#allocation4 + $0x30] sm:$0xff] %vm4296, %v4111
    %4301 = vst.msk [vmem:[#allocation4 + $0x40] sm:$0xff] %vm4296, %v4113
    %4302 = vst.msk [vmem:[#allocation4 + $0x50] sm:$0xff] %vm4296, %v4115
    %4303 = vst.msk [vmem:[#allocation4 + $0x60] sm:$0xff] %vm4296, %v4117
    %4304 = vst.msk [vmem:[#allocation4 + $0x70] sm:$0xff] %vm4296, %v4119
    %4305 = vst.msk [vmem:[#allocation4 + $0x80] sm:$0xff] %vm4296, %v4121
    %4306 = vst.msk [vmem:[#allocation4 + $0x90] sm:$0xff] %vm4296, %v4123
    %4307 = vst.msk [vmem:[#allocation4 + $0xa0] sm:$0xff] %vm4296, %v4125
    %4308 = vst.msk [vmem:[#allocation4 + $0xb0] sm:$0xff] %vm4296, %v4127
    %4309 = vst.msk [vmem:[#allocation4 + $0xc0] sm:$0xff] %vm4296, %v4129
    %4310 = vst.msk [vmem:[#allocation4 + $0xd0] sm:$0xff] %vm4296, %v4131
    %4311 = vst.msk [vmem:[#allocation4 + $0xe0] sm:$0xff] %vm4296, %v4133
    %4312 = vst.msk [vmem:[#allocation4 + $0xf0] sm:$0xff] %vm4296, %v4135
    %4313 = vst.msk [vmem:[#allocation4 + $0x100] sm:$0xff] %vm4296, %v4137
    %4314 = vst.msk [vmem:[#allocation4 + $0x110] sm:$0xff] %vm4296, %v4139
    %4315 = vst.msk [vmem:[#allocation4 + $0x120] sm:$0xff] %vm4296, %v4141
    %4316 = vst.msk [vmem:[#allocation4 + $0x130] sm:$0xff] %vm4296, %v4143
    %4317 = vst.msk [vmem:[#allocation4 + $0x140] sm:$0xff] %vm4296, %v4145
    %4318 = vst.msk [vmem:[#allocation4 + $0x150] sm:$0xff] %vm4296, %v4147
    %4319 = vst.msk [vmem:[#allocation4 + $0x160] sm:$0xff] %vm4296, %v4149
    %4320 = vst.msk [vmem:[#allocation4 + $0x170] sm:$0xff] %vm4296, %v4151
    %4321 = vst.msk [vmem:[#allocation4 + $0x180] sm:$0xff] %vm4296, %v4153
    %4322 = vst.msk [vmem:[#allocation4 + $0x190] sm:$0xff] %vm4296, %v4155
    %4323 = vst.msk [vmem:[#allocation4 + $0x1a0] sm:$0xff] %vm4296, %v4157
    %4324 = vst.msk [vmem:[#allocation4 + $0x1b0] sm:$0xff] %vm4296, %v4159
    %4325 = vst.msk [vmem:[#allocation4 + $0x1c0] sm:$0xff] %vm4296, %v4161
    %4326 = vst.msk [vmem:[#allocation4 + $0x1d0] sm:$0xff] %vm4296, %v4163
    %4327 = vst.msk [vmem:[#allocation4 + $0x1e0] sm:$0xff] %vm4296, %v4165
    %4328 = vst.msk [vmem:[#allocation4 + $0x1f0] sm:$0xff] %vm4296, %v4167
    %4329 = vst.msk [vmem:[#allocation4 + $0x200] sm:$0xff] %vm4296, %v4169
    %4330 = vst.msk [vmem:[#allocation4 + $0x210] sm:$0xff] %vm4296, %v4171
    %4331 = vst.msk [vmem:[#allocation4 + $0x220] sm:$0xff] %vm4296, %v4173
    %4332 = vst.msk [vmem:[#allocation4 + $0x230] sm:$0xff] %vm4296, %v4175
    %4333 = vst.msk [vmem:[#allocation4 + $0x240] sm:$0xff] %vm4296, %v4177
    %4334 = vst.msk [vmem:[#allocation4 + $0x250] sm:$0xff] %vm4296, %v4179
    %4335 = vst.msk [vmem:[#allocation4 + $0x260] sm:$0xff] %vm4296, %v4181
    %4336 = vst.msk [vmem:[#allocation4 + $0x270] sm:$0xff] %vm4296, %v4183
    %4337 = vst.msk [vmem:[#allocation4 + $0x280] sm:$0xff] %vm4296, %v4185
    %4338 = vst.msk [vmem:[#allocation4 + $0x290] sm:$0xff] %vm4296, %v4187
    %4339 = vst.msk [vmem:[#allocation4 + $0x2a0] sm:$0xff] %vm4296, %v4189
    %4340 = vst.msk [vmem:[#allocation4 + $0x2b0] sm:$0xff] %vm4296, %v4191
    %4341 = vst.msk [vmem:[#allocation4 + $0x2c0] sm:$0xff] %vm4296, %v4193
    %4342 = vst.msk [vmem:[#allocation4 + $0x2d0] sm:$0xff] %vm4296, %v4195
    %4343 = vst.msk [vmem:[#allocation4 + $0x2e0] sm:$0xff] %vm4296, %v4197
    %4344 = vst.msk [vmem:[#allocation4 + $0x2f0] sm:$0xff] %vm4296, %v4199
    %4345 = vst.msk [vmem:[#allocation4 + $0x300] sm:$0xff] %vm4296, %v4201
    %4346 = vst.msk [vmem:[#allocation4 + $0x310] sm:$0xff] %vm4296, %v4203
    %4347 = vst.msk [vmem:[#allocation4 + $0x320] sm:$0xff] %vm4296, %v4205
    %4348 = vst.msk [vmem:[#allocation4 + $0x330] sm:$0xff] %vm4296, %v4207
    %4349 = vst.msk [vmem:[#allocation4 + $0x340] sm:$0xff] %vm4296, %v4209
    %4350 = vst.msk [vmem:[#allocation4 + $0x350] sm:$0xff] %vm4296, %v4211
    %4351 = vst.msk [vmem:[#allocation4 + $0x360] sm:$0xff] %vm4296, %v4213
    %4352 = vst.msk [vmem:[#allocation4 + $0x370] sm:$0xff] %vm4296, %v4215
    %4353 = vst.msk [vmem:[#allocation4 + $0x380] sm:$0xff] %vm4296, %v4217
    %4354 = vst.msk [vmem:[#allocation4 + $0x390] sm:$0xff] %vm4296, %v4219
    %4355 = vst.msk [vmem:[#allocation4 + $0x3a0] sm:$0xff] %vm4296, %v4221
    %4356 = vst.msk [vmem:[#allocation4 + $0x3b0] sm:$0xff] %vm4296, %v4223
    %4357 = vst.msk [vmem:[#allocation4 + $0x3c0] sm:$0xff] %vm4296, %v4225
    %4358 = vst.msk [vmem:[#allocation4 + $0x3d0] sm:$0xff] %vm4296, %v4227
    %4359 = vst.msk [vmem:[#allocation4 + $0x3e0] sm:$0xff] %vm4296, %v4229
    %4360 = vst.msk [vmem:[#allocation4 + $0x3f0] sm:$0xff] %vm4296, %v4231
    %4365 = vrot.lane.b32.xlu0 %v3262, 48
    %v4366 = vpop.permute.xlu0 %4365
    %4367 = vrot.lane.b32.xlu0 %v3263, 48
    %v4368 = vpop.permute.xlu0 %4367
    %4369 = vrot.lane.b32.xlu0 %v3265, 48
    %v4370 = vpop.permute.xlu0 %4369
    %4371 = vrot.lane.b32.xlu0 %v3266, 48
    %v4372 = vpop.permute.xlu0 %4371
    %4373 = vrot.lane.b32.xlu0 %v3268, 48
    %v4374 = vpop.permute.xlu0 %4373
    %4375 = vrot.lane.b32.xlu0 %v3269, 48
    %v4376 = vpop.permute.xlu0 %4375
    %4377 = vrot.lane.b32.xlu0 %v3271, 48
    %v4378 = vpop.permute.xlu0 %4377
    %4379 = vrot.lane.b32.xlu0 %v3272, 48
    %v4380 = vpop.permute.xlu0 %4379
    %4381 = vrot.lane.b32.xlu0 %v3274, 48
    %v4382 = vpop.permute.xlu0 %4381
    %4383 = vrot.lane.b32.xlu0 %v3275, 48
    %v4384 = vpop.permute.xlu0 %4383
    %4385 = vrot.lane.b32.xlu0 %v3277, 48
    %v4386 = vpop.permute.xlu0 %4385
    %4387 = vrot.lane.b32.xlu0 %v3278, 48
    %v4388 = vpop.permute.xlu0 %4387
    %4389 = vrot.lane.b32.xlu0 %v3280, 48
    %v4390 = vpop.permute.xlu0 %4389
    %4391 = vrot.lane.b32.xlu0 %v3281, 48
    %v4392 = vpop.permute.xlu0 %4391
    %4393 = vrot.lane.b32.xlu0 %v3283, 48
    %v4394 = vpop.permute.xlu0 %4393
    %4395 = vrot.lane.b32.xlu0 %v3284, 48
    %v4396 = vpop.permute.xlu0 %4395
    %4397 = vrot.lane.b32.xlu0 %v3286, 48
    %v4398 = vpop.permute.xlu0 %4397
    %4399 = vrot.lane.b32.xlu0 %v3287, 48
    %v4400 = vpop.permute.xlu0 %4399
    %4401 = vrot.lane.b32.xlu0 %v3289, 48
    %v4402 = vpop.permute.xlu0 %4401
    %4403 = vrot.lane.b32.xlu0 %v3290, 48
    %v4404 = vpop.permute.xlu0 %4403
    %4405 = vrot.lane.b32.xlu0 %v3292, 48
    %v4406 = vpop.permute.xlu0 %4405
    %4407 = vrot.lane.b32.xlu0 %v3293, 48
    %v4408 = vpop.permute.xlu0 %4407
    %4409 = vrot.lane.b32.xlu0 %v3295, 48
    %v4410 = vpop.permute.xlu0 %4409
    %4411 = vrot.lane.b32.xlu0 %v3296, 48
    %v4412 = vpop.permute.xlu0 %4411
    %4413 = vrot.lane.b32.xlu0 %v3298, 48
    %v4414 = vpop.permute.xlu0 %4413
    %4415 = vrot.lane.b32.xlu0 %v3299, 48
    %v4416 = vpop.permute.xlu0 %4415
    %4417 = vrot.lane.b32.xlu0 %v3301, 48
    %v4418 = vpop.permute.xlu0 %4417
    %4419 = vrot.lane.b32.xlu0 %v3302, 48
    %v4420 = vpop.permute.xlu0 %4419
    %4421 = vrot.lane.b32.xlu0 %v3304, 48
    %v4422 = vpop.permute.xlu0 %4421
    %4423 = vrot.lane.b32.xlu0 %v3305, 48
    %v4424 = vpop.permute.xlu0 %4423
    %4425 = vrot.lane.b32.xlu0 %v3307, 48
    %v4426 = vpop.permute.xlu0 %4425
    %4427 = vrot.lane.b32.xlu0 %v3308, 48
    %v4428 = vpop.permute.xlu0 %4427
    %4429 = vrot.lane.b32.xlu0 %v3316, 48
    %v4430 = vpop.permute.xlu0 %4429
    %4431 = vrot.lane.b32.xlu0 %v3317, 48
    %v4432 = vpop.permute.xlu0 %4431
    %4433 = vrot.lane.b32.xlu0 %v3319, 48
    %v4434 = vpop.permute.xlu0 %4433
    %4435 = vrot.lane.b32.xlu0 %v3320, 48
    %v4436 = vpop.permute.xlu0 %4435
    %4437 = vrot.lane.b32.xlu0 %v3322, 48
    %v4438 = vpop.permute.xlu0 %4437
    %4439 = vrot.lane.b32.xlu0 %v3323, 48
    %v4440 = vpop.permute.xlu0 %4439
    %4441 = vrot.lane.b32.xlu0 %v3325, 48
    %v4442 = vpop.permute.xlu0 %4441
    %4443 = vrot.lane.b32.xlu0 %v3326, 48
    %v4444 = vpop.permute.xlu0 %4443
    %4445 = vrot.lane.b32.xlu0 %v3328, 48
    %v4446 = vpop.permute.xlu0 %4445
    %4447 = vrot.lane.b32.xlu0 %v3329, 48
    %v4448 = vpop.permute.xlu0 %4447
    %4449 = vrot.lane.b32.xlu0 %v3331, 48
    %v4450 = vpop.permute.xlu0 %4449
    %4451 = vrot.lane.b32.xlu0 %v3332, 48
    %v4452 = vpop.permute.xlu0 %4451
    %4453 = vrot.lane.b32.xlu0 %v3334, 48
    %v4454 = vpop.permute.xlu0 %4453
    %4455 = vrot.lane.b32.xlu0 %v3335, 48
    %v4456 = vpop.permute.xlu0 %4455
    %4457 = vrot.lane.b32.xlu0 %v3337, 48
    %v4458 = vpop.permute.xlu0 %4457
    %4459 = vrot.lane.b32.xlu0 %v3338, 48
    %v4460 = vpop.permute.xlu0 %4459
    %4461 = vrot.lane.b32.xlu0 %v3340, 48
    %v4462 = vpop.permute.xlu0 %4461
    %4463 = vrot.lane.b32.xlu0 %v3341, 48
    %v4464 = vpop.permute.xlu0 %4463
    %4465 = vrot.lane.b32.xlu0 %v3343, 48
    %v4466 = vpop.permute.xlu0 %4465
    %4467 = vrot.lane.b32.xlu0 %v3344, 48
    %v4468 = vpop.permute.xlu0 %4467
    %4469 = vrot.lane.b32.xlu0 %v3346, 48
    %v4470 = vpop.permute.xlu0 %4469
    %4471 = vrot.lane.b32.xlu0 %v3347, 48
    %v4472 = vpop.permute.xlu0 %4471
    %4473 = vrot.lane.b32.xlu0 %v3349, 48
    %v4474 = vpop.permute.xlu0 %4473
    %4475 = vrot.lane.b32.xlu0 %v3350, 48
    %v4476 = vpop.permute.xlu0 %4475
    %4477 = vrot.lane.b32.xlu0 %v3352, 48
    %v4478 = vpop.permute.xlu0 %4477
    %4479 = vrot.lane.b32.xlu0 %v3353, 48
    %v4480 = vpop.permute.xlu0 %4479
    %4481 = vrot.lane.b32.xlu0 %v3355, 48
    %v4482 = vpop.permute.xlu0 %4481
    %4483 = vrot.lane.b32.xlu0 %v3356, 48
    %v4484 = vpop.permute.xlu0 %4483
    %4485 = vrot.lane.b32.xlu0 %v3358, 48
    %v4486 = vpop.permute.xlu0 %4485
    %4487 = vrot.lane.b32.xlu0 %v3359, 48
    %v4488 = vpop.permute.xlu0 %4487
    %4489 = vrot.lane.b32.xlu0 %v3361, 48
    %v4490 = vpop.permute.xlu0 %4489
    %4491 = vrot.lane.b32.xlu0 %v3362, 48
    %v4492 = vpop.permute.xlu0 %4491
    %vm4557 = vcmask 523648
    %4558 = vst.msk [vmem:[#allocation4] sm:$0xff] %vm4557, %v4366
    %4559 = vst.msk [vmem:[#allocation4 + $0x10] sm:$0xff] %vm4557, %v4368
    %4560 = vst.msk [vmem:[#allocation4 + $0x20] sm:$0xff] %vm4557, %v4370
    %4561 = vst.msk [vmem:[#allocation4 + $0x30] sm:$0xff] %vm4557, %v4372
    %4562 = vst.msk [vmem:[#allocation4 + $0x40] sm:$0xff] %vm4557, %v4374
    %4563 = vst.msk [vmem:[#allocation4 + $0x50] sm:$0xff] %vm4557, %v4376
    %4564 = vst.msk [vmem:[#allocation4 + $0x60] sm:$0xff] %vm4557, %v4378
    %4565 = vst.msk [vmem:[#allocation4 + $0x70] sm:$0xff] %vm4557, %v4380
    %4566 = vst.msk [vmem:[#allocation4 + $0x80] sm:$0xff] %vm4557, %v4382
    %4567 = vst.msk [vmem:[#allocation4 + $0x90] sm:$0xff] %vm4557, %v4384
    %4568 = vst.msk [vmem:[#allocation4 + $0xa0] sm:$0xff] %vm4557, %v4386
    %4569 = vst.msk [vmem:[#allocation4 + $0xb0] sm:$0xff] %vm4557, %v4388
    %4570 = vst.msk [vmem:[#allocation4 + $0xc0] sm:$0xff] %vm4557, %v4390
    %4571 = vst.msk [vmem:[#allocation4 + $0xd0] sm:$0xff] %vm4557, %v4392
    %4572 = vst.msk [vmem:[#allocation4 + $0xe0] sm:$0xff] %vm4557, %v4394
    %4573 = vst.msk [vmem:[#allocation4 + $0xf0] sm:$0xff] %vm4557, %v4396
    %4574 = vst.msk [vmem:[#allocation4 + $0x100] sm:$0xff] %vm4557, %v4398
    %4575 = vst.msk [vmem:[#allocation4 + $0x110] sm:$0xff] %vm4557, %v4400
    %4576 = vst.msk [vmem:[#allocation4 + $0x120] sm:$0xff] %vm4557, %v4402
    %4577 = vst.msk [vmem:[#allocation4 + $0x130] sm:$0xff] %vm4557, %v4404
    %4578 = vst.msk [vmem:[#allocation4 + $0x140] sm:$0xff] %vm4557, %v4406
    %4579 = vst.msk [vmem:[#allocation4 + $0x150] sm:$0xff] %vm4557, %v4408
    %4580 = vst.msk [vmem:[#allocation4 + $0x160] sm:$0xff] %vm4557, %v4410
    %4581 = vst.msk [vmem:[#allocation4 + $0x170] sm:$0xff] %vm4557, %v4412
    %4582 = vst.msk [vmem:[#allocation4 + $0x180] sm:$0xff] %vm4557, %v4414
    %4583 = vst.msk [vmem:[#allocation4 + $0x190] sm:$0xff] %vm4557, %v4416
    %4584 = vst.msk [vmem:[#allocation4 + $0x1a0] sm:$0xff] %vm4557, %v4418
    %4585 = vst.msk [vmem:[#allocation4 + $0x1b0] sm:$0xff] %vm4557, %v4420
    %4586 = vst.msk [vmem:[#allocation4 + $0x1c0] sm:$0xff] %vm4557, %v4422
    %4587 = vst.msk [vmem:[#allocation4 + $0x1d0] sm:$0xff] %vm4557, %v4424
    %4588 = vst.msk [vmem:[#allocation4 + $0x1e0] sm:$0xff] %vm4557, %v4426
    %4589 = vst.msk [vmem:[#allocation4 + $0x1f0] sm:$0xff] %vm4557, %v4428
    %4590 = vst.msk [vmem:[#allocation4 + $0x200] sm:$0xff] %vm4557, %v4430
    %4591 = vst.msk [vmem:[#allocation4 + $0x210] sm:$0xff] %vm4557, %v4432
    %4592 = vst.msk [vmem:[#allocation4 + $0x220] sm:$0xff] %vm4557, %v4434
    %4593 = vst.msk [vmem:[#allocation4 + $0x230] sm:$0xff] %vm4557, %v4436
    %4594 = vst.msk [vmem:[#allocation4 + $0x240] sm:$0xff] %vm4557, %v4438
    %4595 = vst.msk [vmem:[#allocation4 + $0x250] sm:$0xff] %vm4557, %v4440
    %4596 = vst.msk [vmem:[#allocation4 + $0x260] sm:$0xff] %vm4557, %v4442
    %4597 = vst.msk [vmem:[#allocation4 + $0x270] sm:$0xff] %vm4557, %v4444
    %4598 = vst.msk [vmem:[#allocation4 + $0x280] sm:$0xff] %vm4557, %v4446
    %4599 = vst.msk [vmem:[#allocation4 + $0x290] sm:$0xff] %vm4557, %v4448
    %4600 = vst.msk [vmem:[#allocation4 + $0x2a0] sm:$0xff] %vm4557, %v4450
    %4601 = vst.msk [vmem:[#allocation4 + $0x2b0] sm:$0xff] %vm4557, %v4452
    %4602 = vst.msk [vmem:[#allocation4 + $0x2c0] sm:$0xff] %vm4557, %v4454
    %4603 = vst.msk [vmem:[#allocation4 + $0x2d0] sm:$0xff] %vm4557, %v4456
    %4604 = vst.msk [vmem:[#allocation4 + $0x2e0] sm:$0xff] %vm4557, %v4458
    %4605 = vst.msk [vmem:[#allocation4 + $0x2f0] sm:$0xff] %vm4557, %v4460
    %4606 = vst.msk [vmem:[#allocation4 + $0x300] sm:$0xff] %vm4557, %v4462
    %4607 = vst.msk [vmem:[#allocation4 + $0x310] sm:$0xff] %vm4557, %v4464
    %4608 = vst.msk [vmem:[#allocation4 + $0x320] sm:$0xff] %vm4557, %v4466
    %4609 = vst.msk [vmem:[#allocation4 + $0x330] sm:$0xff] %vm4557, %v4468
    %4610 = vst.msk [vmem:[#allocation4 + $0x340] sm:$0xff] %vm4557, %v4470
    %4611 = vst.msk [vmem:[#allocation4 + $0x350] sm:$0xff] %vm4557, %v4472
    %4612 = vst.msk [vmem:[#allocation4 + $0x360] sm:$0xff] %vm4557, %v4474
    %4613 = vst.msk [vmem:[#allocation4 + $0x370] sm:$0xff] %vm4557, %v4476
    %4614 = vst.msk [vmem:[#allocation4 + $0x380] sm:$0xff] %vm4557, %v4478
    %4615 = vst.msk [vmem:[#allocation4 + $0x390] sm:$0xff] %vm4557, %v4480
    %4616 = vst.msk [vmem:[#allocation4 + $0x3a0] sm:$0xff] %vm4557, %v4482
    %4617 = vst.msk [vmem:[#allocation4 + $0x3b0] sm:$0xff] %vm4557, %v4484
    %4618 = vst.msk [vmem:[#allocation4 + $0x3c0] sm:$0xff] %vm4557, %v4486
    %4619 = vst.msk [vmem:[#allocation4 + $0x3d0] sm:$0xff] %vm4557, %v4488
    %4620 = vst.msk [vmem:[#allocation4 + $0x3e0] sm:$0xff] %vm4557, %v4490
    %4621 = vst.msk [vmem:[#allocation4 + $0x3f0] sm:$0xff] %vm4557, %v4492
    %v4624 = vrot.slane %v3307, 1
    %v4625 = vrot.slane %v3308, 1
    %v4626 = vsel %vm879, %v4624, %v4625
    %v4627 = vrot.slane %v3309, 1
    %v4628 = vsel %vm879, %v4625, %v4627
    %v4629 = vrot.slane %v3361, 1
    %v4630 = vrot.slane %v3362, 1
    %v4631 = vsel %vm879, %v4629, %v4630
    %v4632 = vrot.slane %v3363, 1
    %v4633 = vsel %vm879, %v4630, %v4632
    %4634 = vrot.lane.b32.xlu0 %v3534, 64
    %v4635 = vpop.permute.xlu0 %4634
    %4636 = vrot.lane.b32.xlu0 %v3536, 64
    %v4637 = vpop.permute.xlu0 %4636
    %4638 = vrot.lane.b32.xlu0 %v3539, 64
    %v4639 = vpop.permute.xlu0 %4638
    %4640 = vrot.lane.b32.xlu0 %v3541, 64
    %v4641 = vpop.permute.xlu0 %4640
    %4642 = vrot.lane.b32.xlu0 %v3544, 64
    %v4643 = vpop.permute.xlu0 %4642
    %4644 = vrot.lane.b32.xlu0 %v3546, 64
    %v4645 = vpop.permute.xlu0 %4644
    %4646 = vrot.lane.b32.xlu0 %v3549, 64
    %v4647 = vpop.permute.xlu0 %4646
    %4648 = vrot.lane.b32.xlu0 %v3551, 64
    %v4649 = vpop.permute.xlu0 %4648
    %4650 = vrot.lane.b32.xlu0 %v3554, 64
    %v4651 = vpop.permute.xlu0 %4650
    %4652 = vrot.lane.b32.xlu0 %v3556, 64
    %v4653 = vpop.permute.xlu0 %4652
    %4654 = vrot.lane.b32.xlu0 %v3559, 64
    %v4655 = vpop.permute.xlu0 %4654
    %4656 = vrot.lane.b32.xlu0 %v3561, 64
    %v4657 = vpop.permute.xlu0 %4656
    %4658 = vrot.lane.b32.xlu0 %v3564, 64
    %v4659 = vpop.permute.xlu0 %4658
    %4660 = vrot.lane.b32.xlu0 %v3566, 64
    %v4661 = vpop.permute.xlu0 %4660
    %4662 = vrot.lane.b32.xlu0 %v3569, 64
    %v4663 = vpop.permute.xlu0 %4662
    %4664 = vrot.lane.b32.xlu0 %v3571, 64
    %v4665 = vpop.permute.xlu0 %4664
    %4666 = vrot.lane.b32.xlu0 %v3574, 64
    %v4667 = vpop.permute.xlu0 %4666
    %4668 = vrot.lane.b32.xlu0 %v3576, 64
    %v4669 = vpop.permute.xlu0 %4668
    %4670 = vrot.lane.b32.xlu0 %v3579, 64
    %v4671 = vpop.permute.xlu0 %4670
    %4672 = vrot.lane.b32.xlu0 %v3581, 64
    %v4673 = vpop.permute.xlu0 %4672
    %4674 = vrot.lane.b32.xlu0 %v3584, 64
    %v4675 = vpop.permute.xlu0 %4674
    %4676 = vrot.lane.b32.xlu0 %v3586, 64
    %v4677 = vpop.permute.xlu0 %4676
    %4678 = vrot.lane.b32.xlu0 %v3589, 64
    %v4679 = vpop.permute.xlu0 %4678
    %4680 = vrot.lane.b32.xlu0 %v3591, 64
    %v4681 = vpop.permute.xlu0 %4680
    %4682 = vrot.lane.b32.xlu0 %v3594, 64
    %v4683 = vpop.permute.xlu0 %4682
    %4684 = vrot.lane.b32.xlu0 %v3596, 64
    %v4685 = vpop.permute.xlu0 %4684
    %4686 = vrot.lane.b32.xlu0 %v3599, 64
    %v4687 = vpop.permute.xlu0 %4686
    %4688 = vrot.lane.b32.xlu0 %v3601, 64
    %v4689 = vpop.permute.xlu0 %4688
    %4690 = vrot.lane.b32.xlu0 %v3604, 64
    %v4691 = vpop.permute.xlu0 %4690
    %4692 = vrot.lane.b32.xlu0 %v3606, 64
    %v4693 = vpop.permute.xlu0 %4692
    %4694 = vrot.lane.b32.xlu0 %v4626, 64
    %v4695 = vpop.permute.xlu0 %4694
    %4696 = vrot.lane.b32.xlu0 %v4628, 64
    %v4697 = vpop.permute.xlu0 %4696
    %4698 = vrot.lane.b32.xlu0 %v3614, 64
    %v4699 = vpop.permute.xlu0 %4698
    %4700 = vrot.lane.b32.xlu0 %v3616, 64
    %v4701 = vpop.permute.xlu0 %4700
    %4702 = vrot.lane.b32.xlu0 %v3619, 64
    %v4703 = vpop.permute.xlu0 %4702
    %4704 = vrot.lane.b32.xlu0 %v3621, 64
    %v4705 = vpop.permute.xlu0 %4704
    %4706 = vrot.lane.b32.xlu0 %v3624, 64
    %v4707 = vpop.permute.xlu0 %4706
    %4708 = vrot.lane.b32.xlu0 %v3626, 64
    %v4709 = vpop.permute.xlu0 %4708
    %4710 = vrot.lane.b32.xlu0 %v3629, 64
    %v4711 = vpop.permute.xlu0 %4710
    %4712 = vrot.lane.b32.xlu0 %v3631, 64
    %v4713 = vpop.permute.xlu0 %4712
    %4714 = vrot.lane.b32.xlu0 %v3634, 64
    %v4715 = vpop.permute.xlu0 %4714
    %4716 = vrot.lane.b32.xlu0 %v3636, 64
    %v4717 = vpop.permute.xlu0 %4716
    %4718 = vrot.lane.b32.xlu0 %v3639, 64
    %v4719 = vpop.permute.xlu0 %4718
    %4720 = vrot.lane.b32.xlu0 %v3641, 64
    %v4721 = vpop.permute.xlu0 %4720
    %4722 = vrot.lane.b32.xlu0 %v3644, 64
    %v4723 = vpop.permute.xlu0 %4722
    %4724 = vrot.lane.b32.xlu0 %v3646, 64
    %v4725 = vpop.permute.xlu0 %4724
    %4726 = vrot.lane.b32.xlu0 %v3649, 64
    %v4727 = vpop.permute.xlu0 %4726
    %4728 = vrot.lane.b32.xlu0 %v3651, 64
    %v4729 = vpop.permute.xlu0 %4728
    %4730 = vrot.lane.b32.xlu0 %v3654, 64
    %v4731 = vpop.permute.xlu0 %4730
    %4732 = vrot.lane.b32.xlu0 %v3656, 64
    %v4733 = vpop.permute.xlu0 %4732
    %4734 = vrot.lane.b32.xlu0 %v3659, 64
    %v4735 = vpop.permute.xlu0 %4734
    %4736 = vrot.lane.b32.xlu0 %v3661, 64
    %v4737 = vpop.permute.xlu0 %4736
    %4738 = vrot.lane.b32.xlu0 %v3664, 64
    %v4739 = vpop.permute.xlu0 %4738
    %4740 = vrot.lane.b32.xlu0 %v3666, 64
    %v4741 = vpop.permute.xlu0 %4740
    %4742 = vrot.lane.b32.xlu0 %v3669, 64
    %v4743 = vpop.permute.xlu0 %4742
    %4744 = vrot.lane.b32.xlu0 %v3671, 64
    %v4745 = vpop.permute.xlu0 %4744
    %4746 = vrot.lane.b32.xlu0 %v3674, 64
    %v4747 = vpop.permute.xlu0 %4746
    %4748 = vrot.lane.b32.xlu0 %v3676, 64
    %v4749 = vpop.permute.xlu0 %4748
    %4750 = vrot.lane.b32.xlu0 %v3679, 64
    %v4751 = vpop.permute.xlu0 %4750
    %4752 = vrot.lane.b32.xlu0 %v3681, 64
    %v4753 = vpop.permute.xlu0 %4752
    %4754 = vrot.lane.b32.xlu0 %v3684, 64
    %v4755 = vpop.permute.xlu0 %4754
    %4756 = vrot.lane.b32.xlu0 %v3686, 64
    %v4757 = vpop.permute.xlu0 %4756
    %4758 = vrot.lane.b32.xlu0 %v4631, 64
    %v4759 = vpop.permute.xlu0 %4758
    %4760 = vrot.lane.b32.xlu0 %v4633, 64
    %v4761 = vpop.permute.xlu0 %4760
    %vm4826 = vcmask 654848
    %4827 = vst.msk [vmem:[#allocation4] sm:$0xff] %vm4826, %v4635
    %4828 = vst.msk [vmem:[#allocation4 + $0x10] sm:$0xff] %vm4826, %v4637
    %4829 = vst.msk [vmem:[#allocation4 + $0x20] sm:$0xff] %vm4826, %v4639
    %4830 = vst.msk [vmem:[#allocation4 + $0x30] sm:$0xff] %vm4826, %v4641
    %4831 = vst.msk [vmem:[#allocation4 + $0x40] sm:$0xff] %vm4826, %v4643
    %4832 = vst.msk [vmem:[#allocation4 + $0x50] sm:$0xff] %vm4826, %v4645
    %4833 = vst.msk [vmem:[#allocation4 + $0x60] sm:$0xff] %vm4826, %v4647
    %4834 = vst.msk [vmem:[#allocation4 + $0x70] sm:$0xff] %vm4826, %v4649
    %4835 = vst.msk [vmem:[#allocation4 + $0x80] sm:$0xff] %vm4826, %v4651
    %4836 = vst.msk [vmem:[#allocation4 + $0x90] sm:$0xff] %vm4826, %v4653
    %4837 = vst.msk [vmem:[#allocation4 + $0xa0] sm:$0xff] %vm4826, %v4655
    %4838 = vst.msk [vmem:[#allocation4 + $0xb0] sm:$0xff] %vm4826, %v4657
    %4839 = vst.msk [vmem:[#allocation4 + $0xc0] sm:$0xff] %vm4826, %v4659
    %4840 = vst.msk [vmem:[#allocation4 + $0xd0] sm:$0xff] %vm4826, %v4661
    %4841 = vst.msk [vmem:[#allocation4 + $0xe0] sm:$0xff] %vm4826, %v4663
    %4842 = vst.msk [vmem:[#allocation4 + $0xf0] sm:$0xff] %vm4826, %v4665
    %4843 = vst.msk [vmem:[#allocation4 + $0x100] sm:$0xff] %vm4826, %v4667
    %4844 = vst.msk [vmem:[#allocation4 + $0x110] sm:$0xff] %vm4826, %v4669
    %4845 = vst.msk [vmem:[#allocation4 + $0x120] sm:$0xff] %vm4826, %v4671
    %4846 = vst.msk [vmem:[#allocation4 + $0x130] sm:$0xff] %vm4826, %v4673
    %4847 = vst.msk [vmem:[#allocation4 + $0x140] sm:$0xff] %vm4826, %v4675
    %4848 = vst.msk [vmem:[#allocation4 + $0x150] sm:$0xff] %vm4826, %v4677
    %4849 = vst.msk [vmem:[#allocation4 + $0x160] sm:$0xff] %vm4826, %v4679
    %4850 = vst.msk [vmem:[#allocation4 + $0x170] sm:$0xff] %vm4826, %v4681
    %4851 = vst.msk [vmem:[#allocation4 + $0x180] sm:$0xff] %vm4826, %v4683
    %4852 = vst.msk [vmem:[#allocation4 + $0x190] sm:$0xff] %vm4826, %v4685
    %4853 = vst.msk [vmem:[#allocation4 + $0x1a0] sm:$0xff] %vm4826, %v4687
    %4854 = vst.msk [vmem:[#allocation4 + $0x1b0] sm:$0xff] %vm4826, %v4689
    %4855 = vst.msk [vmem:[#allocation4 + $0x1c0] sm:$0xff] %vm4826, %v4691
    %4856 = vst.msk [vmem:[#allocation4 + $0x1d0] sm:$0xff] %vm4826, %v4693
    %4857 = vst.msk [vmem:[#allocation4 + $0x1e0] sm:$0xff] %vm4826, %v4695
    %4858 = vst.msk [vmem:[#allocation4 + $0x1f0] sm:$0xff] %vm4826, %v4697
    %4859 = vst.msk [vmem:[#allocation4 + $0x200] sm:$0xff] %vm4826, %v4699
    %4860 = vst.msk [vmem:[#allocation4 + $0x210] sm:$0xff] %vm4826, %v4701
    %4861 = vst.msk [vmem:[#allocation4 + $0x220] sm:$0xff] %vm4826, %v4703
    %4862 = vst.msk [vmem:[#allocation4 + $0x230] sm:$0xff] %vm4826, %v4705
    %4863 = vst.msk [vmem:[#allocation4 + $0x240] sm:$0xff] %vm4826, %v4707
    %4864 = vst.msk [vmem:[#allocation4 + $0x250] sm:$0xff] %vm4826, %v4709
    %4865 = vst.msk [vmem:[#allocation4 + $0x260] sm:$0xff] %vm4826, %v4711
    %4866 = vst.msk [vmem:[#allocation4 + $0x270] sm:$0xff] %vm4826, %v4713
    %4867 = vst.msk [vmem:[#allocation4 + $0x280] sm:$0xff] %vm4826, %v4715
    %4868 = vst.msk [vmem:[#allocation4 + $0x290] sm:$0xff] %vm4826, %v4717
    %4869 = vst.msk [vmem:[#allocation4 + $0x2a0] sm:$0xff] %vm4826, %v4719
    %4870 = vst.msk [vmem:[#allocation4 + $0x2b0] sm:$0xff] %vm4826, %v4721
    %4871 = vst.msk [vmem:[#allocation4 + $0x2c0] sm:$0xff] %vm4826, %v4723
    %4872 = vst.msk [vmem:[#allocation4 + $0x2d0] sm:$0xff] %vm4826, %v4725
    %4873 = vst.msk [vmem:[#allocation4 + $0x2e0] sm:$0xff] %vm4826, %v4727
    %4874 = vst.msk [vmem:[#allocation4 + $0x2f0] sm:$0xff] %vm4826, %v4729
    %4875 = vst.msk [vmem:[#allocation4 + $0x300] sm:$0xff] %vm4826, %v4731
    %4876 = vst.msk [vmem:[#allocation4 + $0x310] sm:$0xff] %vm4826, %v4733
    %4877 = vst.msk [vmem:[#allocation4 + $0x320] sm:$0xff] %vm4826, %v4735
    %4878 = vst.msk [vmem:[#allocation4 + $0x330] sm:$0xff] %vm4826, %v4737
    %4879 = vst.msk [vmem:[#allocation4 + $0x340] sm:$0xff] %vm4826, %v4739
    %4880 = vst.msk [vmem:[#allocation4 + $0x350] sm:$0xff] %vm4826, %v4741
    %4881 = vst.msk [vmem:[#allocation4 + $0x360] sm:$0xff] %vm4826, %v4743
    %4882 = vst.msk [vmem:[#allocation4 + $0x370] sm:$0xff] %vm4826, %v4745
    %4883 = vst.msk [vmem:[#allocation4 + $0x380] sm:$0xff] %vm4826, %v4747
    %4884 = vst.msk [vmem:[#allocation4 + $0x390] sm:$0xff] %vm4826, %v4749
    %4885 = vst.msk [vmem:[#allocation4 + $0x3a0] sm:$0xff] %vm4826, %v4751
    %4886 = vst.msk [vmem:[#allocation4 + $0x3b0] sm:$0xff] %vm4826, %v4753
    %4887 = vst.msk [vmem:[#allocation4 + $0x3c0] sm:$0xff] %vm4826, %v4755
    %4888 = vst.msk [vmem:[#allocation4 + $0x3d0] sm:$0xff] %vm4826, %v4757
    %4889 = vst.msk [vmem:[#allocation4 + $0x3e0] sm:$0xff] %vm4826, %v4759
    %4890 = vst.msk [vmem:[#allocation4 + $0x3f0] sm:$0xff] %vm4826, %v4761
    %v4891 = vrot.slane %v3307, 2
    %v4892 = vrot.slane %v3308, 2
    %v4893 = vsel %vm1432, %v4891, %v4892
    %v4894 = vrot.slane %v3309, 2
    %v4895 = vsel %vm1432, %v4892, %v4894
    %v4896 = vrot.slane %v3361, 2
    %v4897 = vrot.slane %v3362, 2
    %v4898 = vsel %vm1432, %v4896, %v4897
    %v4899 = vrot.slane %v3363, 2
    %v4900 = vsel %vm1432, %v4897, %v4899
    %4901 = vrot.lane.b32.xlu0 %v3951, 80
    %v4902 = vpop.permute.xlu0 %4901
    %4903 = vrot.lane.b32.xlu0 %v3953, 80
    %v4904 = vpop.permute.xlu0 %4903
    %4905 = vrot.lane.b32.xlu0 %v3956, 80
    %v4906 = vpop.permute.xlu0 %4905
    %4907 = vrot.lane.b32.xlu0 %v3958, 80
    %v4908 = vpop.permute.xlu0 %4907
    %4909 = vrot.lane.b32.xlu0 %v3961, 80
    %v4910 = vpop.permute.xlu0 %4909
    %4911 = vrot.lane.b32.xlu0 %v3963, 80
    %v4912 = vpop.permute.xlu0 %4911
    %4913 = vrot.lane.b32.xlu0 %v3966, 80
    %v4914 = vpop.permute.xlu0 %4913
    %4915 = vrot.lane.b32.xlu0 %v3968, 80
    %v4916 = vpop.permute.xlu0 %4915
    %4917 = vrot.lane.b32.xlu0 %v3971, 80
    %v4918 = vpop.permute.xlu0 %4917
    %4919 = vrot.lane.b32.xlu0 %v3973, 80
    %v4920 = vpop.permute.xlu0 %4919
    %4921 = vrot.lane.b32.xlu0 %v3976, 80
    %v4922 = vpop.permute.xlu0 %4921
    %4923 = vrot.lane.b32.xlu0 %v3978, 80
    %v4924 = vpop.permute.xlu0 %4923
    %4925 = vrot.lane.b32.xlu0 %v3981, 80
    %v4926 = vpop.permute.xlu0 %4925
    %4927 = vrot.lane.b32.xlu0 %v3983, 80
    %v4928 = vpop.permute.xlu0 %4927
    %4929 = vrot.lane.b32.xlu0 %v3986, 80
    %v4930 = vpop.permute.xlu0 %4929
    %4931 = vrot.lane.b32.xlu0 %v3988, 80
    %v4932 = vpop.permute.xlu0 %4931
    %4933 = vrot.lane.b32.xlu0 %v3991, 80
    %v4934 = vpop.permute.xlu0 %4933
    %4935 = vrot.lane.b32.xlu0 %v3993, 80
    %v4936 = vpop.permute.xlu0 %4935
    %4937 = vrot.lane.b32.xlu0 %v3996, 80
    %v4938 = vpop.permute.xlu0 %4937
    %4939 = vrot.lane.b32.xlu0 %v3998, 80
    %v4940 = vpop.permute.xlu0 %4939
    %4941 = vrot.lane.b32.xlu0 %v4001, 80
    %v4942 = vpop.permute.xlu0 %4941
    %4943 = vrot.lane.b32.xlu0 %v4003, 80
    %v4944 = vpop.permute.xlu0 %4943
    %4945 = vrot.lane.b32.xlu0 %v4006, 80
    %v4946 = vpop.permute.xlu0 %4945
    %4947 = vrot.lane.b32.xlu0 %v4008, 80
    %v4948 = vpop.permute.xlu0 %4947
    %4949 = vrot.lane.b32.xlu0 %v4011, 80
    %v4950 = vpop.permute.xlu0 %4949
    %4951 = vrot.lane.b32.xlu0 %v4013, 80
    %v4952 = vpop.permute.xlu0 %4951
    %4953 = vrot.lane.b32.xlu0 %v4016, 80
    %v4954 = vpop.permute.xlu0 %4953
    %4955 = vrot.lane.b32.xlu0 %v4018, 80
    %v4956 = vpop.permute.xlu0 %4955
    %4957 = vrot.lane.b32.xlu0 %v4021, 80
    %v4958 = vpop.permute.xlu0 %4957
    %4959 = vrot.lane.b32.xlu0 %v4023, 80
    %v4960 = vpop.permute.xlu0 %4959
    %4961 = vrot.lane.b32.xlu0 %v4893, 80
    %v4962 = vpop.permute.xlu0 %4961
    %4963 = vrot.lane.b32.xlu0 %v4895, 80
    %v4964 = vpop.permute.xlu0 %4963
    %4965 = vrot.lane.b32.xlu0 %v4031, 80
    %v4966 = vpop.permute.xlu0 %4965
    %4967 = vrot.lane.b32.xlu0 %v4033, 80
    %v4968 = vpop.permute.xlu0 %4967
    %4969 = vrot.lane.b32.xlu0 %v4036, 80
    %v4970 = vpop.permute.xlu0 %4969
    %4971 = vrot.lane.b32.xlu0 %v4038, 80
    %v4972 = vpop.permute.xlu0 %4971
    %4973 = vrot.lane.b32.xlu0 %v4041, 80
    %v4974 = vpop.permute.xlu0 %4973
    %4975 = vrot.lane.b32.xlu0 %v4043, 80
    %v4976 = vpop.permute.xlu0 %4975
    %4977 = vrot.lane.b32.xlu0 %v4046, 80
    %v4978 = vpop.permute.xlu0 %4977
    %4979 = vrot.lane.b32.xlu0 %v4048, 80
    %v4980 = vpop.permute.xlu0 %4979
    %4981 = vrot.lane.b32.xlu0 %v4051, 80
    %v4982 = vpop.permute.xlu0 %4981
    %4983 = vrot.lane.b32.xlu0 %v4053, 80
    %v4984 = vpop.permute.xlu0 %4983
    %4985 = vrot.lane.b32.xlu0 %v4056, 80
    %v4986 = vpop.permute.xlu0 %4985
    %4987 = vrot.lane.b32.xlu0 %v4058, 80
    %v4988 = vpop.permute.xlu0 %4987
    %4989 = vrot.lane.b32.xlu0 %v4061, 80
    %v4990 = vpop.permute.xlu0 %4989
    %4991 = vrot.lane.b32.xlu0 %v4063, 80
    %v4992 = vpop.permute.xlu0 %4991
    %4993 = vrot.lane.b32.xlu0 %v4066, 80
    %v4994 = vpop.permute.xlu0 %4993
    %4995 = vrot.lane.b32.xlu0 %v4068, 80
    %v4996 = vpop.permute.xlu0 %4995
    %4997 = vrot.lane.b32.xlu0 %v4071, 80
    %v4998 = vpop.permute.xlu0 %4997
    %4999 = vrot.lane.b32.xlu0 %v4073, 80
    %v5000 = vpop.permute.xlu0 %4999
    %5001 = vrot.lane.b32.xlu0 %v4076, 80
    %v5002 = vpop.permute.xlu0 %5001
    %5003 = vrot.lane.b32.xlu0 %v4078, 80
    %v5004 = vpop.permute.xlu0 %5003
    %5005 = vrot.lane.b32.xlu0 %v4081, 80
    %v5006 = vpop.permute.xlu0 %5005
    %5007 = vrot.lane.b32.xlu0 %v4083, 80
    %v5008 = vpop.permute.xlu0 %5007
    %5009 = vrot.lane.b32.xlu0 %v4086, 80
    %v5010 = vpop.permute.xlu0 %5009
    %5011 = vrot.lane.b32.xlu0 %v4088, 80
    %v5012 = vpop.permute.xlu0 %5011
    %5013 = vrot.lane.b32.xlu0 %v4091, 80
    %v5014 = vpop.permute.xlu0 %5013
    %5015 = vrot.lane.b32.xlu0 %v4093, 80
    %v5016 = vpop.permute.xlu0 %5015
    %5017 = vrot.lane.b32.xlu0 %v4096, 80
    %v5018 = vpop.permute.xlu0 %5017
    %5019 = vrot.lane.b32.xlu0 %v4098, 80
    %v5020 = vpop.permute.xlu0 %5019
    %5021 = vrot.lane.b32.xlu0 %v4101, 80
    %v5022 = vpop.permute.xlu0 %5021
    %5023 = vrot.lane.b32.xlu0 %v4103, 80
    %v5024 = vpop.permute.xlu0 %5023
    %5025 = vrot.lane.b32.xlu0 %v4898, 80
    %v5026 = vpop.permute.xlu0 %5025
    %5027 = vrot.lane.b32.xlu0 %v4900, 80
    %v5028 = vpop.permute.xlu0 %5027
    %vm5093 = vcmask 786048
    %5094 = vst.msk [vmem:[#allocation4] sm:$0xff] %vm5093, %v4902
    %5095 = vst.msk [vmem:[#allocation4 + $0x10] sm:$0xff] %vm5093, %v4904
    %5096 = vst.msk [vmem:[#allocation4 + $0x20] sm:$0xff] %vm5093, %v4906
    %5097 = vst.msk [vmem:[#allocation4 + $0x30] sm:$0xff] %vm5093, %v4908
    %5098 = vst.msk [vmem:[#allocation4 + $0x40] sm:$0xff] %vm5093, %v4910
    %5099 = vst.msk [vmem:[#allocation4 + $0x50] sm:$0xff] %vm5093, %v4912
    %5100 = vst.msk [vmem:[#allocation4 + $0x60] sm:$0xff] %vm5093, %v4914
    %5101 = vst.msk [vmem:[#allocation4 + $0x70] sm:$0xff] %vm5093, %v4916
    %5102 = vst.msk [vmem:[#allocation4 + $0x80] sm:$0xff] %vm5093, %v4918
    %5103 = vst.msk [vmem:[#allocation4 + $0x90] sm:$0xff] %vm5093, %v4920
    %5104 = vst.msk [vmem:[#allocation4 + $0xa0] sm:$0xff] %vm5093, %v4922
    %5105 = vst.msk [vmem:[#allocation4 + $0xb0] sm:$0xff] %vm5093, %v4924
    %5106 = vst.msk [vmem:[#allocation4 + $0xc0] sm:$0xff] %vm5093, %v4926
    %5107 = vst.msk [vmem:[#allocation4 + $0xd0] sm:$0xff] %vm5093, %v4928
    %5108 = vst.msk [vmem:[#allocation4 + $0xe0] sm:$0xff] %vm5093, %v4930
    %5109 = vst.msk [vmem:[#allocation4 + $0xf0] sm:$0xff] %vm5093, %v4932
    %5110 = vst.msk [vmem:[#allocation4 + $0x100] sm:$0xff] %vm5093, %v4934
    %5111 = vst.msk [vmem:[#allocation4 + $0x110] sm:$0xff] %vm5093, %v4936
    %5112 = vst.msk [vmem:[#allocation4 + $0x120] sm:$0xff] %vm5093, %v4938
    %5113 = vst.msk [vmem:[#allocation4 + $0x130] sm:$0xff] %vm5093, %v4940
    %5114 = vst.msk [vmem:[#allocation4 + $0x140] sm:$0xff] %vm5093, %v4942
    %5115 = vst.msk [vmem:[#allocation4 + $0x150] sm:$0xff] %vm5093, %v4944
    %5116 = vst.msk [vmem:[#allocation4 + $0x160] sm:$0xff] %vm5093, %v4946
    %5117 = vst.msk [vmem:[#allocation4 + $0x170] sm:$0xff] %vm5093, %v4948
    %5118 = vst.msk [vmem:[#allocation4 + $0x180] sm:$0xff] %vm5093, %v4950
    %5119 = vst.msk [vmem:[#allocation4 + $0x190] sm:$0xff] %vm5093, %v4952
    %5120 = vst.msk [vmem:[#allocation4 + $0x1a0] sm:$0xff] %vm5093, %v4954
    %5121 = vst.msk [vmem:[#allocation4 + $0x1b0] sm:$0xff] %vm5093, %v4956
    %5122 = vst.msk [vmem:[#allocation4 + $0x1c0] sm:$0xff] %vm5093, %v4958
    %5123 = vst.msk [vmem:[#allocation4 + $0x1d0] sm:$0xff] %vm5093, %v4960
    %5124 = vst.msk [vmem:[#allocation4 + $0x1e0] sm:$0xff] %vm5093, %v4962
    %5125 = vst.msk [vmem:[#allocation4 + $0x1f0] sm:$0xff] %vm5093, %v4964
    %5126 = vst.msk [vmem:[#allocation4 + $0x200] sm:$0xff] %vm5093, %v4966
    %5127 = vst.msk [vmem:[#allocation4 + $0x210] sm:$0xff] %vm5093, %v4968
    %5128 = vst.msk [vmem:[#allocation4 + $0x220] sm:$0xff] %vm5093, %v4970
    %5129 = vst.msk [vmem:[#allocation4 + $0x230] sm:$0xff] %vm5093, %v4972
    %5130 = vst.msk [vmem:[#allocation4 + $0x240] sm:$0xff] %vm5093, %v4974
    %5131 = vst.msk [vmem:[#allocation4 + $0x250] sm:$0xff] %vm5093, %v4976
    %5132 = vst.msk [vmem:[#allocation4 + $0x260] sm:$0xff] %vm5093, %v4978
    %5133 = vst.msk [vmem:[#allocation4 + $0x270] sm:$0xff] %vm5093, %v4980
    %5134 = vst.msk [vmem:[#allocation4 + $0x280] sm:$0xff] %vm5093, %v4982
    %5135 = vst.msk [vmem:[#allocation4 + $0x290] sm:$0xff] %vm5093, %v4984
    %5136 = vst.msk [vmem:[#allocation4 + $0x2a0] sm:$0xff] %vm5093, %v4986
    %5137 = vst.msk [vmem:[#allocation4 + $0x2b0] sm:$0xff] %vm5093, %v4988
    %5138 = vst.msk [vmem:[#allocation4 + $0x2c0] sm:$0xff] %vm5093, %v4990
    %5139 = vst.msk [vmem:[#allocation4 + $0x2d0] sm:$0xff] %vm5093, %v4992
    %5140 = vst.msk [vmem:[#allocation4 + $0x2e0] sm:$0xff] %vm5093, %v4994
    %5141 = vst.msk [vmem:[#allocation4 + $0x2f0] sm:$0xff] %vm5093, %v4996
    %5142 = vst.msk [vmem:[#allocation4 + $0x300] sm:$0xff] %vm5093, %v4998
    %5143 = vst.msk [vmem:[#allocation4 + $0x310] sm:$0xff] %vm5093, %v5000
    %5144 = vst.msk [vmem:[#allocation4 + $0x320] sm:$0xff] %vm5093, %v5002
    %5145 = vst.msk [vmem:[#allocation4 + $0x330] sm:$0xff] %vm5093, %v5004
    %5146 = vst.msk [vmem:[#allocation4 + $0x340] sm:$0xff] %vm5093, %v5006
    %5147 = vst.msk [vmem:[#allocation4 + $0x350] sm:$0xff] %vm5093, %v5008
    %5148 = vst.msk [vmem:[#allocation4 + $0x360] sm:$0xff] %vm5093, %v5010
    %5149 = vst.msk [vmem:[#allocation4 + $0x370] sm:$0xff] %vm5093, %v5012
    %5150 = vst.msk [vmem:[#allocation4 + $0x380] sm:$0xff] %vm5093, %v5014
    %5151 = vst.msk [vmem:[#allocation4 + $0x390] sm:$0xff] %vm5093, %v5016
    %5152 = vst.msk [vmem:[#allocation4 + $0x3a0] sm:$0xff] %vm5093, %v5018
    %5153 = vst.msk [vmem:[#allocation4 + $0x3b0] sm:$0xff] %vm5093, %v5020
    %5154 = vst.msk [vmem:[#allocation4 + $0x3c0] sm:$0xff] %vm5093, %v5022
    %5155 = vst.msk [vmem:[#allocation4 + $0x3d0] sm:$0xff] %vm5093, %v5024
    %5156 = vst.msk [vmem:[#allocation4 + $0x3e0] sm:$0xff] %vm5093, %v5026
    %5157 = vst.msk [vmem:[#allocation4 + $0x3f0] sm:$0xff] %vm5093, %v5028
    %5162 = vrot.lane.b32.xlu0 %v3265, 96
    %v5163 = vpop.permute.xlu0 %5162
    %5164 = vrot.lane.b32.xlu0 %v3266, 96
    %v5165 = vpop.permute.xlu0 %5164
    %5166 = vrot.lane.b32.xlu0 %v3268, 96
    %v5167 = vpop.permute.xlu0 %5166
    %5168 = vrot.lane.b32.xlu0 %v3269, 96
    %v5169 = vpop.permute.xlu0 %5168
    %5170 = vrot.lane.b32.xlu0 %v3271, 96
    %v5171 = vpop.permute.xlu0 %5170
    %5172 = vrot.lane.b32.xlu0 %v3272, 96
    %v5173 = vpop.permute.xlu0 %5172
    %5174 = vrot.lane.b32.xlu0 %v3274, 96
    %v5175 = vpop.permute.xlu0 %5174
    %5176 = vrot.lane.b32.xlu0 %v3275, 96
    %v5177 = vpop.permute.xlu0 %5176
    %5178 = vrot.lane.b32.xlu0 %v3277, 96
    %v5179 = vpop.permute.xlu0 %5178
    %5180 = vrot.lane.b32.xlu0 %v3278, 96
    %v5181 = vpop.permute.xlu0 %5180
    %5182 = vrot.lane.b32.xlu0 %v3280, 96
    %v5183 = vpop.permute.xlu0 %5182
    %5184 = vrot.lane.b32.xlu0 %v3281, 96
    %v5185 = vpop.permute.xlu0 %5184
    %5186 = vrot.lane.b32.xlu0 %v3283, 96
    %v5187 = vpop.permute.xlu0 %5186
    %5188 = vrot.lane.b32.xlu0 %v3284, 96
    %v5189 = vpop.permute.xlu0 %5188
    %5190 = vrot.lane.b32.xlu0 %v3286, 96
    %v5191 = vpop.permute.xlu0 %5190
    %5192 = vrot.lane.b32.xlu0 %v3287, 96
    %v5193 = vpop.permute.xlu0 %5192
    %5194 = vrot.lane.b32.xlu0 %v3289, 96
    %v5195 = vpop.permute.xlu0 %5194
    %5196 = vrot.lane.b32.xlu0 %v3290, 96
    %v5197 = vpop.permute.xlu0 %5196
    %5198 = vrot.lane.b32.xlu0 %v3292, 96
    %v5199 = vpop.permute.xlu0 %5198
    %5200 = vrot.lane.b32.xlu0 %v3293, 96
    %v5201 = vpop.permute.xlu0 %5200
    %5202 = vrot.lane.b32.xlu0 %v3295, 96
    %v5203 = vpop.permute.xlu0 %5202
    %5204 = vrot.lane.b32.xlu0 %v3296, 96
    %v5205 = vpop.permute.xlu0 %5204
    %5206 = vrot.lane.b32.xlu0 %v3298, 96
    %v5207 = vpop.permute.xlu0 %5206
    %5208 = vrot.lane.b32.xlu0 %v3299, 96
    %v5209 = vpop.permute.xlu0 %5208
    %5210 = vrot.lane.b32.xlu0 %v3301, 96
    %v5211 = vpop.permute.xlu0 %5210
    %5212 = vrot.lane.b32.xlu0 %v3302, 96
    %v5213 = vpop.permute.xlu0 %5212
    %5214 = vrot.lane.b32.xlu0 %v3304, 96
    %v5215 = vpop.permute.xlu0 %5214
    %5216 = vrot.lane.b32.xlu0 %v3305, 96
    %v5217 = vpop.permute.xlu0 %5216
    %5218 = vrot.lane.b32.xlu0 %v3307, 96
    %v5219 = vpop.permute.xlu0 %5218
    %5220 = vrot.lane.b32.xlu0 %v3308, 96
    %v5221 = vpop.permute.xlu0 %5220
    %5222 = vrot.lane.b32.xlu0 %v3310, 96
    %v5223 = vpop.permute.xlu0 %5222
    %5224 = vrot.lane.b32.xlu0 %v3311, 96
    %v5225 = vpop.permute.xlu0 %5224
    %5226 = vrot.lane.b32.xlu0 %v3319, 96
    %v5227 = vpop.permute.xlu0 %5226
    %5228 = vrot.lane.b32.xlu0 %v3320, 96
    %v5229 = vpop.permute.xlu0 %5228
    %5230 = vrot.lane.b32.xlu0 %v3322, 96
    %v5231 = vpop.permute.xlu0 %5230
    %5232 = vrot.lane.b32.xlu0 %v3323, 96
    %v5233 = vpop.permute.xlu0 %5232
    %5234 = vrot.lane.b32.xlu0 %v3325, 96
    %v5235 = vpop.permute.xlu0 %5234
    %5236 = vrot.lane.b32.xlu0 %v3326, 96
    %v5237 = vpop.permute.xlu0 %5236
    %5238 = vrot.lane.b32.xlu0 %v3328, 96
    %v5239 = vpop.permute.xlu0 %5238
    %5240 = vrot.lane.b32.xlu0 %v3329, 96
    %v5241 = vpop.permute.xlu0 %5240
    %5242 = vrot.lane.b32.xlu0 %v3331, 96
    %v5243 = vpop.permute.xlu0 %5242
    %5244 = vrot.lane.b32.xlu0 %v3332, 96
    %v5245 = vpop.permute.xlu0 %5244
    %5246 = vrot.lane.b32.xlu0 %v3334, 96
    %v5247 = vpop.permute.xlu0 %5246
    %5248 = vrot.lane.b32.xlu0 %v3335, 96
    %v5249 = vpop.permute.xlu0 %5248
    %5250 = vrot.lane.b32.xlu0 %v3337, 96
    %v5251 = vpop.permute.xlu0 %5250
    %5252 = vrot.lane.b32.xlu0 %v3338, 96
    %v5253 = vpop.permute.xlu0 %5252
    %5254 = vrot.lane.b32.xlu0 %v3340, 96
    %v5255 = vpop.permute.xlu0 %5254
    %5256 = vrot.lane.b32.xlu0 %v3341, 96
    %v5257 = vpop.permute.xlu0 %5256
    %5258 = vrot.lane.b32.xlu0 %v3343, 96
    %v5259 = vpop.permute.xlu0 %5258
    %5260 = vrot.lane.b32.xlu0 %v3344, 96
    %v5261 = vpop.permute.xlu0 %5260
    %5262 = vrot.lane.b32.xlu0 %v3346, 96
    %v5263 = vpop.permute.xlu0 %5262
    %5264 = vrot.lane.b32.xlu0 %v3347, 96
    %v5265 = vpop.permute.xlu0 %5264
    %5266 = vrot.lane.b32.xlu0 %v3349, 96
    %v5267 = vpop.permute.xlu0 %5266
    %5268 = vrot.lane.b32.xlu0 %v3350, 96
    %v5269 = vpop.permute.xlu0 %5268
    %5270 = vrot.lane.b32.xlu0 %v3352, 96
    %v5271 = vpop.permute.xlu0 %5270
    %5272 = vrot.lane.b32.xlu0 %v3353, 96
    %v5273 = vpop.permute.xlu0 %5272
    %5274 = vrot.lane.b32.xlu0 %v3355, 96
    %v5275 = vpop.permute.xlu0 %5274
    %5276 = vrot.lane.b32.xlu0 %v3356, 96
    %v5277 = vpop.permute.xlu0 %5276
    %5278 = vrot.lane.b32.xlu0 %v3358, 96
    %v5279 = vpop.permute.xlu0 %5278
    %5280 = vrot.lane.b32.xlu0 %v3359, 96
    %v5281 = vpop.permute.xlu0 %5280
    %5282 = vrot.lane.b32.xlu0 %v3361, 96
    %v5283 = vpop.permute.xlu0 %5282
    %5284 = vrot.lane.b32.xlu0 %v3362, 96
    %v5285 = vpop.permute.xlu0 %5284
    %5286 = vrot.lane.b32.xlu0 %v3364, 96
    %v5287 = vpop.permute.xlu0 %5286
    %5288 = vrot.lane.b32.xlu0 %v3365, 96
    %v5289 = vpop.permute.xlu0 %5288
    %vm5354 = vcmask 917248
    %5355 = vst.msk [vmem:[#allocation4] sm:$0xff] %vm5354, %v5163
    %5356 = vst.msk [vmem:[#allocation4 + $0x10] sm:$0xff] %vm5354, %v5165
    %5357 = vst.msk [vmem:[#allocation4 + $0x20] sm:$0xff] %vm5354, %v5167
    %5358 = vst.msk [vmem:[#allocation4 + $0x30] sm:$0xff] %vm5354, %v5169
    %5359 = vst.msk [vmem:[#allocation4 + $0x40] sm:$0xff] %vm5354, %v5171
    %5360 = vst.msk [vmem:[#allocation4 + $0x50] sm:$0xff] %vm5354, %v5173
    %5361 = vst.msk [vmem:[#allocation4 + $0x60] sm:$0xff] %vm5354, %v5175
    %5362 = vst.msk [vmem:[#allocation4 + $0x70] sm:$0xff] %vm5354, %v5177
    %5363 = vst.msk [vmem:[#allocation4 + $0x80] sm:$0xff] %vm5354, %v5179
    %5364 = vst.msk [vmem:[#allocation4 + $0x90] sm:$0xff] %vm5354, %v5181
    %5365 = vst.msk [vmem:[#allocation4 + $0xa0] sm:$0xff] %vm5354, %v5183
    %5366 = vst.msk [vmem:[#allocation4 + $0xb0] sm:$0xff] %vm5354, %v5185
    %5367 = vst.msk [vmem:[#allocation4 + $0xc0] sm:$0xff] %vm5354, %v5187
    %5368 = vst.msk [vmem:[#allocation4 + $0xd0] sm:$0xff] %vm5354, %v5189
    %5369 = vst.msk [vmem:[#allocation4 + $0xe0] sm:$0xff] %vm5354, %v5191
    %5370 = vst.msk [vmem:[#allocation4 + $0xf0] sm:$0xff] %vm5354, %v5193
    %5371 = vst.msk [vmem:[#allocation4 + $0x100] sm:$0xff] %vm5354, %v5195
    %5372 = vst.msk [vmem:[#allocation4 + $0x110] sm:$0xff] %vm5354, %v5197
    %5373 = vst.msk [vmem:[#allocation4 + $0x120] sm:$0xff] %vm5354, %v5199
    %5374 = vst.msk [vmem:[#allocation4 + $0x130] sm:$0xff] %vm5354, %v5201
    %5375 = vst.msk [vmem:[#allocation4 + $0x140] sm:$0xff] %vm5354, %v5203
    %5376 = vst.msk [vmem:[#allocation4 + $0x150] sm:$0xff] %vm5354, %v5205
    %5377 = vst.msk [vmem:[#allocation4 + $0x160] sm:$0xff] %vm5354, %v5207
    %5378 = vst.msk [vmem:[#allocation4 + $0x170] sm:$0xff] %vm5354, %v5209
    %5379 = vst.msk [vmem:[#allocation4 + $0x180] sm:$0xff] %vm5354, %v5211
    %5380 = vst.msk [vmem:[#allocation4 + $0x190] sm:$0xff] %vm5354, %v5213
    %5381 = vst.msk [vmem:[#allocation4 + $0x1a0] sm:$0xff] %vm5354, %v5215
    %5382 = vst.msk [vmem:[#allocation4 + $0x1b0] sm:$0xff] %vm5354, %v5217
    %5383 = vst.msk [vmem:[#allocation4 + $0x1c0] sm:$0xff] %vm5354, %v5219
    %5384 = vst.msk [vmem:[#allocation4 + $0x1d0] sm:$0xff] %vm5354, %v5221
    %5385 = vst.msk [vmem:[#allocation4 + $0x1e0] sm:$0xff] %vm5354, %v5223
    %5386 = vst.msk [vmem:[#allocation4 + $0x1f0] sm:$0xff] %vm5354, %v5225
    %5387 = vst.msk [vmem:[#allocation4 + $0x200] sm:$0xff] %vm5354, %v5227
    %5388 = vst.msk [vmem:[#allocation4 + $0x210] sm:$0xff] %vm5354, %v5229
    %5389 = vst.msk [vmem:[#allocation4 + $0x220] sm:$0xff] %vm5354, %v5231
    %5390 = vst.msk [vmem:[#allocation4 + $0x230] sm:$0xff] %vm5354, %v5233
    %5391 = vst.msk [vmem:[#allocation4 + $0x240] sm:$0xff] %vm5354, %v5235
    %5392 = vst.msk [vmem:[#allocation4 + $0x250] sm:$0xff] %vm5354, %v5237
    %5393 = vst.msk [vmem:[#allocation4 + $0x260] sm:$0xff] %vm5354, %v5239
    %5394 = vst.msk [vmem:[#allocation4 + $0x270] sm:$0xff] %vm5354, %v5241
    %5395 = vst.msk [vmem:[#allocation4 + $0x280] sm:$0xff] %vm5354, %v5243
    %5396 = vst.msk [vmem:[#allocation4 + $0x290] sm:$0xff] %vm5354, %v5245
    %5397 = vst.msk [vmem:[#allocation4 + $0x2a0] sm:$0xff] %vm5354, %v5247
    %5398 = vst.msk [vmem:[#allocation4 + $0x2b0] sm:$0xff] %vm5354, %v5249
    %5399 = vst.msk [vmem:[#allocation4 + $0x2c0] sm:$0xff] %vm5354, %v5251
    %5400 = vst.msk [vmem:[#allocation4 + $0x2d0] sm:$0xff] %vm5354, %v5253
    %5401 = vst.msk [vmem:[#allocation4 + $0x2e0] sm:$0xff] %vm5354, %v5255
    %5402 = vst.msk [vmem:[#allocation4 + $0x2f0] sm:$0xff] %vm5354, %v5257
    %5403 = vst.msk [vmem:[#allocation4 + $0x300] sm:$0xff] %vm5354, %v5259
    %5404 = vst.msk [vmem:[#allocation4 + $0x310] sm:$0xff] %vm5354, %v5261
    %5405 = vst.msk [vmem:[#allocation4 + $0x320] sm:$0xff] %vm5354, %v5263
    %5406 = vst.msk [vmem:[#allocation4 + $0x330] sm:$0xff] %vm5354, %v5265
    %5407 = vst.msk [vmem:[#allocation4 + $0x340] sm:$0xff] %vm5354, %v5267
    %5408 = vst.msk [vmem:[#allocation4 + $0x350] sm:$0xff] %vm5354, %v5269
    %5409 = vst.msk [vmem:[#allocation4 + $0x360] sm:$0xff] %vm5354, %v5271
    %5410 = vst.msk [vmem:[#allocation4 + $0x370] sm:$0xff] %vm5354, %v5273
    %5411 = vst.msk [vmem:[#allocation4 + $0x380] sm:$0xff] %vm5354, %v5275
    %5412 = vst.msk [vmem:[#allocation4 + $0x390] sm:$0xff] %vm5354, %v5277
    %5413 = vst.msk [vmem:[#allocation4 + $0x3a0] sm:$0xff] %vm5354, %v5279
    %5414 = vst.msk [vmem:[#allocation4 + $0x3b0] sm:$0xff] %vm5354, %v5281
    %5415 = vst.msk [vmem:[#allocation4 + $0x3c0] sm:$0xff] %vm5354, %v5283
    %5416 = vst.msk [vmem:[#allocation4 + $0x3d0] sm:$0xff] %vm5354, %v5285
    %5417 = vst.msk [vmem:[#allocation4 + $0x3e0] sm:$0xff] %vm5354, %v5287
    %5418 = vst.msk [vmem:[#allocation4 + $0x3f0] sm:$0xff] %vm5354, %v5289
    %v5421 = vrot.slane %v3310, 1
    %v5422 = vrot.slane %v3311, 1
    %v5423 = vsel %vm879, %v5421, %v5422
    %v5424 = vrot.slane %v3312, 1
    %v5425 = vsel %vm879, %v5422, %v5424
    %v5426 = vrot.slane %v3364, 1
    %v5427 = vrot.slane %v3365, 1
    %v5428 = vsel %vm879, %v5426, %v5427
    %v5429 = vrot.slane %v3366, 1
    %v5430 = vsel %vm879, %v5427, %v5429
    %5431 = vrot.lane.b32.xlu0 %v3539, 112
    %v5432 = vpop.permute.xlu0 %5431
    %5433 = vrot.lane.b32.xlu0 %v3541, 112
    %v5434 = vpop.permute.xlu0 %5433
    %5435 = vrot.lane.b32.xlu0 %v3544, 112
    %v5436 = vpop.permute.xlu0 %5435
    %5437 = vrot.lane.b32.xlu0 %v3546, 112
    %v5438 = vpop.permute.xlu0 %5437
    %5439 = vrot.lane.b32.xlu0 %v3549, 112
    %v5440 = vpop.permute.xlu0 %5439
    %5441 = vrot.lane.b32.xlu0 %v3551, 112
    %v5442 = vpop.permute.xlu0 %5441
    %5443 = vrot.lane.b32.xlu0 %v3554, 112
    %v5444 = vpop.permute.xlu0 %5443
    %5445 = vrot.lane.b32.xlu0 %v3556, 112
    %v5446 = vpop.permute.xlu0 %5445
    %5447 = vrot.lane.b32.xlu0 %v3559, 112
    %v5448 = vpop.permute.xlu0 %5447
    %5449 = vrot.lane.b32.xlu0 %v3561, 112
    %v5450 = vpop.permute.xlu0 %5449
    %5451 = vrot.lane.b32.xlu0 %v3564, 112
    %v5452 = vpop.permute.xlu0 %5451
    %5453 = vrot.lane.b32.xlu0 %v3566, 112
    %v5454 = vpop.permute.xlu0 %5453
    %5455 = vrot.lane.b32.xlu0 %v3569, 112
    %v5456 = vpop.permute.xlu0 %5455
    %5457 = vrot.lane.b32.xlu0 %v3571, 112
    %v5458 = vpop.permute.xlu0 %5457
    %5459 = vrot.lane.b32.xlu0 %v3574, 112
    %v5460 = vpop.permute.xlu0 %5459
    %5461 = vrot.lane.b32.xlu0 %v3576, 112
    %v5462 = vpop.permute.xlu0 %5461
    %5463 = vrot.lane.b32.xlu0 %v3579, 112
    %v5464 = vpop.permute.xlu0 %5463
    %5465 = vrot.lane.b32.xlu0 %v3581, 112
    %v5466 = vpop.permute.xlu0 %5465
    %5467 = vrot.lane.b32.xlu0 %v3584, 112
    %v5468 = vpop.permute.xlu0 %5467
    %5469 = vrot.lane.b32.xlu0 %v3586, 112
    %v5470 = vpop.permute.xlu0 %5469
    %5471 = vrot.lane.b32.xlu0 %v3589, 112
    %v5472 = vpop.permute.xlu0 %5471
    %5473 = vrot.lane.b32.xlu0 %v3591, 112
    %v5474 = vpop.permute.xlu0 %5473
    %5475 = vrot.lane.b32.xlu0 %v3594, 112
    %v5476 = vpop.permute.xlu0 %5475
    %5477 = vrot.lane.b32.xlu0 %v3596, 112
    %v5478 = vpop.permute.xlu0 %5477
    %5479 = vrot.lane.b32.xlu0 %v3599, 112
    %v5480 = vpop.permute.xlu0 %5479
    %5481 = vrot.lane.b32.xlu0 %v3601, 112
    %v5482 = vpop.permute.xlu0 %5481
    %5483 = vrot.lane.b32.xlu0 %v3604, 112
    %v5484 = vpop.permute.xlu0 %5483
    %5485 = vrot.lane.b32.xlu0 %v3606, 112
    %v5486 = vpop.permute.xlu0 %5485
    %5487 = vrot.lane.b32.xlu0 %v4626, 112
    %v5488 = vpop.permute.xlu0 %5487
    %5489 = vrot.lane.b32.xlu0 %v4628, 112
    %v5490 = vpop.permute.xlu0 %5489
    %5491 = vrot.lane.b32.xlu0 %v5423, 112
    %v5492 = vpop.permute.xlu0 %5491
    %5493 = vrot.lane.b32.xlu0 %v5425, 112
    %v5494 = vpop.permute.xlu0 %5493
    %5495 = vrot.lane.b32.xlu0 %v3619, 112
    %v5496 = vpop.permute.xlu0 %5495
    %5497 = vrot.lane.b32.xlu0 %v3621, 112
    %v5498 = vpop.permute.xlu0 %5497
    %5499 = vrot.lane.b32.xlu0 %v3624, 112
    %v5500 = vpop.permute.xlu0 %5499
    %5501 = vrot.lane.b32.xlu0 %v3626, 112
    %v5502 = vpop.permute.xlu0 %5501
    %5503 = vrot.lane.b32.xlu0 %v3629, 112
    %v5504 = vpop.permute.xlu0 %5503
    %5505 = vrot.lane.b32.xlu0 %v3631, 112
    %v5506 = vpop.permute.xlu0 %5505
    %5507 = vrot.lane.b32.xlu0 %v3634, 112
    %v5508 = vpop.permute.xlu0 %5507
    %5509 = vrot.lane.b32.xlu0 %v3636, 112
    %v5510 = vpop.permute.xlu0 %5509
    %5511 = vrot.lane.b32.xlu0 %v3639, 112
    %v5512 = vpop.permute.xlu0 %5511
    %5513 = vrot.lane.b32.xlu0 %v3641, 112
    %v5514 = vpop.permute.xlu0 %5513
    %5515 = vrot.lane.b32.xlu0 %v3644, 112
    %v5516 = vpop.permute.xlu0 %5515
    %5517 = vrot.lane.b32.xlu0 %v3646, 112
    %v5518 = vpop.permute.xlu0 %5517
    %5519 = vrot.lane.b32.xlu0 %v3649, 112
    %v5520 = vpop.permute.xlu0 %5519
    %5521 = vrot.lane.b32.xlu0 %v3651, 112
    %v5522 = vpop.permute.xlu0 %5521
    %5523 = vrot.lane.b32.xlu0 %v3654, 112
    %v5524 = vpop.permute.xlu0 %5523
    %5525 = vrot.lane.b32.xlu0 %v3656, 112
    %v5526 = vpop.permute.xlu0 %5525
    %5527 = vrot.lane.b32.xlu0 %v3659, 112
    %v5528 = vpop.permute.xlu0 %5527
    %5529 = vrot.lane.b32.xlu0 %v3661, 112
    %v5530 = vpop.permute.xlu0 %5529
    %5531 = vrot.lane.b32.xlu0 %v3664, 112
    %v5532 = vpop.permute.xlu0 %5531
    %5533 = vrot.lane.b32.xlu0 %v3666, 112
    %v5534 = vpop.permute.xlu0 %5533
    %5535 = vrot.lane.b32.xlu0 %v3669, 112
    %v5536 = vpop.permute.xlu0 %5535
    %5537 = vrot.lane.b32.xlu0 %v3671, 112
    %v5538 = vpop.permute.xlu0 %5537
    %5539 = vrot.lane.b32.xlu0 %v3674, 112
    %v5540 = vpop.permute.xlu0 %5539
    %5541 = vrot.lane.b32.xlu0 %v3676, 112
    %v5542 = vpop.permute.xlu0 %5541
    %5543 = vrot.lane.b32.xlu0 %v3679, 112
    %v5544 = vpop.permute.xlu0 %5543
    %5545 = vrot.lane.b32.xlu0 %v3681, 112
    %v5546 = vpop.permute.xlu0 %5545
    %5547 = vrot.lane.b32.xlu0 %v3684, 112
    %v5548 = vpop.permute.xlu0 %5547
    %5549 = vrot.lane.b32.xlu0 %v3686, 112
    %v5550 = vpop.permute.xlu0 %5549
    %5551 = vrot.lane.b32.xlu0 %v4631, 112
    %v5552 = vpop.permute.xlu0 %5551
    %5553 = vrot.lane.b32.xlu0 %v4633, 112
    %v5554 = vpop.permute.xlu0 %5553
    %5555 = vrot.lane.b32.xlu0 %v5428, 112
    %v5556 = vpop.permute.xlu0 %5555
    %5557 = vrot.lane.b32.xlu0 %v5430, 112
    %v5558 = vpop.permute.xlu0 %5557
    %vm5623 = vcmask 1048448
    %5624 = vst.msk [vmem:[#allocation4] sm:$0xff] %vm5623, %v5432
    %5625 = vst.msk [vmem:[#allocation4 + $0x10] sm:$0xff] %vm5623, %v5434
    %5626 = vst.msk [vmem:[#allocation4 + $0x20] sm:$0xff] %vm5623, %v5436
    %5627 = vst.msk [vmem:[#allocation4 + $0x30] sm:$0xff] %vm5623, %v5438
    %5628 = vst.msk [vmem:[#allocation4 + $0x40] sm:$0xff] %vm5623, %v5440
    %5629 = vst.msk [vmem:[#allocation4 + $0x50] sm:$0xff] %vm5623, %v5442
    %5630 = vst.msk [vmem:[#allocation4 + $0x60] sm:$0xff] %vm5623, %v5444
    %5631 = vst.msk [vmem:[#allocation4 + $0x70] sm:$0xff] %vm5623, %v5446
    %5632 = vst.msk [vmem:[#allocation4 + $0x80] sm:$0xff] %vm5623, %v5448
    %5633 = vst.msk [vmem:[#allocation4 + $0x90] sm:$0xff] %vm5623, %v5450
    %5634 = vst.msk [vmem:[#allocation4 + $0xa0] sm:$0xff] %vm5623, %v5452
    %5635 = vst.msk [vmem:[#allocation4 + $0xb0] sm:$0xff] %vm5623, %v5454
    %5636 = vst.msk [vmem:[#allocation4 + $0xc0] sm:$0xff] %vm5623, %v5456
    %5637 = vst.msk [vmem:[#allocation4 + $0xd0] sm:$0xff] %vm5623, %v5458
    %5638 = vst.msk [vmem:[#allocation4 + $0xe0] sm:$0xff] %vm5623, %v5460
    %5639 = vst.msk [vmem:[#allocation4 + $0xf0] sm:$0xff] %vm5623, %v5462
    %5640 = vst.msk [vmem:[#allocation4 + $0x100] sm:$0xff] %vm5623, %v5464
    %5641 = vst.msk [vmem:[#allocation4 + $0x110] sm:$0xff] %vm5623, %v5466
    %5642 = vst.msk [vmem:[#allocation4 + $0x120] sm:$0xff] %vm5623, %v5468
    %5643 = vst.msk [vmem:[#allocation4 + $0x130] sm:$0xff] %vm5623, %v5470
    %5644 = vst.msk [vmem:[#allocation4 + $0x140] sm:$0xff] %vm5623, %v5472
    %5645 = vst.msk [vmem:[#allocation4 + $0x150] sm:$0xff] %vm5623, %v5474
    %5646 = vst.msk [vmem:[#allocation4 + $0x160] sm:$0xff] %vm5623, %v5476
    %5647 = vst.msk [vmem:[#allocation4 + $0x170] sm:$0xff] %vm5623, %v5478
    %5648 = vst.msk [vmem:[#allocation4 + $0x180] sm:$0xff] %vm5623, %v5480
    %5649 = vst.msk [vmem:[#allocation4 + $0x190] sm:$0xff] %vm5623, %v5482
    %5650 = vst.msk [vmem:[#allocation4 + $0x1a0] sm:$0xff] %vm5623, %v5484
    %5651 = vst.msk [vmem:[#allocation4 + $0x1b0] sm:$0xff] %vm5623, %v5486
    %5652 = vst.msk [vmem:[#allocation4 + $0x1c0] sm:$0xff] %vm5623, %v5488
    %5653 = vst.msk [vmem:[#allocation4 + $0x1d0] sm:$0xff] %vm5623, %v5490
    %5654 = vst.msk [vmem:[#allocation4 + $0x1e0] sm:$0xff] %vm5623, %v5492
    %5655 = vst.msk [vmem:[#allocation4 + $0x1f0] sm:$0xff] %vm5623, %v5494
    %5656 = vst.msk [vmem:[#allocation4 + $0x200] sm:$0xff] %vm5623, %v5496
    %5657 = vst.msk [vmem:[#allocation4 + $0x210] sm:$0xff] %vm5623, %v5498
    %5658 = vst.msk [vmem:[#allocation4 + $0x220] sm:$0xff] %vm5623, %v5500
    %5659 = vst.msk [vmem:[#allocation4 + $0x230] sm:$0xff] %vm5623, %v5502
    %5660 = vst.msk [vmem:[#allocation4 + $0x240] sm:$0xff] %vm5623, %v5504
    %5661 = vst.msk [vmem:[#allocation4 + $0x250] sm:$0xff] %vm5623, %v5506
    %5662 = vst.msk [vmem:[#allocation4 + $0x260] sm:$0xff] %vm5623, %v5508
    %5663 = vst.msk [vmem:[#allocation4 + $0x270] sm:$0xff] %vm5623, %v5510
    %5664 = vst.msk [vmem:[#allocation4 + $0x280] sm:$0xff] %vm5623, %v5512
    %5665 = vst.msk [vmem:[#allocation4 + $0x290] sm:$0xff] %vm5623, %v5514
    %5666 = vst.msk [vmem:[#allocation4 + $0x2a0] sm:$0xff] %vm5623, %v5516
    %5667 = vst.msk [vmem:[#allocation4 + $0x2b0] sm:$0xff] %vm5623, %v5518
    %5668 = vst.msk [vmem:[#allocation4 + $0x2c0] sm:$0xff] %vm5623, %v5520
    %5669 = vst.msk [vmem:[#allocation4 + $0x2d0] sm:$0xff] %vm5623, %v5522
    %5670 = vst.msk [vmem:[#allocation4 + $0x2e0] sm:$0xff] %vm5623, %v5524
    %5671 = vst.msk [vmem:[#allocation4 + $0x2f0] sm:$0xff] %vm5623, %v5526
    %5672 = vst.msk [vmem:[#allocation4 + $0x300] sm:$0xff] %vm5623, %v5528
    %5673 = vst.msk [vmem:[#allocation4 + $0x310] sm:$0xff] %vm5623, %v5530
    %5674 = vst.msk [vmem:[#allocation4 + $0x320] sm:$0xff] %vm5623, %v5532
    %5675 = vst.msk [vmem:[#allocation4 + $0x330] sm:$0xff] %vm5623, %v5534
    %5676 = vst.msk [vmem:[#allocation4 + $0x340] sm:$0xff] %vm5623, %v5536
    %5677 = vst.msk [vmem:[#allocation4 + $0x350] sm:$0xff] %vm5623, %v5538
    %5678 = vst.msk [vmem:[#allocation4 + $0x360] sm:$0xff] %vm5623, %v5540
    %5679 = vst.msk [vmem:[#allocation4 + $0x370] sm:$0xff] %vm5623, %v5542
    %5680 = vst.msk [vmem:[#allocation4 + $0x380] sm:$0xff] %vm5623, %v5544
    %5681 = vst.msk [vmem:[#allocation4 + $0x390] sm:$0xff] %vm5623, %v5546
    %5682 = vst.msk [vmem:[#allocation4 + $0x3a0] sm:$0xff] %vm5623, %v5548
    %5683 = vst.msk [vmem:[#allocation4 + $0x3b0] sm:$0xff] %vm5623, %v5550
    %5684 = vst.msk [vmem:[#allocation4 + $0x3c0] sm:$0xff] %vm5623, %v5552
    %5685 = vst.msk [vmem:[#allocation4 + $0x3d0] sm:$0xff] %vm5623, %v5554
    %5686 = vst.msk [vmem:[#allocation4 + $0x3e0] sm:$0xff] %vm5623, %v5556
    %5687 = vst.msk [vmem:[#allocation4 + $0x3f0] sm:$0xff] %vm5623, %v5558
    %v5688 = vrot.slane %v3310, 2
    %v5689 = vrot.slane %v3311, 2
    %v5690 = vsel %vm1432, %v5688, %v5689
    %v5691 = vrot.slane %v3312, 2
    %v5692 = vsel %vm1432, %v5689, %v5691
    %v5693 = vrot.slane %v3364, 2
    %v5694 = vrot.slane %v3365, 2
    %v5695 = vsel %vm1432, %v5693, %v5694
    %v5696 = vrot.slane %v3366, 2
    %v5697 = vsel %vm1432, %v5694, %v5696
    %5762 = vst.msk [vmem:[#allocation4 + $0x8] sm:$0xff] %vm3084, %v3956
    %5763 = vst.msk [vmem:[#allocation4 + $0x18] sm:$0xff] %vm3084, %v3958
    %5764 = vst.msk [vmem:[#allocation4 + $0x28] sm:$0xff] %vm3084, %v3961
    %5765 = vst.msk [vmem:[#allocation4 + $0x38] sm:$0xff] %vm3084, %v3963
    %5766 = vst.msk [vmem:[#allocation4 + $0x48] sm:$0xff] %vm3084, %v3966
    %5767 = vst.msk [vmem:[#allocation4 + $0x58] sm:$0xff] %vm3084, %v3968
    %5768 = vst.msk [vmem:[#allocation4 + $0x68] sm:$0xff] %vm3084, %v3971
    %5769 = vst.msk [vmem:[#allocation4 + $0x78] sm:$0xff] %vm3084, %v3973
    %5770 = vst.msk [vmem:[#allocation4 + $0x88] sm:$0xff] %vm3084, %v3976
    %5771 = vst.msk [vmem:[#allocation4 + $0x98] sm:$0xff] %vm3084, %v3978
    %5772 = vst.msk [vmem:[#allocation4 + $0xa8] sm:$0xff] %vm3084, %v3981
    %5773 = vst.msk [vmem:[#allocation4 + $0xb8] sm:$0xff] %vm3084, %v3983
    %5774 = vst.msk [vmem:[#allocation4 + $0xc8] sm:$0xff] %vm3084, %v3986
    %5775 = vst.msk [vmem:[#allocation4 + $0xd8] sm:$0xff] %vm3084, %v3988
    %5776 = vst.msk [vmem:[#allocation4 + $0xe8] sm:$0xff] %vm3084, %v3991
    %5777 = vst.msk [vmem:[#allocation4 + $0xf8] sm:$0xff] %vm3084, %v3993
    %5778 = vst.msk [vmem:[#allocation4 + $0x108] sm:$0xff] %vm3084, %v3996
    %5779 = vst.msk [vmem:[#allocation4 + $0x118] sm:$0xff] %vm3084, %v3998
    %5780 = vst.msk [vmem:[#allocation4 + $0x128] sm:$0xff] %vm3084, %v4001
    %5781 = vst.msk [vmem:[#allocation4 + $0x138] sm:$0xff] %vm3084, %v4003
    %5782 = vst.msk [vmem:[#allocation4 + $0x148] sm:$0xff] %vm3084, %v4006
    %5783 = vst.msk [vmem:[#allocation4 + $0x158] sm:$0xff] %vm3084, %v4008
    %5784 = vst.msk [vmem:[#allocation4 + $0x168] sm:$0xff] %vm3084, %v4011
    %5785 = vst.msk [vmem:[#allocation4 + $0x178] sm:$0xff] %vm3084, %v4013
    %5786 = vst.msk [vmem:[#allocation4 + $0x188] sm:$0xff] %vm3084, %v4016
    %5787 = vst.msk [vmem:[#allocation4 + $0x198] sm:$0xff] %vm3084, %v4018
    %5788 = vst.msk [vmem:[#allocation4 + $0x1a8] sm:$0xff] %vm3084, %v4021
    %5789 = vst.msk [vmem:[#allocation4 + $0x1b8] sm:$0xff] %vm3084, %v4023
    %5790 = vst.msk [vmem:[#allocation4 + $0x1c8] sm:$0xff] %vm3084, %v4893
    %5791 = vst.msk [vmem:[#allocation4 + $0x1d8] sm:$0xff] %vm3084, %v4895
    %5792 = vst.msk [vmem:[#allocation4 + $0x1e8] sm:$0xff] %vm3084, %v5690
    %5793 = vst.msk [vmem:[#allocation4 + $0x1f8] sm:$0xff] %vm3084, %v5692
    %5794 = vst.msk [vmem:[#allocation4 + $0x208] sm:$0xff] %vm3084, %v4036
    %5795 = vst.msk [vmem:[#allocation4 + $0x218] sm:$0xff] %vm3084, %v4038
    %5796 = vst.msk [vmem:[#allocation4 + $0x228] sm:$0xff] %vm3084, %v4041
    %5797 = vst.msk [vmem:[#allocation4 + $0x238] sm:$0xff] %vm3084, %v4043
    %5798 = vst.msk [vmem:[#allocation4 + $0x248] sm:$0xff] %vm3084, %v4046
    %5799 = vst.msk [vmem:[#allocation4 + $0x258] sm:$0xff] %vm3084, %v4048
    %5800 = vst.msk [vmem:[#allocation4 + $0x268] sm:$0xff] %vm3084, %v4051
    %5801 = vst.msk [vmem:[#allocation4 + $0x278] sm:$0xff] %vm3084, %v4053
    %5802 = vst.msk [vmem:[#allocation4 + $0x288] sm:$0xff] %vm3084, %v4056
    %5803 = vst.msk [vmem:[#allocation4 + $0x298] sm:$0xff] %vm3084, %v4058
    %5804 = vst.msk [vmem:[#allocation4 + $0x2a8] sm:$0xff] %vm3084, %v4061
    %5805 = vst.msk [vmem:[#allocation4 + $0x2b8] sm:$0xff] %vm3084, %v4063
    %5806 = vst.msk [vmem:[#allocation4 + $0x2c8] sm:$0xff] %vm3084, %v4066
    %5807 = vst.msk [vmem:[#allocation4 + $0x2d8] sm:$0xff] %vm3084, %v4068
    %5808 = vst.msk [vmem:[#allocation4 + $0x2e8] sm:$0xff] %vm3084, %v4071
    %5809 = vst.msk [vmem:[#allocation4 + $0x2f8] sm:$0xff] %vm3084, %v4073
    %5810 = vst.msk [vmem:[#allocation4 + $0x308] sm:$0xff] %vm3084, %v4076
    %5811 = vst.msk [vmem:[#allocation4 + $0x318] sm:$0xff] %vm3084, %v4078
    %5812 = vst.msk [vmem:[#allocation4 + $0x328] sm:$0xff] %vm3084, %v4081
    %5813 = vst.msk [vmem:[#allocation4 + $0x338] sm:$0xff] %vm3084, %v4083
    %5814 = vst.msk [vmem:[#allocation4 + $0x348] sm:$0xff] %vm3084, %v4086
    %5815 = vst.msk [vmem:[#allocation4 + $0x358] sm:$0xff] %vm3084, %v4088
    %5816 = vst.msk [vmem:[#allocation4 + $0x368] sm:$0xff] %vm3084, %v4091
    %5817 = vst.msk [vmem:[#allocation4 + $0x378] sm:$0xff] %vm3084, %v4093
    %5818 = vst.msk [vmem:[#allocation4 + $0x388] sm:$0xff] %vm3084, %v4096
    %5819 = vst.msk [vmem:[#allocation4 + $0x398] sm:$0xff] %vm3084, %v4098
    %5820 = vst.msk [vmem:[#allocation4 + $0x3a8] sm:$0xff] %vm3084, %v4101
    %5821 = vst.msk [vmem:[#allocation4 + $0x3b8] sm:$0xff] %vm3084, %v4103
    %5822 = vst.msk [vmem:[#allocation4 + $0x3c8] sm:$0xff] %vm3084, %v4898
    %5823 = vst.msk [vmem:[#allocation4 + $0x3d8] sm:$0xff] %vm3084, %v4900
    %5824 = vst.msk [vmem:[#allocation4 + $0x3e8] sm:$0xff] %vm3084, %v5695
    %5825 = vst.msk [vmem:[#allocation4 + $0x3f8] sm:$0xff] %vm3084, %v5697
    %v5826 = vld [vmem:[#allocation4] sm:$0xff]
    %v5827 = vld [vmem:[#allocation4 + $0x8] sm:$0xff]
    %v5828 = vld [vmem:[#allocation4 + $0x10] sm:$0xff]
    %v5829 = vld [vmem:[#allocation4 + $0x18] sm:$0xff]
    %v5830 = vld [vmem:[#allocation4 + $0x20] sm:$0xff]
    %v5831 = vld [vmem:[#allocation4 + $0x28] sm:$0xff]
    %v5832 = vld [vmem:[#allocation4 + $0x30] sm:$0xff]
    %v5833 = vld [vmem:[#allocation4 + $0x38] sm:$0xff]
    %v5834 = vld [vmem:[#allocation4 + $0x40] sm:$0xff]
    %v5835 = vld [vmem:[#allocation4 + $0x48] sm:$0xff]
    %v5836 = vld [vmem:[#allocation4 + $0x50] sm:$0xff]
    %v5837 = vld [vmem:[#allocation4 + $0x58] sm:$0xff]
    %v5838 = vld [vmem:[#allocation4 + $0x60] sm:$0xff]
    %v5839 = vld [vmem:[#allocation4 + $0x68] sm:$0xff]
    %v5840 = vld [vmem:[#allocation4 + $0x70] sm:$0xff]
    %v5841 = vld [vmem:[#allocation4 + $0x78] sm:$0xff]
    %v5842 = vld [vmem:[#allocation4 + $0x80] sm:$0xff]
    %v5843 = vld [vmem:[#allocation4 + $0x88] sm:$0xff]
    %v5844 = vld [vmem:[#allocation4 + $0x90] sm:$0xff]
    %v5845 = vld [vmem:[#allocation4 + $0x98] sm:$0xff]
    %v5846 = vld [vmem:[#allocation4 + $0xa0] sm:$0xff]
    %v5847 = vld [vmem:[#allocation4 + $0xa8] sm:$0xff]
    %v5848 = vld [vmem:[#allocation4 + $0xb0] sm:$0xff]
    %v5849 = vld [vmem:[#allocation4 + $0xb8] sm:$0xff]
    %v5850 = vld [vmem:[#allocation4 + $0xc0] sm:$0xff]
    %v5851 = vld [vmem:[#allocation4 + $0xc8] sm:$0xff]
    %v5852 = vld [vmem:[#allocation4 + $0xd0] sm:$0xff]
    %v5853 = vld [vmem:[#allocation4 + $0xd8] sm:$0xff]
    %v5854 = vld [vmem:[#allocation4 + $0xe0] sm:$0xff]
    %v5855 = vld [vmem:[#allocation4 + $0xe8] sm:$0xff]
    %v5856 = vld [vmem:[#allocation4 + $0xf0] sm:$0xff]
    %v5857 = vld [vmem:[#allocation4 + $0xf8] sm:$0xff]
    %v5858 = vld [vmem:[#allocation4 + $0x100] sm:$0xff]
    %v5859 = vld [vmem:[#allocation4 + $0x108] sm:$0xff]
    %v5860 = vld [vmem:[#allocation4 + $0x110] sm:$0xff]
    %v5861 = vld [vmem:[#allocation4 + $0x118] sm:$0xff]
    %v5862 = vld [vmem:[#allocation4 + $0x120] sm:$0xff]
    %v5863 = vld [vmem:[#allocation4 + $0x128] sm:$0xff]
    %v5864 = vld [vmem:[#allocation4 + $0x130] sm:$0xff]
    %v5865 = vld [vmem:[#allocation4 + $0x138] sm:$0xff]
    %v5866 = vld [vmem:[#allocation4 + $0x140] sm:$0xff]
    %v5867 = vld [vmem:[#allocation4 + $0x148] sm:$0xff]
    %v5868 = vld [vmem:[#allocation4 + $0x150] sm:$0xff]
    %v5869 = vld [vmem:[#allocation4 + $0x158] sm:$0xff]
    %v5870 = vld [vmem:[#allocation4 + $0x160] sm:$0xff]
    %v5871 = vld [vmem:[#allocation4 + $0x168] sm:$0xff]
    %v5872 = vld [vmem:[#allocation4 + $0x170] sm:$0xff]
    %v5873 = vld [vmem:[#allocation4 + $0x178] sm:$0xff]
    %v5874 = vld [vmem:[#allocation4 + $0x180] sm:$0xff]
    %v5875 = vld [vmem:[#allocation4 + $0x188] sm:$0xff]
    %v5876 = vld [vmem:[#allocation4 + $0x190] sm:$0xff]
    %v5877 = vld [vmem:[#allocation4 + $0x198] sm:$0xff]
    %v5878 = vld [vmem:[#allocation4 + $0x1a0] sm:$0xff]
    %v5879 = vld [vmem:[#allocation4 + $0x1a8] sm:$0xff]
    %v5880 = vld [vmem:[#allocation4 + $0x1b0] sm:$0xff]
    %v5881 = vld [vmem:[#allocation4 + $0x1b8] sm:$0xff]
    %v5882 = vld [vmem:[#allocation4 + $0x1c0] sm:$0xff]
    %v5883 = vld [vmem:[#allocation4 + $0x1c8] sm:$0xff]
    %v5884 = vld [vmem:[#allocation4 + $0x1d0] sm:$0xff]
    %v5885 = vld [vmem:[#allocation4 + $0x1d8] sm:$0xff]
    %v5886 = vld [vmem:[#allocation4 + $0x1e0] sm:$0xff]
    %v5887 = vld [vmem:[#allocation4 + $0x1e8] sm:$0xff]
    %v5888 = vld [vmem:[#allocation4 + $0x1f0] sm:$0xff]
    %v5889 = vld [vmem:[#allocation4 + $0x1f8] sm:$0xff]
    %v5890 = vld [vmem:[#allocation4 + $0x200] sm:$0xff]
    %v5891 = vld [vmem:[#allocation4 + $0x208] sm:$0xff]
    %v5892 = vld [vmem:[#allocation4 + $0x210] sm:$0xff]
    %v5893 = vld [vmem:[#allocation4 + $0x218] sm:$0xff]
    %v5894 = vld [vmem:[#allocation4 + $0x220] sm:$0xff]
    %v5895 = vld [vmem:[#allocation4 + $0x228] sm:$0xff]
    %v5896 = vld [vmem:[#allocation4 + $0x230] sm:$0xff]
    %v5897 = vld [vmem:[#allocation4 + $0x238] sm:$0xff]
    %v5898 = vld [vmem:[#allocation4 + $0x240] sm:$0xff]
    %v5899 = vld [vmem:[#allocation4 + $0x248] sm:$0xff]
    %v5900 = vld [vmem:[#allocation4 + $0x250] sm:$0xff]
    %v5901 = vld [vmem:[#allocation4 + $0x258] sm:$0xff]
    %v5902 = vld [vmem:[#allocation4 + $0x260] sm:$0xff]
    %v5903 = vld [vmem:[#allocation4 + $0x268] sm:$0xff]
    %v5904 = vld [vmem:[#allocation4 + $0x270] sm:$0xff]
    %v5905 = vld [vmem:[#allocation4 + $0x278] sm:$0xff]
    %v5906 = vld [vmem:[#allocation4 + $0x280] sm:$0xff]
    %v5907 = vld [vmem:[#allocation4 + $0x288] sm:$0xff]
    %v5908 = vld [vmem:[#allocation4 + $0x290] sm:$0xff]
    %v5909 = vld [vmem:[#allocation4 + $0x298] sm:$0xff]
    %v5910 = vld [vmem:[#allocation4 + $0x2a0] sm:$0xff]
    %v5911 = vld [vmem:[#allocation4 + $0x2a8] sm:$0xff]
    %v5912 = vld [vmem:[#allocation4 + $0x2b0] sm:$0xff]
    %v5913 = vld [vmem:[#allocation4 + $0x2b8] sm:$0xff]
    %v5914 = vld [vmem:[#allocation4 + $0x2c0] sm:$0xff]
    %v5915 = vld [vmem:[#allocation4 + $0x2c8] sm:$0xff]
    %v5916 = vld [vmem:[#allocation4 + $0x2d0] sm:$0xff]
    %v5917 = vld [vmem:[#allocation4 + $0x2d8] sm:$0xff]
    %v5918 = vld [vmem:[#allocation4 + $0x2e0] sm:$0xff]
    %v5919 = vld [vmem:[#allocation4 + $0x2e8] sm:$0xff]
    %v5920 = vld [vmem:[#allocation4 + $0x2f0] sm:$0xff]
    %v5921 = vld [vmem:[#allocation4 + $0x2f8] sm:$0xff]
    %v5922 = vld [vmem:[#allocation4 + $0x300] sm:$0xff]
    %v5923 = vld [vmem:[#allocation4 + $0x308] sm:$0xff]
    %v5924 = vld [vmem:[#allocation4 + $0x310] sm:$0xff]
    %v5925 = vld [vmem:[#allocation4 + $0x318] sm:$0xff]
    %v5926 = vld [vmem:[#allocation4 + $0x320] sm:$0xff]
    %v5927 = vld [vmem:[#allocation4 + $0x328] sm:$0xff]
    %v5928 = vld [vmem:[#allocation4 + $0x330] sm:$0xff]
    %v5929 = vld [vmem:[#allocation4 + $0x338] sm:$0xff]
    %v5930 = vld [vmem:[#allocation4 + $0x340] sm:$0xff]
    %v5931 = vld [vmem:[#allocation4 + $0x348] sm:$0xff]
    %v5932 = vld [vmem:[#allocation4 + $0x350] sm:$0xff]
    %v5933 = vld [vmem:[#allocation4 + $0x358] sm:$0xff]
    %v5934 = vld [vmem:[#allocation4 + $0x360] sm:$0xff]
    %v5935 = vld [vmem:[#allocation4 + $0x368] sm:$0xff]
    %v5936 = vld [vmem:[#allocation4 + $0x370] sm:$0xff]
    %v5937 = vld [vmem:[#allocation4 + $0x378] sm:$0xff]
    %v5938 = vld [vmem:[#allocation4 + $0x380] sm:$0xff]
    %v5939 = vld [vmem:[#allocation4 + $0x388] sm:$0xff]
    %v5940 = vld [vmem:[#allocation4 + $0x390] sm:$0xff]
    %v5941 = vld [vmem:[#allocation4 + $0x398] sm:$0xff]
    %v5942 = vld [vmem:[#allocation4 + $0x3a0] sm:$0xff]
    %v5943 = vld [vmem:[#allocation4 + $0x3a8] sm:$0xff]
    %v5944 = vld [vmem:[#allocation4 + $0x3b0] sm:$0xff]
    %v5945 = vld [vmem:[#allocation4 + $0x3b8] sm:$0xff]
    %v5946 = vld [vmem:[#allocation4 + $0x3c0] sm:$0xff]
    %v5947 = vld [vmem:[#allocation4 + $0x3c8] sm:$0xff]
    %v5948 = vld [vmem:[#allocation4 + $0x3d0] sm:$0xff]
    %v5949 = vld [vmem:[#allocation4 + $0x3d8] sm:$0xff]
    %v5950 = vld [vmem:[#allocation4 + $0x3e0] sm:$0xff]
    %v5951 = vld [vmem:[#allocation4 + $0x3e8] sm:$0xff]
    %v5952 = vld [vmem:[#allocation4 + $0x3f0] sm:$0xff]
    %v5953 = vld [vmem:[#allocation4 + $0x3f8] sm:$0xff]
    %v5954 = vld [vmem:[%s3] sm:$0xff]
    %v5955 = vld [vmem:[%s3 + $0x8] sm:$0xff]
    %v5956 = vld [vmem:[%s3 + $0x10] sm:$0xff]
    %v5957 = vld [vmem:[%s3 + $0x18] sm:$0xff]
    %v5958 = vld [vmem:[%s3 + $0x20] sm:$0xff]
    %v5959 = vld [vmem:[%s3 + $0x28] sm:$0xff]
    %v5960 = vld [vmem:[%s3 + $0x30] sm:$0xff]
    %v5961 = vld [vmem:[%s3 + $0x38] sm:$0xff]
    %v5962 = vld [vmem:[%s3 + $0x40] sm:$0xff]
    %v5963 = vld [vmem:[%s3 + $0x48] sm:$0xff]
    %v5964 = vld [vmem:[%s3 + $0x50] sm:$0xff]
    %v5965 = vld [vmem:[%s3 + $0x58] sm:$0xff]
    %v5966 = vld [vmem:[%s3 + $0x60] sm:$0xff]
    %v5967 = vld [vmem:[%s3 + $0x68] sm:$0xff]
    %v5968 = vld [vmem:[%s3 + $0x70] sm:$0xff]
    %v5969 = vld [vmem:[%s3 + $0x78] sm:$0xff]
    %v5970 = vld [vmem:[%s3 + $0x80] sm:$0xff]
    %v5971 = vld [vmem:[%s3 + $0x88] sm:$0xff]
    %v5972 = vld [vmem:[%s4] sm:$0x1]
    %v5974 = vlaneseq
    %v5975 = vshrl.u32 %v5974, 7
    %v5976 = vsub.s32 0, %v5975
    %v5977 = vrot.slane %v5972, %v5976
    %v5980 = vsel %vm3084, %v5827, 0
    %v5983 = vsel %vm3084, %v5829, 0
    %v5986 = vsel %vm3084, %v5831, 0
    %v5989 = vsel %vm3084, %v5833, 0
    %v5992 = vsel %vm3084, %v5835, 0
    %v5995 = vsel %vm3084, %v5837, 0
    %v5998 = vsel %vm3084, %v5839, 0
    %v6001 = vsel %vm3084, %v5841, 0
    %v6004 = vsel %vm3084, %v5843, 0
    %v6007 = vsel %vm3084, %v5845, 0
    %v6010 = vsel %vm3084, %v5847, 0
    %v6013 = vsel %vm3084, %v5849, 0
    %v6016 = vsel %vm3084, %v5851, 0
    %v6019 = vsel %vm3084, %v5853, 0
    %v6022 = vsel %vm3084, %v5855, 0
    %v6025 = vsel %vm3084, %v5857, 0
    %v6028 = vsel %vm3084, %v5859, 0
    %v6031 = vsel %vm3084, %v5861, 0
    %v6034 = vsel %vm3084, %v5863, 0
    %v6037 = vsel %vm3084, %v5865, 0
    %v6040 = vsel %vm3084, %v5867, 0
    %v6043 = vsel %vm3084, %v5869, 0
    %v6046 = vsel %vm3084, %v5871, 0
    %v6049 = vsel %vm3084, %v5873, 0
    %v6052 = vsel %vm3084, %v5875, 0
    %v6055 = vsel %vm3084, %v5877, 0
    %v6058 = vsel %vm3084, %v5879, 0
    %v6061 = vsel %vm3084, %v5881, 0
    %v6064 = vsel %vm3084, %v5883, 0
    %v6067 = vsel %vm3084, %v5885, 0
    %v6070 = vsel %vm3084, %v5887, 0
    %v6073 = vsel %vm3084, %v5889, 0
    %v6076 = vsel %vm3084, %v5891, 0
    %v6079 = vsel %vm3084, %v5893, 0
    %v6082 = vsel %vm3084, %v5895, 0
    %v6085 = vsel %vm3084, %v5897, 0
    %v6088 = vsel %vm3084, %v5899, 0
    %v6091 = vsel %vm3084, %v5901, 0
    %v6094 = vsel %vm3084, %v5903, 0
    %v6097 = vsel %vm3084, %v5905, 0
    %v6100 = vsel %vm3084, %v5907, 0
    %v6103 = vsel %vm3084, %v5909, 0
    %v6106 = vsel %vm3084, %v5911, 0
    %v6109 = vsel %vm3084, %v5913, 0
    %v6112 = vsel %vm3084, %v5915, 0
    %v6115 = vsel %vm3084, %v5917, 0
    %v6118 = vsel %vm3084, %v5919, 0
    %v6121 = vsel %vm3084, %v5921, 0
    %v6124 = vsel %vm3084, %v5923, 0
    %v6127 = vsel %vm3084, %v5925, 0
    %v6130 = vsel %vm3084, %v5927, 0
    %v6133 = vsel %vm3084, %v5929, 0
    %v6136 = vsel %vm3084, %v5931, 0
    %v6139 = vsel %vm3084, %v5933, 0
    %v6142 = vsel %vm3084, %v5935, 0
    %v6145 = vsel %vm3084, %v5937, 0
    %v6148 = vsel %vm3084, %v5939, 0
    %v6151 = vsel %vm3084, %v5941, 0
    %v6154 = vsel %vm3084, %v5943, 0
    %v6157 = vsel %vm3084, %v5945, 0
    %v6160 = vsel %vm3084, %v5947, 0
    %v6163 = vsel %vm3084, %v5949, 0
    %v6166 = vsel %vm3084, %v5951, 0
    %v6169 = vsel %vm3084, %v5953, 0
    %6171 = vmatprep.subr.mxu0 0.0
    %6172 = vmatpush1.msra.mxu0 %v5954
    %6173 = vmatprep.subr.mxu0 0.0
    %6174 = vmatpush1.msra.mxu0 %v5955
    %6175 = vmatprep.subr.mxu0 0.0
    %6176 = vmatpush1.msra.mxu0 %v5956
    %6177 = vmatprep.subr.mxu0 0.0
    %6178 = vmatpush1.msra.mxu0 %v5957
    %6179 = vmatprep.subr.mxu0 0.0
    %6180 = vmatpush1.msra.mxu0 %v5958
    %6181 = vmatprep.subr.mxu0 0.0
    %6182 = vmatpush1.msra.mxu0 %v5959
    %6183 = vmatprep.subr.mxu0 0.0
    %6184 = vmatpush1.msra.mxu0 %v5960
    %6185 = vmatprep.subr.mxu0 0.0
    %6186 = vmatpush1.msra.mxu0 %v5961
    %6187 = vmatprep.subr.mxu0 0.0
    %6188 = vmatpush1.msra.mxu0 %v5962
    %6189 = vmatprep.subr.mxu0 0.0
    %6190 = vmatpush1.msra.mxu0 %v5963
    %6191 = vmatprep.subr.mxu0 0.0
    %6192 = vmatpush1.msra.mxu0 %v5964
    %6193 = vmatprep.subr.mxu0 0.0
    %6194 = vmatpush1.msra.mxu0 %v5965
    %6195 = vmatprep.subr.mxu0 0.0
    %6196 = vmatpush1.msra.mxu0 %v5966
    %6197 = vmatprep.subr.mxu0 0.0
    %6198 = vmatpush1.msra.mxu0 %v5967
    %6199 = vmatprep.subr.mxu0 0.0
    %6200 = vmatpush1.msra.mxu0 %v5968
    %6201 = vmatprep.subr.mxu0 0.0
    %6202 = vmatpush1.msra.mxu0 %v5969
    %6203 = vmatprep.subr.mxu0 0.0
    %6204 = vmatpush1.msra.mxu0 %v5970
    %6205 = vmatprep.subr.mxu0 0.0
    %6206 = vmatpush1.msra.mxu0 %v5971
    %6207 = vmatprep.subr.mxu0 0.0
    %6208 = vmatpush1.msra.mxu0 0.0
    %6209 = vmatprep.subr.mxu0 0.0
    %6210 = vmatpush1.msra.mxu0 0.0
    %6211 = vmatprep.subr.mxu0 0.0
    %6212 = vmatpush1.msra.mxu0 0.0
    %6213 = vmatprep.subr.mxu0 0.0
    %6214 = vmatpush1.msra.mxu0 0.0
    %6215 = vmatprep.subr.mxu0 0.0
    %6216 = vmatpush1.msra.mxu0 0.0
    %6217 = vmatprep.subr.mxu0 0.0
    %6218 = vmatpush1.msra.mxu0 0.0
    %6219 = vmatprep.subr.mxu0 0.0
    %6220 = vmatpush1.msra.mxu0 0.0
    %6221 = vmatprep.subr.mxu0 0.0
    %6222 = vmatpush1.msra.mxu0 0.0
    %6223 = vmatprep.subr.mxu0 0.0
    %6224 = vmatpush1.msra.mxu0 0.0
    %6225 = vmatprep.subr.mxu0 0.0
    %6226 = vmatpush1.msra.mxu0 0.0
    %6227 = vmatprep.subr.mxu0 0.0
    %6228 = vmatpush1.msra.mxu0 0.0
    %6229 = vmatprep.subr.mxu0 0.0
    %6230 = vmatpush1.msra.mxu0 0.0
    %6231 = vmatprep.subr.mxu0 0.0
    %6232 = vmatpush1.msra.mxu0 0.0
    %6233 = vmatprep.subr.mxu0 0.0
    %6234 = vmatpush1.msra.mxu0 0.0
    %6235 = vmatprep.mubr.f32.mxu0 %v5980
    %6236 = vmatmul.mubr.f32.gmra.mrb[0].mxu0 %v5826
    %v6237 = vpop.f32.mrb[0].mxu0
    %v6238 = vadd.f32 %v5977, %v6237
    %v6239 = vpop.f32.mrb[0].mxu0
    %6240 = vmatprep.mubr.f32.mxu0 %v5983
    %6241 = vmatmul.mubr.f32.gmra.mrb[0].mxu0 %v5828
    %v6242 = vpop.f32.mrb[0].mxu0
    %v6243 = vadd.f32 %v5977, %v6242
    %v6244 = vpop.f32.mrb[0].mxu0
    %6245 = vmatprep.mubr.f32.mxu0 %v5986
    %6246 = vmatmul.mubr.f32.gmra.mrb[0].mxu0 %v5830
    %v6247 = vpop.f32.mrb[0].mxu0
    %v6248 = vadd.f32 %v5977, %v6247
    %v6249 = vpop.f32.mrb[0].mxu0
    %6250 = vmatprep.mubr.f32.mxu0 %v5989
    %6251 = vmatmul.mubr.f32.gmra.mrb[0].mxu0 %v5832
    %v6252 = vpop.f32.mrb[0].mxu0
    %v6253 = vadd.f32 %v5977, %v6252
    %v6254 = vpop.f32.mrb[0].mxu0
    %6255 = vmatprep.mubr.f32.mxu0 %v5992
    %6256 = vmatmul.mubr.f32.gmra.mrb[0].mxu0 %v5834
    %v6257 = vpop.f32.mrb[0].mxu0
    %v6258 = vadd.f32 %v5977, %v6257
    %v6259 = vpop.f32.mrb[0].mxu0
    %6260 = vmatprep.mubr.f32.mxu0 %v5995
    %6261 = vmatmul.mubr.f32.gmra.mrb[0].mxu0 %v5836
    %v6262 = vpop.f32.mrb[0].mxu0
    %v6263 = vadd.f32 %v5977, %v6262
    %v6264 = vpop.f32.mrb[0].mxu0
    %6265 = vmatprep.mubr.f32.mxu0 %v5998
    %6266 = vmatmul.mubr.f32.gmra.mrb[0].mxu0 %v5838
    %v6267 = vpop.f32.mrb[0].mxu0
    %v6268 = vadd.f32 %v5977, %v6267
    %v6269 = vpop.f32.mrb[0].mxu0
    %6270 = vmatprep.mubr.f32.mxu0 %v6001
    %6271 = vmatmul.mubr.f32.gmra.mrb[0].mxu0 %v5840
    %v6272 = vpop.f32.mrb[0].mxu0
    %v6273 = vadd.f32 %v5977, %v6272
    %v6274 = vpop.f32.mrb[0].mxu0
    %6275 = vmatprep.mubr.f32.mxu0 %v6004
    %6276 = vmatmul.mubr.f32.gmra.mrb[0].mxu0 %v5842
    %v6277 = vpop.f32.mrb[0].mxu0
    %v6278 = vadd.f32 %v5977, %v6277
    %v6279 = vpop.f32.mrb[0].mxu0
    %6280 = vmatprep.mubr.f32.mxu0 %v6007
    %6281 = vmatmul.mubr.f32.gmra.mrb[0].mxu0 %v5844
    %v6282 = vpop.f32.mrb[0].mxu0
    %v6283 = vadd.f32 %v5977, %v6282
    %v6284 = vpop.f32.mrb[0].mxu0
    %6285 = vmatprep.mubr.f32.mxu0 %v6010
    %6286 = vmatmul.mubr.f32.gmra.mrb[0].mxu0 %v5846
    %v6287 = vpop.f32.mrb[0].mxu0
    %v6288 = vadd.f32 %v5977, %v6287
    %v6289 = vpop.f32.mrb[0].mxu0
    %6290 = vmatprep.mubr.f32.mxu0 %v6013
    %6291 = vmatmul.mubr.f32.gmra.mrb[0].mxu0 %v5848
    %v6292 = vpop.f32.mrb[0].mxu0
    %v6293 = vadd.f32 %v5977, %v6292
    %v6294 = vpop.f32.mrb[0].mxu0
    %6295 = vmatprep.mubr.f32.mxu0 %v6016
    %6296 = vmatmul.mubr.f32.gmra.mrb[0].mxu0 %v5850
    %v6297 = vpop.f32.mrb[0].mxu0
    %v6298 = vadd.f32 %v5977, %v6297
    %v6299 = vpop.f32.mrb[0].mxu0
    %6300 = vmatprep.mubr.f32.mxu0 %v6019
    %6301 = vmatmul.mubr.f32.gmra.mrb[0].mxu0 %v5852
    %v6302 = vpop.f32.mrb[0].mxu0
    %v6303 = vadd.f32 %v5977, %v6302
    %v6304 = vpop.f32.mrb[0].mxu0
    %6305 = vmatprep.mubr.f32.mxu0 %v6022
    %6306 = vmatmul.mubr.f32.gmra.mrb[0].mxu0 %v5854
    %v6307 = vpop.f32.mrb[0].mxu0
    %v6308 = vadd.f32 %v5977, %v6307
    %v6309 = vpop.f32.mrb[0].mxu0
    %6310 = vmatprep.mubr.f32.mxu0 %v6025
    %6311 = vmatmul.mubr.f32.gmra.mrb[0].mxu0 %v5856
    %v6312 = vpop.f32.mrb[0].mxu0
    %v6313 = vadd.f32 %v5977, %v6312
    %v6314 = vpop.f32.mrb[0].mxu0
    %6315 = vmatprep.mubr.f32.mxu0 %v6028
    %6316 = vmatmul.mubr.f32.gmra.mrb[0].mxu0 %v5858
    %v6317 = vpop.f32.mrb[0].mxu0
    %v6318 = vadd.f32 %v5977, %v6317
    %v6319 = vpop.f32.mrb[0].mxu0
    %6320 = vmatprep.mubr.f32.mxu0 %v6031
    %6321 = vmatmul.mubr.f32.gmra.mrb[0].mxu0 %v5860
    %v6322 = vpop.f32.mrb[0].mxu0
    %v6323 = vadd.f32 %v5977, %v6322
    %v6324 = vpop.f32.mrb[0].mxu0
    %6325 = vmatprep.mubr.f32.mxu0 %v6034
    %6326 = vmatmul.mubr.f32.gmra.mrb[0].mxu0 %v5862
    %v6327 = vpop.f32.mrb[0].mxu0
    %v6328 = vadd.f32 %v5977, %v6327
    %v6329 = vpop.f32.mrb[0].mxu0
    %6330 = vmatprep.mubr.f32.mxu0 %v6037
    %6331 = vmatmul.mubr.f32.gmra.mrb[0].mxu0 %v5864
    %v6332 = vpop.f32.mrb[0].mxu0
    %v6333 = vadd.f32 %v5977, %v6332
    %v6334 = vpop.f32.mrb[0].mxu0
    %6335 = vmatprep.mubr.f32.mxu0 %v6040
    %6336 = vmatmul.mubr.f32.gmra.mrb[0].mxu0 %v5866
    %v6337 = vpop.f32.mrb[0].mxu0
    %v6338 = vadd.f32 %v5977, %v6337
    %v6339 = vpop.f32.mrb[0].mxu0
    %6340 = vmatprep.mubr.f32.mxu0 %v6043
    %6341 = vmatmul.mubr.f32.gmra.mrb[0].mxu0 %v5868
    %v6342 = vpop.f32.mrb[0].mxu0
    %v6343 = vadd.f32 %v5977, %v6342
    %v6344 = vpop.f32.mrb[0].mxu0
    %6345 = vmatprep.mubr.f32.mxu0 %v6046
    %6346 = vmatmul.mubr.f32.gmra.mrb[0].mxu0 %v5870
    %v6347 = vpop.f32.mrb[0].mxu0
    %v6348 = vadd.f32 %v5977, %v6347
    %v6349 = vpop.f32.mrb[0].mxu0
    %6350 = vmatprep.mubr.f32.mxu0 %v6049
    %6351 = vmatmul.mubr.f32.gmra.mrb[0].mxu0 %v5872
    %v6352 = vpop.f32.mrb[0].mxu0
    %v6353 = vadd.f32 %v5977, %v6352
    %v6354 = vpop.f32.mrb[0].mxu0
    %6355 = vmatprep.mubr.f32.mxu0 %v6052
    %6356 = vmatmul.mubr.f32.gmra.mrb[0].mxu0 %v5874
    %v6357 = vpop.f32.mrb[0].mxu0
    %v6358 = vadd.f32 %v5977, %v6357
    %v6359 = vpop.f32.mrb[0].mxu0
    %6360 = vmatprep.mubr.f32.mxu0 %v6055
    %6361 = vmatmul.mubr.f32.gmra.mrb[0].mxu0 %v5876
    %v6362 = vpop.f32.mrb[0].mxu0
    %v6363 = vadd.f32 %v5977, %v6362
    %v6364 = vpop.f32.mrb[0].mxu0
    %6365 = vmatprep.mubr.f32.mxu0 %v6058
    %6366 = vmatmul.mubr.f32.gmra.mrb[0].mxu0 %v5878
    %v6367 = vpop.f32.mrb[0].mxu0
    %v6368 = vadd.f32 %v5977, %v6367
    %v6369 = vpop.f32.mrb[0].mxu0
    %6370 = vmatprep.mubr.f32.mxu0 %v6061
    %6371 = vmatmul.mubr.f32.gmra.mrb[0].mxu0 %v5880
    %v6372 = vpop.f32.mrb[0].mxu0
    %v6373 = vadd.f32 %v5977, %v6372
    %v6374 = vpop.f32.mrb[0].mxu0
    %6375 = vmatprep.mubr.f32.mxu0 %v6064
    %6376 = vmatmul.mubr.f32.gmra.mrb[0].mxu0 %v5882
    %v6377 = vpop.f32.mrb[0].mxu0
    %v6378 = vadd.f32 %v5977, %v6377
    %v6379 = vpop.f32.mrb[0].mxu0
    %6380 = vmatprep.mubr.f32.mxu0 %v6067
    %6381 = vmatmul.mubr.f32.gmra.mrb[0].mxu0 %v5884
    %v6382 = vpop.f32.mrb[0].mxu0
    %v6383 = vadd.f32 %v5977, %v6382
    %v6384 = vpop.f32.mrb[0].mxu0
    %6385 = vmatprep.mubr.f32.mxu0 %v6070
    %6386 = vmatmul.mubr.f32.gmra.mrb[0].mxu0 %v5886
    %v6387 = vpop.f32.mrb[0].mxu0
    %v6388 = vadd.f32 %v5977, %v6387
    %v6389 = vpop.f32.mrb[0].mxu0
    %6390 = vmatprep.mubr.f32.mxu0 %v6073
    %6391 = vmatmul.mubr.f32.gmra.mrb[0].mxu0 %v5888
    %v6392 = vpop.f32.mrb[0].mxu0
    %v6393 = vadd.f32 %v5977, %v6392
    %v6394 = vpop.f32.mrb[0].mxu0
    %6395 = vmatprep.mubr.f32.mxu0 %v6076
    %6396 = vmatmul.mubr.f32.gmra.mrb[0].mxu0 %v5890
    %v6397 = vpop.f32.mrb[0].mxu0
    %v6398 = vadd.f32 %v5977, %v6397
    %v6399 = vpop.f32.mrb[0].mxu0
    %6400 = vmatprep.mubr.f32.mxu0 %v6079
    %6401 = vmatmul.mubr.f32.gmra.mrb[0].mxu0 %v5892
    %v6402 = vpop.f32.mrb[0].mxu0
    %v6403 = vadd.f32 %v5977, %v6402
    %v6404 = vpop.f32.mrb[0].mxu0
    %6405 = vmatprep.mubr.f32.mxu0 %v6082
    %6406 = vmatmul.mubr.f32.gmra.mrb[0].mxu0 %v5894
    %v6407 = vpop.f32.mrb[0].mxu0
    %v6408 = vadd.f32 %v5977, %v6407
    %v6409 = vpop.f32.mrb[0].mxu0
    %6410 = vmatprep.mubr.f32.mxu0 %v6085
    %6411 = vmatmul.mubr.f32.gmra.mrb[0].mxu0 %v5896
    %v6412 = vpop.f32.mrb[0].mxu0
    %v6413 = vadd.f32 %v5977, %v6412
    %v6414 = vpop.f32.mrb[0].mxu0
    %6415 = vmatprep.mubr.f32.mxu0 %v6088
    %6416 = vmatmul.mubr.f32.gmra.mrb[0].mxu0 %v5898
    %v6417 = vpop.f32.mrb[0].mxu0
    %v6418 = vadd.f32 %v5977, %v6417
    %v6419 = vpop.f32.mrb[0].mxu0
    %6420 = vmatprep.mubr.f32.mxu0 %v6091
    %6421 = vmatmul.mubr.f32.gmra.mrb[0].mxu0 %v5900
    %v6422 = vpop.f32.mrb[0].mxu0
    %v6423 = vadd.f32 %v5977, %v6422
    %v6424 = vpop.f32.mrb[0].mxu0
    %6425 = vmatprep.mubr.f32.mxu0 %v6094
    %6426 = vmatmul.mubr.f32.gmra.mrb[0].mxu0 %v5902
    %v6427 = vpop.f32.mrb[0].mxu0
    %v6428 = vadd.f32 %v5977, %v6427
    %v6429 = vpop.f32.mrb[0].mxu0
    %6430 = vmatprep.mubr.f32.mxu0 %v6097
    %6431 = vmatmul.mubr.f32.gmra.mrb[0].mxu0 %v5904
    %v6432 = vpop.f32.mrb[0].mxu0
    %v6433 = vadd.f32 %v5977, %v6432
    %v6434 = vpop.f32.mrb[0].mxu0
    %6435 = vmatprep.mubr.f32.mxu0 %v6100
    %6436 = vmatmul.mubr.f32.gmra.mrb[0].mxu0 %v5906
    %v6437 = vpop.f32.mrb[0].mxu0
    %v6438 = vadd.f32 %v5977, %v6437
    %v6439 = vpop.f32.mrb[0].mxu0
    %6440 = vmatprep.mubr.f32.mxu0 %v6103
    %6441 = vmatmul.mubr.f32.gmra.mrb[0].mxu0 %v5908
    %v6442 = vpop.f32.mrb[0].mxu0
    %v6443 = vadd.f32 %v5977, %v6442
    %v6444 = vpop.f32.mrb[0].mxu0
    %6445 = vmatprep.mubr.f32.mxu0 %v6106
    %6446 = vmatmul.mubr.f32.gmra.mrb[0].mxu0 %v5910
    %v6447 = vpop.f32.mrb[0].mxu0
    %v6448 = vadd.f32 %v5977, %v6447
    %v6449 = vpop.f32.mrb[0].mxu0
    %6450 = vmatprep.mubr.f32.mxu0 %v6109
    %6451 = vmatmul.mubr.f32.gmra.mrb[0].mxu0 %v5912
    %v6452 = vpop.f32.mrb[0].mxu0
    %v6453 = vadd.f32 %v5977, %v6452
    %v6454 = vpop.f32.mrb[0].mxu0
    %6455 = vmatprep.mubr.f32.mxu0 %v6112
    %6456 = vmatmul.mubr.f32.gmra.mrb[0].mxu0 %v5914
    %v6457 = vpop.f32.mrb[0].mxu0
    %v6458 = vadd.f32 %v5977, %v6457
    %v6459 = vpop.f32.mrb[0].mxu0
    %6460 = vmatprep.mubr.f32.mxu0 %v6115
    %6461 = vmatmul.mubr.f32.gmra.mrb[0].mxu0 %v5916
    %v6462 = vpop.f32.mrb[0].mxu0
    %v6463 = vadd.f32 %v5977, %v6462
    %v6464 = vpop.f32.mrb[0].mxu0
    %6465 = vmatprep.mubr.f32.mxu0 %v6118
    %6466 = vmatmul.mubr.f32.gmra.mrb[0].mxu0 %v5918
    %v6467 = vpop.f32.mrb[0].mxu0
    %v6468 = vadd.f32 %v5977, %v6467
    %v6469 = vpop.f32.mrb[0].mxu0
    %6470 = vmatprep.mubr.f32.mxu0 %v6121
    %6471 = vmatmul.mubr.f32.gmra.mrb[0].mxu0 %v5920
    %v6472 = vpop.f32.mrb[0].mxu0
    %v6473 = vadd.f32 %v5977, %v6472
    %v6474 = vpop.f32.mrb[0].mxu0
    %6475 = vmatprep.mubr.f32.mxu0 %v6124
    %6476 = vmatmul.mubr.f32.gmra.mrb[0].mxu0 %v5922
    %v6477 = vpop.f32.mrb[0].mxu0
    %v6478 = vadd.f32 %v5977, %v6477
    %v6479 = vpop.f32.mrb[0].mxu0
    %6480 = vmatprep.mubr.f32.mxu0 %v6127
    %6481 = vmatmul.mubr.f32.gmra.mrb[0].mxu0 %v5924
    %v6482 = vpop.f32.mrb[0].mxu0
    %v6483 = vadd.f32 %v5977, %v6482
    %v6484 = vpop.f32.mrb[0].mxu0
    %6485 = vmatprep.mubr.f32.mxu0 %v6130
    %6486 = vmatmul.mubr.f32.gmra.mrb[0].mxu0 %v5926
    %v6487 = vpop.f32.mrb[0].mxu0
    %v6488 = vadd.f32 %v5977, %v6487
    %v6489 = vpop.f32.mrb[0].mxu0
    %6490 = vmatprep.mubr.f32.mxu0 %v6133
    %6491 = vmatmul.mubr.f32.gmra.mrb[0].mxu0 %v5928
    %v6492 = vpop.f32.mrb[0].mxu0
    %v6493 = vadd.f32 %v5977, %v6492
    %v6494 = vpop.f32.mrb[0].mxu0
    %6495 = vmatprep.mubr.f32.mxu0 %v6136
    %6496 = vmatmul.mubr.f32.gmra.mrb[0].mxu0 %v5930
    %v6497 = vpop.f32.mrb[0].mxu0
    %v6498 = vadd.f32 %v5977, %v6497
    %v6499 = vpop.f32.mrb[0].mxu0
    %6500 = vmatprep.mubr.f32.mxu0 %v6139
    %6501 = vmatmul.mubr.f32.gmra.mrb[0].mxu0 %v5932
    %v6502 = vpop.f32.mrb[0].mxu0
    %v6503 = vadd.f32 %v5977, %v6502
    %v6504 = vpop.f32.mrb[0].mxu0
    %6505 = vmatprep.mubr.f32.mxu0 %v6142
    %6506 = vmatmul.mubr.f32.gmra.mrb[0].mxu0 %v5934
    %v6507 = vpop.f32.mrb[0].mxu0
    %v6508 = vadd.f32 %v5977, %v6507
    %v6509 = vpop.f32.mrb[0].mxu0
    %6510 = vmatprep.mubr.f32.mxu0 %v6145
    %6511 = vmatmul.mubr.f32.gmra.mrb[0].mxu0 %v5936
    %v6512 = vpop.f32.mrb[0].mxu0
    %v6513 = vadd.f32 %v5977, %v6512
    %v6514 = vpop.f32.mrb[0].mxu0
    %6515 = vmatprep.mubr.f32.mxu0 %v6148
    %6516 = vmatmul.mubr.f32.gmra.mrb[0].mxu0 %v5938
    %v6517 = vpop.f32.mrb[0].mxu0
    %v6518 = vadd.f32 %v5977, %v6517
    %v6519 = vpop.f32.mrb[0].mxu0
    %6520 = vmatprep.mubr.f32.mxu0 %v6151
    %6521 = vmatmul.mubr.f32.gmra.mrb[0].mxu0 %v5940
    %v6522 = vpop.f32.mrb[0].mxu0
    %v6523 = vadd.f32 %v5977, %v6522
    %v6524 = vpop.f32.mrb[0].mxu0
    %6525 = vmatprep.mubr.f32.mxu0 %v6154
    %6526 = vmatmul.mubr.f32.gmra.mrb[0].mxu0 %v5942
    %v6527 = vpop.f32.mrb[0].mxu0
    %v6528 = vadd.f32 %v5977, %v6527
    %v6529 = vpop.f32.mrb[0].mxu0
    %6530 = vmatprep.mubr.f32.mxu0 %v6157
    %6531 = vmatmul.mubr.f32.gmra.mrb[0].mxu0 %v5944
    %v6532 = vpop.f32.mrb[0].mxu0
    %v6533 = vadd.f32 %v5977, %v6532
    %v6534 = vpop.f32.mrb[0].mxu0
    %6535 = vmatprep.mubr.f32.mxu0 %v6160
    %6536 = vmatmul.mubr.f32.gmra.mrb[0].mxu0 %v5946
    %v6537 = vpop.f32.mrb[0].mxu0
    %v6538 = vadd.f32 %v5977, %v6537
    %v6539 = vpop.f32.mrb[0].mxu0
    %6540 = vmatprep.mubr.f32.mxu0 %v6163
    %6541 = vmatmul.mubr.f32.gmra.mrb[0].mxu0 %v5948
    %v6542 = vpop.f32.mrb[0].mxu0
    %v6543 = vadd.f32 %v5977, %v6542
    %v6544 = vpop.f32.mrb[0].mxu0
    %6545 = vmatprep.mubr.f32.mxu0 %v6166
    %6546 = vmatmul.mubr.f32.gmra.mrb[0].mxu0 %v5950
    %v6547 = vpop.f32.mrb[0].mxu0
    %v6548 = vadd.f32 %v5977, %v6547
    %v6549 = vpop.f32.mrb[0].mxu0
    %6550 = vmatprep.mubr.f32.mxu0 %v6169
    %6551 = vmatmul.mubr.f32.gmra.mrb[0].mxu0 %v5952
    %v6552 = vpop.f32.mrb[0].mxu0
    %v6553 = vadd.f32 %v5977, %v6552
    %v6554 = vpop.f32.mrb[0].mxu0
    %6555 = vdwg.mxu0
    %v6556 = vmax.f32 %v6238, 0.0
    %v6557 = vmax.f32 %v6243, 0.0
    %v6558 = vmax.f32 %v6248, 0.0
    %v6559 = vmax.f32 %v6253, 0.0
    %v6560 = vmax.f32 %v6258, 0.0
    %v6561 = vmax.f32 %v6263, 0.0
    %v6562 = vmax.f32 %v6268, 0.0
    %v6563 = vmax.f32 %v6273, 0.0
    %v6564 = vmax.f32 %v6278, 0.0
    %v6565 = vmax.f32 %v6283, 0.0
    %v6566 = vmax.f32 %v6288, 0.0
    %v6567 = vmax.f32 %v6293, 0.0
    %v6568 = vmax.f32 %v6298, 0.0
    %v6569 = vmax.f32 %v6303, 0.0
    %v6570 = vmax.f32 %v6308, 0.0
    %v6571 = vmax.f32 %v6313, 0.0
    %v6572 = vmax.f32 %v6318, 0.0
    %v6573 = vmax.f32 %v6323, 0.0
    %v6574 = vmax.f32 %v6328, 0.0
    %v6575 = vmax.f32 %v6333, 0.0
    %v6576 = vmax.f32 %v6338, 0.0
    %v6577 = vmax.f32 %v6343, 0.0
    %v6578 = vmax.f32 %v6348, 0.0
    %v6579 = vmax.f32 %v6353, 0.0
    %v6580 = vmax.f32 %v6358, 0.0
    %v6581 = vmax.f32 %v6363, 0.0
    %v6582 = vmax.f32 %v6368, 0.0
    %v6583 = vmax.f32 %v6373, 0.0
    %v6584 = vmax.f32 %v6378, 0.0
    %v6585 = vmax.f32 %v6383, 0.0
    %v6586 = vmax.f32 %v6388, 0.0
    %v6587 = vmax.f32 %v6393, 0.0
    %v6588 = vmax.f32 %v6398, 0.0
    %v6589 = vmax.f32 %v6403, 0.0
    %v6590 = vmax.f32 %v6408, 0.0
    %v6591 = vmax.f32 %v6413, 0.0
    %v6592 = vmax.f32 %v6418, 0.0
    %v6593 = vmax.f32 %v6423, 0.0
    %v6594 = vmax.f32 %v6428, 0.0
    %v6595 = vmax.f32 %v6433, 0.0
    %v6596 = vmax.f32 %v6438, 0.0
    %v6597 = vmax.f32 %v6443, 0.0
    %v6598 = vmax.f32 %v6448, 0.0
    %v6599 = vmax.f32 %v6453, 0.0
    %v6600 = vmax.f32 %v6458, 0.0
    %v6601 = vmax.f32 %v6463, 0.0
    %v6602 = vmax.f32 %v6468, 0.0
    %v6603 = vmax.f32 %v6473, 0.0
    %v6604 = vmax.f32 %v6478, 0.0
    %v6605 = vmax.f32 %v6483, 0.0
    %v6606 = vmax.f32 %v6488, 0.0
    %v6607 = vmax.f32 %v6493, 0.0
    %v6608 = vmax.f32 %v6498, 0.0
    %v6609 = vmax.f32 %v6503, 0.0
    %v6610 = vmax.f32 %v6508, 0.0
    %v6611 = vmax.f32 %v6513, 0.0
    %v6612 = vmax.f32 %v6518, 0.0
    %v6613 = vmax.f32 %v6523, 0.0
    %v6614 = vmax.f32 %v6528, 0.0
    %v6615 = vmax.f32 %v6533, 0.0
    %v6616 = vmax.f32 %v6538, 0.0
    %v6617 = vmax.f32 %v6543, 0.0
    %v6618 = vmax.f32 %v6548, 0.0
    %v6619 = vmax.f32 %v6553, 0.0
    %vm6620 = vcmask 261120
    %6621 = vst.msk [vmem:[#allocation5] sm:$0xff] %vm6620, %v6556
    %6622 = vst.msk [vmem:[#allocation5 + $0x8] sm:$0xff] %vm6620, %v6557
    %6623 = vst.msk [vmem:[#allocation5 + $0x10] sm:$0xff] %vm6620, %v6558
    %6624 = vst.msk [vmem:[#allocation5 + $0x18] sm:$0xff] %vm6620, %v6559
    %6625 = vst.msk [vmem:[#allocation5 + $0x20] sm:$0xff] %vm6620, %v6560
    %6626 = vst.msk [vmem:[#allocation5 + $0x28] sm:$0xff] %vm6620, %v6561
    %6627 = vst.msk [vmem:[#allocation5 + $0x30] sm:$0xff] %vm6620, %v6562
    %6628 = vst.msk [vmem:[#allocation5 + $0x38] sm:$0xff] %vm6620, %v6563
    %6629 = vst.msk [vmem:[#allocation5 + $0x40] sm:$0xff] %vm6620, %v6564
    %6630 = vst.msk [vmem:[#allocation5 + $0x48] sm:$0xff] %vm6620, %v6565
    %6631 = vst.msk [vmem:[#allocation5 + $0x50] sm:$0xff] %vm6620, %v6566
    %6632 = vst.msk [vmem:[#allocation5 + $0x58] sm:$0xff] %vm6620, %v6567
    %6633 = vst.msk [vmem:[#allocation5 + $0x60] sm:$0xff] %vm6620, %v6568
    %6634 = vst.msk [vmem:[#allocation5 + $0x68] sm:$0xff] %vm6620, %v6569
    %6635 = vst.msk [vmem:[#allocation5 + $0x70] sm:$0xff] %vm6620, %v6570
    %6636 = vst.msk [vmem:[#allocation5 + $0x78] sm:$0xff] %vm6620, %v6571
    %6637 = vst.msk [vmem:[#allocation5 + $0x80] sm:$0xff] %vm6620, %v6572
    %6638 = vst.msk [vmem:[#allocation5 + $0x88] sm:$0xff] %vm6620, %v6573
    %6639 = vst.msk [vmem:[#allocation5 + $0x90] sm:$0xff] %vm6620, %v6574
    %6640 = vst.msk [vmem:[#allocation5 + $0x98] sm:$0xff] %vm6620, %v6575
    %6641 = vst.msk [vmem:[#allocation5 + $0xa0] sm:$0xff] %vm6620, %v6576
    %6642 = vst.msk [vmem:[#allocation5 + $0xa8] sm:$0xff] %vm6620, %v6577
    %6643 = vst.msk [vmem:[#allocation5 + $0xb0] sm:$0xff] %vm6620, %v6578
    %6644 = vst.msk [vmem:[#allocation5 + $0xb8] sm:$0xff] %vm6620, %v6579
    %6645 = vst.msk [vmem:[#allocation5 + $0xc0] sm:$0xff] %vm6620, %v6580
    %6646 = vst.msk [vmem:[#allocation5 + $0xc8] sm:$0xff] %vm6620, %v6581
    %6647 = vst.msk [vmem:[#allocation5 + $0xd0] sm:$0xff] %vm6620, %v6582
    %6648 = vst.msk [vmem:[#allocation5 + $0xd8] sm:$0xff] %vm6620, %v6583
    %6649 = vst.msk [vmem:[#allocation5 + $0xe0] sm:$0xff] %vm6620, %v6584
    %6650 = vst.msk [vmem:[#allocation5 + $0xe8] sm:$0xff] %vm6620, %v6585
    %6651 = vst.msk [vmem:[#allocation5 + $0xf0] sm:$0xff] %vm6620, %v6586
    %6652 = vst.msk [vmem:[#allocation5 + $0xf8] sm:$0xff] %vm6620, %v6587
    %6653 = vst.msk [vmem:[#allocation5 + $0x100] sm:$0xff] %vm6620, %v6588
    %6654 = vst.msk [vmem:[#allocation5 + $0x108] sm:$0xff] %vm6620, %v6589
    %6655 = vst.msk [vmem:[#allocation5 + $0x110] sm:$0xff] %vm6620, %v6590
    %6656 = vst.msk [vmem:[#allocation5 + $0x118] sm:$0xff] %vm6620, %v6591
    %6657 = vst.msk [vmem:[#allocation5 + $0x120] sm:$0xff] %vm6620, %v6592
    %6658 = vst.msk [vmem:[#allocation5 + $0x128] sm:$0xff] %vm6620, %v6593
    %6659 = vst.msk [vmem:[#allocation5 + $0x130] sm:$0xff] %vm6620, %v6594
    %6660 = vst.msk [vmem:[#allocation5 + $0x138] sm:$0xff] %vm6620, %v6595
    %6661 = vst.msk [vmem:[#allocation5 + $0x140] sm:$0xff] %vm6620, %v6596
    %6662 = vst.msk [vmem:[#allocation5 + $0x148] sm:$0xff] %vm6620, %v6597
    %6663 = vst.msk [vmem:[#allocation5 + $0x150] sm:$0xff] %vm6620, %v6598
    %6664 = vst.msk [vmem:[#allocation5 + $0x158] sm:$0xff] %vm6620, %v6599
    %6665 = vst.msk [vmem:[#allocation5 + $0x160] sm:$0xff] %vm6620, %v6600
    %6666 = vst.msk [vmem:[#allocation5 + $0x168] sm:$0xff] %vm6620, %v6601
    %6667 = vst.msk [vmem:[#allocation5 + $0x170] sm:$0xff] %vm6620, %v6602
    %6668 = vst.msk [vmem:[#allocation5 + $0x178] sm:$0xff] %vm6620, %v6603
    %6669 = vst.msk [vmem:[#allocation5 + $0x180] sm:$0xff] %vm6620, %v6604
    %6670 = vst.msk [vmem:[#allocation5 + $0x188] sm:$0xff] %vm6620, %v6605
    %6671 = vst.msk [vmem:[#allocation5 + $0x190] sm:$0xff] %vm6620, %v6606
    %6672 = vst.msk [vmem:[#allocation5 + $0x198] sm:$0xff] %vm6620, %v6607
    %6673 = vst.msk [vmem:[#allocation5 + $0x1a0] sm:$0xff] %vm6620, %v6608
    %6674 = vst.msk [vmem:[#allocation5 + $0x1a8] sm:$0xff] %vm6620, %v6609
    %6675 = vst.msk [vmem:[#allocation5 + $0x1b0] sm:$0xff] %vm6620, %v6610
    %6676 = vst.msk [vmem:[#allocation5 + $0x1b8] sm:$0xff] %vm6620, %v6611
    %6677 = vst.msk [vmem:[#allocation5 + $0x1c0] sm:$0xff] %vm6620, %v6612
    %6678 = vst.msk [vmem:[#allocation5 + $0x1c8] sm:$0xff] %vm6620, %v6613
    %6679 = vst.msk [vmem:[#allocation5 + $0x1d0] sm:$0xff] %vm6620, %v6614
    %6680 = vst.msk [vmem:[#allocation5 + $0x1d8] sm:$0xff] %vm6620, %v6615
    %6681 = vst.msk [vmem:[#allocation5 + $0x1e0] sm:$0xff] %vm6620, %v6616
    %6682 = vst.msk [vmem:[#allocation5 + $0x1e8] sm:$0xff] %vm6620, %v6617
    %6683 = vst.msk [vmem:[#allocation5 + $0x1f0] sm:$0xff] %vm6620, %v6618
    %6684 = vst.msk [vmem:[#allocation5 + $0x1f8] sm:$0xff] %vm6620, %v6619
    %v6685 = vld [vmem:[#allocation5] ss:$2 sm:$0xff]
    %s6686 = scalar_lea.vmem [#allocation5], 16
    %v6687 = vld [vmem:[%s6686] ss:$2 sm:$0xff]
    %s6688 = scalar_lea.vmem [#allocation5], 32
    %v6689 = vld [vmem:[%s6688] ss:$2 sm:$0xff]
    %s6690 = scalar_lea.vmem [#allocation5], 48
    %v6691 = vld [vmem:[%s6690] ss:$2 sm:$0xff]
    %s6692 = scalar_lea.vmem [#allocation5], 64
    %v6693 = vld [vmem:[%s6692] ss:$2 sm:$0xff]
    %s6694 = scalar_lea.vmem [#allocation5], 80
    %v6695 = vld [vmem:[%s6694] ss:$2 sm:$0xff]
    %s6696 = scalar_lea.vmem [#allocation5], 96
    %v6697 = vld [vmem:[%s6696] ss:$2 sm:$0xff]
    %s6698 = scalar_lea.vmem [#allocation5], 112
    %v6699 = vld [vmem:[%s6698] ss:$2 sm:$0xff]
    %s6700 = scalar_lea.vmem [#allocation5], 128
    %v6701 = vld [vmem:[%s6700] ss:$2 sm:$0xff]
    %s6702 = scalar_lea.vmem [#allocation5], 144
    %v6703 = vld [vmem:[%s6702] ss:$2 sm:$0xff]
    %s6704 = scalar_lea.vmem [#allocation5], 160
    %v6705 = vld [vmem:[%s6704] ss:$2 sm:$0xff]
    %s6706 = scalar_lea.vmem [#allocation5], 176
    %v6707 = vld [vmem:[%s6706] ss:$2 sm:$0xff]
    %s6708 = scalar_lea.vmem [#allocation5], 192
    %v6709 = vld [vmem:[%s6708] ss:$2 sm:$0xff]
    %s6710 = scalar_lea.vmem [#allocation5], 208
    %v6711 = vld [vmem:[%s6710] ss:$2 sm:$0xff]
    %s6712 = scalar_lea.vmem [#allocation5], 224
    %v6713 = vld [vmem:[%s6712] ss:$2 sm:$0xff]
    %s6714 = scalar_lea.vmem [#allocation5], 240
    %v6715 = vld [vmem:[%s6714] ss:$2 sm:$0xff]
    %s6716 = scalar_lea.vmem [#allocation5], 256
    %v6717 = vld [vmem:[%s6716] ss:$2 sm:$0xff]
    %s6718 = scalar_lea.vmem [#allocation5], 272
    %v6719 = vld [vmem:[%s6718] ss:$2 sm:$0xff]
    %s6720 = scalar_lea.vmem [#allocation5], 288
    %v6721 = vld [vmem:[%s6720] ss:$2 sm:$0xff]
    %s6722 = scalar_lea.vmem [#allocation5], 304
    %v6723 = vld [vmem:[%s6722] ss:$2 sm:$0xff]
    %s6724 = scalar_lea.vmem [#allocation5], 320
    %v6725 = vld [vmem:[%s6724] ss:$2 sm:$0xff]
    %s6726 = scalar_lea.vmem [#allocation5], 336
    %v6727 = vld [vmem:[%s6726] ss:$2 sm:$0xff]
    %s6728 = scalar_lea.vmem [#allocation5], 352
    %v6729 = vld [vmem:[%s6728] ss:$2 sm:$0xff]
    %s6730 = scalar_lea.vmem [#allocation5], 368
    %v6731 = vld [vmem:[%s6730] ss:$2 sm:$0xff]
    %s6732 = scalar_lea.vmem [#allocation5], 384
    %v6733 = vld [vmem:[%s6732] ss:$2 sm:$0xff]
    %s6734 = scalar_lea.vmem [#allocation5], 400
    %v6735 = vld [vmem:[%s6734] ss:$2 sm:$0xff]
    %s6736 = scalar_lea.vmem [#allocation5], 416
    %v6737 = vld [vmem:[%s6736] ss:$2 sm:$0xff]
    %s6738 = scalar_lea.vmem [#allocation5], 432
    %v6739 = vld [vmem:[%s6738] ss:$2 sm:$0xff]
    %s6740 = scalar_lea.vmem [#allocation5], 448
    %v6741 = vld [vmem:[%s6740] ss:$2 sm:$0xff]
    %s6742 = scalar_lea.vmem [#allocation5], 464
    %v6743 = vld [vmem:[%s6742] ss:$2 sm:$0xff]
    %s6744 = scalar_lea.vmem [#allocation5], 480
    %v6745 = vld [vmem:[%s6744] ss:$2 sm:$0xff]
    %s6746 = scalar_lea.vmem [#allocation5], 496
    %v6747 = vld [vmem:[%s6746] ss:$2 sm:$0xff]
    %s6748 = scalar_lea.vmem [#allocation5], 1
    %v6749 = vld [vmem:[%s6748] ss:$2 sm:$0xff]
    %s6750 = scalar_lea.vmem [#allocation5], 17
    %v6751 = vld [vmem:[%s6750] ss:$2 sm:$0xff]
    %s6752 = scalar_lea.vmem [#allocation5], 33
    %v6753 = vld [vmem:[%s6752] ss:$2 sm:$0xff]
    %s6754 = scalar_lea.vmem [#allocation5], 49
    %v6755 = vld [vmem:[%s6754] ss:$2 sm:$0xff]
    %s6756 = scalar_lea.vmem [#allocation5], 65
    %v6757 = vld [vmem:[%s6756] ss:$2 sm:$0xff]
    %s6758 = scalar_lea.vmem [#allocation5], 81
    %v6759 = vld [vmem:[%s6758] ss:$2 sm:$0xff]
    %s6760 = scalar_lea.vmem [#allocation5], 97
    %v6761 = vld [vmem:[%s6760] ss:$2 sm:$0xff]
    %s6762 = scalar_lea.vmem [#allocation5], 113
    %v6763 = vld [vmem:[%s6762] ss:$2 sm:$0xff]
    %s6764 = scalar_lea.vmem [#allocation5], 129
    %v6765 = vld [vmem:[%s6764] ss:$2 sm:$0xff]
    %s6766 = scalar_lea.vmem [#allocation5], 145
    %v6767 = vld [vmem:[%s6766] ss:$2 sm:$0xff]
    %s6768 = scalar_lea.vmem [#allocation5], 161
    %v6769 = vld [vmem:[%s6768] ss:$2 sm:$0xff]
    %s6770 = scalar_lea.vmem [#allocation5], 177
    %v6771 = vld [vmem:[%s6770] ss:$2 sm:$0xff]
    %s6772 = scalar_lea.vmem [#allocation5], 193
    %v6773 = vld [vmem:[%s6772] ss:$2 sm:$0xff]
    %s6774 = scalar_lea.vmem [#allocation5], 209
    %v6775 = vld [vmem:[%s6774] ss:$2 sm:$0xff]
    %s6776 = scalar_lea.vmem [#allocation5], 225
    %v6777 = vld [vmem:[%s6776] ss:$2 sm:$0xff]
    %s6778 = scalar_lea.vmem [#allocation5], 241
    %v6779 = vld [vmem:[%s6778] ss:$2 sm:$0xff]
    %s6780 = scalar_lea.vmem [#allocation5], 257
    %v6781 = vld [vmem:[%s6780] ss:$2 sm:$0xff]
    %s6782 = scalar_lea.vmem [#allocation5], 273
    %v6783 = vld [vmem:[%s6782] ss:$2 sm:$0xff]
    %s6784 = scalar_lea.vmem [#allocation5], 289
    %v6785 = vld [vmem:[%s6784] ss:$2 sm:$0xff]
    %s6786 = scalar_lea.vmem [#allocation5], 305
    %v6787 = vld [vmem:[%s6786] ss:$2 sm:$0xff]
    %s6788 = scalar_lea.vmem [#allocation5], 321
    %v6789 = vld [vmem:[%s6788] ss:$2 sm:$0xff]
    %s6790 = scalar_lea.vmem [#allocation5], 337
    %v6791 = vld [vmem:[%s6790] ss:$2 sm:$0xff]
    %s6792 = scalar_lea.vmem [#allocation5], 353
    %v6793 = vld [vmem:[%s6792] ss:$2 sm:$0xff]
    %s6794 = scalar_lea.vmem [#allocation5], 369
    %v6795 = vld [vmem:[%s6794] ss:$2 sm:$0xff]
    %s6796 = scalar_lea.vmem [#allocation5], 385
    %v6797 = vld [vmem:[%s6796] ss:$2 sm:$0xff]
    %s6798 = scalar_lea.vmem [#allocation5], 401
    %v6799 = vld [vmem:[%s6798] ss:$2 sm:$0xff]
    %s6800 = scalar_lea.vmem [#allocation5], 417
    %v6801 = vld [vmem:[%s6800] ss:$2 sm:$0xff]
    %s6802 = scalar_lea.vmem [#allocation5], 433
    %v6803 = vld [vmem:[%s6802] ss:$2 sm:$0xff]
    %s6804 = scalar_lea.vmem [#allocation5], 449
    %v6805 = vld [vmem:[%s6804] ss:$2 sm:$0xff]
    %s6806 = scalar_lea.vmem [#allocation5], 465
    %v6807 = vld [vmem:[%s6806] ss:$2 sm:$0xff]
    %s6808 = scalar_lea.vmem [#allocation5], 481
    %v6809 = vld [vmem:[%s6808] ss:$2 sm:$0xff]
    %s6810 = scalar_lea.vmem [#allocation5], 497
    %v6811 = vld [vmem:[%s6810] ss:$2 sm:$0xff]
    %v6812 = vmax.f32 %v6685, %v6749
    %v6813 = vmax.f32 %v6687, %v6751
    %v6814 = vmax.f32 %v6689, %v6753
    %v6815 = vmax.f32 %v6691, %v6755
    %v6816 = vmax.f32 %v6693, %v6757
    %v6817 = vmax.f32 %v6695, %v6759
    %v6818 = vmax.f32 %v6697, %v6761
    %v6819 = vmax.f32 %v6699, %v6763
    %v6820 = vmax.f32 %v6701, %v6765
    %v6821 = vmax.f32 %v6703, %v6767
    %v6822 = vmax.f32 %v6705, %v6769
    %v6823 = vmax.f32 %v6707, %v6771
    %v6824 = vmax.f32 %v6709, %v6773
    %v6825 = vmax.f32 %v6711, %v6775
    %v6826 = vmax.f32 %v6713, %v6777
    %v6827 = vmax.f32 %v6715, %v6779
    %v6828 = vmax.f32 %v6717, %v6781
    %v6829 = vmax.f32 %v6719, %v6783
    %v6830 = vmax.f32 %v6721, %v6785
    %v6831 = vmax.f32 %v6723, %v6787
    %v6832 = vmax.f32 %v6725, %v6789
    %v6833 = vmax.f32 %v6727, %v6791
    %v6834 = vmax.f32 %v6729, %v6793
    %v6835 = vmax.f32 %v6731, %v6795
    %v6836 = vmax.f32 %v6733, %v6797
    %v6837 = vmax.f32 %v6735, %v6799
    %v6838 = vmax.f32 %v6737, %v6801
    %v6839 = vmax.f32 %v6739, %v6803
    %v6840 = vmax.f32 %v6741, %v6805
    %v6841 = vmax.f32 %v6743, %v6807
    %v6842 = vmax.f32 %v6745, %v6809
    %v6843 = vmax.f32 %v6747, %v6811
    %v6844 = vmax.f32 %v6812, %v6813
    %v6845 = vmax.f32 %v6814, %v6815
    %v6846 = vmax.f32 %v6816, %v6817
    %v6847 = vmax.f32 %v6818, %v6819
    %v6848 = vmax.f32 %v6820, %v6821
    %v6849 = vmax.f32 %v6822, %v6823
    %v6850 = vmax.f32 %v6824, %v6825
    %v6851 = vmax.f32 %v6826, %v6827
    %v6852 = vmax.f32 %v6828, %v6829
    %v6853 = vmax.f32 %v6830, %v6831
    %v6854 = vmax.f32 %v6832, %v6833
    %v6855 = vmax.f32 %v6834, %v6835
    %v6856 = vmax.f32 %v6836, %v6837
    %v6857 = vmax.f32 %v6838, %v6839
    %v6858 = vmax.f32 %v6840, %v6841
    %v6859 = vmax.f32 %v6842, %v6843
    %v6860 = vsel %vm6620, %v6844, 0.0
    %v6861 = vsel %vm6620, %v6845, 0.0
    %v6862 = vadd.f32 %v6860, %v6861
    %v6863 = vsel %vm6620, %v6846, 0.0
    %v6864 = vadd.f32 %v6862, %v6863
    %v6865 = vsel %vm6620, %v6847, 0.0
    %v6866 = vadd.f32 %v6864, %v6865
    %v6867 = vsel %vm6620, %v6848, 0.0
    %v6868 = vadd.f32 %v6866, %v6867
    %v6869 = vsel %vm6620, %v6849, 0.0
    %v6870 = vadd.f32 %v6868, %v6869
    %v6871 = vsel %vm6620, %v6850, 0.0
    %v6872 = vadd.f32 %v6870, %v6871
    %v6873 = vsel %vm6620, %v6851, 0.0
    %v6874 = vadd.f32 %v6872, %v6873
    %v6875 = vsel %vm6620, %v6852, 0.0
    %v6876 = vadd.f32 %v6874, %v6875
    %v6877 = vsel %vm6620, %v6853, 0.0
    %v6878 = vadd.f32 %v6876, %v6877
    %v6879 = vsel %vm6620, %v6854, 0.0
    %v6880 = vadd.f32 %v6878, %v6879
    %v6881 = vsel %vm6620, %v6855, 0.0
    %v6882 = vadd.f32 %v6880, %v6881
    %v6883 = vsel %vm6620, %v6856, 0.0
    %v6884 = vadd.f32 %v6882, %v6883
    %v6885 = vsel %vm6620, %v6857, 0.0
    %v6886 = vadd.f32 %v6884, %v6885
    %v6887 = vsel %vm6620, %v6858, 0.0
    %v6888 = vadd.f32 %v6886, %v6887
    %v6889 = vsel %vm6620, %v6859, 0.0
    %v6890 = vadd.f32 %v6888, %v6889
    %v6891 = vrot.slane %v6890, 4
    %v6892 = vadd.f32 %v6890, %v6891
    %v6893 = vrot.slane %v6892, 2
    %v6894 = vadd.f32 %v6892, %v6893
    %v6895 = vrot.slane %v6894, 1
    %v6896 = vadd.f32 %v6894, %v6895
    %v6897 = vrcp.pop 128.0
    %v6898 = vmul.f32 %v6896, %v6897
    %v6899 = vsub.f32 %v6844, %v6898
    %v6900 = vsub.f32 %v6845, %v6898
    %v6901 = vsub.f32 %v6846, %v6898
    %v6902 = vsub.f32 %v6847, %v6898
    %v6903 = vsub.f32 %v6848, %v6898
    %v6904 = vsub.f32 %v6849, %v6898
    %v6905 = vsub.f32 %v6850, %v6898
    %v6906 = vsub.f32 %v6851, %v6898
    %v6907 = vsub.f32 %v6852, %v6898
    %v6908 = vsub.f32 %v6853, %v6898
    %v6909 = vsub.f32 %v6854, %v6898
    %v6910 = vsub.f32 %v6855, %v6898
    %v6911 = vsub.f32 %v6856, %v6898
    %v6912 = vsub.f32 %v6857, %v6898
    %v6913 = vsub.f32 %v6858, %v6898
    %v6914 = vsub.f32 %v6859, %v6898
    %v6915 = vmul.f32 %v6899, %v6899
    %v6916 = vmul.f32 %v6900, %v6900
    %v6917 = vmul.f32 %v6901, %v6901
    %v6918 = vmul.f32 %v6902, %v6902
    %v6919 = vmul.f32 %v6903, %v6903
    %v6920 = vmul.f32 %v6904, %v6904
    %v6921 = vmul.f32 %v6905, %v6905
    %v6922 = vmul.f32 %v6906, %v6906
    %v6923 = vmul.f32 %v6907, %v6907
    %v6924 = vmul.f32 %v6908, %v6908
    %v6925 = vmul.f32 %v6909, %v6909
    %v6926 = vmul.f32 %v6910, %v6910
    %v6927 = vmul.f32 %v6911, %v6911
    %v6928 = vmul.f32 %v6912, %v6912
    %v6929 = vmul.f32 %v6913, %v6913
    %v6930 = vmul.f32 %v6914, %v6914
    %v6931 = vsel %vm6620, %v6915, 0.0
    %v6932 = vsel %vm6620, %v6916, 0.0
    %v6933 = vadd.f32 %v6931, %v6932
    %v6934 = vsel %vm6620, %v6917, 0.0
    %v6935 = vadd.f32 %v6933, %v6934
    %v6936 = vsel %vm6620, %v6918, 0.0
    %v6937 = vadd.f32 %v6935, %v6936
    %v6938 = vsel %vm6620, %v6919, 0.0
    %v6939 = vadd.f32 %v6937, %v6938
    %v6940 = vsel %vm6620, %v6920, 0.0
    %v6941 = vadd.f32 %v6939, %v6940
    %v6942 = vsel %vm6620, %v6921, 0.0
    %v6943 = vadd.f32 %v6941, %v6942
    %v6944 = vsel %vm6620, %v6922, 0.0
    %v6945 = vadd.f32 %v6943, %v6944
    %v6946 = vsel %vm6620, %v6923, 0.0
    %v6947 = vadd.f32 %v6945, %v6946
    %v6948 = vsel %vm6620, %v6924, 0.0
    %v6949 = vadd.f32 %v6947, %v6948
    %v6950 = vsel %vm6620, %v6925, 0.0
    %v6951 = vadd.f32 %v6949, %v6950
    %v6952 = vsel %vm6620, %v6926, 0.0
    %v6953 = vadd.f32 %v6951, %v6952
    %v6954 = vsel %vm6620, %v6927, 0.0
    %v6955 = vadd.f32 %v6953, %v6954
    %v6956 = vsel %vm6620, %v6928, 0.0
    %v6957 = vadd.f32 %v6955, %v6956
    %v6958 = vsel %vm6620, %v6929, 0.0
    %v6959 = vadd.f32 %v6957, %v6958
    %v6960 = vsel %vm6620, %v6930, 0.0
    %v6961 = vadd.f32 %v6959, %v6960
    %v6962 = vrot.slane %v6961, 4
    %v6963 = vadd.f32 %v6961, %v6962
    %v6964 = vrot.slane %v6963, 2
    %v6965 = vadd.f32 %v6963, %v6964
    %v6966 = vrot.slane %v6965, 1
    %v6967 = vadd.f32 %v6965, %v6966
    %v6968 = vmul.f32 %v6967, %v6897
    %v6969 = vadd.f32 %v6968, 1e-05
    %v6970 = vrsqrt.pop %v6969
    %v6971 = vmul.f32 %v6899, %v6970
    %v6972 = vmul.f32 %v6900, %v6970
    %v6973 = vmul.f32 %v6901, %v6970
    %v6974 = vmul.f32 %v6902, %v6970
    %v6975 = vmul.f32 %v6903, %v6970
    %v6976 = vmul.f32 %v6904, %v6970
    %v6977 = vmul.f32 %v6905, %v6970
    %v6978 = vmul.f32 %v6906, %v6970
    %v6979 = vmul.f32 %v6907, %v6970
    %v6980 = vmul.f32 %v6908, %v6970
    %v6981 = vmul.f32 %v6909, %v6970
    %v6982 = vmul.f32 %v6910, %v6970
    %v6983 = vmul.f32 %v6911, %v6970
    %v6984 = vmul.f32 %v6912, %v6970
    %v6985 = vmul.f32 %v6913, %v6970
    %v6986 = vmul.f32 %v6914, %v6970
    %v6987 = vld [vmem:[%s5] sm:$0x1]
    %v6989 = vlaneseq
    %v6990 = vshrl.u32 %v6989, 7
    %v6991 = vsub.s32 0, %v6990
    %v6992 = vrot.slane %v6987, %v6991
    %v6994 = vmul.f32 %v6971, %v6992
    %v6995 = vmul.f32 %v6972, %v6992
    %v6996 = vmul.f32 %v6973, %v6992
    %v6997 = vmul.f32 %v6974, %v6992
    %v6998 = vmul.f32 %v6975, %v6992
    %v6999 = vmul.f32 %v6976, %v6992
    %v7000 = vmul.f32 %v6977, %v6992
    %v7001 = vmul.f32 %v6978, %v6992
    %v7002 = vmul.f32 %v6979, %v6992
    %v7003 = vmul.f32 %v6980, %v6992
    %v7004 = vmul.f32 %v6981, %v6992
    %v7005 = vmul.f32 %v6982, %v6992
    %v7006 = vmul.f32 %v6983, %v6992
    %v7007 = vmul.f32 %v6984, %v6992
    %v7008 = vmul.f32 %v6985, %v6992
    %v7009 = vmul.f32 %v6986, %v6992
    %v7010 = vld [vmem:[%s6] sm:$0x1]
    %v7012 = vlaneseq
    %v7013 = vshrl.u32 %v7012, 7
    %v7014 = vsub.s32 0, %v7013
    %v7015 = vrot.slane %v7010, %v7014
    %v7017 = vadd.f32 %v6994, %v7015
    %v7018 = vadd.f32 %v6995, %v7015
    %v7019 = vadd.f32 %v6996, %v7015
    %v7020 = vadd.f32 %v6997, %v7015
    %v7021 = vadd.f32 %v6998, %v7015
    %v7022 = vadd.f32 %v6999, %v7015
    %v7023 = vadd.f32 %v7000, %v7015
    %v7024 = vadd.f32 %v7001, %v7015
    %v7025 = vadd.f32 %v7002, %v7015
    %v7026 = vadd.f32 %v7003, %v7015
    %v7027 = vadd.f32 %v7004, %v7015
    %v7028 = vadd.f32 %v7005, %v7015
    %v7029 = vadd.f32 %v7006, %v7015
    %v7030 = vadd.f32 %v7007, %v7015
    %v7031 = vadd.f32 %v7008, %v7015
    %v7032 = vadd.f32 %v7009, %v7015
    %v7033 = vld [vmem:[%s7] sm:$0xff]
    %v7034 = vld [vmem:[%s7 + $0x8] sm:$0xff]
    %v7035 = vld [vmem:[%s7 + $0x10] sm:$0xff]
    %v7036 = vld [vmem:[%s7 + $0x18] sm:$0xff]
    %v7037 = vld [vmem:[%s7 + $0x20] sm:$0xff]
    %v7038 = vld [vmem:[%s7 + $0x28] sm:$0xff]
    %v7039 = vld [vmem:[%s7 + $0x30] sm:$0x3]
    %7040 = vmatprep.subr.mxu0 0.0
    %7041 = vmatpush1.msra.mxu0 %v7017
    %7042 = vmatprep.subr.mxu0 0.0
    %7043 = vmatpush1.msra.mxu0 %v7018
    %7044 = vmatprep.subr.mxu0 0.0
    %7045 = vmatpush1.msra.mxu0 %v7019
    %7046 = vmatprep.subr.mxu0 0.0
    %7047 = vmatpush1.msra.mxu0 %v7020
    %7048 = vmatprep.subr.mxu0 0.0
    %7049 = vmatpush1.msra.mxu0 %v7021
    %7050 = vmatprep.subr.mxu0 0.0
    %7051 = vmatpush1.msra.mxu0 %v7022
    %7052 = vmatprep.subr.mxu0 0.0
    %7053 = vmatpush1.msra.mxu0 %v7023
    %7054 = vmatprep.subr.mxu0 0.0
    %7055 = vmatpush1.msra.mxu0 %v7024
    %7056 = vmatprep.subr.mxu0 0.0
    %7057 = vmatpush1.msra.mxu0 %v7025
    %7058 = vmatprep.subr.mxu0 0.0
    %7059 = vmatpush1.msra.mxu0 %v7026
    %7060 = vmatprep.subr.mxu0 0.0
    %7061 = vmatpush1.msra.mxu0 %v7027
    %7062 = vmatprep.subr.mxu0 0.0
    %7063 = vmatpush1.msra.mxu0 %v7028
    %7064 = vmatprep.subr.mxu0 0.0
    %7065 = vmatpush1.msra.mxu0 %v7029
    %7066 = vmatprep.subr.mxu0 0.0
    %7067 = vmatpush1.msra.mxu0 %v7030
    %7068 = vmatprep.subr.mxu0 0.0
    %7069 = vmatpush1.msra.mxu0 %v7031
    %7070 = vmatprep.subr.mxu0 0.0
    %7071 = vmatpush1.msra.mxu0 %v7032
    %7072 = vmatprep.subr.mxu0 0.0
    %7073 = vmatpush1.msra.mxu0 0.0
    %7074 = vmatprep.subr.mxu0 0.0
    %7075 = vmatpush1.msra.mxu0 0.0
    %7076 = vmatprep.subr.mxu0 0.0
    %7077 = vmatpush1.msra.mxu0 0.0
    %7078 = vmatprep.subr.mxu0 0.0
    %7079 = vmatpush1.msra.mxu0 0.0
    %7080 = vmatprep.subr.mxu0 0.0
    %7081 = vmatpush1.msra.mxu0 0.0
    %7082 = vmatprep.subr.mxu0 0.0
    %7083 = vmatpush1.msra.mxu0 0.0
    %7084 = vmatprep.subr.mxu0 0.0
    %7085 = vmatpush1.msra.mxu0 0.0
    %7086 = vmatprep.subr.mxu0 0.0
    %7087 = vmatpush1.msra.mxu0 0.0
    %7088 = vmatprep.subr.mxu0 0.0
    %7089 = vmatpush1.msra.mxu0 0.0
    %7090 = vmatprep.subr.mxu0 0.0
    %7091 = vmatpush1.msra.mxu0 0.0
    %7092 = vmatprep.subr.mxu0 0.0
    %7093 = vmatpush1.msra.mxu0 0.0
    %7094 = vmatprep.subr.mxu0 0.0
    %7095 = vmatpush1.msra.mxu0 0.0
    %7096 = vmatprep.subr.mxu0 0.0
    %7097 = vmatpush1.msra.mxu0 0.0
    %7098 = vmatprep.subr.mxu0 0.0
    %7099 = vmatpush1.msra.mxu0 0.0
    %7100 = vmatprep.subr.mxu0 0.0
    %7101 = vmatpush1.msra.mxu0 0.0
    %7102 = vmatprep.subr.mxu0 0.0
    %7103 = vmatpush1.msra.mxu0 0.0
    %7104 = vmatprep.mubr.f32.mxu0 0.0
    %7105 = vmatmul.mubr.f32.gmra.mrb[0].mxu0 %v7033
    %v7106 = vpop.f32.mrb[0].mxu0
    %v7107 = vadd.f32 0.0, %v7106
    %v7108 = vpop.f32.mrb[0].mxu0
    %7109 = vmatprep.mubr.f32.mxu0 0.0
    %7110 = vmatmul.mubr.f32.gmra.mrb[0].mxu0 %v7034
    %v7111 = vpop.f32.mrb[0].mxu0
    %v7112 = vadd.f32 0.0, %v7111
    %v7113 = vpop.f32.mrb[0].mxu0
    %7114 = vmatprep.mubr.f32.mxu0 0.0
    %7115 = vmatmul.mubr.f32.gmra.mrb[0].mxu0 %v7035
    %v7116 = vpop.f32.mrb[0].mxu0
    %v7117 = vadd.f32 0.0, %v7116
    %v7118 = vpop.f32.mrb[0].mxu0
    %7119 = vmatprep.mubr.f32.mxu0 0.0
    %7120 = vmatmul.mubr.f32.gmra.mrb[0].mxu0 %v7036
    %v7121 = vpop.f32.mrb[0].mxu0
    %v7122 = vadd.f32 0.0, %v7121
    %v7123 = vpop.f32.mrb[0].mxu0
    %7124 = vmatprep.mubr.f32.mxu0 0.0
    %7125 = vmatmul.mubr.f32.gmra.mrb[0].mxu0 %v7037
    %v7126 = vpop.f32.mrb[0].mxu0
    %v7127 = vadd.f32 0.0, %v7126
    %v7128 = vpop.f32.mrb[0].mxu0
    %7129 = vmatprep.mubr.f32.mxu0 0.0
    %7130 = vmatmul.mubr.f32.gmra.mrb[0].mxu0 %v7038
    %v7131 = vpop.f32.mrb[0].mxu0
    %v7132 = vadd.f32 0.0, %v7131
    %v7133 = vpop.f32.mrb[0].mxu0
    %7134 = vmatprep.mubr.f32.mxu0 0.0
    %7135 = vmatmul.mubr.f32.gmra.mrb[0].mxu0 %v7039
    %v7136 = vpop.f32.mrb[0].mxu0
    %v7137 = vadd.f32 0.0, %v7136
    %v7138 = vpop.f32.mrb[0].mxu0
    %7139 = vdwg.mxu0
    %7140 = vst.msk [vmem:[#allocation6] sm:$0xff] %vm6620, %v7107
    %7141 = vst.msk [vmem:[#allocation6 + $0x8] sm:$0xff] %vm6620, %v7112
    %7142 = vst.msk [vmem:[#allocation6 + $0x10] sm:$0xff] %vm6620, %v7117
    %7143 = vst.msk [vmem:[#allocation6 + $0x18] sm:$0xff] %vm6620, %v7122
    %7144 = vst.msk [vmem:[#allocation6 + $0x20] sm:$0xff] %vm6620, %v7127
    %7145 = vst.msk [vmem:[#allocation6 + $0x28] sm:$0xff] %vm6620, %v7132
    %vm7146 = vcmask 254976
    %7147 = vst.msk [vmem:[#allocation6 + $0x30] sm:$0x3] %vm7146, %v7137
    %v7148 = vld [vmem:[#allocation6] sm:$0x3]
    %7149 = vst.msk [vmem:[#allocation7] sm:$0x3] %vm7146, %v7148
    %v7150 = vld [vmem:[#allocation6 + $0x2] sm:$0x3]
    %v7153 = vunpack.c.l.s4 1983009808
    %v7154 = vunpack.c.0.s8 %v7153
    %v7155 = vlaneseq
    %v7156 = vshrl.u32 %v7155, 7
    %v7157 = vsub.s32 %v7154, %v7156
    %v7158 = vrot.slane %v7150, %v7157
    %7159 = vrot.lane.b32.xlu0 %v7158, 32
    %v7160 = vpop.permute.xlu0 %7159
    %vm7162 = vcmask 517376
    %7163 = vst.msk [vmem:[#allocation7] sm:$0x3] %vm7162, %v7160
    %v7164 = vld [vmem:[#allocation6 + $0x4] sm:$0x3]
    %v7167 = vunpack.c.l.s4 1983009808
    %v7168 = vunpack.c.0.s8 %v7167
    %v7169 = vlaneseq
    %v7170 = vshrl.u32 %v7169, 7
    %v7171 = vsub.s32 %v7168, %v7170
    %v7172 = vrot.slane %v7164, %v7171
    %7173 = vrot.lane.b32.xlu0 %v7172, 64
    %v7174 = vpop.permute.xlu0 %7173
    %vm7176 = vcmask 779776
    %7177 = vst.msk [vmem:[#allocation7] sm:$0x3] %vm7176, %v7174
    %v7178 = vld [vmem:[#allocation6 + $0x6] sm:$0x3]
    %v7181 = vunpack.c.l.s4 1983009808
    %v7182 = vunpack.c.0.s8 %v7181
    %v7183 = vlaneseq
    %v7184 = vshrl.u32 %v7183, 7
    %v7185 = vsub.s32 %v7182, %v7184
    %v7186 = vrot.slane %v7178, %v7185
    %7187 = vrot.lane.b32.xlu0 %v7186, 96
    %v7188 = vpop.permute.xlu0 %7187
    %vm7190 = vcmask 1042176
    %7191 = vst.msk [vmem:[#allocation7] sm:$0x3] %vm7190, %v7188
    %v7192 = vld [vmem:[#allocation6 + $0x8] sm:$0x3]
    %7193 = vst.msk [vmem:[#allocation7 + $0x2] sm:$0x3] %vm7146, %v7192
    %v7194 = vld [vmem:[#allocation6 + $0xa] sm:$0x3]
    %v7197 = vunpack.c.l.s4 1983009808
    %v7198 = vunpack.c.0.s8 %v7197
    %v7199 = vlaneseq
    %v7200 = vshrl.u32 %v7199, 7
    %v7201 = vsub.s32 %v7198, %v7200
    %v7202 = vrot.slane %v7194, %v7201
    %7203 = vrot.lane.b32.xlu0 %v7202, 32
    %v7204 = vpop.permute.xlu0 %7203
    %7206 = vst.msk [vmem:[#allocation7 + $0x2] sm:$0x3] %vm7162, %v7204
    %v7207 = vld [vmem:[#allocation6 + $0xc] sm:$0x3]
    %v7210 = vunpack.c.l.s4 1983009808
    %v7211 = vunpack.c.0.s8 %v7210
    %v7212 = vlaneseq
    %v7213 = vshrl.u32 %v7212, 7
    %v7214 = vsub.s32 %v7211, %v7213
    %v7215 = vrot.slane %v7207, %v7214
    %7216 = vrot.lane.b32.xlu0 %v7215, 64
    %v7217 = vpop.permute.xlu0 %7216
    %7219 = vst.msk [vmem:[#allocation7 + $0x2] sm:$0x3] %vm7176, %v7217
    %v7220 = vld [vmem:[#allocation6 + $0xe] sm:$0x3]
    %v7223 = vunpack.c.l.s4 1983009808
    %v7224 = vunpack.c.0.s8 %v7223
    %v7225 = vlaneseq
    %v7226 = vshrl.u32 %v7225, 7
    %v7227 = vsub.s32 %v7224, %v7226
    %v7228 = vrot.slane %v7220, %v7227
    %7229 = vrot.lane.b32.xlu0 %v7228, 96
    %v7230 = vpop.permute.xlu0 %7229
    %7232 = vst.msk [vmem:[#allocation7 + $0x2] sm:$0x3] %vm7190, %v7230
    %v7233 = vld [vmem:[#allocation6 + $0x10] sm:$0x3]
    %7234 = vst.msk [vmem:[#allocation7 + $0x4] sm:$0x3] %vm7146, %v7233
    %v7235 = vld [vmem:[#allocation6 + $0x12] sm:$0x3]
    %v7238 = vunpack.c.l.s4 1983009808
    %v7239 = vunpack.c.0.s8 %v7238
    %v7240 = vlaneseq
    %v7241 = vshrl.u32 %v7240, 7
    %v7242 = vsub.s32 %v7239, %v7241
    %v7243 = vrot.slane %v7235, %v7242
    %7244 = vrot.lane.b32.xlu0 %v7243, 32
    %v7245 = vpop.permute.xlu0 %7244
    %7247 = vst.msk [vmem:[#allocation7 + $0x4] sm:$0x3] %vm7162, %v7245
    %v7248 = vld [vmem:[#allocation6 + $0x14] sm:$0x3]
    %v7251 = vunpack.c.l.s4 1983009808
    %v7252 = vunpack.c.0.s8 %v7251
    %v7253 = vlaneseq
    %v7254 = vshrl.u32 %v7253, 7
    %v7255 = vsub.s32 %v7252, %v7254
    %v7256 = vrot.slane %v7248, %v7255
    %7257 = vrot.lane.b32.xlu0 %v7256, 64
    %v7258 = vpop.permute.xlu0 %7257
    %7260 = vst.msk [vmem:[#allocation7 + $0x4] sm:$0x3] %vm7176, %v7258
    %v7261 = vld [vmem:[#allocation6 + $0x16] sm:$0x3]
    %v7264 = vunpack.c.l.s4 1983009808
    %v7265 = vunpack.c.0.s8 %v7264
    %v7266 = vlaneseq
    %v7267 = vshrl.u32 %v7266, 7
    %v7268 = vsub.s32 %v7265, %v7267
    %v7269 = vrot.slane %v7261, %v7268
    %7270 = vrot.lane.b32.xlu0 %v7269, 96
    %v7271 = vpop.permute.xlu0 %7270
    %7273 = vst.msk [vmem:[#allocation7 + $0x4] sm:$0x3] %vm7190, %v7271
    %v7274 = vld [vmem:[#allocation6 + $0x18] sm:$0x3]
    %7275 = vst.msk [vmem:[#allocation7 + $0x6] sm:$0x3] %vm7146, %v7274
    %v7276 = vld [vmem:[#allocation6 + $0x1a] sm:$0x3]
    %v7279 = vunpack.c.l.s4 1983009808
    %v7280 = vunpack.c.0.s8 %v7279
    %v7281 = vlaneseq
    %v7282 = vshrl.u32 %v7281, 7
    %v7283 = vsub.s32 %v7280, %v7282
    %v7284 = vrot.slane %v7276, %v7283
    %7285 = vrot.lane.b32.xlu0 %v7284, 32
    %v7286 = vpop.permute.xlu0 %7285
    %7288 = vst.msk [vmem:[#allocation7 + $0x6] sm:$0x3] %vm7162, %v7286
    %v7289 = vld [vmem:[#allocation6 + $0x1c] sm:$0x3]
    %v7292 = vunpack.c.l.s4 1983009808
    %v7293 = vunpack.c.0.s8 %v7292
    %v7294 = vlaneseq
    %v7295 = vshrl.u32 %v7294, 7
    %v7296 = vsub.s32 %v7293, %v7295
    %v7297 = vrot.slane %v7289, %v7296
    %7298 = vrot.lane.b32.xlu0 %v7297, 64
    %v7299 = vpop.permute.xlu0 %7298
    %7301 = vst.msk [vmem:[#allocation7 + $0x6] sm:$0x3] %vm7176, %v7299
    %v7302 = vld [vmem:[#allocation6 + $0x1e] sm:$0x3]
    %v7305 = vunpack.c.l.s4 1983009808
    %v7306 = vunpack.c.0.s8 %v7305
    %v7307 = vlaneseq
    %v7308 = vshrl.u32 %v7307, 7
    %v7309 = vsub.s32 %v7306, %v7308
    %v7310 = vrot.slane %v7302, %v7309
    %7311 = vrot.lane.b32.xlu0 %v7310, 96
    %v7312 = vpop.permute.xlu0 %7311
    %7314 = vst.msk [vmem:[#allocation7 + $0x6] sm:$0x3] %vm7190, %v7312
    %v7315 = vld [vmem:[#allocation6 + $0x20] sm:$0x3]
    %7316 = vst.msk [vmem:[#allocation7 + $0x8] sm:$0x3] %vm7146, %v7315
    %v7317 = vld [vmem:[#allocation6 + $0x22] sm:$0x3]
    %v7320 = vunpack.c.l.s4 1983009808
    %v7321 = vunpack.c.0.s8 %v7320
    %v7322 = vlaneseq
    %v7323 = vshrl.u32 %v7322, 7
    %v7324 = vsub.s32 %v7321, %v7323
    %v7325 = vrot.slane %v7317, %v7324
    %7326 = vrot.lane.b32.xlu0 %v7325, 32
    %v7327 = vpop.permute.xlu0 %7326
    %7329 = vst.msk [vmem:[#allocation7 + $0x8] sm:$0x3] %vm7162, %v7327
    %v7330 = vld [vmem:[#allocation6 + $0x24] sm:$0x3]
    %v7333 = vunpack.c.l.s4 1983009808
    %v7334 = vunpack.c.0.s8 %v7333
    %v7335 = vlaneseq
    %v7336 = vshrl.u32 %v7335, 7
    %v7337 = vsub.s32 %v7334, %v7336
    %v7338 = vrot.slane %v7330, %v7337
    %7339 = vrot.lane.b32.xlu0 %v7338, 64
    %v7340 = vpop.permute.xlu0 %7339
    %7342 = vst.msk [vmem:[#allocation7 + $0x8] sm:$0x3] %vm7176, %v7340
    %v7343 = vld [vmem:[#allocation6 + $0x26] sm:$0x3]
    %v7346 = vunpack.c.l.s4 1983009808
    %v7347 = vunpack.c.0.s8 %v7346
    %v7348 = vlaneseq
    %v7349 = vshrl.u32 %v7348, 7
    %v7350 = vsub.s32 %v7347, %v7349
    %v7351 = vrot.slane %v7343, %v7350
    %7352 = vrot.lane.b32.xlu0 %v7351, 96
    %v7353 = vpop.permute.xlu0 %7352
    %7355 = vst.msk [vmem:[#allocation7 + $0x8] sm:$0x3] %vm7190, %v7353
    %v7356 = vld [vmem:[#allocation6 + $0x28] sm:$0x3]
    %7357 = vst.msk [vmem:[#allocation7 + $0xa] sm:$0x3] %vm7146, %v7356
    %v7358 = vld [vmem:[#allocation6 + $0x2a] sm:$0x3]
    %v7361 = vunpack.c.l.s4 1983009808
    %v7362 = vunpack.c.0.s8 %v7361
    %v7363 = vlaneseq
    %v7364 = vshrl.u32 %v7363, 7
    %v7365 = vsub.s32 %v7362, %v7364
    %v7366 = vrot.slane %v7358, %v7365
    %7367 = vrot.lane.b32.xlu0 %v7366, 32
    %v7368 = vpop.permute.xlu0 %7367
    %7370 = vst.msk [vmem:[#allocation7 + $0xa] sm:$0x3] %vm7162, %v7368
    %v7371 = vld [vmem:[#allocation6 + $0x2c] sm:$0x3]
    %v7374 = vunpack.c.l.s4 1983009808
    %v7375 = vunpack.c.0.s8 %v7374
    %v7376 = vlaneseq
    %v7377 = vshrl.u32 %v7376, 7
    %v7378 = vsub.s32 %v7375, %v7377
    %v7379 = vrot.slane %v7371, %v7378
    %7380 = vrot.lane.b32.xlu0 %v7379, 64
    %v7381 = vpop.permute.xlu0 %7380
    %7383 = vst.msk [vmem:[#allocation7 + $0xa] sm:$0x3] %vm7176, %v7381
    %v7384 = vld [vmem:[#allocation6 + $0x2e] sm:$0x3]
    %v7387 = vunpack.c.l.s4 1983009808
    %v7388 = vunpack.c.0.s8 %v7387
    %v7389 = vlaneseq
    %v7390 = vshrl.u32 %v7389, 7
    %v7391 = vsub.s32 %v7388, %v7390
    %v7392 = vrot.slane %v7384, %v7391
    %7393 = vrot.lane.b32.xlu0 %v7392, 96
    %v7394 = vpop.permute.xlu0 %7393
    %7396 = vst.msk [vmem:[#allocation7 + $0xa] sm:$0x3] %vm7190, %v7394
    %v7397 = vld [vmem:[#allocation6 + $0x30] sm:$0x3]
    %7398 = vst.msk [vmem:[#allocation7 + $0xc] sm:$0x3] %vm7146, %v7397
    %v7399 = vld [vmem:[#allocation7] sm:$0xff]
    %v7400 = vld [vmem:[#allocation7 + $0x8] sm:$0x3f]
    %v7401 = vld [vmem:[%s8] sm:$0xff]
    %v7402 = vld [vmem:[%s8 + $0x8] sm:$0xff]
    %v7403 = vld [vmem:[%s8 + $0x10] sm:$0xff]
    %v7404 = vld [vmem:[%s8 + $0x18] sm:$0xff]
    %v7405 = vld [vmem:[%s8 + $0x20] sm:$0xff]
    %v7406 = vld [vmem:[%s8 + $0x28] sm:$0xff]
    %v7407 = vld [vmem:[%s8 + $0x30] sm:$0xff]
    %v7408 = vld [vmem:[%s8 + $0x38] sm:$0xff]
    %v7409 = vld [vmem:[%s8 + $0x40] sm:$0xff]
    %v7410 = vld [vmem:[%s8 + $0x48] sm:$0xff]
    %v7411 = vld [vmem:[%s8 + $0x50] sm:$0xff]
    %v7412 = vld [vmem:[%s8 + $0x58] sm:$0xff]
    %v7413 = vld [vmem:[%s8 + $0x60] sm:$0xff]
    %v7414 = vld [vmem:[%s8 + $0x68] sm:$0xff]
    %v7415 = vld [vmem:[%s8 + $0x70] sm:$0xff]
    %v7416 = vld [vmem:[%s8 + $0x78] sm:$0xff]
    %v7417 = vld [vmem:[%s8 + $0x80] sm:$0xff]
    %v7418 = vld [vmem:[%s8 + $0x88] sm:$0xff]
    %v7419 = vld [vmem:[%s8 + $0x90] sm:$0xff]
    %v7420 = vld [vmem:[%s8 + $0x98] sm:$0xff]
    %v7421 = vld [vmem:[%s8 + $0xa0] sm:$0xff]
    %v7422 = vld [vmem:[%s8 + $0xa8] sm:$0xff]
    %v7423 = vld [vmem:[%s8 + $0xb0] sm:$0xff]
    %v7424 = vld [vmem:[%s8 + $0xb8] sm:$0xff]
    %v7425 = vld [vmem:[%s8 + $0xc0] sm:$0xff]
    %v7426 = vld [vmem:[%s8 + $0xc8] sm:$0xff]
    %v7427 = vld [vmem:[%s8 + $0xd0] sm:$0xff]
    %v7428 = vld [vmem:[%s8 + $0xd8] sm:$0xff]
    %v7429 = vld [vmem:[%s8 + $0xe0] sm:$0xff]
    %v7430 = vld [vmem:[%s8 + $0xe8] sm:$0xff]
    %v7431 = vld [vmem:[%s8 + $0xf0] sm:$0xff]
    %v7432 = vld [vmem:[%s8 + $0xf8] sm:$0xff]
    %v7433 = vld [vmem:[%s8 + $0x100] sm:$0xff]
    %v7434 = vld [vmem:[%s8 + $0x108] sm:$0xff]
    %v7435 = vld [vmem:[%s8 + $0x110] sm:$0xff]
    %v7436 = vld [vmem:[%s8 + $0x118] sm:$0xff]
    %v7437 = vld [vmem:[%s8 + $0x120] sm:$0xff]
    %v7438 = vld [vmem:[%s8 + $0x128] sm:$0xff]
    %v7439 = vld [vmem:[%s8 + $0x130] sm:$0xff]
    %v7440 = vld [vmem:[%s8 + $0x138] sm:$0xff]
    %v7441 = vld [vmem:[%s8 + $0x140] sm:$0xff]
    %v7442 = vld [vmem:[%s8 + $0x148] sm:$0xff]
    %v7443 = vld [vmem:[%s8 + $0x150] sm:$0xff]
    %v7444 = vld [vmem:[%s8 + $0x158] sm:$0xff]
    %v7445 = vld [vmem:[%s8 + $0x160] sm:$0xff]
    %v7446 = vld [vmem:[%s8 + $0x168] sm:$0xff]
    %v7447 = vld [vmem:[%s8 + $0x170] sm:$0xff]
    %v7448 = vld [vmem:[%s8 + $0x178] sm:$0xff]
    %v7449 = vld [vmem:[%s8 + $0x180] sm:$0xff]
    %v7450 = vld [vmem:[%s8 + $0x188] sm:$0xff]
    %v7451 = vld [vmem:[%s8 + $0x190] sm:$0xff]
    %v7452 = vld [vmem:[%s8 + $0x198] sm:$0xff]
    %v7453 = vld [vmem:[%s8 + $0x1a0] sm:$0xff]
    %v7454 = vld [vmem:[%s8 + $0x1a8] sm:$0xff]
    %v7455 = vld [vmem:[%s8 + $0x1b0] sm:$0xff]
    %v7456 = vld [vmem:[%s8 + $0x1b8] sm:$0xff]
    %v7457 = vld [vmem:[%s8 + $0x1c0] sm:$0xff]
    %v7458 = vld [vmem:[%s8 + $0x1c8] sm:$0xff]
    %v7459 = vld [vmem:[%s8 + $0x1d0] sm:$0xff]
    %v7460 = vld [vmem:[%s8 + $0x1d8] sm:$0xff]
    %v7461 = vld [vmem:[%s8 + $0x1e0] sm:$0xff]
    %v7462 = vld [vmem:[%s8 + $0x1e8] sm:$0xff]
    %v7463 = vld [vmem:[%s8 + $0x1f0] sm:$0xff]
    %v7464 = vld [vmem:[%s8 + $0x1f8] sm:$0xff]
    %v7465 = vld [vmem:[%s8 + $0x200] sm:$0xff]
    %v7466 = vld [vmem:[%s8 + $0x208] sm:$0xff]
    %v7467 = vld [vmem:[%s8 + $0x210] sm:$0xff]
    %v7468 = vld [vmem:[%s8 + $0x218] sm:$0xff]
    %v7469 = vld [vmem:[%s8 + $0x220] sm:$0xff]
    %v7470 = vld [vmem:[%s8 + $0x228] sm:$0xff]
    %v7471 = vld [vmem:[%s8 + $0x230] sm:$0xff]
    %v7472 = vld [vmem:[%s8 + $0x238] sm:$0xff]
    %v7473 = vld [vmem:[%s8 + $0x240] sm:$0xff]
    %v7474 = vld [vmem:[%s8 + $0x248] sm:$0xff]
    %v7475 = vld [vmem:[%s8 + $0x250] sm:$0xff]
    %v7476 = vld [vmem:[%s8 + $0x258] sm:$0xff]
    %v7477 = vld [vmem:[%s8 + $0x260] sm:$0xff]
    %v7478 = vld [vmem:[%s8 + $0x268] sm:$0xff]
    %v7479 = vld [vmem:[%s8 + $0x270] sm:$0xff]
    %v7480 = vld [vmem:[%s8 + $0x278] sm:$0xff]
    %v7481 = vld [vmem:[%s8 + $0x280] sm:$0xff]
    %v7482 = vld [vmem:[%s8 + $0x288] sm:$0xff]
    %v7483 = vld [vmem:[%s8 + $0x290] sm:$0xff]
    %v7484 = vld [vmem:[%s8 + $0x298] sm:$0xff]
    %v7485 = vld [vmem:[%s8 + $0x2a0] sm:$0xff]
    %v7486 = vld [vmem:[%s8 + $0x2a8] sm:$0xff]
    %v7487 = vld [vmem:[%s8 + $0x2b0] sm:$0xff]
    %v7488 = vld [vmem:[%s8 + $0x2b8] sm:$0xff]
    %v7489 = vld [vmem:[%s8 + $0x2c0] sm:$0xff]
    %v7490 = vld [vmem:[%s8 + $0x2c8] sm:$0xff]
    %v7491 = vld [vmem:[%s8 + $0x2d0] sm:$0xff]
    %v7492 = vld [vmem:[%s8 + $0x2d8] sm:$0xff]
    %v7493 = vld [vmem:[%s8 + $0x2e0] sm:$0xff]
    %v7494 = vld [vmem:[%s8 + $0x2e8] sm:$0xff]
    %v7495 = vld [vmem:[%s8 + $0x2f0] sm:$0xff]
    %v7496 = vld [vmem:[%s8 + $0x2f8] sm:$0xff]
    %v7497 = vld [vmem:[%s8 + $0x300] sm:$0xff]
    %v7498 = vld [vmem:[%s8 + $0x308] sm:$0xff]
    %v7499 = vld [vmem:[%s8 + $0x310] sm:$0xff]
    %v7500 = vld [vmem:[%s8 + $0x318] sm:$0xff]
    %v7501 = vld [vmem:[%s9] sm:$0x1]
    %v7503 = vlaneseq
    %v7504 = vshrl.u32 %v7503, 7
    %v7505 = vsub.s32 0, %v7504
    %v7506 = vrot.slane %v7501, %v7505
    %v7510 = vcombine.high %v7399, %v7399
    %v7512 = vunpack.c.l.s4 1983009808
    %v7513 = vunpack.c.0.s8 %v7512
    %v7514 = vlaneseq
    %v7515 = vshrl.u32 %v7514, 7
    %v7516 = vsub.s32 %v7513, %v7515
    %v7517 = vrot.slane %v7399, %v7516
    %v7519 = vunpack.c.l.s4 1983009808
    %v7520 = vunpack.c.0.s8 %v7519
    %v7521 = vlaneseq
    %v7522 = vshrl.u32 %v7521, 7
    %v7523 = vsub.s32 %v7520, %v7522
    %v7524 = vrot.slane %v7510, %v7523
    %v7525 = vcombine.high %v7517, %v7517
    %v7526 = vcombine.high %v7524, %v7524
    %v7527 = vcombine.high %v7400, %v7400
    %v7529 = vunpack.c.l.s4 1983009808
    %v7530 = vunpack.c.0.s8 %v7529
    %v7531 = vlaneseq
    %v7532 = vshrl.u32 %v7531, 7
    %v7533 = vsub.s32 %v7530, %v7532
    %v7534 = vrot.slane %v7400, %v7533
    %v7536 = vunpack.c.l.s4 1983009808
    %v7537 = vunpack.c.0.s8 %v7536
    %v7538 = vlaneseq
    %v7539 = vshrl.u32 %v7538, 7
    %v7540 = vsub.s32 %v7537, %v7539
    %v7541 = vrot.slane %v7527, %v7540
    %v7542 = vcombine.high %v7534, %v7534
    %v7549 = vsel %vm6620, %v7541, 0
    %7551 = vmatprep.subr.mxu0 0.0
    %7552 = vmatpush1.msra.mxu0 %v7401
    %7553 = vmatprep.subr.mxu0 0.0
    %7554 = vmatpush1.msra.mxu0 %v7402
    %7555 = vmatprep.subr.mxu0 0.0
    %7556 = vmatpush1.msra.mxu0 %v7403
    %7557 = vmatprep.subr.mxu0 0.0
    %7558 = vmatpush1.msra.mxu0 %v7404
    %7559 = vmatprep.subr.mxu0 0.0
    %7560 = vmatpush1.msra.mxu0 %v7405
    %7561 = vmatprep.subr.mxu0 0.0
    %7562 = vmatpush1.msra.mxu0 %v7406
    %7563 = vmatprep.subr.mxu0 0.0
    %7564 = vmatpush1.msra.mxu0 %v7407
    %7565 = vmatprep.subr.mxu0 0.0
    %7566 = vmatpush1.msra.mxu0 %v7408
    %7567 = vmatprep.subr.mxu0 0.0
    %7568 = vmatpush1.msra.mxu0 %v7409
    %7569 = vmatprep.subr.mxu0 0.0
    %7570 = vmatpush1.msra.mxu0 %v7410
    %7571 = vmatprep.subr.mxu0 0.0
    %7572 = vmatpush1.msra.mxu0 %v7411
    %7573 = vmatprep.subr.mxu0 0.0
    %7574 = vmatpush1.msra.mxu0 %v7412
    %7575 = vmatprep.subr.mxu0 0.0
    %7576 = vmatpush1.msra.mxu0 %v7413
    %7577 = vmatprep.subr.mxu0 0.0
    %7578 = vmatpush1.msra.mxu0 %v7414
    %7579 = vmatprep.subr.mxu0 0.0
    %7580 = vmatpush1.msra.mxu0 %v7415
    %7581 = vmatprep.subr.mxu0 0.0
    %7582 = vmatpush1.msra.mxu0 %v7416
    %7583 = vmatprep.subr.mxu0 0.0
    %7584 = vmatpush1.msra.mxu0 %v7417
    %7585 = vmatprep.subr.mxu0 0.0
    %7586 = vmatpush1.msra.mxu0 %v7418
    %7587 = vmatprep.subr.mxu0 0.0
    %7588 = vmatpush1.msra.mxu0 %v7419
    %7589 = vmatprep.subr.mxu0 0.0
    %7590 = vmatpush1.msra.mxu0 %v7420
    %7591 = vmatprep.subr.mxu0 0.0
    %7592 = vmatpush1.msra.mxu0 %v7421
    %7593 = vmatprep.subr.mxu0 0.0
    %7594 = vmatpush1.msra.mxu0 %v7422
    %7595 = vmatprep.subr.mxu0 0.0
    %7596 = vmatpush1.msra.mxu0 %v7423
    %7597 = vmatprep.subr.mxu0 0.0
    %7598 = vmatpush1.msra.mxu0 %v7424
    %7599 = vmatprep.subr.mxu0 0.0
    %7600 = vmatpush1.msra.mxu0 %v7425
    %7601 = vmatprep.subr.mxu0 0.0
    %7602 = vmatpush1.msra.mxu0 %v7426
    %7603 = vmatprep.subr.mxu0 0.0
    %7604 = vmatpush1.msra.mxu0 %v7427
    %7605 = vmatprep.subr.mxu0 0.0
    %7606 = vmatpush1.msra.mxu0 %v7428
    %7607 = vmatprep.subr.mxu0 0.0
    %7608 = vmatpush1.msra.mxu0 %v7429
    %7609 = vmatprep.subr.mxu0 0.0
    %7610 = vmatpush1.msra.mxu0 %v7430
    %7611 = vmatprep.subr.mxu0 0.0
    %7612 = vmatpush1.msra.mxu0 %v7431
    %7613 = vmatprep.subr.mxu0 0.0
    %7614 = vmatpush1.msra.mxu0 %v7432
    %7615 = vmatprep.mubr.f32.mxu0 %v7525
    %7616 = vmatmul.mubr.f32.gmra.mrb[0].mxu0 %v7517
    %v7617 = vpop.f32.mrb[0].mxu0
    %v7618 = vadd.f32 %v7506, %v7617
    %v7619 = vpop.f32.mrb[0].mxu0
    %7620 = vdwg.mxu0
    %7621 = vmatprep.subr.mxu0 0.0
    %7622 = vmatpush1.msra.mxu0 %v7433
    %7623 = vmatprep.subr.mxu0 0.0
    %7624 = vmatpush1.msra.mxu0 %v7434
    %7625 = vmatprep.subr.mxu0 0.0
    %7626 = vmatpush1.msra.mxu0 %v7435
    %7627 = vmatprep.subr.mxu0 0.0
    %7628 = vmatpush1.msra.mxu0 %v7436
    %7629 = vmatprep.subr.mxu0 0.0
    %7630 = vmatpush1.msra.mxu0 %v7437
    %7631 = vmatprep.subr.mxu0 0.0
    %7632 = vmatpush1.msra.mxu0 %v7438
    %7633 = vmatprep.subr.mxu0 0.0
    %7634 = vmatpush1.msra.mxu0 %v7439
    %7635 = vmatprep.subr.mxu0 0.0
    %7636 = vmatpush1.msra.mxu0 %v7440
    %7637 = vmatprep.subr.mxu0 0.0
    %7638 = vmatpush1.msra.mxu0 %v7441
    %7639 = vmatprep.subr.mxu0 0.0
    %7640 = vmatpush1.msra.mxu0 %v7442
    %7641 = vmatprep.subr.mxu0 0.0
    %7642 = vmatpush1.msra.mxu0 %v7443
    %7643 = vmatprep.subr.mxu0 0.0
    %7644 = vmatpush1.msra.mxu0 %v7444
    %7645 = vmatprep.subr.mxu0 0.0
    %7646 = vmatpush1.msra.mxu0 %v7445
    %7647 = vmatprep.subr.mxu0 0.0
    %7648 = vmatpush1.msra.mxu0 %v7446
    %7649 = vmatprep.subr.mxu0 0.0
    %7650 = vmatpush1.msra.mxu0 %v7447
    %7651 = vmatprep.subr.mxu0 0.0
    %7652 = vmatpush1.msra.mxu0 %v7448
    %7653 = vmatprep.subr.mxu0 0.0
    %7654 = vmatpush1.msra.mxu0 %v7449
    %7655 = vmatprep.subr.mxu0 0.0
    %7656 = vmatpush1.msra.mxu0 %v7450
    %7657 = vmatprep.subr.mxu0 0.0
    %7658 = vmatpush1.msra.mxu0 %v7451
    %7659 = vmatprep.subr.mxu0 0.0
    %7660 = vmatpush1.msra.mxu0 %v7452
    %7661 = vmatprep.subr.mxu0 0.0
    %7662 = vmatpush1.msra.mxu0 %v7453
    %7663 = vmatprep.subr.mxu0 0.0
    %7664 = vmatpush1.msra.mxu0 %v7454
    %7665 = vmatprep.subr.mxu0 0.0
    %7666 = vmatpush1.msra.mxu0 %v7455
    %7667 = vmatprep.subr.mxu0 0.0
    %7668 = vmatpush1.msra.mxu0 %v7456
    %7669 = vmatprep.subr.mxu0 0.0
    %7670 = vmatpush1.msra.mxu0 %v7457
    %7671 = vmatprep.subr.mxu0 0.0
    %7672 = vmatpush1.msra.mxu0 %v7458
    %7673 = vmatprep.subr.mxu0 0.0
    %7674 = vmatpush1.msra.mxu0 %v7459
    %7675 = vmatprep.subr.mxu0 0.0
    %7676 = vmatpush1.msra.mxu0 %v7460
    %7677 = vmatprep.subr.mxu0 0.0
    %7678 = vmatpush1.msra.mxu0 %v7461
    %7679 = vmatprep.subr.mxu0 0.0
    %7680 = vmatpush1.msra.mxu0 %v7462
    %7681 = vmatprep.subr.mxu0 0.0
    %7682 = vmatpush1.msra.mxu0 %v7463
    %7683 = vmatprep.subr.mxu0 0.0
    %7684 = vmatpush1.msra.mxu0 %v7464
    %7685 = vmatprep.mubr.f32.mxu0 %v7526
    %7686 = vmatmul.mubr.f32.gmra.mrb[0].mxu0 %v7524
    %v7687 = vpop.f32.mrb[0].mxu0
    %v7688 = vadd.f32 %v7618, %v7687
    %v7689 = vpop.f32.mrb[0].mxu0
    %7690 = vdwg.mxu0
    %7691 = vmatprep.subr.mxu0 0.0
    %7692 = vmatpush1.msra.mxu0 %v7465
    %7693 = vmatprep.subr.mxu0 0.0
    %7694 = vmatpush1.msra.mxu0 %v7466
    %7695 = vmatprep.subr.mxu0 0.0
    %7696 = vmatpush1.msra.mxu0 %v7467
    %7697 = vmatprep.subr.mxu0 0.0
    %7698 = vmatpush1.msra.mxu0 %v7468
    %7699 = vmatprep.subr.mxu0 0.0
    %7700 = vmatpush1.msra.mxu0 %v7469
    %7701 = vmatprep.subr.mxu0 0.0
    %7702 = vmatpush1.msra.mxu0 %v7470
    %7703 = vmatprep.subr.mxu0 0.0
    %7704 = vmatpush1.msra.mxu0 %v7471
    %7705 = vmatprep.subr.mxu0 0.0
    %7706 = vmatpush1.msra.mxu0 %v7472
    %7707 = vmatprep.subr.mxu0 0.0
    %7708 = vmatpush1.msra.mxu0 %v7473
    %7709 = vmatprep.subr.mxu0 0.0
    %7710 = vmatpush1.msra.mxu0 %v7474
    %7711 = vmatprep.subr.mxu0 0.0
    %7712 = vmatpush1.msra.mxu0 %v7475
    %7713 = vmatprep.subr.mxu0 0.0
    %7714 = vmatpush1.msra.mxu0 %v7476
    %7715 = vmatprep.subr.mxu0 0.0
    %7716 = vmatpush1.msra.mxu0 %v7477
    %7717 = vmatprep.subr.mxu0 0.0
    %7718 = vmatpush1.msra.mxu0 %v7478
    %7719 = vmatprep.subr.mxu0 0.0
    %7720 = vmatpush1.msra.mxu0 %v7479
    %7721 = vmatprep.subr.mxu0 0.0
    %7722 = vmatpush1.msra.mxu0 %v7480
    %7723 = vmatprep.subr.mxu0 0.0
    %7724 = vmatpush1.msra.mxu0 %v7481
    %7725 = vmatprep.subr.mxu0 0.0
    %7726 = vmatpush1.msra.mxu0 %v7482
    %7727 = vmatprep.subr.mxu0 0.0
    %7728 = vmatpush1.msra.mxu0 %v7483
    %7729 = vmatprep.subr.mxu0 0.0
    %7730 = vmatpush1.msra.mxu0 %v7484
    %7731 = vmatprep.subr.mxu0 0.0
    %7732 = vmatpush1.msra.mxu0 %v7485
    %7733 = vmatprep.subr.mxu0 0.0
    %7734 = vmatpush1.msra.mxu0 %v7486
    %7735 = vmatprep.subr.mxu0 0.0
    %7736 = vmatpush1.msra.mxu0 %v7487
    %7737 = vmatprep.subr.mxu0 0.0
    %7738 = vmatpush1.msra.mxu0 %v7488
    %7739 = vmatprep.subr.mxu0 0.0
    %7740 = vmatpush1.msra.mxu0 %v7489
    %7741 = vmatprep.subr.mxu0 0.0
    %7742 = vmatpush1.msra.mxu0 %v7490
    %7743 = vmatprep.subr.mxu0 0.0
    %7744 = vmatpush1.msra.mxu0 %v7491
    %7745 = vmatprep.subr.mxu0 0.0
    %7746 = vmatpush1.msra.mxu0 %v7492
    %7747 = vmatprep.subr.mxu0 0.0
    %7748 = vmatpush1.msra.mxu0 %v7493
    %7749 = vmatprep.subr.mxu0 0.0
    %7750 = vmatpush1.msra.mxu0 %v7494
    %7751 = vmatprep.subr.mxu0 0.0
    %7752 = vmatpush1.msra.mxu0 %v7495
    %7753 = vmatprep.subr.mxu0 0.0
    %7754 = vmatpush1.msra.mxu0 %v7496
    %7755 = vmatprep.mubr.f32.mxu0 %v7542
    %7756 = vmatmul.mubr.f32.gmra.mrb[0].mxu0 %v7534
    %v7757 = vpop.f32.mrb[0].mxu0
    %v7758 = vadd.f32 %v7688, %v7757
    %v7759 = vpop.f32.mrb[0].mxu0
    %7760 = vdwg.mxu0
    %7761 = vmatprep.subr.mxu0 0.0
    %7762 = vmatpush1.msra.mxu0 %v7497
    %7763 = vmatprep.subr.mxu0 0.0
    %7764 = vmatpush1.msra.mxu0 %v7498
    %7765 = vmatprep.subr.mxu0 0.0
    %7766 = vmatpush1.msra.mxu0 %v7499
    %7767 = vmatprep.subr.mxu0 0.0
    %7768 = vmatpush1.msra.mxu0 %v7500
    %7769 = vmatprep.subr.mxu0 0.0
    %7770 = vmatpush1.msra.mxu0 0.0
    %7771 = vmatprep.subr.mxu0 0.0
    %7772 = vmatpush1.msra.mxu0 0.0
    %7773 = vmatprep.subr.mxu0 0.0
    %7774 = vmatpush1.msra.mxu0 0.0
    %7775 = vmatprep.subr.mxu0 0.0
    %7776 = vmatpush1.msra.mxu0 0.0
    %7777 = vmatprep.subr.mxu0 0.0
    %7778 = vmatpush1.msra.mxu0 0.0
    %7779 = vmatprep.subr.mxu0 0.0
    %7780 = vmatpush1.msra.mxu0 0.0
    %7781 = vmatprep.subr.mxu0 0.0
    %7782 = vmatpush1.msra.mxu0 0.0
    %7783 = vmatprep.subr.mxu0 0.0
    %7784 = vmatpush1.msra.mxu0 0.0
    %7785 = vmatprep.subr.mxu0 0.0
    %7786 = vmatpush1.msra.mxu0 0.0
    %7787 = vmatprep.subr.mxu0 0.0
    %7788 = vmatpush1.msra.mxu0 0.0
    %7789 = vmatprep.subr.mxu0 0.0
    %7790 = vmatpush1.msra.mxu0 0.0
    %7791 = vmatprep.subr.mxu0 0.0
    %7792 = vmatpush1.msra.mxu0 0.0
    %7793 = vmatprep.subr.mxu0 0.0
    %7794 = vmatpush1.msra.mxu0 0.0
    %7795 = vmatprep.subr.mxu0 0.0
    %7796 = vmatpush1.msra.mxu0 0.0
    %7797 = vmatprep.subr.mxu0 0.0
    %7798 = vmatpush1.msra.mxu0 0.0
    %7799 = vmatprep.subr.mxu0 0.0
    %7800 = vmatpush1.msra.mxu0 0.0
    %7801 = vmatprep.subr.mxu0 0.0
    %7802 = vmatpush1.msra.mxu0 0.0
    %7803 = vmatprep.subr.mxu0 0.0
    %7804 = vmatpush1.msra.mxu0 0.0
    %7805 = vmatprep.subr.mxu0 0.0
    %7806 = vmatpush1.msra.mxu0 0.0
    %7807 = vmatprep.subr.mxu0 0.0
    %7808 = vmatpush1.msra.mxu0 0.0
    %7809 = vmatprep.subr.mxu0 0.0
    %7810 = vmatpush1.msra.mxu0 0.0
    %7811 = vmatprep.subr.mxu0 0.0
    %7812 = vmatpush1.msra.mxu0 0.0
    %7813 = vmatprep.subr.mxu0 0.0
    %7814 = vmatpush1.msra.mxu0 0.0
    %7815 = vmatprep.subr.mxu0 0.0
    %7816 = vmatpush1.msra.mxu0 0.0
    %7817 = vmatprep.subr.mxu0 0.0
    %7818 = vmatpush1.msra.mxu0 0.0
    %7819 = vmatprep.subr.mxu0 0.0
    %7820 = vmatpush1.msra.mxu0 0.0
    %7821 = vmatprep.subr.mxu0 0.0
    %7822 = vmatpush1.msra.mxu0 0.0
    %7823 = vmatprep.subr.mxu0 0.0
    %7824 = vmatpush1.msra.mxu0 0.0
    %7825 = vmatprep.mubr.f32.mxu0 0.0
    %7826 = vmatmul.mubr.f32.gmra.mrb[0].mxu0 %v7549
    %v7827 = vpop.f32.mrb[0].mxu0
    %v7828 = vadd.f32 %v7758, %v7827
    %v7829 = vpop.f32.mrb[0].mxu0
    %7830 = vdwg.mxu0
    %v7831 = vmax.f32 %v7828, 0.0
    %v7832 = vld [vmem:[%s10] sm:$0xff]
    %v7833 = vld [vmem:[%s10 + $0x8] sm:$0xff]
    %v7834 = vld [vmem:[%s10 + $0x10] sm:$0xff]
    %v7835 = vld [vmem:[%s10 + $0x18] sm:$0xff]
    %v7836 = vld [vmem:[%s10 + $0x20] sm:$0xff]
    %v7837 = vld [vmem:[%s10 + $0x28] sm:$0xff]
    %v7838 = vld [vmem:[%s10 + $0x30] sm:$0xff]
    %v7839 = vld [vmem:[%s10 + $0x38] sm:$0xff]
    %v7840 = vld [vmem:[%s10 + $0x40] sm:$0xff]
    %v7841 = vld [vmem:[%s10 + $0x48] sm:$0xff]
    %v7842 = vld [vmem:[%s10 + $0x50] sm:$0xff]
    %v7843 = vld [vmem:[%s10 + $0x58] sm:$0xff]
    %v7844 = vld [vmem:[%s10 + $0x60] sm:$0xff]
    %v7845 = vld [vmem:[%s10 + $0x68] sm:$0xff]
    %v7846 = vld [vmem:[%s10 + $0x70] sm:$0xff]
    %v7847 = vld [vmem:[%s10 + $0x78] sm:$0xff]
    %v7848 = vld [vmem:[%s11] sm:$0x1]
    %v7850 = vlaneseq
    %v7851 = vshrl.u32 %v7850, 7
    %v7852 = vsub.s32 0, %v7851
    %v7853 = vrot.slane %v7848, %v7852
    %7855 = vmatprep.subr.mxu0 0.0
    %7856 = vmatpush1.msra.mxu0 %v7832
    %7857 = vmatprep.subr.mxu0 0.0
    %7858 = vmatpush1.msra.mxu0 %v7833
    %7859 = vmatprep.subr.mxu0 0.0
    %7860 = vmatpush1.msra.mxu0 %v7834
    %7861 = vmatprep.subr.mxu0 0.0
    %7862 = vmatpush1.msra.mxu0 %v7835
    %7863 = vmatprep.subr.mxu0 0.0
    %7864 = vmatpush1.msra.mxu0 %v7836
    %7865 = vmatprep.subr.mxu0 0.0
    %7866 = vmatpush1.msra.mxu0 %v7837
    %7867 = vmatprep.subr.mxu0 0.0
    %7868 = vmatpush1.msra.mxu0 %v7838
    %7869 = vmatprep.subr.mxu0 0.0
    %7870 = vmatpush1.msra.mxu0 %v7839
    %7871 = vmatprep.subr.mxu0 0.0
    %7872 = vmatpush1.msra.mxu0 %v7840
    %7873 = vmatprep.subr.mxu0 0.0
    %7874 = vmatpush1.msra.mxu0 %v7841
    %7875 = vmatprep.subr.mxu0 0.0
    %7876 = vmatpush1.msra.mxu0 %v7842
    %7877 = vmatprep.subr.mxu0 0.0
    %7878 = vmatpush1.msra.mxu0 %v7843
    %7879 = vmatprep.subr.mxu0 0.0
    %7880 = vmatpush1.msra.mxu0 %v7844
    %7881 = vmatprep.subr.mxu0 0.0
    %7882 = vmatpush1.msra.mxu0 %v7845
    %7883 = vmatprep.subr.mxu0 0.0
    %7884 = vmatpush1.msra.mxu0 %v7846
    %7885 = vmatprep.subr.mxu0 0.0
    %7886 = vmatpush1.msra.mxu0 %v7847
    %7887 = vmatprep.subr.mxu0 0.0
    %7888 = vmatpush1.msra.mxu0 0.0
    %7889 = vmatprep.subr.mxu0 0.0
    %7890 = vmatpush1.msra.mxu0 0.0
    %7891 = vmatprep.subr.mxu0 0.0
    %7892 = vmatpush1.msra.mxu0 0.0
    %7893 = vmatprep.subr.mxu0 0.0
    %7894 = vmatpush1.msra.mxu0 0.0
    %7895 = vmatprep.subr.mxu0 0.0
    %7896 = vmatpush1.msra.mxu0 0.0
    %7897 = vmatprep.subr.mxu0 0.0
    %7898 = vmatpush1.msra.mxu0 0.0
    %7899 = vmatprep.subr.mxu0 0.0
    %7900 = vmatpush1.msra.mxu0 0.0
    %7901 = vmatprep.subr.mxu0 0.0
    %7902 = vmatpush1.msra.mxu0 0.0
    %7903 = vmatprep.subr.mxu0 0.0
    %7904 = vmatpush1.msra.mxu0 0.0
    %7905 = vmatprep.subr.mxu0 0.0
    %7906 = vmatpush1.msra.mxu0 0.0
    %7907 = vmatprep.subr.mxu0 0.0
    %7908 = vmatpush1.msra.mxu0 0.0
    %7909 = vmatprep.subr.mxu0 0.0
    %7910 = vmatpush1.msra.mxu0 0.0
    %7911 = vmatprep.subr.mxu0 0.0
    %7912 = vmatpush1.msra.mxu0 0.0
    %7913 = vmatprep.subr.mxu0 0.0
    %7914 = vmatpush1.msra.mxu0 0.0
    %7915 = vmatprep.subr.mxu0 0.0
    %7916 = vmatpush1.msra.mxu0 0.0
    %7917 = vmatprep.subr.mxu0 0.0
    %7918 = vmatpush1.msra.mxu0 0.0
    %7919 = vmatprep.mubr.f32.mxu0 0.0
    %7920 = vmatmul.mubr.f32.gmra.mrb[0].mxu0 %v7831
    %v7921 = vpop.f32.mrb[0].mxu0
    %v7922 = vadd.f32 %v7853, %v7921
    %v7923 = vpop.f32.mrb[0].mxu0
    %7924 = vdwg.mxu0
    %v7925 = vld [vmem:[%s12] sm:$0x3]
    %v7926 = vadd.f32 %v7922, %v7925
    %vm7927 = vcmask 58368
    %v7928 = vsel %vm7927, %v7926, -inf
    %7929 = vmax.xlane.f32.xlu0 %v7928
    %v7930 = vpop.xlane.xlu0 %7929
    %v7931 = vsub.f32 %v7926, %v7930
    %v7932 = vmul.f32 %v7931, 1.442695
    %v7933 = vpow.pop %v7932
    %v7934 = vsel %vm7927, %v7933, 0.0
    %7935 = vadd.xlane.f32.xlu0 %v7934
    %v7936 = vpop.xlane.xlu0 %7935
    %v7937 = vrcp.pop %v7936
    %v7938 = vmul.f32 %v7933, %v7937
    %7939 = vst.msk [vmem:[#allocation8] sm:$0x3] %vm7927, %v7938
    // Predicated region
    $region54: #{tpu_custom_call.1} parent=1 // pred_check
      _
    $region55: #{tpu_custom_call.1} parent=1 // pred_check_branch
      %7941 = sbr.rel (0) target = $region57
    $region56: #{tpu_custom_call.1} parent=1 // pred_region
      %s7943 = ssub.s32 32, 32
      %7944 = vsyncadd [#allocation9], %s7943
      %s7946 = sshll.u32 [#allocation8], 4
      %s7947 = int_to_ptr.vmem [resolvable:$true] %s7946
      %7949 = dma.vmem_to_hbm [thread:$0]  %s7947, 32, %s13, [#allocation9]
    $region57: #{tpu_custom_call.1} parent=1 // pred_fallthru
      _
    // Predicated region
    $region58: #{tpu_custom_call.1} parent=1 // pred_check
      _
    $region59: #{tpu_custom_call.1} parent=1 // pred_check_branch
      %7951 = sbr.rel (0) target = $region61
    $region60: #{tpu_custom_call.1} parent=1 // pred_region
      %7952 = dma.done [#allocation9], 32
    $region61: #{tpu_custom_call.1} parent=1 // pred_fallthru
      _
    %7953 = vsyncpa [#allocation9], 1

</llo_original>
